<compile_context>
chip_gen: v7x
topology: tpu7x:2x2x1
jax: 0.10.0
libtpu: 0.0.40
codegen_flags: <defaults>
</compile_context>

<pallas_src>
import functools

import numpy as np
import jax
import jax.numpy as jnp
from jax.experimental import pallas as pl
from jax.experimental.pallas import tpu as pltpu

EPS = 1e-5  # nn.BatchNorm default eps


# ---------------------------------------------------------------------------
# Fused forward kernel (conv trunk + FC head + softmax).
# ---------------------------------------------------------------------------
def _convnet_kernel(x_ref,
                    w1_ref, b1_ref, w2_ref, b2_ref, w3_ref, b3_ref,
                    fc1w_ref, fc1b_ref, fc2w_ref, fc2b_ref, fc3w_ref, fc3b_ref,
                    out_ref, feat_ref, *, meta):
    layers = meta["layers"]
    batch = meta["batch"]
    h0 = meta["h0"]
    conv_w = (w1_ref, w2_ref, w3_ref)
    conv_b = (b1_ref, b2_ref, b3_ref)
    h_last = layers[-1]["hout"]
    c_last = layers[-1]["cout"]

    for img in range(batch):                      # static unroll; batch is tiny
        a = x_ref[img * h0:(img + 1) * h0, :]     # (H0, W0*Cin) image slab
        for li, lm in enumerate(layers):
            hout, pw, kh = lm["hout"], lm["pw"], lm["kh"]
            brow = conv_b[li][...]                # (1, wp*Cout), BN folded
            pooled = None
            for r in range(pw):                   # candidate pool positions
                acc = None
                for dy in range(kh):              # conv rows: one matmul each
                    part = jnp.dot(a[dy:dy + hout, :],
                                   conv_w[li][dy * pw + r],
                                   preferred_element_type=jnp.float32)
                    acc = part if acc is None else acc + part
                cand = jnp.maximum(acc + brow, 0.0)   # conv + folded BN + ReLU
                pooled = cand if pooled is None else jnp.maximum(pooled, cand)
            a = pooled                            # (Hout, wp*Cout)

        # Flatten into the (batch, n_nodes) scratch.  Feature order is (y, c);
        # fc1's weight rows were permuted at prep time to match torch.flatten.
        for y in range(h_last):
            feat_ref[img:img + 1, y * c_last:(y + 1) * c_last] = a[y:y + 1, :]

    feat = feat_ref[...]                          # (batch, n_nodes) f32

    fc1w = fc1w_ref[...]                          # bf16, MXU w/ f32 accumulate
    h1 = jnp.dot(feat.astype(fc1w.dtype), fc1w,
                 preferred_element_type=jnp.float32) + fc1b_ref[...]
    h1 = jnp.maximum(h1, 0.0)

    fc2w = fc2w_ref[...]
    h2 = jnp.dot(h1.astype(fc2w.dtype), fc2w,
                 preferred_element_type=jnp.float32) + fc2b_ref[...]
    h2 = jnp.maximum(h2, 0.0)

    logits = jnp.dot(h2, fc3w_ref[...],
                     preferred_element_type=jnp.float32) + fc3b_ref[...]
    mx = jnp.max(logits, axis=-1, keepdims=True)
    e = jnp.exp(logits - mx)
    # exact division keeps the 1e-5 sum-to-one property of softmax
    out_ref[...] = e / jnp.sum(e, axis=-1, keepdims=True)


# ---------------------------------------------------------------------------
# One-time parameter preparation (constant transforms, NOT per-call work).
# ---------------------------------------------------------------------------
def _fold_bn(w, b, bn):
    gamma, beta, mu, var = bn
    s = gamma / np.sqrt(var + EPS)
    return w * s, (b - mu) * s + beta


def prepare_params(raw, height, width):
    """Fold BN, build pool-selecting block-Toeplitz conv matrices, permute fc1
    rows to the kernel's flatten order, cast the big FC weights to bf16."""
    np_raw = jax.tree_util.tree_map(lambda a: np.asarray(a, np.float32), raw)

    prepared = {}
    layers = []
    hin, win = height, width
    for li, (wn, bn_, bnn) in enumerate(
            (("w1", "b1", "bn1"), ("w2", "b2", "bn2"), ("w3", "b3", "bn3"))):
        wf, bf = _fold_bn(np_raw[wn], np_raw[bn_], np_raw[bnn])
        kh, kw, cin, cout = wf.shape
        hout, wout = hin - (kh - 1), win - (kw - 1)
        pw = 3 if li < 2 else wout          # last pool spans the full width
        wp = wout // pw                     # pooled width (floor, matches torch)
        # wsel[dy*pw + r] : (Win*Cin, wp*Cout)
        #   output column (j*Cout + c') = conv output at x = j*pw + r,
        #   i.e. the (1, pw) max-pool column selection is baked in.
        wsel = np.zeros((kh * pw, win * cin, wp * cout), np.float32)
        for dy in range(kh):
            for r in range(pw):
                for j in range(wp):
                    for dx in range(kw):
                        xin = j * pw + r + dx
                        wsel[dy * pw + r,
                             xin * cin:(xin + 1) * cin,
                             j * cout:(j + 1) * cout] = wf[dy, dx]
        prepared[f"conv{li + 1}_w"] = jnp.asarray(wsel)
        prepared[f"conv{li + 1}_b"] = jnp.asarray(np.tile(bf, wp)[None, :])
        layers.append(dict(hout=hout, pw=pw, kh=kh, cout=cout))
        hin, win = hout, wp

    assert win == 1, "final max_pool2d must collapse the width"
    h_last, c_last = layers[-1]["hout"], layers[-1]["cout"]
    n_nodes = h_last * c_last

    # kernel flatten order: f = y*C + c ; torch.flatten (NCHW) order: c*H + y.
    perm = np.array([(f % c_last) * h_last + f // c_last
                     for f in range(n_nodes)], dtype=np.int64)
    fc1w, fc1b = _fold_bn(np_raw["fc1_w"][perm], np_raw["fc1_b"], np_raw["fcbn1"])
    fc2w, fc2b = _fold_bn(np_raw["fc2_w"], np_raw["fc2_b"], np_raw["fcbn2"])

    prepared["fc1_w"] = jnp.asarray(fc1w).astype(jnp.bfloat16)
    prepared["fc1_b"] = jnp.asarray(fc1b[None, :])
    prepared["fc2_w"] = jnp.asarray(fc2w).astype(jnp.bfloat16)
    prepared["fc2_b"] = jnp.asarray(fc2b[None, :])
    prepared["fc3_w"] = jnp.asarray(np_raw["fc3_w"])
    prepared["fc3_b"] = jnp.asarray(np_raw["fc3_b"][None, :])

    meta = dict(layers=layers, h0=height, n_nodes=n_nodes,
                n_classes=int(np_raw["fc3_w"].shape[1]))
    return prepared, meta


def make_forward(prepared, meta):
    vmem = pl.BlockSpec(memory_space=pltpu.MemorySpace.VMEM)

    @jax.jit
    def forward(x_nchw):
        n, cin, h, w = x_nchw.shape
        assert cin == 1 and h == meta["h0"]
        x2d = x_nchw.reshape(n * h, w)          # (N*H, W) -- Cin == 1
        kernel = functools.partial(_convnet_kernel, meta=dict(meta, batch=n))
        return pl.pallas_call(
            kernel,
            out_shape=jax.ShapeDtypeStruct((n, meta["n_classes"]), jnp.float32),
            in_specs=[vmem] * 13,
            out_specs=vmem,
            scratch_shapes=[pltpu.VMEM((n, meta["n_nodes"]), jnp.float32)],
        )(x2d,
          prepared["conv1_w"], prepared["conv1_b"],
          prepared["conv2_w"], prepared["conv2_b"],
          prepared["conv3_w"], prepared["conv3_b"],
          prepared["fc1_w"], prepared["fc1_b"],
          prepared["fc2_w"], prepared["fc2_b"],
          prepared["fc3_w"], prepared["fc3_b"])

    return forward


# ---------------------------------------------------------------------------
# Plain-JAX (XLA) reference of the torch module, for validation only.
# ---------------------------------------------------------------------------
def reference_forward(x_nchw, p):
    x = jnp.transpose(x_nchw, (0, 2, 3, 1))     # NCHW -> NHWC

    def conv_bn_relu_pool(x, w, b, bn, pool_w):
        y = jax.lax.conv_general_dilated(
            x, w, window_strides=(1, 1), padding="VALID",
            dimension_numbers=("NHWC", "HWIO", "NHWC")) + b
        gamma, beta, mu, var = bn
        y = (y - mu) * gamma * jax.lax.rsqrt(var + EPS) + beta
        y = jnp.maximum(y, 0.0)
        n_, h_, w_, c_ = y.shape
        pw = w_ if pool_w is None else pool_w
        wp = w_ // pw
        return y[:, :, :wp * pw, :].reshape(n_, h_, wp, pw, c_).max(axis=3)

    x = conv_bn_relu_pool(x, p["w1"], p["b1"], p["bn1"], 3)
    x = conv_bn_relu_pool(x, p["w2"], p["b2"], p["bn2"], 3)
    x = conv_bn_relu_pool(x, p["w3"], p["b3"], p["bn3"], None)
    feat = jnp.transpose(x, (0, 3, 1, 2)).reshape(x.shape[0], -1)

    def fc_bn_relu(a, w, b, bn):
        gamma, beta, mu, var = bn
        y = a @ w + b
        y = (y - mu) * gamma * jax.lax.rsqrt(var + EPS) + beta
        return jnp.maximum(y, 0.0)

    h1 = fc_bn_relu(feat, p["fc1_w"], p["fc1_b"], p["fcbn1"])
    h2 = fc_bn_relu(h1, p["fc2_w"], p["fc2_b"], p["fcbn2"])
    logits = h2 @ p["fc3_w"] + p["fc3_b"]
    return jax.nn.softmax(logits, axis=1)


# ---------------------------------------------------------------------------
# Deterministic parameter initialization (shapes from ConvNet.__init__,
# c=[8,16,32], k=3  =>  n_nodes = (64 - 6) * 32 = 1856).
# Conv weights in HWIO layout, Linear weights as (in, out).
# ---------------------------------------------------------------------------
def init_params(key, c=(8, 16, 32), k=3):
    n_nodes = (64 - 3 * (k - 1)) * c[-1]  # 1856
    keys = iter(jax.random.split(key, 64))

    def w_init(shape, scale=0.05):
        return scale * jax.random.normal(next(keys), shape, dtype=jnp.float32)

    def bn_init(cdim):
        gamma = 1.0 + 0.1 * jax.random.normal(next(keys), (cdim,), jnp.float32)
        beta = 0.1 * jax.random.normal(next(keys), (cdim,), jnp.float32)
        mean = 0.1 * jax.random.normal(next(keys), (cdim,), jnp.float32)
        var = 0.5 + jax.random.uniform(next(keys), (cdim,), jnp.float32)
        return (gamma, beta, mean, var)

    p = {}
    p["w1"], p["b1"], p["bn1"] = w_init((k, k, 1, c[0])), w_init((c[0],)), bn_init(c[0])
    p["w2"], p["b2"], p["bn2"] = w_init((k, k, c[0], c[1])), w_init((c[1],)), bn_init(c[1])
    p["w3"], p["b3"], p["bn3"] = w_init((k, k, c[1], c[2])), w_init((c[2],)), bn_init(c[2])
    p["fc1_w"], p["fc1_b"], p["fcbn1"] = w_init((n_nodes, 256)), w_init((256,)), bn_init(256)
    p["fc2_w"], p["fc2_b"], p["fcbn2"] = w_init((256, 64)), w_init((64,)), bn_init(64)
    p["fc3_w"], p["fc3_b"] = w_init((64, 4)), w_init((4,))
    return p


if __name__ == "__main__":
    key = jax.random.PRNGKey(0)
    pkey, xkey = jax.random.split(key)
    raw_params = init_params(pkey)

    # Height must be 64 (baked into the torch n_nodes formula); width 36
    # survives the two (1,3) pools and three valid 3x3 convs down to W=1.
    x = jax.random.normal(xkey, (2, 1, 64, 36), dtype=jnp.float32)

    prepared, meta = prepare_params(raw_params, height=64, width=36)
    forward = make_forward(prepared, meta)

    out = jax.block_until_ready(forward(x))

    assert out.shape == (2, 4), out.shape
    assert bool(jnp.all(jnp.isfinite(out)))
    assert bool(jnp.allclose(jnp.sum(out, axis=1), 1.0, atol=1e-5))

    # Cross-check against the plain-JAX reference of the torch module
    # (tolerance covers the bf16 fc1/fc2 weights in the Pallas path).
    ref = reference_forward(x, raw_params)
    assert bool(jnp.allclose(out, ref, atol=2e-2)), (out, ref)

    print("KERNEL_OK")
</pallas_src>

<mosaic_0001>
module attributes {stable_mosaic.version = 11 : i64} {
  func.func @_convnet_kernel(%arg0: memref<128x36xf32, #tpu.memory_space<vmem>>, %arg1: memref<9x36x88xf32, #tpu.memory_space<vmem>>, %arg2: memref<1x88xf32, #tpu.memory_space<vmem>>, %arg3: memref<9x88x48xf32, #tpu.memory_space<vmem>>, %arg4: memref<1x48xf32, #tpu.memory_space<vmem>>, %arg5: memref<3x48x32xf32, #tpu.memory_space<vmem>>, %arg6: memref<1x32xf32, #tpu.memory_space<vmem>>, %arg7: memref<1856x256xbf16, #tpu.memory_space<vmem>>, %arg8: memref<1x256xf32, #tpu.memory_space<vmem>>, %arg9: memref<256x64xbf16, #tpu.memory_space<vmem>>, %arg10: memref<1x64xf32, #tpu.memory_space<vmem>>, %arg11: memref<64x4xf32, #tpu.memory_space<vmem>>, %arg12: memref<1x4xf32, #tpu.memory_space<vmem>>, %arg13: memref<2x4xf32, #tpu.memory_space<vmem>>, %arg14: memref<2x1856xf32, #tpu.memory_space<vmem>>) attributes {dimension_semantics = [], scalar_prefetch = 0 : i64, scratch_operands = 1 : i64, tpu.core_type = #tpu.core_type<tc>} {
    %c0 = arith.constant 0 : index
    %c0_0 = arith.constant 0 : index
    %0 = vector.load %arg0[%c0, %c0_0] : memref<128x36xf32, #tpu.memory_space<vmem>>, vector<64x36xf32>
    %c0_1 = arith.constant 0 : index
    %c0_2 = arith.constant 0 : index
    %1 = vector.load %arg2[%c0_1, %c0_2] : memref<1x88xf32, #tpu.memory_space<vmem>>, vector<1x88xf32>
    %2 = vector.extract_strided_slice %0 {offsets = [0, 0], sizes = [62, 36], strides = [1, 1]} : vector<64x36xf32> to vector<62x36xf32>
    %c0_3 = arith.constant 0 : index
    %c0_4 = arith.constant 0 : index
    %c0_5 = arith.constant 0 : index
    %3 = vector.load %arg1[%c0_3, %c0_4, %c0_5] : memref<9x36x88xf32, #tpu.memory_space<vmem>>, vector<1x36x88xf32>
    %4 = vector.shape_cast %3 : vector<1x36x88xf32> to vector<36x88xf32>
    %cst = arith.constant dense<0.000000e+00> : vector<62x88xf32>
    %5 = tpu.matmul %2, %4, %cst {dimension_numbers = #tpu.dot_dimension_numbers<[1], [0], [0], [1], [0, 0, 1, 1], [], []>} : vector<62x36xf32>, vector<36x88xf32>, vector<62x88xf32> -> vector<62x88xf32>
    %6 = vector.extract_strided_slice %0 {offsets = [1, 0], sizes = [62, 36], strides = [1, 1]} : vector<64x36xf32> to vector<62x36xf32>
    %c3 = arith.constant 3 : index
    %c0_6 = arith.constant 0 : index
    %c0_7 = arith.constant 0 : index
    %7 = vector.load %arg1[%c3, %c0_6, %c0_7] : memref<9x36x88xf32, #tpu.memory_space<vmem>>, vector<1x36x88xf32>
    %8 = vector.shape_cast %7 : vector<1x36x88xf32> to vector<36x88xf32>
    %cst_8 = arith.constant dense<0.000000e+00> : vector<62x88xf32>
    %9 = tpu.matmul %6, %8, %cst_8 {dimension_numbers = #tpu.dot_dimension_numbers<[1], [0], [0], [1], [0, 0, 1, 1], [], []>} : vector<62x36xf32>, vector<36x88xf32>, vector<62x88xf32> -> vector<62x88xf32>
    %10 = arith.addf %5, %9 : vector<62x88xf32>
    %11 = vector.extract_strided_slice %0 {offsets = [2, 0], sizes = [62, 36], strides = [1, 1]} : vector<64x36xf32> to vector<62x36xf32>
    %c6 = arith.constant 6 : index
    %c0_9 = arith.constant 0 : index
    %c0_10 = arith.constant 0 : index
    %12 = vector.load %arg1[%c6, %c0_9, %c0_10] : memref<9x36x88xf32, #tpu.memory_space<vmem>>, vector<1x36x88xf32>
    %13 = vector.shape_cast %12 : vector<1x36x88xf32> to vector<36x88xf32>
    %cst_11 = arith.constant dense<0.000000e+00> : vector<62x88xf32>
    %14 = tpu.matmul %11, %13, %cst_11 {dimension_numbers = #tpu.dot_dimension_numbers<[1], [0], [0], [1], [0, 0, 1, 1], [], []>} : vector<62x36xf32>, vector<36x88xf32>, vector<62x88xf32> -> vector<62x88xf32>
    %15 = arith.addf %10, %14 : vector<62x88xf32>
    %16 = vector.broadcast %1 : vector<1x88xf32> to vector<62x88xf32>
    %17 = arith.addf %15, %16 : vector<62x88xf32>
    %cst_12 = arith.constant 0.000000e+00 : f32
    %18 = vector.broadcast %cst_12 : f32 to vector<62x88xf32>
    %19 = arith.maximumf %17, %18 : vector<62x88xf32>
    %20 = vector.extract_strided_slice %0 {offsets = [0, 0], sizes = [62, 36], strides = [1, 1]} : vector<64x36xf32> to vector<62x36xf32>
    %c1 = arith.constant 1 : index
    %c0_13 = arith.constant 0 : index
    %c0_14 = arith.constant 0 : index
    %21 = vector.load %arg1[%c1, %c0_13, %c0_14] : memref<9x36x88xf32, #tpu.memory_space<vmem>>, vector<1x36x88xf32>
    %22 = vector.shape_cast %21 : vector<1x36x88xf32> to vector<36x88xf32>
    %cst_15 = arith.constant dense<0.000000e+00> : vector<62x88xf32>
    %23 = tpu.matmul %20, %22, %cst_15 {dimension_numbers = #tpu.dot_dimension_numbers<[1], [0], [0], [1], [0, 0, 1, 1], [], []>} : vector<62x36xf32>, vector<36x88xf32>, vector<62x88xf32> -> vector<62x88xf32>
    %24 = vector.extract_strided_slice %0 {offsets = [1, 0], sizes = [62, 36], strides = [1, 1]} : vector<64x36xf32> to vector<62x36xf32>
    %c4 = arith.constant 4 : index
    %c0_16 = arith.constant 0 : index
    %c0_17 = arith.constant 0 : index
    %25 = vector.load %arg1[%c4, %c0_16, %c0_17] : memref<9x36x88xf32, #tpu.memory_space<vmem>>, vector<1x36x88xf32>
    %26 = vector.shape_cast %25 : vector<1x36x88xf32> to vector<36x88xf32>
    %cst_18 = arith.constant dense<0.000000e+00> : vector<62x88xf32>
    %27 = tpu.matmul %24, %26, %cst_18 {dimension_numbers = #tpu.dot_dimension_numbers<[1], [0], [0], [1], [0, 0, 1, 1], [], []>} : vector<62x36xf32>, vector<36x88xf32>, vector<62x88xf32> -> vector<62x88xf32>
    %28 = arith.addf %23, %27 : vector<62x88xf32>
    %29 = vector.extract_strided_slice %0 {offsets = [2, 0], sizes = [62, 36], strides = [1, 1]} : vector<64x36xf32> to vector<62x36xf32>
    %c7 = arith.constant 7 : index
    %c0_19 = arith.constant 0 : index
    %c0_20 = arith.constant 0 : index
    %30 = vector.load %arg1[%c7, %c0_19, %c0_20] : memref<9x36x88xf32, #tpu.memory_space<vmem>>, vector<1x36x88xf32>
    %31 = vector.shape_cast %30 : vector<1x36x88xf32> to vector<36x88xf32>
    %cst_21 = arith.constant dense<0.000000e+00> : vector<62x88xf32>
    %32 = tpu.matmul %29, %31, %cst_21 {dimension_numbers = #tpu.dot_dimension_numbers<[1], [0], [0], [1], [0, 0, 1, 1], [], []>} : vector<62x36xf32>, vector<36x88xf32>, vector<62x88xf32> -> vector<62x88xf32>
    %33 = arith.addf %28, %32 : vector<62x88xf32>
    %34 = vector.broadcast %1 : vector<1x88xf32> to vector<62x88xf32>
    %35 = arith.addf %33, %34 : vector<62x88xf32>
    %cst_22 = arith.constant 0.000000e+00 : f32
    %36 = vector.broadcast %cst_22 : f32 to vector<62x88xf32>
    %37 = arith.maximumf %35, %36 : vector<62x88xf32>
    %38 = arith.maximumf %19, %37 : vector<62x88xf32>
    %39 = vector.extract_strided_slice %0 {offsets = [0, 0], sizes = [62, 36], strides = [1, 1]} : vector<64x36xf32> to vector<62x36xf32>
    %c2 = arith.constant 2 : index
    %c0_23 = arith.constant 0 : index
    %c0_24 = arith.constant 0 : index
    %40 = vector.load %arg1[%c2, %c0_23, %c0_24] : memref<9x36x88xf32, #tpu.memory_space<vmem>>, vector<1x36x88xf32>
    %41 = vector.shape_cast %40 : vector<1x36x88xf32> to vector<36x88xf32>
    %cst_25 = arith.constant dense<0.000000e+00> : vector<62x88xf32>
    %42 = tpu.matmul %39, %41, %cst_25 {dimension_numbers = #tpu.dot_dimension_numbers<[1], [0], [0], [1], [0, 0, 1, 1], [], []>} : vector<62x36xf32>, vector<36x88xf32>, vector<62x88xf32> -> vector<62x88xf32>
    %43 = vector.extract_strided_slice %0 {offsets = [1, 0], sizes = [62, 36], strides = [1, 1]} : vector<64x36xf32> to vector<62x36xf32>
    %c5 = arith.constant 5 : index
    %c0_26 = arith.constant 0 : index
    %c0_27 = arith.constant 0 : index
    %44 = vector.load %arg1[%c5, %c0_26, %c0_27] : memref<9x36x88xf32, #tpu.memory_space<vmem>>, vector<1x36x88xf32>
    %45 = vector.shape_cast %44 : vector<1x36x88xf32> to vector<36x88xf32>
    %cst_28 = arith.constant dense<0.000000e+00> : vector<62x88xf32>
    %46 = tpu.matmul %43, %45, %cst_28 {dimension_numbers = #tpu.dot_dimension_numbers<[1], [0], [0], [1], [0, 0, 1, 1], [], []>} : vector<62x36xf32>, vector<36x88xf32>, vector<62x88xf32> -> vector<62x88xf32>
    %47 = arith.addf %42, %46 : vector<62x88xf32>
    %48 = vector.extract_strided_slice %0 {offsets = [2, 0], sizes = [62, 36], strides = [1, 1]} : vector<64x36xf32> to vector<62x36xf32>
    %c8 = arith.constant 8 : index
    %c0_29 = arith.constant 0 : index
    %c0_30 = arith.constant 0 : index
    %49 = vector.load %arg1[%c8, %c0_29, %c0_30] : memref<9x36x88xf32, #tpu.memory_space<vmem>>, vector<1x36x88xf32>
    %50 = vector.shape_cast %49 : vector<1x36x88xf32> to vector<36x88xf32>
    %cst_31 = arith.constant dense<0.000000e+00> : vector<62x88xf32>
    %51 = tpu.matmul %48, %50, %cst_31 {dimension_numbers = #tpu.dot_dimension_numbers<[1], [0], [0], [1], [0, 0, 1, 1], [], []>} : vector<62x36xf32>, vector<36x88xf32>, vector<62x88xf32> -> vector<62x88xf32>
    %52 = arith.addf %47, %51 : vector<62x88xf32>
    %53 = vector.broadcast %1 : vector<1x88xf32> to vector<62x88xf32>
    %54 = arith.addf %52, %53 : vector<62x88xf32>
    %cst_32 = arith.constant 0.000000e+00 : f32
    %55 = vector.broadcast %cst_32 : f32 to vector<62x88xf32>
    %56 = arith.maximumf %54, %55 : vector<62x88xf32>
    %57 = arith.maximumf %38, %56 : vector<62x88xf32>
    %c0_33 = arith.constant 0 : index
    %c0_34 = arith.constant 0 : index
    %58 = vector.load %arg4[%c0_33, %c0_34] : memref<1x48xf32, #tpu.memory_space<vmem>>, vector<1x48xf32>
    %59 = vector.extract_strided_slice %57 {offsets = [0, 0], sizes = [60, 88], strides = [1, 1]} : vector<62x88xf32> to vector<60x88xf32>
    %c0_35 = arith.constant 0 : index
    %c0_36 = arith.constant 0 : index
    %c0_37 = arith.constant 0 : index
    %60 = vector.load %arg3[%c0_35, %c0_36, %c0_37] : memref<9x88x48xf32, #tpu.memory_space<vmem>>, vector<1x88x48xf32>
    %61 = vector.shape_cast %60 : vector<1x88x48xf32> to vector<88x48xf32>
    %cst_38 = arith.constant dense<0.000000e+00> : vector<60x48xf32>
    %62 = tpu.matmul %59, %61, %cst_38 {dimension_numbers = #tpu.dot_dimension_numbers<[1], [0], [0], [1], [0, 0, 1, 1], [], []>} : vector<60x88xf32>, vector<88x48xf32>, vector<60x48xf32> -> vector<60x48xf32>
    %63 = vector.extract_strided_slice %57 {offsets = [1, 0], sizes = [60, 88], strides = [1, 1]} : vector<62x88xf32> to vector<60x88xf32>
    %c3_39 = arith.constant 3 : index
    %c0_40 = arith.constant 0 : index
    %c0_41 = arith.constant 0 : index
    %64 = vector.load %arg3[%c3_39, %c0_40, %c0_41] : memref<9x88x48xf32, #tpu.memory_space<vmem>>, vector<1x88x48xf32>
    %65 = vector.shape_cast %64 : vector<1x88x48xf32> to vector<88x48xf32>
    %cst_42 = arith.constant dense<0.000000e+00> : vector<60x48xf32>
    %66 = tpu.matmul %63, %65, %cst_42 {dimension_numbers = #tpu.dot_dimension_numbers<[1], [0], [0], [1], [0, 0, 1, 1], [], []>} : vector<60x88xf32>, vector<88x48xf32>, vector<60x48xf32> -> vector<60x48xf32>
    %67 = arith.addf %62, %66 : vector<60x48xf32>
    %68 = vector.extract_strided_slice %57 {offsets = [2, 0], sizes = [60, 88], strides = [1, 1]} : vector<62x88xf32> to vector<60x88xf32>
    %c6_43 = arith.constant 6 : index
    %c0_44 = arith.constant 0 : index
    %c0_45 = arith.constant 0 : index
    %69 = vector.load %arg3[%c6_43, %c0_44, %c0_45] : memref<9x88x48xf32, #tpu.memory_space<vmem>>, vector<1x88x48xf32>
    %70 = vector.shape_cast %69 : vector<1x88x48xf32> to vector<88x48xf32>
    %cst_46 = arith.constant dense<0.000000e+00> : vector<60x48xf32>
    %71 = tpu.matmul %68, %70, %cst_46 {dimension_numbers = #tpu.dot_dimension_numbers<[1], [0], [0], [1], [0, 0, 1, 1], [], []>} : vector<60x88xf32>, vector<88x48xf32>, vector<60x48xf32> -> vector<60x48xf32>
    %72 = arith.addf %67, %71 : vector<60x48xf32>
    %73 = vector.broadcast %58 : vector<1x48xf32> to vector<60x48xf32>
    %74 = arith.addf %72, %73 : vector<60x48xf32>
    %cst_47 = arith.constant 0.000000e+00 : f32
    %75 = vector.broadcast %cst_47 : f32 to vector<60x48xf32>
    %76 = arith.maximumf %74, %75 : vector<60x48xf32>
    %77 = vector.extract_strided_slice %57 {offsets = [0, 0], sizes = [60, 88], strides = [1, 1]} : vector<62x88xf32> to vector<60x88xf32>
    %c1_48 = arith.constant 1 : index
    %c0_49 = arith.constant 0 : index
    %c0_50 = arith.constant 0 : index
    %78 = vector.load %arg3[%c1_48, %c0_49, %c0_50] : memref<9x88x48xf32, #tpu.memory_space<vmem>>, vector<1x88x48xf32>
    %79 = vector.shape_cast %78 : vector<1x88x48xf32> to vector<88x48xf32>
    %cst_51 = arith.constant dense<0.000000e+00> : vector<60x48xf32>
    %80 = tpu.matmul %77, %79, %cst_51 {dimension_numbers = #tpu.dot_dimension_numbers<[1], [0], [0], [1], [0, 0, 1, 1], [], []>} : vector<60x88xf32>, vector<88x48xf32>, vector<60x48xf32> -> vector<60x48xf32>
    %81 = vector.extract_strided_slice %57 {offsets = [1, 0], sizes = [60, 88], strides = [1, 1]} : vector<62x88xf32> to vector<60x88xf32>
    %c4_52 = arith.constant 4 : index
    %c0_53 = arith.constant 0 : index
    %c0_54 = arith.constant 0 : index
    %82 = vector.load %arg3[%c4_52, %c0_53, %c0_54] : memref<9x88x48xf32, #tpu.memory_space<vmem>>, vector<1x88x48xf32>
    %83 = vector.shape_cast %82 : vector<1x88x48xf32> to vector<88x48xf32>
    %cst_55 = arith.constant dense<0.000000e+00> : vector<60x48xf32>
    %84 = tpu.matmul %81, %83, %cst_55 {dimension_numbers = #tpu.dot_dimension_numbers<[1], [0], [0], [1], [0, 0, 1, 1], [], []>} : vector<60x88xf32>, vector<88x48xf32>, vector<60x48xf32> -> vector<60x48xf32>
    %85 = arith.addf %80, %84 : vector<60x48xf32>
    %86 = vector.extract_strided_slice %57 {offsets = [2, 0], sizes = [60, 88], strides = [1, 1]} : vector<62x88xf32> to vector<60x88xf32>
    %c7_56 = arith.constant 7 : index
    %c0_57 = arith.constant 0 : index
    %c0_58 = arith.constant 0 : index
    %87 = vector.load %arg3[%c7_56, %c0_57, %c0_58] : memref<9x88x48xf32, #tpu.memory_space<vmem>>, vector<1x88x48xf32>
    %88 = vector.shape_cast %87 : vector<1x88x48xf32> to vector<88x48xf32>
    %cst_59 = arith.constant dense<0.000000e+00> : vector<60x48xf32>
    %89 = tpu.matmul %86, %88, %cst_59 {dimension_numbers = #tpu.dot_dimension_numbers<[1], [0], [0], [1], [0, 0, 1, 1], [], []>} : vector<60x88xf32>, vector<88x48xf32>, vector<60x48xf32> -> vector<60x48xf32>
    %90 = arith.addf %85, %89 : vector<60x48xf32>
    %91 = vector.broadcast %58 : vector<1x48xf32> to vector<60x48xf32>
    %92 = arith.addf %90, %91 : vector<60x48xf32>
    %cst_60 = arith.constant 0.000000e+00 : f32
    %93 = vector.broadcast %cst_60 : f32 to vector<60x48xf32>
    %94 = arith.maximumf %92, %93 : vector<60x48xf32>
    %95 = arith.maximumf %76, %94 : vector<60x48xf32>
    %96 = vector.extract_strided_slice %57 {offsets = [0, 0], sizes = [60, 88], strides = [1, 1]} : vector<62x88xf32> to vector<60x88xf32>
    %c2_61 = arith.constant 2 : index
    %c0_62 = arith.constant 0 : index
    %c0_63 = arith.constant 0 : index
    %97 = vector.load %arg3[%c2_61, %c0_62, %c0_63] : memref<9x88x48xf32, #tpu.memory_space<vmem>>, vector<1x88x48xf32>
    %98 = vector.shape_cast %97 : vector<1x88x48xf32> to vector<88x48xf32>
    %cst_64 = arith.constant dense<0.000000e+00> : vector<60x48xf32>
    %99 = tpu.matmul %96, %98, %cst_64 {dimension_numbers = #tpu.dot_dimension_numbers<[1], [0], [0], [1], [0, 0, 1, 1], [], []>} : vector<60x88xf32>, vector<88x48xf32>, vector<60x48xf32> -> vector<60x48xf32>
    %100 = vector.extract_strided_slice %57 {offsets = [1, 0], sizes = [60, 88], strides = [1, 1]} : vector<62x88xf32> to vector<60x88xf32>
    %c5_65 = arith.constant 5 : index
    %c0_66 = arith.constant 0 : index
    %c0_67 = arith.constant 0 : index
    %101 = vector.load %arg3[%c5_65, %c0_66, %c0_67] : memref<9x88x48xf32, #tpu.memory_space<vmem>>, vector<1x88x48xf32>
    %102 = vector.shape_cast %101 : vector<1x88x48xf32> to vector<88x48xf32>
    %cst_68 = arith.constant dense<0.000000e+00> : vector<60x48xf32>
    %103 = tpu.matmul %100, %102, %cst_68 {dimension_numbers = #tpu.dot_dimension_numbers<[1], [0], [0], [1], [0, 0, 1, 1], [], []>} : vector<60x88xf32>, vector<88x48xf32>, vector<60x48xf32> -> vector<60x48xf32>
    %104 = arith.addf %99, %103 : vector<60x48xf32>
    %105 = vector.extract_strided_slice %57 {offsets = [2, 0], sizes = [60, 88], strides = [1, 1]} : vector<62x88xf32> to vector<60x88xf32>
    %c8_69 = arith.constant 8 : index
    %c0_70 = arith.constant 0 : index
    %c0_71 = arith.constant 0 : index
    %106 = vector.load %arg3[%c8_69, %c0_70, %c0_71] : memref<9x88x48xf32, #tpu.memory_space<vmem>>, vector<1x88x48xf32>
    %107 = vector.shape_cast %106 : vector<1x88x48xf32> to vector<88x48xf32>
    %cst_72 = arith.constant dense<0.000000e+00> : vector<60x48xf32>
    %108 = tpu.matmul %105, %107, %cst_72 {dimension_numbers = #tpu.dot_dimension_numbers<[1], [0], [0], [1], [0, 0, 1, 1], [], []>} : vector<60x88xf32>, vector<88x48xf32>, vector<60x48xf32> -> vector<60x48xf32>
    %109 = arith.addf %104, %108 : vector<60x48xf32>
    %110 = vector.broadcast %58 : vector<1x48xf32> to vector<60x48xf32>
    %111 = arith.addf %109, %110 : vector<60x48xf32>
    %cst_73 = arith.constant 0.000000e+00 : f32
    %112 = vector.broadcast %cst_73 : f32 to vector<60x48xf32>
    %113 = arith.maximumf %111, %112 : vector<60x48xf32>
    %114 = arith.maximumf %95, %113 : vector<60x48xf32>
    %c0_74 = arith.constant 0 : index
    %c0_75 = arith.constant 0 : index
    %115 = vector.load %arg6[%c0_74, %c0_75] : memref<1x32xf32, #tpu.memory_space<vmem>>, vector<1x32xf32>
    %116 = vector.extract_strided_slice %114 {offsets = [0, 0], sizes = [58, 48], strides = [1, 1]} : vector<60x48xf32> to vector<58x48xf32>
    %c0_76 = arith.constant 0 : index
    %c0_77 = arith.constant 0 : index
    %c0_78 = arith.constant 0 : index
    %117 = vector.load %arg5[%c0_76, %c0_77, %c0_78] : memref<3x48x32xf32, #tpu.memory_space<vmem>>, vector<1x48x32xf32>
    %118 = vector.shape_cast %117 : vector<1x48x32xf32> to vector<48x32xf32>
    %cst_79 = arith.constant dense<0.000000e+00> : vector<58x32xf32>
    %119 = tpu.matmul %116, %118, %cst_79 {dimension_numbers = #tpu.dot_dimension_numbers<[1], [0], [0], [1], [0, 0, 1, 1], [], []>} : vector<58x48xf32>, vector<48x32xf32>, vector<58x32xf32> -> vector<58x32xf32>
    %120 = vector.extract_strided_slice %114 {offsets = [1, 0], sizes = [58, 48], strides = [1, 1]} : vector<60x48xf32> to vector<58x48xf32>
    %c1_80 = arith.constant 1 : index
    %c0_81 = arith.constant 0 : index
    %c0_82 = arith.constant 0 : index
    %121 = vector.load %arg5[%c1_80, %c0_81, %c0_82] : memref<3x48x32xf32, #tpu.memory_space<vmem>>, vector<1x48x32xf32>
    %122 = vector.shape_cast %121 : vector<1x48x32xf32> to vector<48x32xf32>
    %cst_83 = arith.constant dense<0.000000e+00> : vector<58x32xf32>
    %123 = tpu.matmul %120, %122, %cst_83 {dimension_numbers = #tpu.dot_dimension_numbers<[1], [0], [0], [1], [0, 0, 1, 1], [], []>} : vector<58x48xf32>, vector<48x32xf32>, vector<58x32xf32> -> vector<58x32xf32>
    %124 = arith.addf %119, %123 : vector<58x32xf32>
    %125 = vector.extract_strided_slice %114 {offsets = [2, 0], sizes = [58, 48], strides = [1, 1]} : vector<60x48xf32> to vector<58x48xf32>
    %c2_84 = arith.constant 2 : index
    %c0_85 = arith.constant 0 : index
    %c0_86 = arith.constant 0 : index
    %126 = vector.load %arg5[%c2_84, %c0_85, %c0_86] : memref<3x48x32xf32, #tpu.memory_space<vmem>>, vector<1x48x32xf32>
    %127 = vector.shape_cast %126 : vector<1x48x32xf32> to vector<48x32xf32>
    %cst_87 = arith.constant dense<0.000000e+00> : vector<58x32xf32>
    %128 = tpu.matmul %125, %127, %cst_87 {dimension_numbers = #tpu.dot_dimension_numbers<[1], [0], [0], [1], [0, 0, 1, 1], [], []>} : vector<58x48xf32>, vector<48x32xf32>, vector<58x32xf32> -> vector<58x32xf32>
    %129 = arith.addf %124, %128 : vector<58x32xf32>
    %130 = vector.broadcast %115 : vector<1x32xf32> to vector<58x32xf32>
    %131 = arith.addf %129, %130 : vector<58x32xf32>
    %cst_88 = arith.constant 0.000000e+00 : f32
    %132 = vector.broadcast %cst_88 : f32 to vector<58x32xf32>
    %133 = arith.maximumf %131, %132 : vector<58x32xf32>
    %134 = vector.extract_strided_slice %133 {offsets = [0, 0], sizes = [1, 32], strides = [1, 1]} : vector<58x32xf32> to vector<1x32xf32>
    %c0_89 = arith.constant 0 : index
    %c0_90 = arith.constant 0 : index
    %135 = vector.load %arg14[%c0_89, %c0_90] : memref<2x1856xf32, #tpu.memory_space<vmem>>, vector<1x32xf32>
    tpu.vector_store %arg14[%c0_89, %c0_90], %134 {strides = array<i32>} : memref<2x1856xf32, #tpu.memory_space<vmem>>, vector<1x32xf32>,
    %136 = vector.extract_strided_slice %133 {offsets = [1, 0], sizes = [1, 32], strides = [1, 1]} : vector<58x32xf32> to vector<1x32xf32>
    %c0_91 = arith.constant 0 : index
    %c32 = arith.constant 32 : index
    %137 = vector.load %arg14[%c0_91, %c32] : memref<2x1856xf32, #tpu.memory_space<vmem>>, vector<1x32xf32>
    tpu.vector_store %arg14[%c0_91, %c32], %136 {strides = array<i32>} : memref<2x1856xf32, #tpu.memory_space<vmem>>, vector<1x32xf32>,
    %138 = vector.extract_strided_slice %133 {offsets = [2, 0], sizes = [1, 32], strides = [1, 1]} : vector<58x32xf32> to vector<1x32xf32>
    %c0_92 = arith.constant 0 : index
    %c64 = arith.constant 64 : index
    %139 = vector.load %arg14[%c0_92, %c64] : memref<2x1856xf32, #tpu.memory_space<vmem>>, vector<1x32xf32>
    tpu.vector_store %arg14[%c0_92, %c64], %138 {strides = array<i32>} : memref<2x1856xf32, #tpu.memory_space<vmem>>, vector<1x32xf32>,
    %140 = vector.extract_strided_slice %133 {offsets = [3, 0], sizes = [1, 32], strides = [1, 1]} : vector<58x32xf32> to vector<1x32xf32>
    %c0_93 = arith.constant 0 : index
    %c96 = arith.constant 96 : index
    %141 = vector.load %arg14[%c0_93, %c96] : memref<2x1856xf32, #tpu.memory_space<vmem>>, vector<1x32xf32>
    tpu.vector_store %arg14[%c0_93, %c96], %140 {strides = array<i32>} : memref<2x1856xf32, #tpu.memory_space<vmem>>, vector<1x32xf32>,
    %142 = vector.extract_strided_slice %133 {offsets = [4, 0], sizes = [1, 32], strides = [1, 1]} : vector<58x32xf32> to vector<1x32xf32>
    %c0_94 = arith.constant 0 : index
    %c128 = arith.constant 128 : index
    %143 = vector.load %arg14[%c0_94, %c128] : memref<2x1856xf32, #tpu.memory_space<vmem>>, vector<1x32xf32>
    tpu.vector_store %arg14[%c0_94, %c128], %142 {strides = array<i32>} : memref<2x1856xf32, #tpu.memory_space<vmem>>, vector<1x32xf32>,
    %144 = vector.extract_strided_slice %133 {offsets = [5, 0], sizes = [1, 32], strides = [1, 1]} : vector<58x32xf32> to vector<1x32xf32>
    %c0_95 = arith.constant 0 : index
    %c160 = arith.constant 160 : index
    %145 = vector.load %arg14[%c0_95, %c160] : memref<2x1856xf32, #tpu.memory_space<vmem>>, vector<1x32xf32>
    tpu.vector_store %arg14[%c0_95, %c160], %144 {strides = array<i32>} : memref<2x1856xf32, #tpu.memory_space<vmem>>, vector<1x32xf32>,
    %146 = vector.extract_strided_slice %133 {offsets = [6, 0], sizes = [1, 32], strides = [1, 1]} : vector<58x32xf32> to vector<1x32xf32>
    %c0_96 = arith.constant 0 : index
    %c192 = arith.constant 192 : index
    %147 = vector.load %arg14[%c0_96, %c192] : memref<2x1856xf32, #tpu.memory_space<vmem>>, vector<1x32xf32>
    tpu.vector_store %arg14[%c0_96, %c192], %146 {strides = array<i32>} : memref<2x1856xf32, #tpu.memory_space<vmem>>, vector<1x32xf32>,
    %148 = vector.extract_strided_slice %133 {offsets = [7, 0], sizes = [1, 32], strides = [1, 1]} : vector<58x32xf32> to vector<1x32xf32>
    %c0_97 = arith.constant 0 : index
    %c224 = arith.constant 224 : index
    %149 = vector.load %arg14[%c0_97, %c224] : memref<2x1856xf32, #tpu.memory_space<vmem>>, vector<1x32xf32>
    tpu.vector_store %arg14[%c0_97, %c224], %148 {strides = array<i32>} : memref<2x1856xf32, #tpu.memory_space<vmem>>, vector<1x32xf32>,
    %150 = vector.extract_strided_slice %133 {offsets = [8, 0], sizes = [1, 32], strides = [1, 1]} : vector<58x32xf32> to vector<1x32xf32>
    %c0_98 = arith.constant 0 : index
    %c256 = arith.constant 256 : index
    %151 = vector.load %arg14[%c0_98, %c256] : memref<2x1856xf32, #tpu.memory_space<vmem>>, vector<1x32xf32>
    tpu.vector_store %arg14[%c0_98, %c256], %150 {strides = array<i32>} : memref<2x1856xf32, #tpu.memory_space<vmem>>, vector<1x32xf32>,
    %152 = vector.extract_strided_slice %133 {offsets = [9, 0], sizes = [1, 32], strides = [1, 1]} : vector<58x32xf32> to vector<1x32xf32>
    %c0_99 = arith.constant 0 : index
    %c288 = arith.constant 288 : index
    %153 = vector.load %arg14[%c0_99, %c288] : memref<2x1856xf32, #tpu.memory_space<vmem>>, vector<1x32xf32>
    tpu.vector_store %arg14[%c0_99, %c288], %152 {strides = array<i32>} : memref<2x1856xf32, #tpu.memory_space<vmem>>, vector<1x32xf32>,
    %154 = vector.extract_strided_slice %133 {offsets = [10, 0], sizes = [1, 32], strides = [1, 1]} : vector<58x32xf32> to vector<1x32xf32>
    %c0_100 = arith.constant 0 : index
    %c320 = arith.constant 320 : index
    %155 = vector.load %arg14[%c0_100, %c320] : memref<2x1856xf32, #tpu.memory_space<vmem>>, vector<1x32xf32>
    tpu.vector_store %arg14[%c0_100, %c320], %154 {strides = array<i32>} : memref<2x1856xf32, #tpu.memory_space<vmem>>, vector<1x32xf32>,
    %156 = vector.extract_strided_slice %133 {offsets = [11, 0], sizes = [1, 32], strides = [1, 1]} : vector<58x32xf32> to vector<1x32xf32>
    %c0_101 = arith.constant 0 : index
    %c352 = arith.constant 352 : index
    %157 = vector.load %arg14[%c0_101, %c352] : memref<2x1856xf32, #tpu.memory_space<vmem>>, vector<1x32xf32>
    tpu.vector_store %arg14[%c0_101, %c352], %156 {strides = array<i32>} : memref<2x1856xf32, #tpu.memory_space<vmem>>, vector<1x32xf32>,
    %158 = vector.extract_strided_slice %133 {offsets = [12, 0], sizes = [1, 32], strides = [1, 1]} : vector<58x32xf32> to vector<1x32xf32>
    %c0_102 = arith.constant 0 : index
    %c384 = arith.constant 384 : index
    %159 = vector.load %arg14[%c0_102, %c384] : memref<2x1856xf32, #tpu.memory_space<vmem>>, vector<1x32xf32>
    tpu.vector_store %arg14[%c0_102, %c384], %158 {strides = array<i32>} : memref<2x1856xf32, #tpu.memory_space<vmem>>, vector<1x32xf32>,
    %160 = vector.extract_strided_slice %133 {offsets = [13, 0], sizes = [1, 32], strides = [1, 1]} : vector<58x32xf32> to vector<1x32xf32>
    %c0_103 = arith.constant 0 : index
    %c416 = arith.constant 416 : index
    %161 = vector.load %arg14[%c0_103, %c416] : memref<2x1856xf32, #tpu.memory_space<vmem>>, vector<1x32xf32>
    tpu.vector_store %arg14[%c0_103, %c416], %160 {strides = array<i32>} : memref<2x1856xf32, #tpu.memory_space<vmem>>, vector<1x32xf32>,
    %162 = vector.extract_strided_slice %133 {offsets = [14, 0], sizes = [1, 32], strides = [1, 1]} : vector<58x32xf32> to vector<1x32xf32>
    %c0_104 = arith.constant 0 : index
    %c448 = arith.constant 448 : index
    %163 = vector.load %arg14[%c0_104, %c448] : memref<2x1856xf32, #tpu.memory_space<vmem>>, vector<1x32xf32>
    tpu.vector_store %arg14[%c0_104, %c448], %162 {strides = array<i32>} : memref<2x1856xf32, #tpu.memory_space<vmem>>, vector<1x32xf32>,
    %164 = vector.extract_strided_slice %133 {offsets = [15, 0], sizes = [1, 32], strides = [1, 1]} : vector<58x32xf32> to vector<1x32xf32>
    %c0_105 = arith.constant 0 : index
    %c480 = arith.constant 480 : index
    %165 = vector.load %arg14[%c0_105, %c480] : memref<2x1856xf32, #tpu.memory_space<vmem>>, vector<1x32xf32>
    tpu.vector_store %arg14[%c0_105, %c480], %164 {strides = array<i32>} : memref<2x1856xf32, #tpu.memory_space<vmem>>, vector<1x32xf32>,
    %166 = vector.extract_strided_slice %133 {offsets = [16, 0], sizes = [1, 32], strides = [1, 1]} : vector<58x32xf32> to vector<1x32xf32>
    %c0_106 = arith.constant 0 : index
    %c512 = arith.constant 512 : index
    %167 = vector.load %arg14[%c0_106, %c512] : memref<2x1856xf32, #tpu.memory_space<vmem>>, vector<1x32xf32>
    tpu.vector_store %arg14[%c0_106, %c512], %166 {strides = array<i32>} : memref<2x1856xf32, #tpu.memory_space<vmem>>, vector<1x32xf32>,
    %168 = vector.extract_strided_slice %133 {offsets = [17, 0], sizes = [1, 32], strides = [1, 1]} : vector<58x32xf32> to vector<1x32xf32>
    %c0_107 = arith.constant 0 : index
    %c544 = arith.constant 544 : index
    %169 = vector.load %arg14[%c0_107, %c544] : memref<2x1856xf32, #tpu.memory_space<vmem>>, vector<1x32xf32>
    tpu.vector_store %arg14[%c0_107, %c544], %168 {strides = array<i32>} : memref<2x1856xf32, #tpu.memory_space<vmem>>, vector<1x32xf32>,
    %170 = vector.extract_strided_slice %133 {offsets = [18, 0], sizes = [1, 32], strides = [1, 1]} : vector<58x32xf32> to vector<1x32xf32>
    %c0_108 = arith.constant 0 : index
    %c576 = arith.constant 576 : index
    %171 = vector.load %arg14[%c0_108, %c576] : memref<2x1856xf32, #tpu.memory_space<vmem>>, vector<1x32xf32>
    tpu.vector_store %arg14[%c0_108, %c576], %170 {strides = array<i32>} : memref<2x1856xf32, #tpu.memory_space<vmem>>, vector<1x32xf32>,
    %172 = vector.extract_strided_slice %133 {offsets = [19, 0], sizes = [1, 32], strides = [1, 1]} : vector<58x32xf32> to vector<1x32xf32>
    %c0_109 = arith.constant 0 : index
    %c608 = arith.constant 608 : index
    %173 = vector.load %arg14[%c0_109, %c608] : memref<2x1856xf32, #tpu.memory_space<vmem>>, vector<1x32xf32>
    tpu.vector_store %arg14[%c0_109, %c608], %172 {strides = array<i32>} : memref<2x1856xf32, #tpu.memory_space<vmem>>, vector<1x32xf32>,
    %174 = vector.extract_strided_slice %133 {offsets = [20, 0], sizes = [1, 32], strides = [1, 1]} : vector<58x32xf32> to vector<1x32xf32>
    %c0_110 = arith.constant 0 : index
    %c640 = arith.constant 640 : index
    %175 = vector.load %arg14[%c0_110, %c640] : memref<2x1856xf32, #tpu.memory_space<vmem>>, vector<1x32xf32>
    tpu.vector_store %arg14[%c0_110, %c640], %174 {strides = array<i32>} : memref<2x1856xf32, #tpu.memory_space<vmem>>, vector<1x32xf32>,
    %176 = vector.extract_strided_slice %133 {offsets = [21, 0], sizes = [1, 32], strides = [1, 1]} : vector<58x32xf32> to vector<1x32xf32>
    %c0_111 = arith.constant 0 : index
    %c672 = arith.constant 672 : index
    %177 = vector.load %arg14[%c0_111, %c672] : memref<2x1856xf32, #tpu.memory_space<vmem>>, vector<1x32xf32>
    tpu.vector_store %arg14[%c0_111, %c672], %176 {strides = array<i32>} : memref<2x1856xf32, #tpu.memory_space<vmem>>, vector<1x32xf32>,
    %178 = vector.extract_strided_slice %133 {offsets = [22, 0], sizes = [1, 32], strides = [1, 1]} : vector<58x32xf32> to vector<1x32xf32>
    %c0_112 = arith.constant 0 : index
    %c704 = arith.constant 704 : index
    %179 = vector.load %arg14[%c0_112, %c704] : memref<2x1856xf32, #tpu.memory_space<vmem>>, vector<1x32xf32>
    tpu.vector_store %arg14[%c0_112, %c704], %178 {strides = array<i32>} : memref<2x1856xf32, #tpu.memory_space<vmem>>, vector<1x32xf32>,
    %180 = vector.extract_strided_slice %133 {offsets = [23, 0], sizes = [1, 32], strides = [1, 1]} : vector<58x32xf32> to vector<1x32xf32>
    %c0_113 = arith.constant 0 : index
    %c736 = arith.constant 736 : index
    %181 = vector.load %arg14[%c0_113, %c736] : memref<2x1856xf32, #tpu.memory_space<vmem>>, vector<1x32xf32>
    tpu.vector_store %arg14[%c0_113, %c736], %180 {strides = array<i32>} : memref<2x1856xf32, #tpu.memory_space<vmem>>, vector<1x32xf32>,
    %182 = vector.extract_strided_slice %133 {offsets = [24, 0], sizes = [1, 32], strides = [1, 1]} : vector<58x32xf32> to vector<1x32xf32>
    %c0_114 = arith.constant 0 : index
    %c768 = arith.constant 768 : index
    %183 = vector.load %arg14[%c0_114, %c768] : memref<2x1856xf32, #tpu.memory_space<vmem>>, vector<1x32xf32>
    tpu.vector_store %arg14[%c0_114, %c768], %182 {strides = array<i32>} : memref<2x1856xf32, #tpu.memory_space<vmem>>, vector<1x32xf32>,
    %184 = vector.extract_strided_slice %133 {offsets = [25, 0], sizes = [1, 32], strides = [1, 1]} : vector<58x32xf32> to vector<1x32xf32>
    %c0_115 = arith.constant 0 : index
    %c800 = arith.constant 800 : index
    %185 = vector.load %arg14[%c0_115, %c800] : memref<2x1856xf32, #tpu.memory_space<vmem>>, vector<1x32xf32>
    tpu.vector_store %arg14[%c0_115, %c800], %184 {strides = array<i32>} : memref<2x1856xf32, #tpu.memory_space<vmem>>, vector<1x32xf32>,
    %186 = vector.extract_strided_slice %133 {offsets = [26, 0], sizes = [1, 32], strides = [1, 1]} : vector<58x32xf32> to vector<1x32xf32>
    %c0_116 = arith.constant 0 : index
    %c832 = arith.constant 832 : index
    %187 = vector.load %arg14[%c0_116, %c832] : memref<2x1856xf32, #tpu.memory_space<vmem>>, vector<1x32xf32>
    tpu.vector_store %arg14[%c0_116, %c832], %186 {strides = array<i32>} : memref<2x1856xf32, #tpu.memory_space<vmem>>, vector<1x32xf32>,
    %188 = vector.extract_strided_slice %133 {offsets = [27, 0], sizes = [1, 32], strides = [1, 1]} : vector<58x32xf32> to vector<1x32xf32>
    %c0_117 = arith.constant 0 : index
    %c864 = arith.constant 864 : index
    %189 = vector.load %arg14[%c0_117, %c864] : memref<2x1856xf32, #tpu.memory_space<vmem>>, vector<1x32xf32>
    tpu.vector_store %arg14[%c0_117, %c864], %188 {strides = array<i32>} : memref<2x1856xf32, #tpu.memory_space<vmem>>, vector<1x32xf32>,
    %190 = vector.extract_strided_slice %133 {offsets = [28, 0], sizes = [1, 32], strides = [1, 1]} : vector<58x32xf32> to vector<1x32xf32>
    %c0_118 = arith.constant 0 : index
    %c896 = arith.constant 896 : index
    %191 = vector.load %arg14[%c0_118, %c896] : memref<2x1856xf32, #tpu.memory_space<vmem>>, vector<1x32xf32>
    tpu.vector_store %arg14[%c0_118, %c896], %190 {strides = array<i32>} : memref<2x1856xf32, #tpu.memory_space<vmem>>, vector<1x32xf32>,
    %192 = vector.extract_strided_slice %133 {offsets = [29, 0], sizes = [1, 32], strides = [1, 1]} : vector<58x32xf32> to vector<1x32xf32>
    %c0_119 = arith.constant 0 : index
    %c928 = arith.constant 928 : index
    %193 = vector.load %arg14[%c0_119, %c928] : memref<2x1856xf32, #tpu.memory_space<vmem>>, vector<1x32xf32>
    tpu.vector_store %arg14[%c0_119, %c928], %192 {strides = array<i32>} : memref<2x1856xf32, #tpu.memory_space<vmem>>, vector<1x32xf32>,
    %194 = vector.extract_strided_slice %133 {offsets = [30, 0], sizes = [1, 32], strides = [1, 1]} : vector<58x32xf32> to vector<1x32xf32>
    %c0_120 = arith.constant 0 : index
    %c960 = arith.constant 960 : index
    %195 = vector.load %arg14[%c0_120, %c960] : memref<2x1856xf32, #tpu.memory_space<vmem>>, vector<1x32xf32>
    tpu.vector_store %arg14[%c0_120, %c960], %194 {strides = array<i32>} : memref<2x1856xf32, #tpu.memory_space<vmem>>, vector<1x32xf32>,
    %196 = vector.extract_strided_slice %133 {offsets = [31, 0], sizes = [1, 32], strides = [1, 1]} : vector<58x32xf32> to vector<1x32xf32>
    %c0_121 = arith.constant 0 : index
    %c992 = arith.constant 992 : index
    %197 = vector.load %arg14[%c0_121, %c992] : memref<2x1856xf32, #tpu.memory_space<vmem>>, vector<1x32xf32>
    tpu.vector_store %arg14[%c0_121, %c992], %196 {strides = array<i32>} : memref<2x1856xf32, #tpu.memory_space<vmem>>, vector<1x32xf32>,
    %198 = vector.extract_strided_slice %133 {offsets = [32, 0], sizes = [1, 32], strides = [1, 1]} : vector<58x32xf32> to vector<1x32xf32>
    %c0_122 = arith.constant 0 : index
    %c1024 = arith.constant 1024 : index
    %199 = vector.load %arg14[%c0_122, %c1024] : memref<2x1856xf32, #tpu.memory_space<vmem>>, vector<1x32xf32>
    tpu.vector_store %arg14[%c0_122, %c1024], %198 {strides = array<i32>} : memref<2x1856xf32, #tpu.memory_space<vmem>>, vector<1x32xf32>,
    %200 = vector.extract_strided_slice %133 {offsets = [33, 0], sizes = [1, 32], strides = [1, 1]} : vector<58x32xf32> to vector<1x32xf32>
    %c0_123 = arith.constant 0 : index
    %c1056 = arith.constant 1056 : index
    %201 = vector.load %arg14[%c0_123, %c1056] : memref<2x1856xf32, #tpu.memory_space<vmem>>, vector<1x32xf32>
    tpu.vector_store %arg14[%c0_123, %c1056], %200 {strides = array<i32>} : memref<2x1856xf32, #tpu.memory_space<vmem>>, vector<1x32xf32>,
    %202 = vector.extract_strided_slice %133 {offsets = [34, 0], sizes = [1, 32], strides = [1, 1]} : vector<58x32xf32> to vector<1x32xf32>
    %c0_124 = arith.constant 0 : index
    %c1088 = arith.constant 1088 : index
    %203 = vector.load %arg14[%c0_124, %c1088] : memref<2x1856xf32, #tpu.memory_space<vmem>>, vector<1x32xf32>
    tpu.vector_store %arg14[%c0_124, %c1088], %202 {strides = array<i32>} : memref<2x1856xf32, #tpu.memory_space<vmem>>, vector<1x32xf32>,
    %204 = vector.extract_strided_slice %133 {offsets = [35, 0], sizes = [1, 32], strides = [1, 1]} : vector<58x32xf32> to vector<1x32xf32>
    %c0_125 = arith.constant 0 : index
    %c1120 = arith.constant 1120 : index
    %205 = vector.load %arg14[%c0_125, %c1120] : memref<2x1856xf32, #tpu.memory_space<vmem>>, vector<1x32xf32>
    tpu.vector_store %arg14[%c0_125, %c1120], %204 {strides = array<i32>} : memref<2x1856xf32, #tpu.memory_space<vmem>>, vector<1x32xf32>,
    %206 = vector.extract_strided_slice %133 {offsets = [36, 0], sizes = [1, 32], strides = [1, 1]} : vector<58x32xf32> to vector<1x32xf32>
    %c0_126 = arith.constant 0 : index
    %c1152 = arith.constant 1152 : index
    %207 = vector.load %arg14[%c0_126, %c1152] : memref<2x1856xf32, #tpu.memory_space<vmem>>, vector<1x32xf32>
    tpu.vector_store %arg14[%c0_126, %c1152], %206 {strides = array<i32>} : memref<2x1856xf32, #tpu.memory_space<vmem>>, vector<1x32xf32>,
    %208 = vector.extract_strided_slice %133 {offsets = [37, 0], sizes = [1, 32], strides = [1, 1]} : vector<58x32xf32> to vector<1x32xf32>
    %c0_127 = arith.constant 0 : index
    %c1184 = arith.constant 1184 : index
    %209 = vector.load %arg14[%c0_127, %c1184] : memref<2x1856xf32, #tpu.memory_space<vmem>>, vector<1x32xf32>
    tpu.vector_store %arg14[%c0_127, %c1184], %208 {strides = array<i32>} : memref<2x1856xf32, #tpu.memory_space<vmem>>, vector<1x32xf32>,
    %210 = vector.extract_strided_slice %133 {offsets = [38, 0], sizes = [1, 32], strides = [1, 1]} : vector<58x32xf32> to vector<1x32xf32>
    %c0_128 = arith.constant 0 : index
    %c1216 = arith.constant 1216 : index
    %211 = vector.load %arg14[%c0_128, %c1216] : memref<2x1856xf32, #tpu.memory_space<vmem>>, vector<1x32xf32>
    tpu.vector_store %arg14[%c0_128, %c1216], %210 {strides = array<i32>} : memref<2x1856xf32, #tpu.memory_space<vmem>>, vector<1x32xf32>,
    %212 = vector.extract_strided_slice %133 {offsets = [39, 0], sizes = [1, 32], strides = [1, 1]} : vector<58x32xf32> to vector<1x32xf32>
    %c0_129 = arith.constant 0 : index
    %c1248 = arith.constant 1248 : index
    %213 = vector.load %arg14[%c0_129, %c1248] : memref<2x1856xf32, #tpu.memory_space<vmem>>, vector<1x32xf32>
    tpu.vector_store %arg14[%c0_129, %c1248], %212 {strides = array<i32>} : memref<2x1856xf32, #tpu.memory_space<vmem>>, vector<1x32xf32>,
    %214 = vector.extract_strided_slice %133 {offsets = [40, 0], sizes = [1, 32], strides = [1, 1]} : vector<58x32xf32> to vector<1x32xf32>
    %c0_130 = arith.constant 0 : index
    %c1280 = arith.constant 1280 : index
    %215 = vector.load %arg14[%c0_130, %c1280] : memref<2x1856xf32, #tpu.memory_space<vmem>>, vector<1x32xf32>
    tpu.vector_store %arg14[%c0_130, %c1280], %214 {strides = array<i32>} : memref<2x1856xf32, #tpu.memory_space<vmem>>, vector<1x32xf32>,
    %216 = vector.extract_strided_slice %133 {offsets = [41, 0], sizes = [1, 32], strides = [1, 1]} : vector<58x32xf32> to vector<1x32xf32>
    %c0_131 = arith.constant 0 : index
    %c1312 = arith.constant 1312 : index
    %217 = vector.load %arg14[%c0_131, %c1312] : memref<2x1856xf32, #tpu.memory_space<vmem>>, vector<1x32xf32>
    tpu.vector_store %arg14[%c0_131, %c1312], %216 {strides = array<i32>} : memref<2x1856xf32, #tpu.memory_space<vmem>>, vector<1x32xf32>,
    %218 = vector.extract_strided_slice %133 {offsets = [42, 0], sizes = [1, 32], strides = [1, 1]} : vector<58x32xf32> to vector<1x32xf32>
    %c0_132 = arith.constant 0 : index
    %c1344 = arith.constant 1344 : index
    %219 = vector.load %arg14[%c0_132, %c1344] : memref<2x1856xf32, #tpu.memory_space<vmem>>, vector<1x32xf32>
    tpu.vector_store %arg14[%c0_132, %c1344], %218 {strides = array<i32>} : memref<2x1856xf32, #tpu.memory_space<vmem>>, vector<1x32xf32>,
    %220 = vector.extract_strided_slice %133 {offsets = [43, 0], sizes = [1, 32], strides = [1, 1]} : vector<58x32xf32> to vector<1x32xf32>
    %c0_133 = arith.constant 0 : index
    %c1376 = arith.constant 1376 : index
    %221 = vector.load %arg14[%c0_133, %c1376] : memref<2x1856xf32, #tpu.memory_space<vmem>>, vector<1x32xf32>
    tpu.vector_store %arg14[%c0_133, %c1376], %220 {strides = array<i32>} : memref<2x1856xf32, #tpu.memory_space<vmem>>, vector<1x32xf32>,
    %222 = vector.extract_strided_slice %133 {offsets = [44, 0], sizes = [1, 32], strides = [1, 1]} : vector<58x32xf32> to vector<1x32xf32>
    %c0_134 = arith.constant 0 : index
    %c1408 = arith.constant 1408 : index
    %223 = vector.load %arg14[%c0_134, %c1408] : memref<2x1856xf32, #tpu.memory_space<vmem>>, vector<1x32xf32>
    tpu.vector_store %arg14[%c0_134, %c1408], %222 {strides = array<i32>} : memref<2x1856xf32, #tpu.memory_space<vmem>>, vector<1x32xf32>,
    %224 = vector.extract_strided_slice %133 {offsets = [45, 0], sizes = [1, 32], strides = [1, 1]} : vector<58x32xf32> to vector<1x32xf32>
    %c0_135 = arith.constant 0 : index
    %c1440 = arith.constant 1440 : index
    %225 = vector.load %arg14[%c0_135, %c1440] : memref<2x1856xf32, #tpu.memory_space<vmem>>, vector<1x32xf32>
    tpu.vector_store %arg14[%c0_135, %c1440], %224 {strides = array<i32>} : memref<2x1856xf32, #tpu.memory_space<vmem>>, vector<1x32xf32>,
    %226 = vector.extract_strided_slice %133 {offsets = [46, 0], sizes = [1, 32], strides = [1, 1]} : vector<58x32xf32> to vector<1x32xf32>
    %c0_136 = arith.constant 0 : index
    %c1472 = arith.constant 1472 : index
    %227 = vector.load %arg14[%c0_136, %c1472] : memref<2x1856xf32, #tpu.memory_space<vmem>>, vector<1x32xf32>
    tpu.vector_store %arg14[%c0_136, %c1472], %226 {strides = array<i32>} : memref<2x1856xf32, #tpu.memory_space<vmem>>, vector<1x32xf32>,
    %228 = vector.extract_strided_slice %133 {offsets = [47, 0], sizes = [1, 32], strides = [1, 1]} : vector<58x32xf32> to vector<1x32xf32>
    %c0_137 = arith.constant 0 : index
    %c1504 = arith.constant 1504 : index
    %229 = vector.load %arg14[%c0_137, %c1504] : memref<2x1856xf32, #tpu.memory_space<vmem>>, vector<1x32xf32>
    tpu.vector_store %arg14[%c0_137, %c1504], %228 {strides = array<i32>} : memref<2x1856xf32, #tpu.memory_space<vmem>>, vector<1x32xf32>,
    %230 = vector.extract_strided_slice %133 {offsets = [48, 0], sizes = [1, 32], strides = [1, 1]} : vector<58x32xf32> to vector<1x32xf32>
    %c0_138 = arith.constant 0 : index
    %c1536 = arith.constant 1536 : index
    %231 = vector.load %arg14[%c0_138, %c1536] : memref<2x1856xf32, #tpu.memory_space<vmem>>, vector<1x32xf32>
    tpu.vector_store %arg14[%c0_138, %c1536], %230 {strides = array<i32>} : memref<2x1856xf32, #tpu.memory_space<vmem>>, vector<1x32xf32>,
    %232 = vector.extract_strided_slice %133 {offsets = [49, 0], sizes = [1, 32], strides = [1, 1]} : vector<58x32xf32> to vector<1x32xf32>
    %c0_139 = arith.constant 0 : index
    %c1568 = arith.constant 1568 : index
    %233 = vector.load %arg14[%c0_139, %c1568] : memref<2x1856xf32, #tpu.memory_space<vmem>>, vector<1x32xf32>
    tpu.vector_store %arg14[%c0_139, %c1568], %232 {strides = array<i32>} : memref<2x1856xf32, #tpu.memory_space<vmem>>, vector<1x32xf32>,
    %234 = vector.extract_strided_slice %133 {offsets = [50, 0], sizes = [1, 32], strides = [1, 1]} : vector<58x32xf32> to vector<1x32xf32>
    %c0_140 = arith.constant 0 : index
    %c1600 = arith.constant 1600 : index
    %235 = vector.load %arg14[%c0_140, %c1600] : memref<2x1856xf32, #tpu.memory_space<vmem>>, vector<1x32xf32>
    tpu.vector_store %arg14[%c0_140, %c1600], %234 {strides = array<i32>} : memref<2x1856xf32, #tpu.memory_space<vmem>>, vector<1x32xf32>,
    %236 = vector.extract_strided_slice %133 {offsets = [51, 0], sizes = [1, 32], strides = [1, 1]} : vector<58x32xf32> to vector<1x32xf32>
    %c0_141 = arith.constant 0 : index
    %c1632 = arith.constant 1632 : index
    %237 = vector.load %arg14[%c0_141, %c1632] : memref<2x1856xf32, #tpu.memory_space<vmem>>, vector<1x32xf32>
    tpu.vector_store %arg14[%c0_141, %c1632], %236 {strides = array<i32>} : memref<2x1856xf32, #tpu.memory_space<vmem>>, vector<1x32xf32>,
    %238 = vector.extract_strided_slice %133 {offsets = [52, 0], sizes = [1, 32], strides = [1, 1]} : vector<58x32xf32> to vector<1x32xf32>
    %c0_142 = arith.constant 0 : index
    %c1664 = arith.constant 1664 : index
    %239 = vector.load %arg14[%c0_142, %c1664] : memref<2x1856xf32, #tpu.memory_space<vmem>>, vector<1x32xf32>
    tpu.vector_store %arg14[%c0_142, %c1664], %238 {strides = array<i32>} : memref<2x1856xf32, #tpu.memory_space<vmem>>, vector<1x32xf32>,
    %240 = vector.extract_strided_slice %133 {offsets = [53, 0], sizes = [1, 32], strides = [1, 1]} : vector<58x32xf32> to vector<1x32xf32>
    %c0_143 = arith.constant 0 : index
    %c1696 = arith.constant 1696 : index
    %241 = vector.load %arg14[%c0_143, %c1696] : memref<2x1856xf32, #tpu.memory_space<vmem>>, vector<1x32xf32>
    tpu.vector_store %arg14[%c0_143, %c1696], %240 {strides = array<i32>} : memref<2x1856xf32, #tpu.memory_space<vmem>>, vector<1x32xf32>,
    %242 = vector.extract_strided_slice %133 {offsets = [54, 0], sizes = [1, 32], strides = [1, 1]} : vector<58x32xf32> to vector<1x32xf32>
    %c0_144 = arith.constant 0 : index
    %c1728 = arith.constant 1728 : index
    %243 = vector.load %arg14[%c0_144, %c1728] : memref<2x1856xf32, #tpu.memory_space<vmem>>, vector<1x32xf32>
    tpu.vector_store %arg14[%c0_144, %c1728], %242 {strides = array<i32>} : memref<2x1856xf32, #tpu.memory_space<vmem>>, vector<1x32xf32>,
    %244 = vector.extract_strided_slice %133 {offsets = [55, 0], sizes = [1, 32], strides = [1, 1]} : vector<58x32xf32> to vector<1x32xf32>
    %c0_145 = arith.constant 0 : index
    %c1760 = arith.constant 1760 : index
    %245 = vector.load %arg14[%c0_145, %c1760] : memref<2x1856xf32, #tpu.memory_space<vmem>>, vector<1x32xf32>
    tpu.vector_store %arg14[%c0_145, %c1760], %244 {strides = array<i32>} : memref<2x1856xf32, #tpu.memory_space<vmem>>, vector<1x32xf32>,
    %246 = vector.extract_strided_slice %133 {offsets = [56, 0], sizes = [1, 32], strides = [1, 1]} : vector<58x32xf32> to vector<1x32xf32>
    %c0_146 = arith.constant 0 : index
    %c1792 = arith.constant 1792 : index
    %247 = vector.load %arg14[%c0_146, %c1792] : memref<2x1856xf32, #tpu.memory_space<vmem>>, vector<1x32xf32>
    tpu.vector_store %arg14[%c0_146, %c1792], %246 {strides = array<i32>} : memref<2x1856xf32, #tpu.memory_space<vmem>>, vector<1x32xf32>,
    %248 = vector.extract_strided_slice %133 {offsets = [57, 0], sizes = [1, 32], strides = [1, 1]} : vector<58x32xf32> to vector<1x32xf32>
    %c0_147 = arith.constant 0 : index
    %c1824 = arith.constant 1824 : index
    %249 = vector.load %arg14[%c0_147, %c1824] : memref<2x1856xf32, #tpu.memory_space<vmem>>, vector<1x32xf32>
    tpu.vector_store %arg14[%c0_147, %c1824], %248 {strides = array<i32>} : memref<2x1856xf32, #tpu.memory_space<vmem>>, vector<1x32xf32>,
    %c64_148 = arith.constant 64 : index
    %c0_149 = arith.constant 0 : index
    %250 = vector.load %arg0[%c64_148, %c0_149] : memref<128x36xf32, #tpu.memory_space<vmem>>, vector<64x36xf32>
    %c0_150 = arith.constant 0 : index
    %c0_151 = arith.constant 0 : index
    %251 = vector.load %arg2[%c0_150, %c0_151] : memref<1x88xf32, #tpu.memory_space<vmem>>, vector<1x88xf32>
    %252 = vector.extract_strided_slice %250 {offsets = [0, 0], sizes = [62, 36], strides = [1, 1]} : vector<64x36xf32> to vector<62x36xf32>
    %c0_152 = arith.constant 0 : index
    %c0_153 = arith.constant 0 : index
    %c0_154 = arith.constant 0 : index
    %253 = vector.load %arg1[%c0_152, %c0_153, %c0_154] : memref<9x36x88xf32, #tpu.memory_space<vmem>>, vector<1x36x88xf32>
    %254 = vector.shape_cast %253 : vector<1x36x88xf32> to vector<36x88xf32>
    %cst_155 = arith.constant dense<0.000000e+00> : vector<62x88xf32>
    %255 = tpu.matmul %252, %254, %cst_155 {dimension_numbers = #tpu.dot_dimension_numbers<[1], [0], [0], [1], [0, 0, 1, 1], [], []>} : vector<62x36xf32>, vector<36x88xf32>, vector<62x88xf32> -> vector<62x88xf32>
    %256 = vector.extract_strided_slice %250 {offsets = [1, 0], sizes = [62, 36], strides = [1, 1]} : vector<64x36xf32> to vector<62x36xf32>
    %c3_156 = arith.constant 3 : index
    %c0_157 = arith.constant 0 : index
    %c0_158 = arith.constant 0 : index
    %257 = vector.load %arg1[%c3_156, %c0_157, %c0_158] : memref<9x36x88xf32, #tpu.memory_space<vmem>>, vector<1x36x88xf32>
    %258 = vector.shape_cast %257 : vector<1x36x88xf32> to vector<36x88xf32>
    %cst_159 = arith.constant dense<0.000000e+00> : vector<62x88xf32>
    %259 = tpu.matmul %256, %258, %cst_159 {dimension_numbers = #tpu.dot_dimension_numbers<[1], [0], [0], [1], [0, 0, 1, 1], [], []>} : vector<62x36xf32>, vector<36x88xf32>, vector<62x88xf32> -> vector<62x88xf32>
    %260 = arith.addf %255, %259 : vector<62x88xf32>
    %261 = vector.extract_strided_slice %250 {offsets = [2, 0], sizes = [62, 36], strides = [1, 1]} : vector<64x36xf32> to vector<62x36xf32>
    %c6_160 = arith.constant 6 : index
    %c0_161 = arith.constant 0 : index
    %c0_162 = arith.constant 0 : index
    %262 = vector.load %arg1[%c6_160, %c0_161, %c0_162] : memref<9x36x88xf32, #tpu.memory_space<vmem>>, vector<1x36x88xf32>
    %263 = vector.shape_cast %262 : vector<1x36x88xf32> to vector<36x88xf32>
    %cst_163 = arith.constant dense<0.000000e+00> : vector<62x88xf32>
    %264 = tpu.matmul %261, %263, %cst_163 {dimension_numbers = #tpu.dot_dimension_numbers<[1], [0], [0], [1], [0, 0, 1, 1], [], []>} : vector<62x36xf32>, vector<36x88xf32>, vector<62x88xf32> -> vector<62x88xf32>
    %265 = arith.addf %260, %264 : vector<62x88xf32>
    %266 = vector.broadcast %251 : vector<1x88xf32> to vector<62x88xf32>
    %267 = arith.addf %265, %266 : vector<62x88xf32>
    %cst_164 = arith.constant 0.000000e+00 : f32
    %268 = vector.broadcast %cst_164 : f32 to vector<62x88xf32>
    %269 = arith.maximumf %267, %268 : vector<62x88xf32>
    %270 = vector.extract_strided_slice %250 {offsets = [0, 0], sizes = [62, 36], strides = [1, 1]} : vector<64x36xf32> to vector<62x36xf32>
    %c1_165 = arith.constant 1 : index
    %c0_166 = arith.constant 0 : index
    %c0_167 = arith.constant 0 : index
    %271 = vector.load %arg1[%c1_165, %c0_166, %c0_167] : memref<9x36x88xf32, #tpu.memory_space<vmem>>, vector<1x36x88xf32>
    %272 = vector.shape_cast %271 : vector<1x36x88xf32> to vector<36x88xf32>
    %cst_168 = arith.constant dense<0.000000e+00> : vector<62x88xf32>
    %273 = tpu.matmul %270, %272, %cst_168 {dimension_numbers = #tpu.dot_dimension_numbers<[1], [0], [0], [1], [0, 0, 1, 1], [], []>} : vector<62x36xf32>, vector<36x88xf32>, vector<62x88xf32> -> vector<62x88xf32>
    %274 = vector.extract_strided_slice %250 {offsets = [1, 0], sizes = [62, 36], strides = [1, 1]} : vector<64x36xf32> to vector<62x36xf32>
    %c4_169 = arith.constant 4 : index
    %c0_170 = arith.constant 0 : index
    %c0_171 = arith.constant 0 : index
    %275 = vector.load %arg1[%c4_169, %c0_170, %c0_171] : memref<9x36x88xf32, #tpu.memory_space<vmem>>, vector<1x36x88xf32>
    %276 = vector.shape_cast %275 : vector<1x36x88xf32> to vector<36x88xf32>
    %cst_172 = arith.constant dense<0.000000e+00> : vector<62x88xf32>
    %277 = tpu.matmul %274, %276, %cst_172 {dimension_numbers = #tpu.dot_dimension_numbers<[1], [0], [0], [1], [0, 0, 1, 1], [], []>} : vector<62x36xf32>, vector<36x88xf32>, vector<62x88xf32> -> vector<62x88xf32>
    %278 = arith.addf %273, %277 : vector<62x88xf32>
    %279 = vector.extract_strided_slice %250 {offsets = [2, 0], sizes = [62, 36], strides = [1, 1]} : vector<64x36xf32> to vector<62x36xf32>
    %c7_173 = arith.constant 7 : index
    %c0_174 = arith.constant 0 : index
    %c0_175 = arith.constant 0 : index
    %280 = vector.load %arg1[%c7_173, %c0_174, %c0_175] : memref<9x36x88xf32, #tpu.memory_space<vmem>>, vector<1x36x88xf32>
    %281 = vector.shape_cast %280 : vector<1x36x88xf32> to vector<36x88xf32>
    %cst_176 = arith.constant dense<0.000000e+00> : vector<62x88xf32>
    %282 = tpu.matmul %279, %281, %cst_176 {dimension_numbers = #tpu.dot_dimension_numbers<[1], [0], [0], [1], [0, 0, 1, 1], [], []>} : vector<62x36xf32>, vector<36x88xf32>, vector<62x88xf32> -> vector<62x88xf32>
    %283 = arith.addf %278, %282 : vector<62x88xf32>
    %284 = vector.broadcast %251 : vector<1x88xf32> to vector<62x88xf32>
    %285 = arith.addf %283, %284 : vector<62x88xf32>
    %cst_177 = arith.constant 0.000000e+00 : f32
    %286 = vector.broadcast %cst_177 : f32 to vector<62x88xf32>
    %287 = arith.maximumf %285, %286 : vector<62x88xf32>
    %288 = arith.maximumf %269, %287 : vector<62x88xf32>
    %289 = vector.extract_strided_slice %250 {offsets = [0, 0], sizes = [62, 36], strides = [1, 1]} : vector<64x36xf32> to vector<62x36xf32>
    %c2_178 = arith.constant 2 : index
    %c0_179 = arith.constant 0 : index
    %c0_180 = arith.constant 0 : index
    %290 = vector.load %arg1[%c2_178, %c0_179, %c0_180] : memref<9x36x88xf32, #tpu.memory_space<vmem>>, vector<1x36x88xf32>
    %291 = vector.shape_cast %290 : vector<1x36x88xf32> to vector<36x88xf32>
    %cst_181 = arith.constant dense<0.000000e+00> : vector<62x88xf32>
    %292 = tpu.matmul %289, %291, %cst_181 {dimension_numbers = #tpu.dot_dimension_numbers<[1], [0], [0], [1], [0, 0, 1, 1], [], []>} : vector<62x36xf32>, vector<36x88xf32>, vector<62x88xf32> -> vector<62x88xf32>
    %293 = vector.extract_strided_slice %250 {offsets = [1, 0], sizes = [62, 36], strides = [1, 1]} : vector<64x36xf32> to vector<62x36xf32>
    %c5_182 = arith.constant 5 : index
    %c0_183 = arith.constant 0 : index
    %c0_184 = arith.constant 0 : index
    %294 = vector.load %arg1[%c5_182, %c0_183, %c0_184] : memref<9x36x88xf32, #tpu.memory_space<vmem>>, vector<1x36x88xf32>
    %295 = vector.shape_cast %294 : vector<1x36x88xf32> to vector<36x88xf32>
    %cst_185 = arith.constant dense<0.000000e+00> : vector<62x88xf32>
    %296 = tpu.matmul %293, %295, %cst_185 {dimension_numbers = #tpu.dot_dimension_numbers<[1], [0], [0], [1], [0, 0, 1, 1], [], []>} : vector<62x36xf32>, vector<36x88xf32>, vector<62x88xf32> -> vector<62x88xf32>
    %297 = arith.addf %292, %296 : vector<62x88xf32>
    %298 = vector.extract_strided_slice %250 {offsets = [2, 0], sizes = [62, 36], strides = [1, 1]} : vector<64x36xf32> to vector<62x36xf32>
    %c8_186 = arith.constant 8 : index
    %c0_187 = arith.constant 0 : index
    %c0_188 = arith.constant 0 : index
    %299 = vector.load %arg1[%c8_186, %c0_187, %c0_188] : memref<9x36x88xf32, #tpu.memory_space<vmem>>, vector<1x36x88xf32>
    %300 = vector.shape_cast %299 : vector<1x36x88xf32> to vector<36x88xf32>
    %cst_189 = arith.constant dense<0.000000e+00> : vector<62x88xf32>
    %301 = tpu.matmul %298, %300, %cst_189 {dimension_numbers = #tpu.dot_dimension_numbers<[1], [0], [0], [1], [0, 0, 1, 1], [], []>} : vector<62x36xf32>, vector<36x88xf32>, vector<62x88xf32> -> vector<62x88xf32>
    %302 = arith.addf %297, %301 : vector<62x88xf32>
    %303 = vector.broadcast %251 : vector<1x88xf32> to vector<62x88xf32>
    %304 = arith.addf %302, %303 : vector<62x88xf32>
    %cst_190 = arith.constant 0.000000e+00 : f32
    %305 = vector.broadcast %cst_190 : f32 to vector<62x88xf32>
    %306 = arith.maximumf %304, %305 : vector<62x88xf32>
    %307 = arith.maximumf %288, %306 : vector<62x88xf32>
    %c0_191 = arith.constant 0 : index
    %c0_192 = arith.constant 0 : index
    %308 = vector.load %arg4[%c0_191, %c0_192] : memref<1x48xf32, #tpu.memory_space<vmem>>, vector<1x48xf32>
    %309 = vector.extract_strided_slice %307 {offsets = [0, 0], sizes = [60, 88], strides = [1, 1]} : vector<62x88xf32> to vector<60x88xf32>
    %c0_193 = arith.constant 0 : index
    %c0_194 = arith.constant 0 : index
    %c0_195 = arith.constant 0 : index
    %310 = vector.load %arg3[%c0_193, %c0_194, %c0_195] : memref<9x88x48xf32, #tpu.memory_space<vmem>>, vector<1x88x48xf32>
    %311 = vector.shape_cast %310 : vector<1x88x48xf32> to vector<88x48xf32>
    %cst_196 = arith.constant dense<0.000000e+00> : vector<60x48xf32>
    %312 = tpu.matmul %309, %311, %cst_196 {dimension_numbers = #tpu.dot_dimension_numbers<[1], [0], [0], [1], [0, 0, 1, 1], [], []>} : vector<60x88xf32>, vector<88x48xf32>, vector<60x48xf32> -> vector<60x48xf32>
    %313 = vector.extract_strided_slice %307 {offsets = [1, 0], sizes = [60, 88], strides = [1, 1]} : vector<62x88xf32> to vector<60x88xf32>
    %c3_197 = arith.constant 3 : index
    %c0_198 = arith.constant 0 : index
    %c0_199 = arith.constant 0 : index
    %314 = vector.load %arg3[%c3_197, %c0_198, %c0_199] : memref<9x88x48xf32, #tpu.memory_space<vmem>>, vector<1x88x48xf32>
    %315 = vector.shape_cast %314 : vector<1x88x48xf32> to vector<88x48xf32>
    %cst_200 = arith.constant dense<0.000000e+00> : vector<60x48xf32>
    %316 = tpu.matmul %313, %315, %cst_200 {dimension_numbers = #tpu.dot_dimension_numbers<[1], [0], [0], [1], [0, 0, 1, 1], [], []>} : vector<60x88xf32>, vector<88x48xf32>, vector<60x48xf32> -> vector<60x48xf32>
    %317 = arith.addf %312, %316 : vector<60x48xf32>
    %318 = vector.extract_strided_slice %307 {offsets = [2, 0], sizes = [60, 88], strides = [1, 1]} : vector<62x88xf32> to vector<60x88xf32>
    %c6_201 = arith.constant 6 : index
    %c0_202 = arith.constant 0 : index
    %c0_203 = arith.constant 0 : index
    %319 = vector.load %arg3[%c6_201, %c0_202, %c0_203] : memref<9x88x48xf32, #tpu.memory_space<vmem>>, vector<1x88x48xf32>
    %320 = vector.shape_cast %319 : vector<1x88x48xf32> to vector<88x48xf32>
    %cst_204 = arith.constant dense<0.000000e+00> : vector<60x48xf32>
    %321 = tpu.matmul %318, %320, %cst_204 {dimension_numbers = #tpu.dot_dimension_numbers<[1], [0], [0], [1], [0, 0, 1, 1], [], []>} : vector<60x88xf32>, vector<88x48xf32>, vector<60x48xf32> -> vector<60x48xf32>
    %322 = arith.addf %317, %321 : vector<60x48xf32>
    %323 = vector.broadcast %308 : vector<1x48xf32> to vector<60x48xf32>
    %324 = arith.addf %322, %323 : vector<60x48xf32>
    %cst_205 = arith.constant 0.000000e+00 : f32
    %325 = vector.broadcast %cst_205 : f32 to vector<60x48xf32>
    %326 = arith.maximumf %324, %325 : vector<60x48xf32>
    %327 = vector.extract_strided_slice %307 {offsets = [0, 0], sizes = [60, 88], strides = [1, 1]} : vector<62x88xf32> to vector<60x88xf32>
    %c1_206 = arith.constant 1 : index
    %c0_207 = arith.constant 0 : index
    %c0_208 = arith.constant 0 : index
    %328 = vector.load %arg3[%c1_206, %c0_207, %c0_208] : memref<9x88x48xf32, #tpu.memory_space<vmem>>, vector<1x88x48xf32>
    %329 = vector.shape_cast %328 : vector<1x88x48xf32> to vector<88x48xf32>
    %cst_209 = arith.constant dense<0.000000e+00> : vector<60x48xf32>
    %330 = tpu.matmul %327, %329, %cst_209 {dimension_numbers = #tpu.dot_dimension_numbers<[1], [0], [0], [1], [0, 0, 1, 1], [], []>} : vector<60x88xf32>, vector<88x48xf32>, vector<60x48xf32> -> vector<60x48xf32>
    %331 = vector.extract_strided_slice %307 {offsets = [1, 0], sizes = [60, 88], strides = [1, 1]} : vector<62x88xf32> to vector<60x88xf32>
    %c4_210 = arith.constant 4 : index
    %c0_211 = arith.constant 0 : index
    %c0_212 = arith.constant 0 : index
    %332 = vector.load %arg3[%c4_210, %c0_211, %c0_212] : memref<9x88x48xf32, #tpu.memory_space<vmem>>, vector<1x88x48xf32>
    %333 = vector.shape_cast %332 : vector<1x88x48xf32> to vector<88x48xf32>
    %cst_213 = arith.constant dense<0.000000e+00> : vector<60x48xf32>
    %334 = tpu.matmul %331, %333, %cst_213 {dimension_numbers = #tpu.dot_dimension_numbers<[1], [0], [0], [1], [0, 0, 1, 1], [], []>} : vector<60x88xf32>, vector<88x48xf32>, vector<60x48xf32> -> vector<60x48xf32>
    %335 = arith.addf %330, %334 : vector<60x48xf32>
    %336 = vector.extract_strided_slice %307 {offsets = [2, 0], sizes = [60, 88], strides = [1, 1]} : vector<62x88xf32> to vector<60x88xf32>
    %c7_214 = arith.constant 7 : index
    %c0_215 = arith.constant 0 : index
    %c0_216 = arith.constant 0 : index
    %337 = vector.load %arg3[%c7_214, %c0_215, %c0_216] : memref<9x88x48xf32, #tpu.memory_space<vmem>>, vector<1x88x48xf32>
    %338 = vector.shape_cast %337 : vector<1x88x48xf32> to vector<88x48xf32>
    %cst_217 = arith.constant dense<0.000000e+00> : vector<60x48xf32>
    %339 = tpu.matmul %336, %338, %cst_217 {dimension_numbers = #tpu.dot_dimension_numbers<[1], [0], [0], [1], [0, 0, 1, 1], [], []>} : vector<60x88xf32>, vector<88x48xf32>, vector<60x48xf32> -> vector<60x48xf32>
    %340 = arith.addf %335, %339 : vector<60x48xf32>
    %341 = vector.broadcast %308 : vector<1x48xf32> to vector<60x48xf32>
    %342 = arith.addf %340, %341 : vector<60x48xf32>
    %cst_218 = arith.constant 0.000000e+00 : f32
    %343 = vector.broadcast %cst_218 : f32 to vector<60x48xf32>
    %344 = arith.maximumf %342, %343 : vector<60x48xf32>
    %345 = arith.maximumf %326, %344 : vector<60x48xf32>
    %346 = vector.extract_strided_slice %307 {offsets = [0, 0], sizes = [60, 88], strides = [1, 1]} : vector<62x88xf32> to vector<60x88xf32>
    %c2_219 = arith.constant 2 : index
    %c0_220 = arith.constant 0 : index
    %c0_221 = arith.constant 0 : index
    %347 = vector.load %arg3[%c2_219, %c0_220, %c0_221] : memref<9x88x48xf32, #tpu.memory_space<vmem>>, vector<1x88x48xf32>
    %348 = vector.shape_cast %347 : vector<1x88x48xf32> to vector<88x48xf32>
    %cst_222 = arith.constant dense<0.000000e+00> : vector<60x48xf32>
    %349 = tpu.matmul %346, %348, %cst_222 {dimension_numbers = #tpu.dot_dimension_numbers<[1], [0], [0], [1], [0, 0, 1, 1], [], []>} : vector<60x88xf32>, vector<88x48xf32>, vector<60x48xf32> -> vector<60x48xf32>
    %350 = vector.extract_strided_slice %307 {offsets = [1, 0], sizes = [60, 88], strides = [1, 1]} : vector<62x88xf32> to vector<60x88xf32>
    %c5_223 = arith.constant 5 : index
    %c0_224 = arith.constant 0 : index
    %c0_225 = arith.constant 0 : index
    %351 = vector.load %arg3[%c5_223, %c0_224, %c0_225] : memref<9x88x48xf32, #tpu.memory_space<vmem>>, vector<1x88x48xf32>
    %352 = vector.shape_cast %351 : vector<1x88x48xf32> to vector<88x48xf32>
    %cst_226 = arith.constant dense<0.000000e+00> : vector<60x48xf32>
    %353 = tpu.matmul %350, %352, %cst_226 {dimension_numbers = #tpu.dot_dimension_numbers<[1], [0], [0], [1], [0, 0, 1, 1], [], []>} : vector<60x88xf32>, vector<88x48xf32>, vector<60x48xf32> -> vector<60x48xf32>
    %354 = arith.addf %349, %353 : vector<60x48xf32>
    %355 = vector.extract_strided_slice %307 {offsets = [2, 0], sizes = [60, 88], strides = [1, 1]} : vector<62x88xf32> to vector<60x88xf32>
    %c8_227 = arith.constant 8 : index
    %c0_228 = arith.constant 0 : index
    %c0_229 = arith.constant 0 : index
    %356 = vector.load %arg3[%c8_227, %c0_228, %c0_229] : memref<9x88x48xf32, #tpu.memory_space<vmem>>, vector<1x88x48xf32>
    %357 = vector.shape_cast %356 : vector<1x88x48xf32> to vector<88x48xf32>
    %cst_230 = arith.constant dense<0.000000e+00> : vector<60x48xf32>
    %358 = tpu.matmul %355, %357, %cst_230 {dimension_numbers = #tpu.dot_dimension_numbers<[1], [0], [0], [1], [0, 0, 1, 1], [], []>} : vector<60x88xf32>, vector<88x48xf32>, vector<60x48xf32> -> vector<60x48xf32>
    %359 = arith.addf %354, %358 : vector<60x48xf32>
    %360 = vector.broadcast %308 : vector<1x48xf32> to vector<60x48xf32>
    %361 = arith.addf %359, %360 : vector<60x48xf32>
    %cst_231 = arith.constant 0.000000e+00 : f32
    %362 = vector.broadcast %cst_231 : f32 to vector<60x48xf32>
    %363 = arith.maximumf %361, %362 : vector<60x48xf32>
    %364 = arith.maximumf %345, %363 : vector<60x48xf32>
    %c0_232 = arith.constant 0 : index
    %c0_233 = arith.constant 0 : index
    %365 = vector.load %arg6[%c0_232, %c0_233] : memref<1x32xf32, #tpu.memory_space<vmem>>, vector<1x32xf32>
    %366 = vector.extract_strided_slice %364 {offsets = [0, 0], sizes = [58, 48], strides = [1, 1]} : vector<60x48xf32> to vector<58x48xf32>
    %c0_234 = arith.constant 0 : index
    %c0_235 = arith.constant 0 : index
    %c0_236 = arith.constant 0 : index
    %367 = vector.load %arg5[%c0_234, %c0_235, %c0_236] : memref<3x48x32xf32, #tpu.memory_space<vmem>>, vector<1x48x32xf32>
    %368 = vector.shape_cast %367 : vector<1x48x32xf32> to vector<48x32xf32>
    %cst_237 = arith.constant dense<0.000000e+00> : vector<58x32xf32>
    %369 = tpu.matmul %366, %368, %cst_237 {dimension_numbers = #tpu.dot_dimension_numbers<[1], [0], [0], [1], [0, 0, 1, 1], [], []>} : vector<58x48xf32>, vector<48x32xf32>, vector<58x32xf32> -> vector<58x32xf32>
    %370 = vector.extract_strided_slice %364 {offsets = [1, 0], sizes = [58, 48], strides = [1, 1]} : vector<60x48xf32> to vector<58x48xf32>
    %c1_238 = arith.constant 1 : index
    %c0_239 = arith.constant 0 : index
    %c0_240 = arith.constant 0 : index
    %371 = vector.load %arg5[%c1_238, %c0_239, %c0_240] : memref<3x48x32xf32, #tpu.memory_space<vmem>>, vector<1x48x32xf32>
    %372 = vector.shape_cast %371 : vector<1x48x32xf32> to vector<48x32xf32>
    %cst_241 = arith.constant dense<0.000000e+00> : vector<58x32xf32>
    %373 = tpu.matmul %370, %372, %cst_241 {dimension_numbers = #tpu.dot_dimension_numbers<[1], [0], [0], [1], [0, 0, 1, 1], [], []>} : vector<58x48xf32>, vector<48x32xf32>, vector<58x32xf32> -> vector<58x32xf32>
    %374 = arith.addf %369, %373 : vector<58x32xf32>
    %375 = vector.extract_strided_slice %364 {offsets = [2, 0], sizes = [58, 48], strides = [1, 1]} : vector<60x48xf32> to vector<58x48xf32>
    %c2_242 = arith.constant 2 : index
    %c0_243 = arith.constant 0 : index
    %c0_244 = arith.constant 0 : index
    %376 = vector.load %arg5[%c2_242, %c0_243, %c0_244] : memref<3x48x32xf32, #tpu.memory_space<vmem>>, vector<1x48x32xf32>
    %377 = vector.shape_cast %376 : vector<1x48x32xf32> to vector<48x32xf32>
    %cst_245 = arith.constant dense<0.000000e+00> : vector<58x32xf32>
    %378 = tpu.matmul %375, %377, %cst_245 {dimension_numbers = #tpu.dot_dimension_numbers<[1], [0], [0], [1], [0, 0, 1, 1], [], []>} : vector<58x48xf32>, vector<48x32xf32>, vector<58x32xf32> -> vector<58x32xf32>
    %379 = arith.addf %374, %378 : vector<58x32xf32>
    %380 = vector.broadcast %365 : vector<1x32xf32> to vector<58x32xf32>
    %381 = arith.addf %379, %380 : vector<58x32xf32>
    %cst_246 = arith.constant 0.000000e+00 : f32
    %382 = vector.broadcast %cst_246 : f32 to vector<58x32xf32>
    %383 = arith.maximumf %381, %382 : vector<58x32xf32>
    %384 = vector.extract_strided_slice %383 {offsets = [0, 0], sizes = [1, 32], strides = [1, 1]} : vector<58x32xf32> to vector<1x32xf32>
    %c1_247 = arith.constant 1 : index
    %c0_248 = arith.constant 0 : index
    %385 = vector.load %arg14[%c1_247, %c0_248] : memref<2x1856xf32, #tpu.memory_space<vmem>>, vector<1x32xf32>
    tpu.vector_store %arg14[%c1_247, %c0_248], %384 {strides = array<i32>} : memref<2x1856xf32, #tpu.memory_space<vmem>>, vector<1x32xf32>,
    %386 = vector.extract_strided_slice %383 {offsets = [1, 0], sizes = [1, 32], strides = [1, 1]} : vector<58x32xf32> to vector<1x32xf32>
    %c1_249 = arith.constant 1 : index
    %c32_250 = arith.constant 32 : index
    %387 = vector.load %arg14[%c1_249, %c32_250] : memref<2x1856xf32, #tpu.memory_space<vmem>>, vector<1x32xf32>
    tpu.vector_store %arg14[%c1_249, %c32_250], %386 {strides = array<i32>} : memref<2x1856xf32, #tpu.memory_space<vmem>>, vector<1x32xf32>,
    %388 = vector.extract_strided_slice %383 {offsets = [2, 0], sizes = [1, 32], strides = [1, 1]} : vector<58x32xf32> to vector<1x32xf32>
    %c1_251 = arith.constant 1 : index
    %c64_252 = arith.constant 64 : index
    %389 = vector.load %arg14[%c1_251, %c64_252] : memref<2x1856xf32, #tpu.memory_space<vmem>>, vector<1x32xf32>
    tpu.vector_store %arg14[%c1_251, %c64_252], %388 {strides = array<i32>} : memref<2x1856xf32, #tpu.memory_space<vmem>>, vector<1x32xf32>,
    %390 = vector.extract_strided_slice %383 {offsets = [3, 0], sizes = [1, 32], strides = [1, 1]} : vector<58x32xf32> to vector<1x32xf32>
    %c1_253 = arith.constant 1 : index
    %c96_254 = arith.constant 96 : index
    %391 = vector.load %arg14[%c1_253, %c96_254] : memref<2x1856xf32, #tpu.memory_space<vmem>>, vector<1x32xf32>
    tpu.vector_store %arg14[%c1_253, %c96_254], %390 {strides = array<i32>} : memref<2x1856xf32, #tpu.memory_space<vmem>>, vector<1x32xf32>,
    %392 = vector.extract_strided_slice %383 {offsets = [4, 0], sizes = [1, 32], strides = [1, 1]} : vector<58x32xf32> to vector<1x32xf32>
    %c1_255 = arith.constant 1 : index
    %c128_256 = arith.constant 128 : index
    %393 = vector.load %arg14[%c1_255, %c128_256] : memref<2x1856xf32, #tpu.memory_space<vmem>>, vector<1x32xf32>
    tpu.vector_store %arg14[%c1_255, %c128_256], %392 {strides = array<i32>} : memref<2x1856xf32, #tpu.memory_space<vmem>>, vector<1x32xf32>,
    %394 = vector.extract_strided_slice %383 {offsets = [5, 0], sizes = [1, 32], strides = [1, 1]} : vector<58x32xf32> to vector<1x32xf32>
    %c1_257 = arith.constant 1 : index
    %c160_258 = arith.constant 160 : index
    %395 = vector.load %arg14[%c1_257, %c160_258] : memref<2x1856xf32, #tpu.memory_space<vmem>>, vector<1x32xf32>
    tpu.vector_store %arg14[%c1_257, %c160_258], %394 {strides = array<i32>} : memref<2x1856xf32, #tpu.memory_space<vmem>>, vector<1x32xf32>,
    %396 = vector.extract_strided_slice %383 {offsets = [6, 0], sizes = [1, 32], strides = [1, 1]} : vector<58x32xf32> to vector<1x32xf32>
    %c1_259 = arith.constant 1 : index
    %c192_260 = arith.constant 192 : index
    %397 = vector.load %arg14[%c1_259, %c192_260] : memref<2x1856xf32, #tpu.memory_space<vmem>>, vector<1x32xf32>
    tpu.vector_store %arg14[%c1_259, %c192_260], %396 {strides = array<i32>} : memref<2x1856xf32, #tpu.memory_space<vmem>>, vector<1x32xf32>,
    %398 = vector.extract_strided_slice %383 {offsets = [7, 0], sizes = [1, 32], strides = [1, 1]} : vector<58x32xf32> to vector<1x32xf32>
    %c1_261 = arith.constant 1 : index
    %c224_262 = arith.constant 224 : index
    %399 = vector.load %arg14[%c1_261, %c224_262] : memref<2x1856xf32, #tpu.memory_space<vmem>>, vector<1x32xf32>
    tpu.vector_store %arg14[%c1_261, %c224_262], %398 {strides = array<i32>} : memref<2x1856xf32, #tpu.memory_space<vmem>>, vector<1x32xf32>,
    %400 = vector.extract_strided_slice %383 {offsets = [8, 0], sizes = [1, 32], strides = [1, 1]} : vector<58x32xf32> to vector<1x32xf32>
    %c1_263 = arith.constant 1 : index
    %c256_264 = arith.constant 256 : index
    %401 = vector.load %arg14[%c1_263, %c256_264] : memref<2x1856xf32, #tpu.memory_space<vmem>>, vector<1x32xf32>
    tpu.vector_store %arg14[%c1_263, %c256_264], %400 {strides = array<i32>} : memref<2x1856xf32, #tpu.memory_space<vmem>>, vector<1x32xf32>,
    %402 = vector.extract_strided_slice %383 {offsets = [9, 0], sizes = [1, 32], strides = [1, 1]} : vector<58x32xf32> to vector<1x32xf32>
    %c1_265 = arith.constant 1 : index
    %c288_266 = arith.constant 288 : index
    %403 = vector.load %arg14[%c1_265, %c288_266] : memref<2x1856xf32, #tpu.memory_space<vmem>>, vector<1x32xf32>
    tpu.vector_store %arg14[%c1_265, %c288_266], %402 {strides = array<i32>} : memref<2x1856xf32, #tpu.memory_space<vmem>>, vector<1x32xf32>,
    %404 = vector.extract_strided_slice %383 {offsets = [10, 0], sizes = [1, 32], strides = [1, 1]} : vector<58x32xf32> to vector<1x32xf32>
    %c1_267 = arith.constant 1 : index
    %c320_268 = arith.constant 320 : index
    %405 = vector.load %arg14[%c1_267, %c320_268] : memref<2x1856xf32, #tpu.memory_space<vmem>>, vector<1x32xf32>
    tpu.vector_store %arg14[%c1_267, %c320_268], %404 {strides = array<i32>} : memref<2x1856xf32, #tpu.memory_space<vmem>>, vector<1x32xf32>,
    %406 = vector.extract_strided_slice %383 {offsets = [11, 0], sizes = [1, 32], strides = [1, 1]} : vector<58x32xf32> to vector<1x32xf32>
    %c1_269 = arith.constant 1 : index
    %c352_270 = arith.constant 352 : index
    %407 = vector.load %arg14[%c1_269, %c352_270] : memref<2x1856xf32, #tpu.memory_space<vmem>>, vector<1x32xf32>
    tpu.vector_store %arg14[%c1_269, %c352_270], %406 {strides = array<i32>} : memref<2x1856xf32, #tpu.memory_space<vmem>>, vector<1x32xf32>,
    %408 = vector.extract_strided_slice %383 {offsets = [12, 0], sizes = [1, 32], strides = [1, 1]} : vector<58x32xf32> to vector<1x32xf32>
    %c1_271 = arith.constant 1 : index
    %c384_272 = arith.constant 384 : index
    %409 = vector.load %arg14[%c1_271, %c384_272] : memref<2x1856xf32, #tpu.memory_space<vmem>>, vector<1x32xf32>
    tpu.vector_store %arg14[%c1_271, %c384_272], %408 {strides = array<i32>} : memref<2x1856xf32, #tpu.memory_space<vmem>>, vector<1x32xf32>,
    %410 = vector.extract_strided_slice %383 {offsets = [13, 0], sizes = [1, 32], strides = [1, 1]} : vector<58x32xf32> to vector<1x32xf32>
    %c1_273 = arith.constant 1 : index
    %c416_274 = arith.constant 416 : index
    %411 = vector.load %arg14[%c1_273, %c416_274] : memref<2x1856xf32, #tpu.memory_space<vmem>>, vector<1x32xf32>
    tpu.vector_store %arg14[%c1_273, %c416_274], %410 {strides = array<i32>} : memref<2x1856xf32, #tpu.memory_space<vmem>>, vector<1x32xf32>,
    %412 = vector.extract_strided_slice %383 {offsets = [14, 0], sizes = [1, 32], strides = [1, 1]} : vector<58x32xf32> to vector<1x32xf32>
    %c1_275 = arith.constant 1 : index
    %c448_276 = arith.constant 448 : index
    %413 = vector.load %arg14[%c1_275, %c448_276] : memref<2x1856xf32, #tpu.memory_space<vmem>>, vector<1x32xf32>
    tpu.vector_store %arg14[%c1_275, %c448_276], %412 {strides = array<i32>} : memref<2x1856xf32, #tpu.memory_space<vmem>>, vector<1x32xf32>,
    %414 = vector.extract_strided_slice %383 {offsets = [15, 0], sizes = [1, 32], strides = [1, 1]} : vector<58x32xf32> to vector<1x32xf32>
    %c1_277 = arith.constant 1 : index
    %c480_278 = arith.constant 480 : index
    %415 = vector.load %arg14[%c1_277, %c480_278] : memref<2x1856xf32, #tpu.memory_space<vmem>>, vector<1x32xf32>
    tpu.vector_store %arg14[%c1_277, %c480_278], %414 {strides = array<i32>} : memref<2x1856xf32, #tpu.memory_space<vmem>>, vector<1x32xf32>,
    %416 = vector.extract_strided_slice %383 {offsets = [16, 0], sizes = [1, 32], strides = [1, 1]} : vector<58x32xf32> to vector<1x32xf32>
    %c1_279 = arith.constant 1 : index
    %c512_280 = arith.constant 512 : index
    %417 = vector.load %arg14[%c1_279, %c512_280] : memref<2x1856xf32, #tpu.memory_space<vmem>>, vector<1x32xf32>
    tpu.vector_store %arg14[%c1_279, %c512_280], %416 {strides = array<i32>} : memref<2x1856xf32, #tpu.memory_space<vmem>>, vector<1x32xf32>,
    %418 = vector.extract_strided_slice %383 {offsets = [17, 0], sizes = [1, 32], strides = [1, 1]} : vector<58x32xf32> to vector<1x32xf32>
    %c1_281 = arith.constant 1 : index
    %c544_282 = arith.constant 544 : index
    %419 = vector.load %arg14[%c1_281, %c544_282] : memref<2x1856xf32, #tpu.memory_space<vmem>>, vector<1x32xf32>
    tpu.vector_store %arg14[%c1_281, %c544_282], %418 {strides = array<i32>} : memref<2x1856xf32, #tpu.memory_space<vmem>>, vector<1x32xf32>,
    %420 = vector.extract_strided_slice %383 {offsets = [18, 0], sizes = [1, 32], strides = [1, 1]} : vector<58x32xf32> to vector<1x32xf32>
    %c1_283 = arith.constant 1 : index
    %c576_284 = arith.constant 576 : index
    %421 = vector.load %arg14[%c1_283, %c576_284] : memref<2x1856xf32, #tpu.memory_space<vmem>>, vector<1x32xf32>
    tpu.vector_store %arg14[%c1_283, %c576_284], %420 {strides = array<i32>} : memref<2x1856xf32, #tpu.memory_space<vmem>>, vector<1x32xf32>,
    %422 = vector.extract_strided_slice %383 {offsets = [19, 0], sizes = [1, 32], strides = [1, 1]} : vector<58x32xf32> to vector<1x32xf32>
    %c1_285 = arith.constant 1 : index
    %c608_286 = arith.constant 608 : index
    %423 = vector.load %arg14[%c1_285, %c608_286] : memref<2x1856xf32, #tpu.memory_space<vmem>>, vector<1x32xf32>
    tpu.vector_store %arg14[%c1_285, %c608_286], %422 {strides = array<i32>} : memref<2x1856xf32, #tpu.memory_space<vmem>>, vector<1x32xf32>,
    %424 = vector.extract_strided_slice %383 {offsets = [20, 0], sizes = [1, 32], strides = [1, 1]} : vector<58x32xf32> to vector<1x32xf32>
    %c1_287 = arith.constant 1 : index
    %c640_288 = arith.constant 640 : index
    %425 = vector.load %arg14[%c1_287, %c640_288] : memref<2x1856xf32, #tpu.memory_space<vmem>>, vector<1x32xf32>
    tpu.vector_store %arg14[%c1_287, %c640_288], %424 {strides = array<i32>} : memref<2x1856xf32, #tpu.memory_space<vmem>>, vector<1x32xf32>,
    %426 = vector.extract_strided_slice %383 {offsets = [21, 0], sizes = [1, 32], strides = [1, 1]} : vector<58x32xf32> to vector<1x32xf32>
    %c1_289 = arith.constant 1 : index
    %c672_290 = arith.constant 672 : index
    %427 = vector.load %arg14[%c1_289, %c672_290] : memref<2x1856xf32, #tpu.memory_space<vmem>>, vector<1x32xf32>
    tpu.vector_store %arg14[%c1_289, %c672_290], %426 {strides = array<i32>} : memref<2x1856xf32, #tpu.memory_space<vmem>>, vector<1x32xf32>,
    %428 = vector.extract_strided_slice %383 {offsets = [22, 0], sizes = [1, 32], strides = [1, 1]} : vector<58x32xf32> to vector<1x32xf32>
    %c1_291 = arith.constant 1 : index
    %c704_292 = arith.constant 704 : index
    %429 = vector.load %arg14[%c1_291, %c704_292] : memref<2x1856xf32, #tpu.memory_space<vmem>>, vector<1x32xf32>
    tpu.vector_store %arg14[%c1_291, %c704_292], %428 {strides = array<i32>} : memref<2x1856xf32, #tpu.memory_space<vmem>>, vector<1x32xf32>,
    %430 = vector.extract_strided_slice %383 {offsets = [23, 0], sizes = [1, 32], strides = [1, 1]} : vector<58x32xf32> to vector<1x32xf32>
    %c1_293 = arith.constant 1 : index
    %c736_294 = arith.constant 736 : index
    %431 = vector.load %arg14[%c1_293, %c736_294] : memref<2x1856xf32, #tpu.memory_space<vmem>>, vector<1x32xf32>
    tpu.vector_store %arg14[%c1_293, %c736_294], %430 {strides = array<i32>} : memref<2x1856xf32, #tpu.memory_space<vmem>>, vector<1x32xf32>,
    %432 = vector.extract_strided_slice %383 {offsets = [24, 0], sizes = [1, 32], strides = [1, 1]} : vector<58x32xf32> to vector<1x32xf32>
    %c1_295 = arith.constant 1 : index
    %c768_296 = arith.constant 768 : index
    %433 = vector.load %arg14[%c1_295, %c768_296] : memref<2x1856xf32, #tpu.memory_space<vmem>>, vector<1x32xf32>
    tpu.vector_store %arg14[%c1_295, %c768_296], %432 {strides = array<i32>} : memref<2x1856xf32, #tpu.memory_space<vmem>>, vector<1x32xf32>,
    %434 = vector.extract_strided_slice %383 {offsets = [25, 0], sizes = [1, 32], strides = [1, 1]} : vector<58x32xf32> to vector<1x32xf32>
    %c1_297 = arith.constant 1 : index
    %c800_298 = arith.constant 800 : index
    %435 = vector.load %arg14[%c1_297, %c800_298] : memref<2x1856xf32, #tpu.memory_space<vmem>>, vector<1x32xf32>
    tpu.vector_store %arg14[%c1_297, %c800_298], %434 {strides = array<i32>} : memref<2x1856xf32, #tpu.memory_space<vmem>>, vector<1x32xf32>,
    %436 = vector.extract_strided_slice %383 {offsets = [26, 0], sizes = [1, 32], strides = [1, 1]} : vector<58x32xf32> to vector<1x32xf32>
    %c1_299 = arith.constant 1 : index
    %c832_300 = arith.constant 832 : index
    %437 = vector.load %arg14[%c1_299, %c832_300] : memref<2x1856xf32, #tpu.memory_space<vmem>>, vector<1x32xf32>
    tpu.vector_store %arg14[%c1_299, %c832_300], %436 {strides = array<i32>} : memref<2x1856xf32, #tpu.memory_space<vmem>>, vector<1x32xf32>,
    %438 = vector.extract_strided_slice %383 {offsets = [27, 0], sizes = [1, 32], strides = [1, 1]} : vector<58x32xf32> to vector<1x32xf32>
    %c1_301 = arith.constant 1 : index
    %c864_302 = arith.constant 864 : index
    %439 = vector.load %arg14[%c1_301, %c864_302] : memref<2x1856xf32, #tpu.memory_space<vmem>>, vector<1x32xf32>
    tpu.vector_store %arg14[%c1_301, %c864_302], %438 {strides = array<i32>} : memref<2x1856xf32, #tpu.memory_space<vmem>>, vector<1x32xf32>,
    %440 = vector.extract_strided_slice %383 {offsets = [28, 0], sizes = [1, 32], strides = [1, 1]} : vector<58x32xf32> to vector<1x32xf32>
    %c1_303 = arith.constant 1 : index
    %c896_304 = arith.constant 896 : index
    %441 = vector.load %arg14[%c1_303, %c896_304] : memref<2x1856xf32, #tpu.memory_space<vmem>>, vector<1x32xf32>
    tpu.vector_store %arg14[%c1_303, %c896_304], %440 {strides = array<i32>} : memref<2x1856xf32, #tpu.memory_space<vmem>>, vector<1x32xf32>,
    %442 = vector.extract_strided_slice %383 {offsets = [29, 0], sizes = [1, 32], strides = [1, 1]} : vector<58x32xf32> to vector<1x32xf32>
    %c1_305 = arith.constant 1 : index
    %c928_306 = arith.constant 928 : index
    %443 = vector.load %arg14[%c1_305, %c928_306] : memref<2x1856xf32, #tpu.memory_space<vmem>>, vector<1x32xf32>
    tpu.vector_store %arg14[%c1_305, %c928_306], %442 {strides = array<i32>} : memref<2x1856xf32, #tpu.memory_space<vmem>>, vector<1x32xf32>,
    %444 = vector.extract_strided_slice %383 {offsets = [30, 0], sizes = [1, 32], strides = [1, 1]} : vector<58x32xf32> to vector<1x32xf32>
    %c1_307 = arith.constant 1 : index
    %c960_308 = arith.constant 960 : index
    %445 = vector.load %arg14[%c1_307, %c960_308] : memref<2x1856xf32, #tpu.memory_space<vmem>>, vector<1x32xf32>
    tpu.vector_store %arg14[%c1_307, %c960_308], %444 {strides = array<i32>} : memref<2x1856xf32, #tpu.memory_space<vmem>>, vector<1x32xf32>,
    %446 = vector.extract_strided_slice %383 {offsets = [31, 0], sizes = [1, 32], strides = [1, 1]} : vector<58x32xf32> to vector<1x32xf32>
    %c1_309 = arith.constant 1 : index
    %c992_310 = arith.constant 992 : index
    %447 = vector.load %arg14[%c1_309, %c992_310] : memref<2x1856xf32, #tpu.memory_space<vmem>>, vector<1x32xf32>
    tpu.vector_store %arg14[%c1_309, %c992_310], %446 {strides = array<i32>} : memref<2x1856xf32, #tpu.memory_space<vmem>>, vector<1x32xf32>,
    %448 = vector.extract_strided_slice %383 {offsets = [32, 0], sizes = [1, 32], strides = [1, 1]} : vector<58x32xf32> to vector<1x32xf32>
    %c1_311 = arith.constant 1 : index
    %c1024_312 = arith.constant 1024 : index
    %449 = vector.load %arg14[%c1_311, %c1024_312] : memref<2x1856xf32, #tpu.memory_space<vmem>>, vector<1x32xf32>
    tpu.vector_store %arg14[%c1_311, %c1024_312], %448 {strides = array<i32>} : memref<2x1856xf32, #tpu.memory_space<vmem>>, vector<1x32xf32>,
    %450 = vector.extract_strided_slice %383 {offsets = [33, 0], sizes = [1, 32], strides = [1, 1]} : vector<58x32xf32> to vector<1x32xf32>
    %c1_313 = arith.constant 1 : index
    %c1056_314 = arith.constant 1056 : index
    %451 = vector.load %arg14[%c1_313, %c1056_314] : memref<2x1856xf32, #tpu.memory_space<vmem>>, vector<1x32xf32>
    tpu.vector_store %arg14[%c1_313, %c1056_314], %450 {strides = array<i32>} : memref<2x1856xf32, #tpu.memory_space<vmem>>, vector<1x32xf32>,
    %452 = vector.extract_strided_slice %383 {offsets = [34, 0], sizes = [1, 32], strides = [1, 1]} : vector<58x32xf32> to vector<1x32xf32>
    %c1_315 = arith.constant 1 : index
    %c1088_316 = arith.constant 1088 : index
    %453 = vector.load %arg14[%c1_315, %c1088_316] : memref<2x1856xf32, #tpu.memory_space<vmem>>, vector<1x32xf32>
    tpu.vector_store %arg14[%c1_315, %c1088_316], %452 {strides = array<i32>} : memref<2x1856xf32, #tpu.memory_space<vmem>>, vector<1x32xf32>,
    %454 = vector.extract_strided_slice %383 {offsets = [35, 0], sizes = [1, 32], strides = [1, 1]} : vector<58x32xf32> to vector<1x32xf32>
    %c1_317 = arith.constant 1 : index
    %c1120_318 = arith.constant 1120 : index
    %455 = vector.load %arg14[%c1_317, %c1120_318] : memref<2x1856xf32, #tpu.memory_space<vmem>>, vector<1x32xf32>
    tpu.vector_store %arg14[%c1_317, %c1120_318], %454 {strides = array<i32>} : memref<2x1856xf32, #tpu.memory_space<vmem>>, vector<1x32xf32>,
    %456 = vector.extract_strided_slice %383 {offsets = [36, 0], sizes = [1, 32], strides = [1, 1]} : vector<58x32xf32> to vector<1x32xf32>
    %c1_319 = arith.constant 1 : index
    %c1152_320 = arith.constant 1152 : index
    %457 = vector.load %arg14[%c1_319, %c1152_320] : memref<2x1856xf32, #tpu.memory_space<vmem>>, vector<1x32xf32>
    tpu.vector_store %arg14[%c1_319, %c1152_320], %456 {strides = array<i32>} : memref<2x1856xf32, #tpu.memory_space<vmem>>, vector<1x32xf32>,
    %458 = vector.extract_strided_slice %383 {offsets = [37, 0], sizes = [1, 32], strides = [1, 1]} : vector<58x32xf32> to vector<1x32xf32>
    %c1_321 = arith.constant 1 : index
    %c1184_322 = arith.constant 1184 : index
    %459 = vector.load %arg14[%c1_321, %c1184_322] : memref<2x1856xf32, #tpu.memory_space<vmem>>, vector<1x32xf32>
    tpu.vector_store %arg14[%c1_321, %c1184_322], %458 {strides = array<i32>} : memref<2x1856xf32, #tpu.memory_space<vmem>>, vector<1x32xf32>,
    %460 = vector.extract_strided_slice %383 {offsets = [38, 0], sizes = [1, 32], strides = [1, 1]} : vector<58x32xf32> to vector<1x32xf32>
    %c1_323 = arith.constant 1 : index
    %c1216_324 = arith.constant 1216 : index
    %461 = vector.load %arg14[%c1_323, %c1216_324] : memref<2x1856xf32, #tpu.memory_space<vmem>>, vector<1x32xf32>
    tpu.vector_store %arg14[%c1_323, %c1216_324], %460 {strides = array<i32>} : memref<2x1856xf32, #tpu.memory_space<vmem>>, vector<1x32xf32>,
    %462 = vector.extract_strided_slice %383 {offsets = [39, 0], sizes = [1, 32], strides = [1, 1]} : vector<58x32xf32> to vector<1x32xf32>
    %c1_325 = arith.constant 1 : index
    %c1248_326 = arith.constant 1248 : index
    %463 = vector.load %arg14[%c1_325, %c1248_326] : memref<2x1856xf32, #tpu.memory_space<vmem>>, vector<1x32xf32>
    tpu.vector_store %arg14[%c1_325, %c1248_326], %462 {strides = array<i32>} : memref<2x1856xf32, #tpu.memory_space<vmem>>, vector<1x32xf32>,
    %464 = vector.extract_strided_slice %383 {offsets = [40, 0], sizes = [1, 32], strides = [1, 1]} : vector<58x32xf32> to vector<1x32xf32>
    %c1_327 = arith.constant 1 : index
    %c1280_328 = arith.constant 1280 : index
    %465 = vector.load %arg14[%c1_327, %c1280_328] : memref<2x1856xf32, #tpu.memory_space<vmem>>, vector<1x32xf32>
    tpu.vector_store %arg14[%c1_327, %c1280_328], %464 {strides = array<i32>} : memref<2x1856xf32, #tpu.memory_space<vmem>>, vector<1x32xf32>,
    %466 = vector.extract_strided_slice %383 {offsets = [41, 0], sizes = [1, 32], strides = [1, 1]} : vector<58x32xf32> to vector<1x32xf32>
    %c1_329 = arith.constant 1 : index
    %c1312_330 = arith.constant 1312 : index
    %467 = vector.load %arg14[%c1_329, %c1312_330] : memref<2x1856xf32, #tpu.memory_space<vmem>>, vector<1x32xf32>
    tpu.vector_store %arg14[%c1_329, %c1312_330], %466 {strides = array<i32>} : memref<2x1856xf32, #tpu.memory_space<vmem>>, vector<1x32xf32>,
    %468 = vector.extract_strided_slice %383 {offsets = [42, 0], sizes = [1, 32], strides = [1, 1]} : vector<58x32xf32> to vector<1x32xf32>
    %c1_331 = arith.constant 1 : index
    %c1344_332 = arith.constant 1344 : index
    %469 = vector.load %arg14[%c1_331, %c1344_332] : memref<2x1856xf32, #tpu.memory_space<vmem>>, vector<1x32xf32>
    tpu.vector_store %arg14[%c1_331, %c1344_332], %468 {strides = array<i32>} : memref<2x1856xf32, #tpu.memory_space<vmem>>, vector<1x32xf32>,
    %470 = vector.extract_strided_slice %383 {offsets = [43, 0], sizes = [1, 32], strides = [1, 1]} : vector<58x32xf32> to vector<1x32xf32>
    %c1_333 = arith.constant 1 : index
    %c1376_334 = arith.constant 1376 : index
    %471 = vector.load %arg14[%c1_333, %c1376_334] : memref<2x1856xf32, #tpu.memory_space<vmem>>, vector<1x32xf32>
    tpu.vector_store %arg14[%c1_333, %c1376_334], %470 {strides = array<i32>} : memref<2x1856xf32, #tpu.memory_space<vmem>>, vector<1x32xf32>,
    %472 = vector.extract_strided_slice %383 {offsets = [44, 0], sizes = [1, 32], strides = [1, 1]} : vector<58x32xf32> to vector<1x32xf32>
    %c1_335 = arith.constant 1 : index
    %c1408_336 = arith.constant 1408 : index
    %473 = vector.load %arg14[%c1_335, %c1408_336] : memref<2x1856xf32, #tpu.memory_space<vmem>>, vector<1x32xf32>
    tpu.vector_store %arg14[%c1_335, %c1408_336], %472 {strides = array<i32>} : memref<2x1856xf32, #tpu.memory_space<vmem>>, vector<1x32xf32>,
    %474 = vector.extract_strided_slice %383 {offsets = [45, 0], sizes = [1, 32], strides = [1, 1]} : vector<58x32xf32> to vector<1x32xf32>
    %c1_337 = arith.constant 1 : index
    %c1440_338 = arith.constant 1440 : index
    %475 = vector.load %arg14[%c1_337, %c1440_338] : memref<2x1856xf32, #tpu.memory_space<vmem>>, vector<1x32xf32>
    tpu.vector_store %arg14[%c1_337, %c1440_338], %474 {strides = array<i32>} : memref<2x1856xf32, #tpu.memory_space<vmem>>, vector<1x32xf32>,
    %476 = vector.extract_strided_slice %383 {offsets = [46, 0], sizes = [1, 32], strides = [1, 1]} : vector<58x32xf32> to vector<1x32xf32>
    %c1_339 = arith.constant 1 : index
    %c1472_340 = arith.constant 1472 : index
    %477 = vector.load %arg14[%c1_339, %c1472_340] : memref<2x1856xf32, #tpu.memory_space<vmem>>, vector<1x32xf32>
    tpu.vector_store %arg14[%c1_339, %c1472_340], %476 {strides = array<i32>} : memref<2x1856xf32, #tpu.memory_space<vmem>>, vector<1x32xf32>,
    %478 = vector.extract_strided_slice %383 {offsets = [47, 0], sizes = [1, 32], strides = [1, 1]} : vector<58x32xf32> to vector<1x32xf32>
    %c1_341 = arith.constant 1 : index
    %c1504_342 = arith.constant 1504 : index
    %479 = vector.load %arg14[%c1_341, %c1504_342] : memref<2x1856xf32, #tpu.memory_space<vmem>>, vector<1x32xf32>
    tpu.vector_store %arg14[%c1_341, %c1504_342], %478 {strides = array<i32>} : memref<2x1856xf32, #tpu.memory_space<vmem>>, vector<1x32xf32>,
    %480 = vector.extract_strided_slice %383 {offsets = [48, 0], sizes = [1, 32], strides = [1, 1]} : vector<58x32xf32> to vector<1x32xf32>
    %c1_343 = arith.constant 1 : index
    %c1536_344 = arith.constant 1536 : index
    %481 = vector.load %arg14[%c1_343, %c1536_344] : memref<2x1856xf32, #tpu.memory_space<vmem>>, vector<1x32xf32>
    tpu.vector_store %arg14[%c1_343, %c1536_344], %480 {strides = array<i32>} : memref<2x1856xf32, #tpu.memory_space<vmem>>, vector<1x32xf32>,
    %482 = vector.extract_strided_slice %383 {offsets = [49, 0], sizes = [1, 32], strides = [1, 1]} : vector<58x32xf32> to vector<1x32xf32>
    %c1_345 = arith.constant 1 : index
    %c1568_346 = arith.constant 1568 : index
    %483 = vector.load %arg14[%c1_345, %c1568_346] : memref<2x1856xf32, #tpu.memory_space<vmem>>, vector<1x32xf32>
    tpu.vector_store %arg14[%c1_345, %c1568_346], %482 {strides = array<i32>} : memref<2x1856xf32, #tpu.memory_space<vmem>>, vector<1x32xf32>,
    %484 = vector.extract_strided_slice %383 {offsets = [50, 0], sizes = [1, 32], strides = [1, 1]} : vector<58x32xf32> to vector<1x32xf32>
    %c1_347 = arith.constant 1 : index
    %c1600_348 = arith.constant 1600 : index
    %485 = vector.load %arg14[%c1_347, %c1600_348] : memref<2x1856xf32, #tpu.memory_space<vmem>>, vector<1x32xf32>
    tpu.vector_store %arg14[%c1_347, %c1600_348], %484 {strides = array<i32>} : memref<2x1856xf32, #tpu.memory_space<vmem>>, vector<1x32xf32>,
    %486 = vector.extract_strided_slice %383 {offsets = [51, 0], sizes = [1, 32], strides = [1, 1]} : vector<58x32xf32> to vector<1x32xf32>
    %c1_349 = arith.constant 1 : index
    %c1632_350 = arith.constant 1632 : index
    %487 = vector.load %arg14[%c1_349, %c1632_350] : memref<2x1856xf32, #tpu.memory_space<vmem>>, vector<1x32xf32>
    tpu.vector_store %arg14[%c1_349, %c1632_350], %486 {strides = array<i32>} : memref<2x1856xf32, #tpu.memory_space<vmem>>, vector<1x32xf32>,
    %488 = vector.extract_strided_slice %383 {offsets = [52, 0], sizes = [1, 32], strides = [1, 1]} : vector<58x32xf32> to vector<1x32xf32>
    %c1_351 = arith.constant 1 : index
    %c1664_352 = arith.constant 1664 : index
    %489 = vector.load %arg14[%c1_351, %c1664_352] : memref<2x1856xf32, #tpu.memory_space<vmem>>, vector<1x32xf32>
    tpu.vector_store %arg14[%c1_351, %c1664_352], %488 {strides = array<i32>} : memref<2x1856xf32, #tpu.memory_space<vmem>>, vector<1x32xf32>,
    %490 = vector.extract_strided_slice %383 {offsets = [53, 0], sizes = [1, 32], strides = [1, 1]} : vector<58x32xf32> to vector<1x32xf32>
    %c1_353 = arith.constant 1 : index
    %c1696_354 = arith.constant 1696 : index
    %491 = vector.load %arg14[%c1_353, %c1696_354] : memref<2x1856xf32, #tpu.memory_space<vmem>>, vector<1x32xf32>
    tpu.vector_store %arg14[%c1_353, %c1696_354], %490 {strides = array<i32>} : memref<2x1856xf32, #tpu.memory_space<vmem>>, vector<1x32xf32>,
    %492 = vector.extract_strided_slice %383 {offsets = [54, 0], sizes = [1, 32], strides = [1, 1]} : vector<58x32xf32> to vector<1x32xf32>
    %c1_355 = arith.constant 1 : index
    %c1728_356 = arith.constant 1728 : index
    %493 = vector.load %arg14[%c1_355, %c1728_356] : memref<2x1856xf32, #tpu.memory_space<vmem>>, vector<1x32xf32>
    tpu.vector_store %arg14[%c1_355, %c1728_356], %492 {strides = array<i32>} : memref<2x1856xf32, #tpu.memory_space<vmem>>, vector<1x32xf32>,
    %494 = vector.extract_strided_slice %383 {offsets = [55, 0], sizes = [1, 32], strides = [1, 1]} : vector<58x32xf32> to vector<1x32xf32>
    %c1_357 = arith.constant 1 : index
    %c1760_358 = arith.constant 1760 : index
    %495 = vector.load %arg14[%c1_357, %c1760_358] : memref<2x1856xf32, #tpu.memory_space<vmem>>, vector<1x32xf32>
    tpu.vector_store %arg14[%c1_357, %c1760_358], %494 {strides = array<i32>} : memref<2x1856xf32, #tpu.memory_space<vmem>>, vector<1x32xf32>,
    %496 = vector.extract_strided_slice %383 {offsets = [56, 0], sizes = [1, 32], strides = [1, 1]} : vector<58x32xf32> to vector<1x32xf32>
    %c1_359 = arith.constant 1 : index
    %c1792_360 = arith.constant 1792 : index
    %497 = vector.load %arg14[%c1_359, %c1792_360] : memref<2x1856xf32, #tpu.memory_space<vmem>>, vector<1x32xf32>
    tpu.vector_store %arg14[%c1_359, %c1792_360], %496 {strides = array<i32>} : memref<2x1856xf32, #tpu.memory_space<vmem>>, vector<1x32xf32>,
    %498 = vector.extract_strided_slice %383 {offsets = [57, 0], sizes = [1, 32], strides = [1, 1]} : vector<58x32xf32> to vector<1x32xf32>
    %c1_361 = arith.constant 1 : index
    %c1824_362 = arith.constant 1824 : index
    %499 = vector.load %arg14[%c1_361, %c1824_362] : memref<2x1856xf32, #tpu.memory_space<vmem>>, vector<1x32xf32>
    tpu.vector_store %arg14[%c1_361, %c1824_362], %498 {strides = array<i32>} : memref<2x1856xf32, #tpu.memory_space<vmem>>, vector<1x32xf32>,
    %c0_363 = arith.constant 0 : index
    %c0_364 = arith.constant 0 : index
    %500 = vector.load %arg14[%c0_363, %c0_364] : memref<2x1856xf32, #tpu.memory_space<vmem>>, vector<2x1856xf32>
    %c0_365 = arith.constant 0 : index
    %c0_366 = arith.constant 0 : index
    %501 = vector.load %arg7[%c0_365, %c0_366] : memref<1856x256xbf16, #tpu.memory_space<vmem>>, vector<1856x256xbf16>
    %502 = arith.truncf %500 : vector<2x1856xf32> to vector<2x1856xbf16>
    %cst_367 = arith.constant dense<0.000000e+00> : vector<2x256xf32>
    %503 = tpu.matmul %502, %501, %cst_367 {dimension_numbers = #tpu.dot_dimension_numbers<[1], [0], [0], [1], [0, 0, 1, 1], [], []>} : vector<2x1856xbf16>, vector<1856x256xbf16>, vector<2x256xf32> -> vector<2x256xf32>
    %c0_368 = arith.constant 0 : index
    %c0_369 = arith.constant 0 : index
    %504 = vector.load %arg8[%c0_368, %c0_369] : memref<1x256xf32, #tpu.memory_space<vmem>>, vector<1x256xf32>
    %505 = vector.broadcast %504 : vector<1x256xf32> to vector<2x256xf32>
    %506 = arith.addf %503, %505 : vector<2x256xf32>
    %cst_370 = arith.constant 0.000000e+00 : f32
    %507 = vector.broadcast %cst_370 : f32 to vector<2x256xf32>
    %508 = arith.maximumf %506, %507 : vector<2x256xf32>
    %c0_371 = arith.constant 0 : index
    %c0_372 = arith.constant 0 : index
    %509 = vector.load %arg9[%c0_371, %c0_372] : memref<256x64xbf16, #tpu.memory_space<vmem>>, vector<256x64xbf16>
    %510 = arith.truncf %508 : vector<2x256xf32> to vector<2x256xbf16>
    %cst_373 = arith.constant dense<0.000000e+00> : vector<2x64xf32>
    %511 = tpu.matmul %510, %509, %cst_373 {dimension_numbers = #tpu.dot_dimension_numbers<[1], [0], [0], [1], [0, 0, 1, 1], [], []>} : vector<2x256xbf16>, vector<256x64xbf16>, vector<2x64xf32> -> vector<2x64xf32>
    %c0_374 = arith.constant 0 : index
    %c0_375 = arith.constant 0 : index
    %512 = vector.load %arg10[%c0_374, %c0_375] : memref<1x64xf32, #tpu.memory_space<vmem>>, vector<1x64xf32>
    %513 = vector.broadcast %512 : vector<1x64xf32> to vector<2x64xf32>
    %514 = arith.addf %511, %513 : vector<2x64xf32>
    %cst_376 = arith.constant 0.000000e+00 : f32
    %515 = vector.broadcast %cst_376 : f32 to vector<2x64xf32>
    %516 = arith.maximumf %514, %515 : vector<2x64xf32>
    %c0_377 = arith.constant 0 : index
    %c0_378 = arith.constant 0 : index
    %517 = vector.load %arg11[%c0_377, %c0_378] : memref<64x4xf32, #tpu.memory_space<vmem>>, vector<64x4xf32>
    %cst_379 = arith.constant dense<0.000000e+00> : vector<2x4xf32>
    %518 = tpu.matmul %516, %517, %cst_379 {dimension_numbers = #tpu.dot_dimension_numbers<[1], [0], [0], [1], [0, 0, 1, 1], [], []>} : vector<2x64xf32>, vector<64x4xf32>, vector<2x4xf32> -> vector<2x4xf32>
    %c0_380 = arith.constant 0 : index
    %c0_381 = arith.constant 0 : index
    %519 = vector.load %arg12[%c0_380, %c0_381] : memref<1x4xf32, #tpu.memory_space<vmem>>, vector<1x4xf32>
    %520 = vector.broadcast %519 : vector<1x4xf32> to vector<2x4xf32>
    %521 = arith.addf %518, %520 : vector<2x4xf32>
    %cst_382 = arith.constant dense<0xFF800000> : vector<2xf32>
    %522 = vector.multi_reduction <maximumf>, %521, %cst_382 [1] : vector<2x4xf32> to vector<2xf32>
    %523 = vector.shape_cast %522 : vector<2xf32> to vector<2x1xf32>
    %524 = vector.broadcast %523 : vector<2x1xf32> to vector<2x4xf32>
    %525 = arith.subf %521, %524 : vector<2x4xf32>
    %526 = math.exp %525 : vector<2x4xf32>
    %cst_383 = arith.constant dense<0.000000e+00> : vector<2xf32>
    %527 = vector.multi_reduction <add>, %526, %cst_383 [1] : vector<2x4xf32> to vector<2xf32>
    %528 = vector.shape_cast %527 : vector<2xf32> to vector<2x1xf32>
    %529 = vector.broadcast %528 : vector<2x1xf32> to vector<2x4xf32>
    %530 = arith.divf %526, %529 : vector<2x4xf32>
    %c0_384 = arith.constant 0 : index
    %c0_385 = arith.constant 0 : index
    %531 = vector.load %arg13[%c0_384, %c0_385] : memref<2x4xf32, #tpu.memory_space<vmem>>, vector<2x4xf32>
    tpu.vector_store %arg13[%c0_384, %c0_385], %530 {strides = array<i32>} : memref<2x4xf32, #tpu.memory_space<vmem>>, vector<2x4xf32>,
    return
  }
}

</mosaic_0001>

<llo_original>
// kernel: forward.1
$region0: #{forward.1}
  #allocation0 [shape = 'u32[]', space=smem, size = 0x4, offset = 0x4, fixed_abs, tag = 'smem constant byte address 0x4 - core index']
  #allocation1 [shape = 'u32[144,128]{1,0:T(1,128)}', space=vmem, size = 0x12000, scoped, tag = 'internal scratch']
  #allocation2 [shape = 'f32[2,1856]{1,0:T(2,128)}', space=vmem, size = 0x3c00, scoped, tag = 'scratch operand']
  %s0 = inlined_call_operand.vmem [shape: f32[128,36], index: 0, kind: input, shape index: {}]
  %s1 = inlined_call_operand.vmem [shape: f32[9,36,88], index: 1, kind: input, shape index: {}]
  %s2 = inlined_call_operand.vmem [shape: f32[1,88], index: 2, kind: input, shape index: {}]
  %s3 = inlined_call_operand.vmem [shape: f32[9,88,48], index: 3, kind: input, shape index: {}]
  %s4 = inlined_call_operand.vmem [shape: f32[1,48], index: 4, kind: input, shape index: {}]
  %s5 = inlined_call_operand.vmem [shape: f32[3,48,32], index: 5, kind: input, shape index: {}]
  %s6 = inlined_call_operand.vmem [shape: f32[1,32], index: 6, kind: input, shape index: {}]
  %s7 = inlined_call_operand.vmem [shape: bf16[1856,256], index: 7, kind: input, shape index: {}]
  %s8 = inlined_call_operand.vmem [shape: f32[1,256], index: 8, kind: input, shape index: {}]
  %s9 = inlined_call_operand.vmem [shape: bf16[256,64], index: 9, kind: input, shape index: {}]
  %s10 = inlined_call_operand.vmem [shape: f32[1,64], index: 10, kind: input, shape index: {}]
  %s11 = inlined_call_operand.vmem [shape: f32[64,4], index: 11, kind: input, shape index: {}]
  %s12 = inlined_call_operand.vmem [shape: f32[1,4], index: 12, kind: input, shape index: {}]
  %s13 = inlined_call_operand.hbm [shape: f32[2,4], index: 13, kind: output, shape index: {}]
  %s14 = sld [smem:[#allocation0]]
  $region62: #{forward.1} parent=0
    _
  %s16 = ssub.s32 1, %s14
  %s17 = scalar_select 0, %s16, %s14
  $region1: #{forward.1} parent=0
    #allocation3 [shape = 'u8[1024]{0}', space=vmem, size = 0x400, scoped, tag = 'output window, operand 0, single buffered']
    #allocation4 [shape = 's32[1]{0}', space=sflag, size = 0x4, scoped, tag = 'scoped memory for forward.1']
    %18 = vsyncpa [#allocation4], 0
    // Predicated region
    $region2: #{forward.1} parent=1 // pred_check
      _
    $region3: #{forward.1} parent=1 // pred_check_branch
      %20 = sbr.rel (0) target = $region5
    $region4: #{forward.1} parent=1 // pred_region
      _
    $region5: #{forward.1} parent=1 // pred_fallthru
      _
    // Predicated region
    $region6: #{forward.1} parent=1 // pred_check
      _
    $region7: #{forward.1} parent=1 // pred_check_branch
      %22 = sbr.rel (0) target = $region9
    $region8: #{forward.1} parent=1 // pred_region
      _
    $region9: #{forward.1} parent=1 // pred_fallthru
      _
    // Predicated region
    $region10: #{forward.1} parent=1 // pred_check
      _
    $region11: #{forward.1} parent=1 // pred_check_branch
      %24 = sbr.rel (0) target = $region13
    $region12: #{forward.1} parent=1 // pred_region
      _
    $region13: #{forward.1} parent=1 // pred_fallthru
      _
    // Predicated region
    $region14: #{forward.1} parent=1 // pred_check
      _
    $region15: #{forward.1} parent=1 // pred_check_branch
      %26 = sbr.rel (0) target = $region17
    $region16: #{forward.1} parent=1 // pred_region
      _
    $region17: #{forward.1} parent=1 // pred_fallthru
      _
    // Predicated region
    $region18: #{forward.1} parent=1 // pred_check
      _
    $region19: #{forward.1} parent=1 // pred_check_branch
      %28 = sbr.rel (0) target = $region21
    $region20: #{forward.1} parent=1 // pred_region
      _
    $region21: #{forward.1} parent=1 // pred_fallthru
      _
    // Predicated region
    $region22: #{forward.1} parent=1 // pred_check
      _
    $region23: #{forward.1} parent=1 // pred_check_branch
      %30 = sbr.rel (0) target = $region25
    $region24: #{forward.1} parent=1 // pred_region
      _
    $region25: #{forward.1} parent=1 // pred_fallthru
      _
    // Predicated region
    $region26: #{forward.1} parent=1 // pred_check
      _
    $region27: #{forward.1} parent=1 // pred_check_branch
      %32 = sbr.rel (0) target = $region29
    $region28: #{forward.1} parent=1 // pred_region
      _
    $region29: #{forward.1} parent=1 // pred_fallthru
      _
    // Predicated region
    $region30: #{forward.1} parent=1 // pred_check
      _
    $region31: #{forward.1} parent=1 // pred_check_branch
      %34 = sbr.rel (0) target = $region33
    $region32: #{forward.1} parent=1 // pred_region
      _
    $region33: #{forward.1} parent=1 // pred_fallthru
      _
    // Predicated region
    $region34: #{forward.1} parent=1 // pred_check
      _
    $region35: #{forward.1} parent=1 // pred_check_branch
      %36 = sbr.rel (0) target = $region37
    $region36: #{forward.1} parent=1 // pred_region
      _
    $region37: #{forward.1} parent=1 // pred_fallthru
      _
    // Predicated region
    $region38: #{forward.1} parent=1 // pred_check
      _
    $region39: #{forward.1} parent=1 // pred_check_branch
      %38 = sbr.rel (0) target = $region41
    $region40: #{forward.1} parent=1 // pred_region
      _
    $region41: #{forward.1} parent=1 // pred_fallthru
      _
    // Predicated region
    $region42: #{forward.1} parent=1 // pred_check
      _
    $region43: #{forward.1} parent=1 // pred_check_branch
      %40 = sbr.rel (0) target = $region45
    $region44: #{forward.1} parent=1 // pred_region
      _
    $region45: #{forward.1} parent=1 // pred_fallthru
      _
    // Predicated region
    $region46: #{forward.1} parent=1 // pred_check
      _
    $region47: #{forward.1} parent=1 // pred_check_branch
      %42 = sbr.rel (0) target = $region49
    $region48: #{forward.1} parent=1 // pred_region
      _
    $region49: #{forward.1} parent=1 // pred_fallthru
      _
    // Predicated region
    $region50: #{forward.1} parent=1 // pred_check
      _
    $region51: #{forward.1} parent=1 // pred_check_branch
      %44 = sbr.rel (0) target = $region53
    $region52: #{forward.1} parent=1 // pred_region
      _
    $region53: #{forward.1} parent=1 // pred_fallthru
      _
    %v46 = vld [vmem:[%s0] sm:$0xff]
    %v47 = vld [vmem:[%s0 + $0x8] sm:$0xff]
    %v48 = vld [vmem:[%s0 + $0x10] sm:$0xff]
    %v49 = vld [vmem:[%s0 + $0x18] sm:$0xff]
    %v50 = vld [vmem:[%s0 + $0x20] sm:$0xff]
    %v51 = vld [vmem:[%s0 + $0x28] sm:$0xff]
    %v52 = vld [vmem:[%s0 + $0x30] sm:$0xff]
    %v53 = vld [vmem:[%s0 + $0x38] sm:$0xff]
    %v54 = vld [vmem:[%s2] sm:$0x1]
    %v55 = vld [vmem:[%s1] sm:$0xff]
    %v56 = vld [vmem:[%s1 + $0x8] sm:$0xff]
    %v57 = vld [vmem:[%s1 + $0x10] sm:$0xff]
    %v58 = vld [vmem:[%s1 + $0x18] sm:$0xff]
    %v59 = vld [vmem:[%s1 + $0x20] sm:$0xf]
    %s60 = scalar_lea.vmem %s1, 120
    %v61 = vld [vmem:[%s60] sm:$0xff]
    %v62 = vld [vmem:[%s60 + $0x8] sm:$0xff]
    %v63 = vld [vmem:[%s60 + $0x10] sm:$0xff]
    %v64 = vld [vmem:[%s60 + $0x18] sm:$0xff]
    %v65 = vld [vmem:[%s60 + $0x20] sm:$0xf]
    %vm74 = vcmask 1046528
    %v75 = vrot.slane %v46, 1
    %v76 = vrot.slane %v47, 1
    %v77 = vsel %vm74, %v75, %v76
    %v78 = vrot.slane %v48, 1
    %v79 = vsel %vm74, %v76, %v78
    %v80 = vrot.slane %v49, 1
    %v81 = vsel %vm74, %v78, %v80
    %v82 = vrot.slane %v50, 1
    %v83 = vsel %vm74, %v80, %v82
    %v84 = vrot.slane %v51, 1
    %v85 = vsel %vm74, %v82, %v84
    %v86 = vrot.slane %v52, 1
    %v87 = vsel %vm74, %v84, %v86
    %v88 = vrot.slane %v53, 1
    %v89 = vsel %vm74, %v86, %v88
    %vm90 = vcmask 293888
    %v91 = vsel %vm90, %v77, 0
    %v93 = vsel %vm90, %v79, 0
    %v95 = vsel %vm90, %v81, 0
    %v97 = vsel %vm90, %v83, 0
    %v99 = vsel %vm90, %v85, 0
    %v101 = vsel %vm90, %v87, 0
    %v103 = vsel %vm90, %v89, 0
    %v105 = vsel %vm90, %v88, 0
    %vm107 = vcmask 1043456
    %v109 = vsel %vm107, %v65, 0
    %111 = vmatprep.subr.mxu0 0.0
    %112 = vmatpush1.msra.mxu0 %v61
    %113 = vmatprep.subr.mxu0 0.0
    %114 = vmatpush1.msra.mxu0 %v62
    %115 = vmatprep.subr.mxu0 0.0
    %116 = vmatpush1.msra.mxu0 %v63
    %117 = vmatprep.subr.mxu0 0.0
    %118 = vmatpush1.msra.mxu0 %v64
    %119 = vmatprep.subr.mxu0 0.0
    %120 = vmatpush1.msra.mxu0 %v109
    %121 = vmatprep.subr.mxu0 0.0
    %122 = vmatpush1.msra.mxu0 0.0
    %123 = vmatprep.subr.mxu0 0.0
    %124 = vmatpush1.msra.mxu0 0.0
    %125 = vmatprep.subr.mxu0 0.0
    %126 = vmatpush1.msra.mxu0 0.0
    %127 = vmatprep.subr.mxu0 0.0
    %128 = vmatpush1.msra.mxu0 0.0
    %129 = vmatprep.subr.mxu0 0.0
    %130 = vmatpush1.msra.mxu0 0.0
    %131 = vmatprep.subr.mxu0 0.0
    %132 = vmatpush1.msra.mxu0 0.0
    %133 = vmatprep.subr.mxu0 0.0
    %134 = vmatpush1.msra.mxu0 0.0
    %135 = vmatprep.subr.mxu0 0.0
    %136 = vmatpush1.msra.mxu0 0.0
    %137 = vmatprep.subr.mxu0 0.0
    %138 = vmatpush1.msra.mxu0 0.0
    %139 = vmatprep.subr.mxu0 0.0
    %140 = vmatpush1.msra.mxu0 0.0
    %141 = vmatprep.subr.mxu0 0.0
    %142 = vmatpush1.msra.mxu0 0.0
    %143 = vmatprep.subr.mxu0 0.0
    %144 = vmatpush1.msra.mxu0 0.0
    %145 = vmatprep.subr.mxu0 0.0
    %146 = vmatpush1.msra.mxu0 0.0
    %147 = vmatprep.subr.mxu0 0.0
    %148 = vmatpush1.msra.mxu0 0.0
    %149 = vmatprep.subr.mxu0 0.0
    %150 = vmatpush1.msra.mxu0 0.0
    %151 = vmatprep.subr.mxu0 0.0
    %152 = vmatpush1.msra.mxu0 0.0
    %153 = vmatprep.subr.mxu0 0.0
    %154 = vmatpush1.msra.mxu0 0.0
    %155 = vmatprep.subr.mxu0 0.0
    %156 = vmatpush1.msra.mxu0 0.0
    %157 = vmatprep.subr.mxu0 0.0
    %158 = vmatpush1.msra.mxu0 0.0
    %159 = vmatprep.subr.mxu0 0.0
    %160 = vmatpush1.msra.mxu0 0.0
    %161 = vmatprep.subr.mxu0 0.0
    %162 = vmatpush1.msra.mxu0 0.0
    %163 = vmatprep.subr.mxu0 0.0
    %164 = vmatpush1.msra.mxu0 0.0
    %165 = vmatprep.subr.mxu0 0.0
    %166 = vmatpush1.msra.mxu0 0.0
    %167 = vmatprep.subr.mxu0 0.0
    %168 = vmatpush1.msra.mxu0 0.0
    %169 = vmatprep.subr.mxu0 0.0
    %170 = vmatpush1.msra.mxu0 0.0
    %171 = vmatprep.subr.mxu0 0.0
    %172 = vmatpush1.msra.mxu0 0.0
    %173 = vmatprep.subr.mxu0 0.0
    %174 = vmatpush1.msra.mxu0 0.0
    %175 = vmatprep.mubr.f32.mxu0 0.0
    %176 = vmatmul.mubr.f32.gmra.mrb[0].mxu0 %v91
    %v177 = vpop.f32.mrb[0].mxu0
    %v178 = vadd.f32 0.0, %v177
    %v179 = vpop.f32.mrb[0].mxu0
    %180 = vmatprep.mubr.f32.mxu0 0.0
    %181 = vmatmul.mubr.f32.gmra.mrb[0].mxu0 %v93
    %v182 = vpop.f32.mrb[0].mxu0
    %v183 = vadd.f32 0.0, %v182
    %v184 = vpop.f32.mrb[0].mxu0
    %185 = vmatprep.mubr.f32.mxu0 0.0
    %186 = vmatmul.mubr.f32.gmra.mrb[0].mxu0 %v95
    %v187 = vpop.f32.mrb[0].mxu0
    %v188 = vadd.f32 0.0, %v187
    %v189 = vpop.f32.mrb[0].mxu0
    %190 = vmatprep.mubr.f32.mxu0 0.0
    %191 = vmatmul.mubr.f32.gmra.mrb[0].mxu0 %v97
    %v192 = vpop.f32.mrb[0].mxu0
    %v193 = vadd.f32 0.0, %v192
    %v194 = vpop.f32.mrb[0].mxu0
    %195 = vmatprep.mubr.f32.mxu0 0.0
    %196 = vmatmul.mubr.f32.gmra.mrb[0].mxu0 %v99
    %v197 = vpop.f32.mrb[0].mxu0
    %v198 = vadd.f32 0.0, %v197
    %v199 = vpop.f32.mrb[0].mxu0
    %200 = vmatprep.mubr.f32.mxu0 0.0
    %201 = vmatmul.mubr.f32.gmra.mrb[0].mxu0 %v101
    %v202 = vpop.f32.mrb[0].mxu0
    %v203 = vadd.f32 0.0, %v202
    %v204 = vpop.f32.mrb[0].mxu0
    %205 = vmatprep.mubr.f32.mxu0 0.0
    %206 = vmatmul.mubr.f32.gmra.mrb[0].mxu0 %v103
    %v207 = vpop.f32.mrb[0].mxu0
    %v208 = vadd.f32 0.0, %v207
    %v209 = vpop.f32.mrb[0].mxu0
    %210 = vmatprep.mubr.f32.mxu0 0.0
    %211 = vmatmul.mubr.f32.gmra.mrb[0].mxu0 %v105
    %v212 = vpop.f32.mrb[0].mxu0
    %v213 = vadd.f32 0.0, %v212
    %v214 = vpop.f32.mrb[0].mxu0
    %215 = vdwg.mxu0
    %v216 = vsel %vm90, %v46, 0
    %v218 = vsel %vm90, %v47, 0
    %v220 = vsel %vm90, %v48, 0
    %v222 = vsel %vm90, %v49, 0
    %v224 = vsel %vm90, %v50, 0
    %v226 = vsel %vm90, %v51, 0
    %v228 = vsel %vm90, %v52, 0
    %v230 = vsel %vm90, %v53, 0
    %v233 = vsel %vm107, %v59, 0
    %235 = vmatprep.subr.mxu0 0.0
    %236 = vmatpush1.msra.mxu0 %v55
    %237 = vmatprep.subr.mxu0 0.0
    %238 = vmatpush1.msra.mxu0 %v56
    %239 = vmatprep.subr.mxu0 0.0
    %240 = vmatpush1.msra.mxu0 %v57
    %241 = vmatprep.subr.mxu0 0.0
    %242 = vmatpush1.msra.mxu0 %v58
    %243 = vmatprep.subr.mxu0 0.0
    %244 = vmatpush1.msra.mxu0 %v233
    %245 = vmatprep.subr.mxu0 0.0
    %246 = vmatpush1.msra.mxu0 0.0
    %247 = vmatprep.subr.mxu0 0.0
    %248 = vmatpush1.msra.mxu0 0.0
    %249 = vmatprep.subr.mxu0 0.0
    %250 = vmatpush1.msra.mxu0 0.0
    %251 = vmatprep.subr.mxu0 0.0
    %252 = vmatpush1.msra.mxu0 0.0
    %253 = vmatprep.subr.mxu0 0.0
    %254 = vmatpush1.msra.mxu0 0.0
    %255 = vmatprep.subr.mxu0 0.0
    %256 = vmatpush1.msra.mxu0 0.0
    %257 = vmatprep.subr.mxu0 0.0
    %258 = vmatpush1.msra.mxu0 0.0
    %259 = vmatprep.subr.mxu0 0.0
    %260 = vmatpush1.msra.mxu0 0.0
    %261 = vmatprep.subr.mxu0 0.0
    %262 = vmatpush1.msra.mxu0 0.0
    %263 = vmatprep.subr.mxu0 0.0
    %264 = vmatpush1.msra.mxu0 0.0
    %265 = vmatprep.subr.mxu0 0.0
    %266 = vmatpush1.msra.mxu0 0.0
    %267 = vmatprep.subr.mxu0 0.0
    %268 = vmatpush1.msra.mxu0 0.0
    %269 = vmatprep.subr.mxu0 0.0
    %270 = vmatpush1.msra.mxu0 0.0
    %271 = vmatprep.subr.mxu0 0.0
    %272 = vmatpush1.msra.mxu0 0.0
    %273 = vmatprep.subr.mxu0 0.0
    %274 = vmatpush1.msra.mxu0 0.0
    %275 = vmatprep.subr.mxu0 0.0
    %276 = vmatpush1.msra.mxu0 0.0
    %277 = vmatprep.subr.mxu0 0.0
    %278 = vmatpush1.msra.mxu0 0.0
    %279 = vmatprep.subr.mxu0 0.0
    %280 = vmatpush1.msra.mxu0 0.0
    %281 = vmatprep.subr.mxu0 0.0
    %282 = vmatpush1.msra.mxu0 0.0
    %283 = vmatprep.subr.mxu0 0.0
    %284 = vmatpush1.msra.mxu0 0.0
    %285 = vmatprep.subr.mxu0 0.0
    %286 = vmatpush1.msra.mxu0 0.0
    %287 = vmatprep.subr.mxu0 0.0
    %288 = vmatpush1.msra.mxu0 0.0
    %289 = vmatprep.subr.mxu0 0.0
    %290 = vmatpush1.msra.mxu0 0.0
    %291 = vmatprep.subr.mxu0 0.0
    %292 = vmatpush1.msra.mxu0 0.0
    %293 = vmatprep.subr.mxu0 0.0
    %294 = vmatpush1.msra.mxu0 0.0
    %295 = vmatprep.subr.mxu0 0.0
    %296 = vmatpush1.msra.mxu0 0.0
    %297 = vmatprep.subr.mxu0 0.0
    %298 = vmatpush1.msra.mxu0 0.0
    %299 = vmatprep.mubr.f32.mxu0 0.0
    %300 = vmatmul.mubr.f32.gmra.mrb[0].mxu0 %v216
    %v301 = vpop.f32.mrb[0].mxu0
    %v302 = vadd.f32 %v178, %v301
    %v303 = vpop.f32.mrb[0].mxu0
    %304 = vmatprep.mubr.f32.mxu0 0.0
    %305 = vmatmul.mubr.f32.gmra.mrb[0].mxu0 %v218
    %v306 = vpop.f32.mrb[0].mxu0
    %v307 = vadd.f32 %v183, %v306
    %v308 = vpop.f32.mrb[0].mxu0
    %309 = vmatprep.mubr.f32.mxu0 0.0
    %310 = vmatmul.mubr.f32.gmra.mrb[0].mxu0 %v220
    %v311 = vpop.f32.mrb[0].mxu0
    %v312 = vadd.f32 %v188, %v311
    %v313 = vpop.f32.mrb[0].mxu0
    %314 = vmatprep.mubr.f32.mxu0 0.0
    %315 = vmatmul.mubr.f32.gmra.mrb[0].mxu0 %v222
    %v316 = vpop.f32.mrb[0].mxu0
    %v317 = vadd.f32 %v193, %v316
    %v318 = vpop.f32.mrb[0].mxu0
    %319 = vmatprep.mubr.f32.mxu0 0.0
    %320 = vmatmul.mubr.f32.gmra.mrb[0].mxu0 %v224
    %v321 = vpop.f32.mrb[0].mxu0
    %v322 = vadd.f32 %v198, %v321
    %v323 = vpop.f32.mrb[0].mxu0
    %324 = vmatprep.mubr.f32.mxu0 0.0
    %325 = vmatmul.mubr.f32.gmra.mrb[0].mxu0 %v226
    %v326 = vpop.f32.mrb[0].mxu0
    %v327 = vadd.f32 %v203, %v326
    %v328 = vpop.f32.mrb[0].mxu0
    %329 = vmatprep.mubr.f32.mxu0 0.0
    %330 = vmatmul.mubr.f32.gmra.mrb[0].mxu0 %v228
    %v331 = vpop.f32.mrb[0].mxu0
    %v332 = vadd.f32 %v208, %v331
    %v333 = vpop.f32.mrb[0].mxu0
    %334 = vmatprep.mubr.f32.mxu0 0.0
    %335 = vmatmul.mubr.f32.gmra.mrb[0].mxu0 %v230
    %v336 = vpop.f32.mrb[0].mxu0
    %v337 = vadd.f32 %v213, %v336
    %v338 = vpop.f32.mrb[0].mxu0
    %339 = vdwg.mxu0
    %s340 = scalar_lea.vmem %s1, 240
    %v341 = vld [vmem:[%s340] sm:$0xff]
    %v342 = vld [vmem:[%s340 + $0x8] sm:$0xff]
    %v343 = vld [vmem:[%s340 + $0x10] sm:$0xff]
    %v344 = vld [vmem:[%s340 + $0x18] sm:$0xff]
    %v345 = vld [vmem:[%s340 + $0x20] sm:$0xf]
    %vm346 = vcmask 1045504
    %v347 = vrot.slane %v46, 2
    %v348 = vrot.slane %v47, 2
    %v349 = vsel %vm346, %v347, %v348
    %v350 = vrot.slane %v48, 2
    %v351 = vsel %vm346, %v348, %v350
    %v352 = vrot.slane %v49, 2
    %v353 = vsel %vm346, %v350, %v352
    %v354 = vrot.slane %v50, 2
    %v355 = vsel %vm346, %v352, %v354
    %v356 = vrot.slane %v51, 2
    %v357 = vsel %vm346, %v354, %v356
    %v358 = vrot.slane %v52, 2
    %v359 = vsel %vm346, %v356, %v358
    %v360 = vrot.slane %v53, 2
    %v361 = vsel %vm346, %v358, %v360
    %v362 = vsel %vm90, %v349, 0
    %v364 = vsel %vm90, %v351, 0
    %v366 = vsel %vm90, %v353, 0
    %v368 = vsel %vm90, %v355, 0
    %v370 = vsel %vm90, %v357, 0
    %v372 = vsel %vm90, %v359, 0
    %v374 = vsel %vm90, %v361, 0
    %v376 = vsel %vm90, %v360, 0
    %v379 = vsel %vm107, %v345, 0
    %381 = vmatprep.subr.mxu0 0.0
    %382 = vmatpush1.msra.mxu0 %v341
    %383 = vmatprep.subr.mxu0 0.0
    %384 = vmatpush1.msra.mxu0 %v342
    %385 = vmatprep.subr.mxu0 0.0
    %386 = vmatpush1.msra.mxu0 %v343
    %387 = vmatprep.subr.mxu0 0.0
    %388 = vmatpush1.msra.mxu0 %v344
    %389 = vmatprep.subr.mxu0 0.0
    %390 = vmatpush1.msra.mxu0 %v379
    %391 = vmatprep.subr.mxu0 0.0
    %392 = vmatpush1.msra.mxu0 0.0
    %393 = vmatprep.subr.mxu0 0.0
    %394 = vmatpush1.msra.mxu0 0.0
    %395 = vmatprep.subr.mxu0 0.0
    %396 = vmatpush1.msra.mxu0 0.0
    %397 = vmatprep.subr.mxu0 0.0
    %398 = vmatpush1.msra.mxu0 0.0
    %399 = vmatprep.subr.mxu0 0.0
    %400 = vmatpush1.msra.mxu0 0.0
    %401 = vmatprep.subr.mxu0 0.0
    %402 = vmatpush1.msra.mxu0 0.0
    %403 = vmatprep.subr.mxu0 0.0
    %404 = vmatpush1.msra.mxu0 0.0
    %405 = vmatprep.subr.mxu0 0.0
    %406 = vmatpush1.msra.mxu0 0.0
    %407 = vmatprep.subr.mxu0 0.0
    %408 = vmatpush1.msra.mxu0 0.0
    %409 = vmatprep.subr.mxu0 0.0
    %410 = vmatpush1.msra.mxu0 0.0
    %411 = vmatprep.subr.mxu0 0.0
    %412 = vmatpush1.msra.mxu0 0.0
    %413 = vmatprep.subr.mxu0 0.0
    %414 = vmatpush1.msra.mxu0 0.0
    %415 = vmatprep.subr.mxu0 0.0
    %416 = vmatpush1.msra.mxu0 0.0
    %417 = vmatprep.subr.mxu0 0.0
    %418 = vmatpush1.msra.mxu0 0.0
    %419 = vmatprep.subr.mxu0 0.0
    %420 = vmatpush1.msra.mxu0 0.0
    %421 = vmatprep.subr.mxu0 0.0
    %422 = vmatpush1.msra.mxu0 0.0
    %423 = vmatprep.subr.mxu0 0.0
    %424 = vmatpush1.msra.mxu0 0.0
    %425 = vmatprep.subr.mxu0 0.0
    %426 = vmatpush1.msra.mxu0 0.0
    %427 = vmatprep.subr.mxu0 0.0
    %428 = vmatpush1.msra.mxu0 0.0
    %429 = vmatprep.subr.mxu0 0.0
    %430 = vmatpush1.msra.mxu0 0.0
    %431 = vmatprep.subr.mxu0 0.0
    %432 = vmatpush1.msra.mxu0 0.0
    %433 = vmatprep.subr.mxu0 0.0
    %434 = vmatpush1.msra.mxu0 0.0
    %435 = vmatprep.subr.mxu0 0.0
    %436 = vmatpush1.msra.mxu0 0.0
    %437 = vmatprep.subr.mxu0 0.0
    %438 = vmatpush1.msra.mxu0 0.0
    %439 = vmatprep.subr.mxu0 0.0
    %440 = vmatpush1.msra.mxu0 0.0
    %441 = vmatprep.subr.mxu0 0.0
    %442 = vmatpush1.msra.mxu0 0.0
    %443 = vmatprep.subr.mxu0 0.0
    %444 = vmatpush1.msra.mxu0 0.0
    %445 = vmatprep.mubr.f32.mxu0 0.0
    %446 = vmatmul.mubr.f32.gmra.mrb[0].mxu0 %v362
    %v447 = vpop.f32.mrb[0].mxu0
    %v448 = vadd.f32 0.0, %v447
    %v449 = vpop.f32.mrb[0].mxu0
    %450 = vmatprep.mubr.f32.mxu0 0.0
    %451 = vmatmul.mubr.f32.gmra.mrb[0].mxu0 %v364
    %v452 = vpop.f32.mrb[0].mxu0
    %v453 = vadd.f32 0.0, %v452
    %v454 = vpop.f32.mrb[0].mxu0
    %455 = vmatprep.mubr.f32.mxu0 0.0
    %456 = vmatmul.mubr.f32.gmra.mrb[0].mxu0 %v366
    %v457 = vpop.f32.mrb[0].mxu0
    %v458 = vadd.f32 0.0, %v457
    %v459 = vpop.f32.mrb[0].mxu0
    %460 = vmatprep.mubr.f32.mxu0 0.0
    %461 = vmatmul.mubr.f32.gmra.mrb[0].mxu0 %v368
    %v462 = vpop.f32.mrb[0].mxu0
    %v463 = vadd.f32 0.0, %v462
    %v464 = vpop.f32.mrb[0].mxu0
    %465 = vmatprep.mubr.f32.mxu0 0.0
    %466 = vmatmul.mubr.f32.gmra.mrb[0].mxu0 %v370
    %v467 = vpop.f32.mrb[0].mxu0
    %v468 = vadd.f32 0.0, %v467
    %v469 = vpop.f32.mrb[0].mxu0
    %470 = vmatprep.mubr.f32.mxu0 0.0
    %471 = vmatmul.mubr.f32.gmra.mrb[0].mxu0 %v372
    %v472 = vpop.f32.mrb[0].mxu0
    %v473 = vadd.f32 0.0, %v472
    %v474 = vpop.f32.mrb[0].mxu0
    %475 = vmatprep.mubr.f32.mxu0 0.0
    %476 = vmatmul.mubr.f32.gmra.mrb[0].mxu0 %v374
    %v477 = vpop.f32.mrb[0].mxu0
    %v478 = vadd.f32 0.0, %v477
    %v479 = vpop.f32.mrb[0].mxu0
    %480 = vmatprep.mubr.f32.mxu0 0.0
    %481 = vmatmul.mubr.f32.gmra.mrb[0].mxu0 %v376
    %v482 = vpop.f32.mrb[0].mxu0
    %v483 = vadd.f32 0.0, %v482
    %v484 = vpop.f32.mrb[0].mxu0
    %485 = vdwg.mxu0
    %v486 = vadd.f32 %v302, %v448
    %v487 = vadd.f32 %v307, %v453
    %v488 = vadd.f32 %v312, %v458
    %v489 = vadd.f32 %v317, %v463
    %v490 = vadd.f32 %v322, %v468
    %v491 = vadd.f32 %v327, %v473
    %v492 = vadd.f32 %v332, %v478
    %v493 = vadd.f32 %v337, %v483
    %v495 = vlaneseq
    %v496 = vshrl.u32 %v495, 7
    %v497 = vsub.s32 0, %v496
    %v498 = vrot.slane %v54, %v497
    %v500 = vadd.f32 %v486, %v498
    %v501 = vadd.f32 %v487, %v498
    %v502 = vadd.f32 %v488, %v498
    %v503 = vadd.f32 %v489, %v498
    %v504 = vadd.f32 %v490, %v498
    %v505 = vadd.f32 %v491, %v498
    %v506 = vadd.f32 %v492, %v498
    %v507 = vadd.f32 %v493, %v498
    %v508 = vmax.f32 %v500, 0.0
    %v509 = vmax.f32 %v501, 0.0
    %v510 = vmax.f32 %v502, 0.0
    %v511 = vmax.f32 %v503, 0.0
    %v512 = vmax.f32 %v504, 0.0
    %v513 = vmax.f32 %v505, 0.0
    %v514 = vmax.f32 %v506, 0.0
    %v515 = vmax.f32 %v507, 0.0
    %s516 = scalar_lea.vmem %s1, 40
    %v517 = vld [vmem:[%s516] sm:$0xff]
    %v518 = vld [vmem:[%s516 + $0x8] sm:$0xff]
    %v519 = vld [vmem:[%s516 + $0x10] sm:$0xff]
    %v520 = vld [vmem:[%s516 + $0x18] sm:$0xff]
    %v521 = vld [vmem:[%s516 + $0x20] sm:$0xf]
    %s522 = scalar_lea.vmem %s1, 160
    %v523 = vld [vmem:[%s522] sm:$0xff]
    %v524 = vld [vmem:[%s522 + $0x8] sm:$0xff]
    %v525 = vld [vmem:[%s522 + $0x10] sm:$0xff]
    %v526 = vld [vmem:[%s522 + $0x18] sm:$0xff]
    %v527 = vld [vmem:[%s522 + $0x20] sm:$0xf]
    %v529 = vsel %vm107, %v527, 0
    %531 = vmatprep.subr.mxu0 0.0
    %532 = vmatpush1.msra.mxu0 %v523
    %533 = vmatprep.subr.mxu0 0.0
    %534 = vmatpush1.msra.mxu0 %v524
    %535 = vmatprep.subr.mxu0 0.0
    %536 = vmatpush1.msra.mxu0 %v525
    %537 = vmatprep.subr.mxu0 0.0
    %538 = vmatpush1.msra.mxu0 %v526
    %539 = vmatprep.subr.mxu0 0.0
    %540 = vmatpush1.msra.mxu0 %v529
    %541 = vmatprep.subr.mxu0 0.0
    %542 = vmatpush1.msra.mxu0 0.0
    %543 = vmatprep.subr.mxu0 0.0
    %544 = vmatpush1.msra.mxu0 0.0
    %545 = vmatprep.subr.mxu0 0.0
    %546 = vmatpush1.msra.mxu0 0.0
    %547 = vmatprep.subr.mxu0 0.0
    %548 = vmatpush1.msra.mxu0 0.0
    %549 = vmatprep.subr.mxu0 0.0
    %550 = vmatpush1.msra.mxu0 0.0
    %551 = vmatprep.subr.mxu0 0.0
    %552 = vmatpush1.msra.mxu0 0.0
    %553 = vmatprep.subr.mxu0 0.0
    %554 = vmatpush1.msra.mxu0 0.0
    %555 = vmatprep.subr.mxu0 0.0
    %556 = vmatpush1.msra.mxu0 0.0
    %557 = vmatprep.subr.mxu0 0.0
    %558 = vmatpush1.msra.mxu0 0.0
    %559 = vmatprep.subr.mxu0 0.0
    %560 = vmatpush1.msra.mxu0 0.0
    %561 = vmatprep.subr.mxu0 0.0
    %562 = vmatpush1.msra.mxu0 0.0
    %563 = vmatprep.subr.mxu0 0.0
    %564 = vmatpush1.msra.mxu0 0.0
    %565 = vmatprep.subr.mxu0 0.0
    %566 = vmatpush1.msra.mxu0 0.0
    %567 = vmatprep.subr.mxu0 0.0
    %568 = vmatpush1.msra.mxu0 0.0
    %569 = vmatprep.subr.mxu0 0.0
    %570 = vmatpush1.msra.mxu0 0.0
    %571 = vmatprep.subr.mxu0 0.0
    %572 = vmatpush1.msra.mxu0 0.0
    %573 = vmatprep.subr.mxu0 0.0
    %574 = vmatpush1.msra.mxu0 0.0
    %575 = vmatprep.subr.mxu0 0.0
    %576 = vmatpush1.msra.mxu0 0.0
    %577 = vmatprep.subr.mxu0 0.0
    %578 = vmatpush1.msra.mxu0 0.0
    %579 = vmatprep.subr.mxu0 0.0
    %580 = vmatpush1.msra.mxu0 0.0
    %581 = vmatprep.subr.mxu0 0.0
    %582 = vmatpush1.msra.mxu0 0.0
    %583 = vmatprep.subr.mxu0 0.0
    %584 = vmatpush1.msra.mxu0 0.0
    %585 = vmatprep.subr.mxu0 0.0
    %586 = vmatpush1.msra.mxu0 0.0
    %587 = vmatprep.subr.mxu0 0.0
    %588 = vmatpush1.msra.mxu0 0.0
    %589 = vmatprep.subr.mxu0 0.0
    %590 = vmatpush1.msra.mxu0 0.0
    %591 = vmatprep.subr.mxu0 0.0
    %592 = vmatpush1.msra.mxu0 0.0
    %593 = vmatprep.subr.mxu0 0.0
    %594 = vmatpush1.msra.mxu0 0.0
    %595 = vmatprep.mubr.f32.mxu0 0.0
    %596 = vmatmul.mubr.f32.gmra.mrb[0].mxu0 %v91
    %v597 = vpop.f32.mrb[0].mxu0
    %v598 = vadd.f32 0.0, %v597
    %v599 = vpop.f32.mrb[0].mxu0
    %600 = vmatprep.mubr.f32.mxu0 0.0
    %601 = vmatmul.mubr.f32.gmra.mrb[0].mxu0 %v93
    %v602 = vpop.f32.mrb[0].mxu0
    %v603 = vadd.f32 0.0, %v602
    %v604 = vpop.f32.mrb[0].mxu0
    %605 = vmatprep.mubr.f32.mxu0 0.0
    %606 = vmatmul.mubr.f32.gmra.mrb[0].mxu0 %v95
    %v607 = vpop.f32.mrb[0].mxu0
    %v608 = vadd.f32 0.0, %v607
    %v609 = vpop.f32.mrb[0].mxu0
    %610 = vmatprep.mubr.f32.mxu0 0.0
    %611 = vmatmul.mubr.f32.gmra.mrb[0].mxu0 %v97
    %v612 = vpop.f32.mrb[0].mxu0
    %v613 = vadd.f32 0.0, %v612
    %v614 = vpop.f32.mrb[0].mxu0
    %615 = vmatprep.mubr.f32.mxu0 0.0
    %616 = vmatmul.mubr.f32.gmra.mrb[0].mxu0 %v99
    %v617 = vpop.f32.mrb[0].mxu0
    %v618 = vadd.f32 0.0, %v617
    %v619 = vpop.f32.mrb[0].mxu0
    %620 = vmatprep.mubr.f32.mxu0 0.0
    %621 = vmatmul.mubr.f32.gmra.mrb[0].mxu0 %v101
    %v622 = vpop.f32.mrb[0].mxu0
    %v623 = vadd.f32 0.0, %v622
    %v624 = vpop.f32.mrb[0].mxu0
    %625 = vmatprep.mubr.f32.mxu0 0.0
    %626 = vmatmul.mubr.f32.gmra.mrb[0].mxu0 %v103
    %v627 = vpop.f32.mrb[0].mxu0
    %v628 = vadd.f32 0.0, %v627
    %v629 = vpop.f32.mrb[0].mxu0
    %630 = vmatprep.mubr.f32.mxu0 0.0
    %631 = vmatmul.mubr.f32.gmra.mrb[0].mxu0 %v105
    %v632 = vpop.f32.mrb[0].mxu0
    %v633 = vadd.f32 0.0, %v632
    %v634 = vpop.f32.mrb[0].mxu0
    %635 = vdwg.mxu0
    %v637 = vsel %vm107, %v521, 0
    %639 = vmatprep.subr.mxu0 0.0
    %640 = vmatpush1.msra.mxu0 %v517
    %641 = vmatprep.subr.mxu0 0.0
    %642 = vmatpush1.msra.mxu0 %v518
    %643 = vmatprep.subr.mxu0 0.0
    %644 = vmatpush1.msra.mxu0 %v519
    %645 = vmatprep.subr.mxu0 0.0
    %646 = vmatpush1.msra.mxu0 %v520
    %647 = vmatprep.subr.mxu0 0.0
    %648 = vmatpush1.msra.mxu0 %v637
    %649 = vmatprep.subr.mxu0 0.0
    %650 = vmatpush1.msra.mxu0 0.0
    %651 = vmatprep.subr.mxu0 0.0
    %652 = vmatpush1.msra.mxu0 0.0
    %653 = vmatprep.subr.mxu0 0.0
    %654 = vmatpush1.msra.mxu0 0.0
    %655 = vmatprep.subr.mxu0 0.0
    %656 = vmatpush1.msra.mxu0 0.0
    %657 = vmatprep.subr.mxu0 0.0
    %658 = vmatpush1.msra.mxu0 0.0
    %659 = vmatprep.subr.mxu0 0.0
    %660 = vmatpush1.msra.mxu0 0.0
    %661 = vmatprep.subr.mxu0 0.0
    %662 = vmatpush1.msra.mxu0 0.0
    %663 = vmatprep.subr.mxu0 0.0
    %664 = vmatpush1.msra.mxu0 0.0
    %665 = vmatprep.subr.mxu0 0.0
    %666 = vmatpush1.msra.mxu0 0.0
    %667 = vmatprep.subr.mxu0 0.0
    %668 = vmatpush1.msra.mxu0 0.0
    %669 = vmatprep.subr.mxu0 0.0
    %670 = vmatpush1.msra.mxu0 0.0
    %671 = vmatprep.subr.mxu0 0.0
    %672 = vmatpush1.msra.mxu0 0.0
    %673 = vmatprep.subr.mxu0 0.0
    %674 = vmatpush1.msra.mxu0 0.0
    %675 = vmatprep.subr.mxu0 0.0
    %676 = vmatpush1.msra.mxu0 0.0
    %677 = vmatprep.subr.mxu0 0.0
    %678 = vmatpush1.msra.mxu0 0.0
    %679 = vmatprep.subr.mxu0 0.0
    %680 = vmatpush1.msra.mxu0 0.0
    %681 = vmatprep.subr.mxu0 0.0
    %682 = vmatpush1.msra.mxu0 0.0
    %683 = vmatprep.subr.mxu0 0.0
    %684 = vmatpush1.msra.mxu0 0.0
    %685 = vmatprep.subr.mxu0 0.0
    %686 = vmatpush1.msra.mxu0 0.0
    %687 = vmatprep.subr.mxu0 0.0
    %688 = vmatpush1.msra.mxu0 0.0
    %689 = vmatprep.subr.mxu0 0.0
    %690 = vmatpush1.msra.mxu0 0.0
    %691 = vmatprep.subr.mxu0 0.0
    %692 = vmatpush1.msra.mxu0 0.0
    %693 = vmatprep.subr.mxu0 0.0
    %694 = vmatpush1.msra.mxu0 0.0
    %695 = vmatprep.subr.mxu0 0.0
    %696 = vmatpush1.msra.mxu0 0.0
    %697 = vmatprep.subr.mxu0 0.0
    %698 = vmatpush1.msra.mxu0 0.0
    %699 = vmatprep.subr.mxu0 0.0
    %700 = vmatpush1.msra.mxu0 0.0
    %701 = vmatprep.subr.mxu0 0.0
    %702 = vmatpush1.msra.mxu0 0.0
    %703 = vmatprep.mubr.f32.mxu0 0.0
    %704 = vmatmul.mubr.f32.gmra.mrb[0].mxu0 %v216
    %v705 = vpop.f32.mrb[0].mxu0
    %v706 = vadd.f32 %v598, %v705
    %v707 = vpop.f32.mrb[0].mxu0
    %708 = vmatprep.mubr.f32.mxu0 0.0
    %709 = vmatmul.mubr.f32.gmra.mrb[0].mxu0 %v218
    %v710 = vpop.f32.mrb[0].mxu0
    %v711 = vadd.f32 %v603, %v710
    %v712 = vpop.f32.mrb[0].mxu0
    %713 = vmatprep.mubr.f32.mxu0 0.0
    %714 = vmatmul.mubr.f32.gmra.mrb[0].mxu0 %v220
    %v715 = vpop.f32.mrb[0].mxu0
    %v716 = vadd.f32 %v608, %v715
    %v717 = vpop.f32.mrb[0].mxu0
    %718 = vmatprep.mubr.f32.mxu0 0.0
    %719 = vmatmul.mubr.f32.gmra.mrb[0].mxu0 %v222
    %v720 = vpop.f32.mrb[0].mxu0
    %v721 = vadd.f32 %v613, %v720
    %v722 = vpop.f32.mrb[0].mxu0
    %723 = vmatprep.mubr.f32.mxu0 0.0
    %724 = vmatmul.mubr.f32.gmra.mrb[0].mxu0 %v224
    %v725 = vpop.f32.mrb[0].mxu0
    %v726 = vadd.f32 %v618, %v725
    %v727 = vpop.f32.mrb[0].mxu0
    %728 = vmatprep.mubr.f32.mxu0 0.0
    %729 = vmatmul.mubr.f32.gmra.mrb[0].mxu0 %v226
    %v730 = vpop.f32.mrb[0].mxu0
    %v731 = vadd.f32 %v623, %v730
    %v732 = vpop.f32.mrb[0].mxu0
    %733 = vmatprep.mubr.f32.mxu0 0.0
    %734 = vmatmul.mubr.f32.gmra.mrb[0].mxu0 %v228
    %v735 = vpop.f32.mrb[0].mxu0
    %v736 = vadd.f32 %v628, %v735
    %v737 = vpop.f32.mrb[0].mxu0
    %738 = vmatprep.mubr.f32.mxu0 0.0
    %739 = vmatmul.mubr.f32.gmra.mrb[0].mxu0 %v230
    %v740 = vpop.f32.mrb[0].mxu0
    %v741 = vadd.f32 %v633, %v740
    %v742 = vpop.f32.mrb[0].mxu0
    %743 = vdwg.mxu0
    %s744 = scalar_lea.vmem %s1, 280
    %v745 = vld [vmem:[%s744] sm:$0xff]
    %v746 = vld [vmem:[%s744 + $0x8] sm:$0xff]
    %v747 = vld [vmem:[%s744 + $0x10] sm:$0xff]
    %v748 = vld [vmem:[%s744 + $0x18] sm:$0xff]
    %v749 = vld [vmem:[%s744 + $0x20] sm:$0xf]
    %v751 = vsel %vm107, %v749, 0
    %753 = vmatprep.subr.mxu0 0.0
    %754 = vmatpush1.msra.mxu0 %v745
    %755 = vmatprep.subr.mxu0 0.0
    %756 = vmatpush1.msra.mxu0 %v746
    %757 = vmatprep.subr.mxu0 0.0
    %758 = vmatpush1.msra.mxu0 %v747
    %759 = vmatprep.subr.mxu0 0.0
    %760 = vmatpush1.msra.mxu0 %v748
    %761 = vmatprep.subr.mxu0 0.0
    %762 = vmatpush1.msra.mxu0 %v751
    %763 = vmatprep.subr.mxu0 0.0
    %764 = vmatpush1.msra.mxu0 0.0
    %765 = vmatprep.subr.mxu0 0.0
    %766 = vmatpush1.msra.mxu0 0.0
    %767 = vmatprep.subr.mxu0 0.0
    %768 = vmatpush1.msra.mxu0 0.0
    %769 = vmatprep.subr.mxu0 0.0
    %770 = vmatpush1.msra.mxu0 0.0
    %771 = vmatprep.subr.mxu0 0.0
    %772 = vmatpush1.msra.mxu0 0.0
    %773 = vmatprep.subr.mxu0 0.0
    %774 = vmatpush1.msra.mxu0 0.0
    %775 = vmatprep.subr.mxu0 0.0
    %776 = vmatpush1.msra.mxu0 0.0
    %777 = vmatprep.subr.mxu0 0.0
    %778 = vmatpush1.msra.mxu0 0.0
    %779 = vmatprep.subr.mxu0 0.0
    %780 = vmatpush1.msra.mxu0 0.0
    %781 = vmatprep.subr.mxu0 0.0
    %782 = vmatpush1.msra.mxu0 0.0
    %783 = vmatprep.subr.mxu0 0.0
    %784 = vmatpush1.msra.mxu0 0.0
    %785 = vmatprep.subr.mxu0 0.0
    %786 = vmatpush1.msra.mxu0 0.0
    %787 = vmatprep.subr.mxu0 0.0
    %788 = vmatpush1.msra.mxu0 0.0
    %789 = vmatprep.subr.mxu0 0.0
    %790 = vmatpush1.msra.mxu0 0.0
    %791 = vmatprep.subr.mxu0 0.0
    %792 = vmatpush1.msra.mxu0 0.0
    %793 = vmatprep.subr.mxu0 0.0
    %794 = vmatpush1.msra.mxu0 0.0
    %795 = vmatprep.subr.mxu0 0.0
    %796 = vmatpush1.msra.mxu0 0.0
    %797 = vmatprep.subr.mxu0 0.0
    %798 = vmatpush1.msra.mxu0 0.0
    %799 = vmatprep.subr.mxu0 0.0
    %800 = vmatpush1.msra.mxu0 0.0
    %801 = vmatprep.subr.mxu0 0.0
    %802 = vmatpush1.msra.mxu0 0.0
    %803 = vmatprep.subr.mxu0 0.0
    %804 = vmatpush1.msra.mxu0 0.0
    %805 = vmatprep.subr.mxu0 0.0
    %806 = vmatpush1.msra.mxu0 0.0
    %807 = vmatprep.subr.mxu0 0.0
    %808 = vmatpush1.msra.mxu0 0.0
    %809 = vmatprep.subr.mxu0 0.0
    %810 = vmatpush1.msra.mxu0 0.0
    %811 = vmatprep.subr.mxu0 0.0
    %812 = vmatpush1.msra.mxu0 0.0
    %813 = vmatprep.subr.mxu0 0.0
    %814 = vmatpush1.msra.mxu0 0.0
    %815 = vmatprep.subr.mxu0 0.0
    %816 = vmatpush1.msra.mxu0 0.0
    %817 = vmatprep.mubr.f32.mxu0 0.0
    %818 = vmatmul.mubr.f32.gmra.mrb[0].mxu0 %v362
    %v819 = vpop.f32.mrb[0].mxu0
    %v820 = vadd.f32 0.0, %v819
    %v821 = vpop.f32.mrb[0].mxu0
    %822 = vmatprep.mubr.f32.mxu0 0.0
    %823 = vmatmul.mubr.f32.gmra.mrb[0].mxu0 %v364
    %v824 = vpop.f32.mrb[0].mxu0
    %v825 = vadd.f32 0.0, %v824
    %v826 = vpop.f32.mrb[0].mxu0
    %827 = vmatprep.mubr.f32.mxu0 0.0
    %828 = vmatmul.mubr.f32.gmra.mrb[0].mxu0 %v366
    %v829 = vpop.f32.mrb[0].mxu0
    %v830 = vadd.f32 0.0, %v829
    %v831 = vpop.f32.mrb[0].mxu0
    %832 = vmatprep.mubr.f32.mxu0 0.0
    %833 = vmatmul.mubr.f32.gmra.mrb[0].mxu0 %v368
    %v834 = vpop.f32.mrb[0].mxu0
    %v835 = vadd.f32 0.0, %v834
    %v836 = vpop.f32.mrb[0].mxu0
    %837 = vmatprep.mubr.f32.mxu0 0.0
    %838 = vmatmul.mubr.f32.gmra.mrb[0].mxu0 %v370
    %v839 = vpop.f32.mrb[0].mxu0
    %v840 = vadd.f32 0.0, %v839
    %v841 = vpop.f32.mrb[0].mxu0
    %842 = vmatprep.mubr.f32.mxu0 0.0
    %843 = vmatmul.mubr.f32.gmra.mrb[0].mxu0 %v372
    %v844 = vpop.f32.mrb[0].mxu0
    %v845 = vadd.f32 0.0, %v844
    %v846 = vpop.f32.mrb[0].mxu0
    %847 = vmatprep.mubr.f32.mxu0 0.0
    %848 = vmatmul.mubr.f32.gmra.mrb[0].mxu0 %v374
    %v849 = vpop.f32.mrb[0].mxu0
    %v850 = vadd.f32 0.0, %v849
    %v851 = vpop.f32.mrb[0].mxu0
    %852 = vmatprep.mubr.f32.mxu0 0.0
    %853 = vmatmul.mubr.f32.gmra.mrb[0].mxu0 %v376
    %v854 = vpop.f32.mrb[0].mxu0
    %v855 = vadd.f32 0.0, %v854
    %v856 = vpop.f32.mrb[0].mxu0
    %857 = vdwg.mxu0
    %v858 = vadd.f32 %v706, %v820
    %v859 = vadd.f32 %v711, %v825
    %v860 = vadd.f32 %v716, %v830
    %v861 = vadd.f32 %v721, %v835
    %v862 = vadd.f32 %v726, %v840
    %v863 = vadd.f32 %v731, %v845
    %v864 = vadd.f32 %v736, %v850
    %v865 = vadd.f32 %v741, %v855
    %v866 = vadd.f32 %v858, %v498
    %v867 = vadd.f32 %v859, %v498
    %v868 = vadd.f32 %v860, %v498
    %v869 = vadd.f32 %v861, %v498
    %v870 = vadd.f32 %v862, %v498
    %v871 = vadd.f32 %v863, %v498
    %v872 = vadd.f32 %v864, %v498
    %v873 = vadd.f32 %v865, %v498
    %v874 = vmax.f32 %v866, 0.0
    %v875 = vmax.f32 %v867, 0.0
    %v876 = vmax.f32 %v868, 0.0
    %v877 = vmax.f32 %v869, 0.0
    %v878 = vmax.f32 %v870, 0.0
    %v879 = vmax.f32 %v871, 0.0
    %v880 = vmax.f32 %v872, 0.0
    %v881 = vmax.f32 %v873, 0.0
    %v882 = vmax.f32 %v508, %v874
    %v883 = vmax.f32 %v509, %v875
    %v884 = vmax.f32 %v510, %v876
    %v885 = vmax.f32 %v511, %v877
    %v886 = vmax.f32 %v512, %v878
    %v887 = vmax.f32 %v513, %v879
    %v888 = vmax.f32 %v514, %v880
    %v889 = vmax.f32 %v515, %v881
    %s890 = scalar_lea.vmem %s1, 80
    %v891 = vld [vmem:[%s890] sm:$0xff]
    %v892 = vld [vmem:[%s890 + $0x8] sm:$0xff]
    %v893 = vld [vmem:[%s890 + $0x10] sm:$0xff]
    %v894 = vld [vmem:[%s890 + $0x18] sm:$0xff]
    %v895 = vld [vmem:[%s890 + $0x20] sm:$0xf]
    %s896 = scalar_lea.vmem %s1, 200
    %v897 = vld [vmem:[%s896] sm:$0xff]
    %v898 = vld [vmem:[%s896 + $0x8] sm:$0xff]
    %v899 = vld [vmem:[%s896 + $0x10] sm:$0xff]
    %v900 = vld [vmem:[%s896 + $0x18] sm:$0xff]
    %v901 = vld [vmem:[%s896 + $0x20] sm:$0xf]
    %v903 = vsel %vm107, %v901, 0
    %905 = vmatprep.subr.mxu0 0.0
    %906 = vmatpush1.msra.mxu0 %v897
    %907 = vmatprep.subr.mxu0 0.0
    %908 = vmatpush1.msra.mxu0 %v898
    %909 = vmatprep.subr.mxu0 0.0
    %910 = vmatpush1.msra.mxu0 %v899
    %911 = vmatprep.subr.mxu0 0.0
    %912 = vmatpush1.msra.mxu0 %v900
    %913 = vmatprep.subr.mxu0 0.0
    %914 = vmatpush1.msra.mxu0 %v903
    %915 = vmatprep.subr.mxu0 0.0
    %916 = vmatpush1.msra.mxu0 0.0
    %917 = vmatprep.subr.mxu0 0.0
    %918 = vmatpush1.msra.mxu0 0.0
    %919 = vmatprep.subr.mxu0 0.0
    %920 = vmatpush1.msra.mxu0 0.0
    %921 = vmatprep.subr.mxu0 0.0
    %922 = vmatpush1.msra.mxu0 0.0
    %923 = vmatprep.subr.mxu0 0.0
    %924 = vmatpush1.msra.mxu0 0.0
    %925 = vmatprep.subr.mxu0 0.0
    %926 = vmatpush1.msra.mxu0 0.0
    %927 = vmatprep.subr.mxu0 0.0
    %928 = vmatpush1.msra.mxu0 0.0
    %929 = vmatprep.subr.mxu0 0.0
    %930 = vmatpush1.msra.mxu0 0.0
    %931 = vmatprep.subr.mxu0 0.0
    %932 = vmatpush1.msra.mxu0 0.0
    %933 = vmatprep.subr.mxu0 0.0
    %934 = vmatpush1.msra.mxu0 0.0
    %935 = vmatprep.subr.mxu0 0.0
    %936 = vmatpush1.msra.mxu0 0.0
    %937 = vmatprep.subr.mxu0 0.0
    %938 = vmatpush1.msra.mxu0 0.0
    %939 = vmatprep.subr.mxu0 0.0
    %940 = vmatpush1.msra.mxu0 0.0
    %941 = vmatprep.subr.mxu0 0.0
    %942 = vmatpush1.msra.mxu0 0.0
    %943 = vmatprep.subr.mxu0 0.0
    %944 = vmatpush1.msra.mxu0 0.0
    %945 = vmatprep.subr.mxu0 0.0
    %946 = vmatpush1.msra.mxu0 0.0
    %947 = vmatprep.subr.mxu0 0.0
    %948 = vmatpush1.msra.mxu0 0.0
    %949 = vmatprep.subr.mxu0 0.0
    %950 = vmatpush1.msra.mxu0 0.0
    %951 = vmatprep.subr.mxu0 0.0
    %952 = vmatpush1.msra.mxu0 0.0
    %953 = vmatprep.subr.mxu0 0.0
    %954 = vmatpush1.msra.mxu0 0.0
    %955 = vmatprep.subr.mxu0 0.0
    %956 = vmatpush1.msra.mxu0 0.0
    %957 = vmatprep.subr.mxu0 0.0
    %958 = vmatpush1.msra.mxu0 0.0
    %959 = vmatprep.subr.mxu0 0.0
    %960 = vmatpush1.msra.mxu0 0.0
    %961 = vmatprep.subr.mxu0 0.0
    %962 = vmatpush1.msra.mxu0 0.0
    %963 = vmatprep.subr.mxu0 0.0
    %964 = vmatpush1.msra.mxu0 0.0
    %965 = vmatprep.subr.mxu0 0.0
    %966 = vmatpush1.msra.mxu0 0.0
    %967 = vmatprep.subr.mxu0 0.0
    %968 = vmatpush1.msra.mxu0 0.0
    %969 = vmatprep.mubr.f32.mxu0 0.0
    %970 = vmatmul.mubr.f32.gmra.mrb[0].mxu0 %v91
    %v971 = vpop.f32.mrb[0].mxu0
    %v972 = vadd.f32 0.0, %v971
    %v973 = vpop.f32.mrb[0].mxu0
    %974 = vmatprep.mubr.f32.mxu0 0.0
    %975 = vmatmul.mubr.f32.gmra.mrb[0].mxu0 %v93
    %v976 = vpop.f32.mrb[0].mxu0
    %v977 = vadd.f32 0.0, %v976
    %v978 = vpop.f32.mrb[0].mxu0
    %979 = vmatprep.mubr.f32.mxu0 0.0
    %980 = vmatmul.mubr.f32.gmra.mrb[0].mxu0 %v95
    %v981 = vpop.f32.mrb[0].mxu0
    %v982 = vadd.f32 0.0, %v981
    %v983 = vpop.f32.mrb[0].mxu0
    %984 = vmatprep.mubr.f32.mxu0 0.0
    %985 = vmatmul.mubr.f32.gmra.mrb[0].mxu0 %v97
    %v986 = vpop.f32.mrb[0].mxu0
    %v987 = vadd.f32 0.0, %v986
    %v988 = vpop.f32.mrb[0].mxu0
    %989 = vmatprep.mubr.f32.mxu0 0.0
    %990 = vmatmul.mubr.f32.gmra.mrb[0].mxu0 %v99
    %v991 = vpop.f32.mrb[0].mxu0
    %v992 = vadd.f32 0.0, %v991
    %v993 = vpop.f32.mrb[0].mxu0
    %994 = vmatprep.mubr.f32.mxu0 0.0
    %995 = vmatmul.mubr.f32.gmra.mrb[0].mxu0 %v101
    %v996 = vpop.f32.mrb[0].mxu0
    %v997 = vadd.f32 0.0, %v996
    %v998 = vpop.f32.mrb[0].mxu0
    %999 = vmatprep.mubr.f32.mxu0 0.0
    %1000 = vmatmul.mubr.f32.gmra.mrb[0].mxu0 %v103
    %v1001 = vpop.f32.mrb[0].mxu0
    %v1002 = vadd.f32 0.0, %v1001
    %v1003 = vpop.f32.mrb[0].mxu0
    %1004 = vmatprep.mubr.f32.mxu0 0.0
    %1005 = vmatmul.mubr.f32.gmra.mrb[0].mxu0 %v105
    %v1006 = vpop.f32.mrb[0].mxu0
    %v1007 = vadd.f32 0.0, %v1006
    %v1008 = vpop.f32.mrb[0].mxu0
    %1009 = vdwg.mxu0
    %v1011 = vsel %vm107, %v895, 0
    %1013 = vmatprep.subr.mxu0 0.0
    %1014 = vmatpush1.msra.mxu0 %v891
    %1015 = vmatprep.subr.mxu0 0.0
    %1016 = vmatpush1.msra.mxu0 %v892
    %1017 = vmatprep.subr.mxu0 0.0
    %1018 = vmatpush1.msra.mxu0 %v893
    %1019 = vmatprep.subr.mxu0 0.0
    %1020 = vmatpush1.msra.mxu0 %v894
    %1021 = vmatprep.subr.mxu0 0.0
    %1022 = vmatpush1.msra.mxu0 %v1011
    %1023 = vmatprep.subr.mxu0 0.0
    %1024 = vmatpush1.msra.mxu0 0.0
    %1025 = vmatprep.subr.mxu0 0.0
    %1026 = vmatpush1.msra.mxu0 0.0
    %1027 = vmatprep.subr.mxu0 0.0
    %1028 = vmatpush1.msra.mxu0 0.0
    %1029 = vmatprep.subr.mxu0 0.0
    %1030 = vmatpush1.msra.mxu0 0.0
    %1031 = vmatprep.subr.mxu0 0.0
    %1032 = vmatpush1.msra.mxu0 0.0
    %1033 = vmatprep.subr.mxu0 0.0
    %1034 = vmatpush1.msra.mxu0 0.0
    %1035 = vmatprep.subr.mxu0 0.0
    %1036 = vmatpush1.msra.mxu0 0.0
    %1037 = vmatprep.subr.mxu0 0.0
    %1038 = vmatpush1.msra.mxu0 0.0
    %1039 = vmatprep.subr.mxu0 0.0
    %1040 = vmatpush1.msra.mxu0 0.0
    %1041 = vmatprep.subr.mxu0 0.0
    %1042 = vmatpush1.msra.mxu0 0.0
    %1043 = vmatprep.subr.mxu0 0.0
    %1044 = vmatpush1.msra.mxu0 0.0
    %1045 = vmatprep.subr.mxu0 0.0
    %1046 = vmatpush1.msra.mxu0 0.0
    %1047 = vmatprep.subr.mxu0 0.0
    %1048 = vmatpush1.msra.mxu0 0.0
    %1049 = vmatprep.subr.mxu0 0.0
    %1050 = vmatpush1.msra.mxu0 0.0
    %1051 = vmatprep.subr.mxu0 0.0
    %1052 = vmatpush1.msra.mxu0 0.0
    %1053 = vmatprep.subr.mxu0 0.0
    %1054 = vmatpush1.msra.mxu0 0.0
    %1055 = vmatprep.subr.mxu0 0.0
    %1056 = vmatpush1.msra.mxu0 0.0
    %1057 = vmatprep.subr.mxu0 0.0
    %1058 = vmatpush1.msra.mxu0 0.0
    %1059 = vmatprep.subr.mxu0 0.0
    %1060 = vmatpush1.msra.mxu0 0.0
    %1061 = vmatprep.subr.mxu0 0.0
    %1062 = vmatpush1.msra.mxu0 0.0
    %1063 = vmatprep.subr.mxu0 0.0
    %1064 = vmatpush1.msra.mxu0 0.0
    %1065 = vmatprep.subr.mxu0 0.0
    %1066 = vmatpush1.msra.mxu0 0.0
    %1067 = vmatprep.subr.mxu0 0.0
    %1068 = vmatpush1.msra.mxu0 0.0
    %1069 = vmatprep.subr.mxu0 0.0
    %1070 = vmatpush1.msra.mxu0 0.0
    %1071 = vmatprep.subr.mxu0 0.0
    %1072 = vmatpush1.msra.mxu0 0.0
    %1073 = vmatprep.subr.mxu0 0.0
    %1074 = vmatpush1.msra.mxu0 0.0
    %1075 = vmatprep.subr.mxu0 0.0
    %1076 = vmatpush1.msra.mxu0 0.0
    %1077 = vmatprep.mubr.f32.mxu0 0.0
    %1078 = vmatmul.mubr.f32.gmra.mrb[0].mxu0 %v216
    %v1079 = vpop.f32.mrb[0].mxu0
    %v1080 = vadd.f32 %v972, %v1079
    %v1081 = vpop.f32.mrb[0].mxu0
    %1082 = vmatprep.mubr.f32.mxu0 0.0
    %1083 = vmatmul.mubr.f32.gmra.mrb[0].mxu0 %v218
    %v1084 = vpop.f32.mrb[0].mxu0
    %v1085 = vadd.f32 %v977, %v1084
    %v1086 = vpop.f32.mrb[0].mxu0
    %1087 = vmatprep.mubr.f32.mxu0 0.0
    %1088 = vmatmul.mubr.f32.gmra.mrb[0].mxu0 %v220
    %v1089 = vpop.f32.mrb[0].mxu0
    %v1090 = vadd.f32 %v982, %v1089
    %v1091 = vpop.f32.mrb[0].mxu0
    %1092 = vmatprep.mubr.f32.mxu0 0.0
    %1093 = vmatmul.mubr.f32.gmra.mrb[0].mxu0 %v222
    %v1094 = vpop.f32.mrb[0].mxu0
    %v1095 = vadd.f32 %v987, %v1094
    %v1096 = vpop.f32.mrb[0].mxu0
    %1097 = vmatprep.mubr.f32.mxu0 0.0
    %1098 = vmatmul.mubr.f32.gmra.mrb[0].mxu0 %v224
    %v1099 = vpop.f32.mrb[0].mxu0
    %v1100 = vadd.f32 %v992, %v1099
    %v1101 = vpop.f32.mrb[0].mxu0
    %1102 = vmatprep.mubr.f32.mxu0 0.0
    %1103 = vmatmul.mubr.f32.gmra.mrb[0].mxu0 %v226
    %v1104 = vpop.f32.mrb[0].mxu0
    %v1105 = vadd.f32 %v997, %v1104
    %v1106 = vpop.f32.mrb[0].mxu0
    %1107 = vmatprep.mubr.f32.mxu0 0.0
    %1108 = vmatmul.mubr.f32.gmra.mrb[0].mxu0 %v228
    %v1109 = vpop.f32.mrb[0].mxu0
    %v1110 = vadd.f32 %v1002, %v1109
    %v1111 = vpop.f32.mrb[0].mxu0
    %1112 = vmatprep.mubr.f32.mxu0 0.0
    %1113 = vmatmul.mubr.f32.gmra.mrb[0].mxu0 %v230
    %v1114 = vpop.f32.mrb[0].mxu0
    %v1115 = vadd.f32 %v1007, %v1114
    %v1116 = vpop.f32.mrb[0].mxu0
    %1117 = vdwg.mxu0
    %s1118 = scalar_lea.vmem %s1, 320
    %v1119 = vld [vmem:[%s1118] sm:$0xff]
    %v1120 = vld [vmem:[%s1118 + $0x8] sm:$0xff]
    %v1121 = vld [vmem:[%s1118 + $0x10] sm:$0xff]
    %v1122 = vld [vmem:[%s1118 + $0x18] sm:$0xff]
    %v1123 = vld [vmem:[%s1118 + $0x20] sm:$0xf]
    %v1125 = vsel %vm107, %v1123, 0
    %1127 = vmatprep.subr.mxu0 0.0
    %1128 = vmatpush1.msra.mxu0 %v1119
    %1129 = vmatprep.subr.mxu0 0.0
    %1130 = vmatpush1.msra.mxu0 %v1120
    %1131 = vmatprep.subr.mxu0 0.0
    %1132 = vmatpush1.msra.mxu0 %v1121
    %1133 = vmatprep.subr.mxu0 0.0
    %1134 = vmatpush1.msra.mxu0 %v1122
    %1135 = vmatprep.subr.mxu0 0.0
    %1136 = vmatpush1.msra.mxu0 %v1125
    %1137 = vmatprep.subr.mxu0 0.0
    %1138 = vmatpush1.msra.mxu0 0.0
    %1139 = vmatprep.subr.mxu0 0.0
    %1140 = vmatpush1.msra.mxu0 0.0
    %1141 = vmatprep.subr.mxu0 0.0
    %1142 = vmatpush1.msra.mxu0 0.0
    %1143 = vmatprep.subr.mxu0 0.0
    %1144 = vmatpush1.msra.mxu0 0.0
    %1145 = vmatprep.subr.mxu0 0.0
    %1146 = vmatpush1.msra.mxu0 0.0
    %1147 = vmatprep.subr.mxu0 0.0
    %1148 = vmatpush1.msra.mxu0 0.0
    %1149 = vmatprep.subr.mxu0 0.0
    %1150 = vmatpush1.msra.mxu0 0.0
    %1151 = vmatprep.subr.mxu0 0.0
    %1152 = vmatpush1.msra.mxu0 0.0
    %1153 = vmatprep.subr.mxu0 0.0
    %1154 = vmatpush1.msra.mxu0 0.0
    %1155 = vmatprep.subr.mxu0 0.0
    %1156 = vmatpush1.msra.mxu0 0.0
    %1157 = vmatprep.subr.mxu0 0.0
    %1158 = vmatpush1.msra.mxu0 0.0
    %1159 = vmatprep.subr.mxu0 0.0
    %1160 = vmatpush1.msra.mxu0 0.0
    %1161 = vmatprep.subr.mxu0 0.0
    %1162 = vmatpush1.msra.mxu0 0.0
    %1163 = vmatprep.subr.mxu0 0.0
    %1164 = vmatpush1.msra.mxu0 0.0
    %1165 = vmatprep.subr.mxu0 0.0
    %1166 = vmatpush1.msra.mxu0 0.0
    %1167 = vmatprep.subr.mxu0 0.0
    %1168 = vmatpush1.msra.mxu0 0.0
    %1169 = vmatprep.subr.mxu0 0.0
    %1170 = vmatpush1.msra.mxu0 0.0
    %1171 = vmatprep.subr.mxu0 0.0
    %1172 = vmatpush1.msra.mxu0 0.0
    %1173 = vmatprep.subr.mxu0 0.0
    %1174 = vmatpush1.msra.mxu0 0.0
    %1175 = vmatprep.subr.mxu0 0.0
    %1176 = vmatpush1.msra.mxu0 0.0
    %1177 = vmatprep.subr.mxu0 0.0
    %1178 = vmatpush1.msra.mxu0 0.0
    %1179 = vmatprep.subr.mxu0 0.0
    %1180 = vmatpush1.msra.mxu0 0.0
    %1181 = vmatprep.subr.mxu0 0.0
    %1182 = vmatpush1.msra.mxu0 0.0
    %1183 = vmatprep.subr.mxu0 0.0
    %1184 = vmatpush1.msra.mxu0 0.0
    %1185 = vmatprep.subr.mxu0 0.0
    %1186 = vmatpush1.msra.mxu0 0.0
    %1187 = vmatprep.subr.mxu0 0.0
    %1188 = vmatpush1.msra.mxu0 0.0
    %1189 = vmatprep.subr.mxu0 0.0
    %1190 = vmatpush1.msra.mxu0 0.0
    %1191 = vmatprep.mubr.f32.mxu0 0.0
    %1192 = vmatmul.mubr.f32.gmra.mrb[0].mxu0 %v362
    %v1193 = vpop.f32.mrb[0].mxu0
    %v1194 = vadd.f32 0.0, %v1193
    %v1195 = vpop.f32.mrb[0].mxu0
    %1196 = vmatprep.mubr.f32.mxu0 0.0
    %1197 = vmatmul.mubr.f32.gmra.mrb[0].mxu0 %v364
    %v1198 = vpop.f32.mrb[0].mxu0
    %v1199 = vadd.f32 0.0, %v1198
    %v1200 = vpop.f32.mrb[0].mxu0
    %1201 = vmatprep.mubr.f32.mxu0 0.0
    %1202 = vmatmul.mubr.f32.gmra.mrb[0].mxu0 %v366
    %v1203 = vpop.f32.mrb[0].mxu0
    %v1204 = vadd.f32 0.0, %v1203
    %v1205 = vpop.f32.mrb[0].mxu0
    %1206 = vmatprep.mubr.f32.mxu0 0.0
    %1207 = vmatmul.mubr.f32.gmra.mrb[0].mxu0 %v368
    %v1208 = vpop.f32.mrb[0].mxu0
    %v1209 = vadd.f32 0.0, %v1208
    %v1210 = vpop.f32.mrb[0].mxu0
    %1211 = vmatprep.mubr.f32.mxu0 0.0
    %1212 = vmatmul.mubr.f32.gmra.mrb[0].mxu0 %v370
    %v1213 = vpop.f32.mrb[0].mxu0
    %v1214 = vadd.f32 0.0, %v1213
    %v1215 = vpop.f32.mrb[0].mxu0
    %1216 = vmatprep.mubr.f32.mxu0 0.0
    %1217 = vmatmul.mubr.f32.gmra.mrb[0].mxu0 %v372
    %v1218 = vpop.f32.mrb[0].mxu0
    %v1219 = vadd.f32 0.0, %v1218
    %v1220 = vpop.f32.mrb[0].mxu0
    %1221 = vmatprep.mubr.f32.mxu0 0.0
    %1222 = vmatmul.mubr.f32.gmra.mrb[0].mxu0 %v374
    %v1223 = vpop.f32.mrb[0].mxu0
    %v1224 = vadd.f32 0.0, %v1223
    %v1225 = vpop.f32.mrb[0].mxu0
    %1226 = vmatprep.mubr.f32.mxu0 0.0
    %1227 = vmatmul.mubr.f32.gmra.mrb[0].mxu0 %v376
    %v1228 = vpop.f32.mrb[0].mxu0
    %v1229 = vadd.f32 0.0, %v1228
    %v1230 = vpop.f32.mrb[0].mxu0
    %1231 = vdwg.mxu0
    %v1232 = vadd.f32 %v1080, %v1194
    %v1233 = vadd.f32 %v1085, %v1199
    %v1234 = vadd.f32 %v1090, %v1204
    %v1235 = vadd.f32 %v1095, %v1209
    %v1236 = vadd.f32 %v1100, %v1214
    %v1237 = vadd.f32 %v1105, %v1219
    %v1238 = vadd.f32 %v1110, %v1224
    %v1239 = vadd.f32 %v1115, %v1229
    %v1240 = vadd.f32 %v1232, %v498
    %v1241 = vadd.f32 %v1233, %v498
    %v1242 = vadd.f32 %v1234, %v498
    %v1243 = vadd.f32 %v1235, %v498
    %v1244 = vadd.f32 %v1236, %v498
    %v1245 = vadd.f32 %v1237, %v498
    %v1246 = vadd.f32 %v1238, %v498
    %v1247 = vadd.f32 %v1239, %v498
    %v1248 = vmax.f32 %v1240, 0.0
    %v1249 = vmax.f32 %v1241, 0.0
    %v1250 = vmax.f32 %v1242, 0.0
    %v1251 = vmax.f32 %v1243, 0.0
    %v1252 = vmax.f32 %v1244, 0.0
    %v1253 = vmax.f32 %v1245, 0.0
    %v1254 = vmax.f32 %v1246, 0.0
    %v1255 = vmax.f32 %v1247, 0.0
    %v1256 = vmax.f32 %v882, %v1248
    %v1257 = vmax.f32 %v883, %v1249
    %v1258 = vmax.f32 %v884, %v1250
    %v1259 = vmax.f32 %v885, %v1251
    %v1260 = vmax.f32 %v886, %v1252
    %v1261 = vmax.f32 %v887, %v1253
    %v1262 = vmax.f32 %v888, %v1254
    %v1263 = vmax.f32 %v889, %v1255
    %v1264 = vld [vmem:[%s4] sm:$0x1]
    %v1265 = vld [vmem:[%s3] sm:$0xff]
    %v1266 = vld [vmem:[%s3 + $0x8] sm:$0xff]
    %v1267 = vld [vmem:[%s3 + $0x10] sm:$0xff]
    %v1268 = vld [vmem:[%s3 + $0x18] sm:$0xff]
    %v1269 = vld [vmem:[%s3 + $0x20] sm:$0xff]
    %v1270 = vld [vmem:[%s3 + $0x28] sm:$0xff]
    %v1271 = vld [vmem:[%s3 + $0x30] sm:$0xff]
    %v1272 = vld [vmem:[%s3 + $0x38] sm:$0xff]
    %v1273 = vld [vmem:[%s3 + $0x40] sm:$0xff]
    %v1274 = vld [vmem:[%s3 + $0x48] sm:$0xff]
    %v1275 = vld [vmem:[%s3 + $0x50] sm:$0xff]
    %s1276 = scalar_lea.vmem %s3, 264
    %v1277 = vld [vmem:[%s1276] sm:$0xff]
    %v1278 = vld [vmem:[%s1276 + $0x8] sm:$0xff]
    %v1279 = vld [vmem:[%s1276 + $0x10] sm:$0xff]
    %v1280 = vld [vmem:[%s1276 + $0x18] sm:$0xff]
    %v1281 = vld [vmem:[%s1276 + $0x20] sm:$0xff]
    %v1282 = vld [vmem:[%s1276 + $0x28] sm:$0xff]
    %v1283 = vld [vmem:[%s1276 + $0x30] sm:$0xff]
    %v1284 = vld [vmem:[%s1276 + $0x38] sm:$0xff]
    %v1285 = vld [vmem:[%s1276 + $0x40] sm:$0xff]
    %v1286 = vld [vmem:[%s1276 + $0x48] sm:$0xff]
    %v1287 = vld [vmem:[%s1276 + $0x50] sm:$0xff]
    %v1296 = vrot.slane %v1256, 1
    %v1297 = vrot.slane %v1257, 1
    %v1298 = vsel %vm74, %v1296, %v1297
    %v1299 = vrot.slane %v1258, 1
    %v1300 = vsel %vm74, %v1297, %v1299
    %v1301 = vrot.slane %v1259, 1
    %v1302 = vsel %vm74, %v1299, %v1301
    %v1303 = vrot.slane %v1260, 1
    %v1304 = vsel %vm74, %v1301, %v1303
    %v1305 = vrot.slane %v1261, 1
    %v1306 = vsel %vm74, %v1303, %v1305
    %v1307 = vrot.slane %v1262, 1
    %v1308 = vsel %vm74, %v1305, %v1307
    %v1309 = vrot.slane %v1263, 1
    %v1310 = vsel %vm74, %v1307, %v1309
    %vm1311 = vcmask 719872
    %v1312 = vsel %vm1311, %v1298, 0
    %v1314 = vsel %vm1311, %v1300, 0
    %v1316 = vsel %vm1311, %v1302, 0
    %v1318 = vsel %vm1311, %v1304, 0
    %v1320 = vsel %vm1311, %v1306, 0
    %v1322 = vsel %vm1311, %v1308, 0
    %v1324 = vsel %vm1311, %v1310, 0
    %v1326 = vsel %vm1311, %v1309, 0
    %1328 = vmatprep.subr.mxu0 0.0
    %1329 = vmatpush1.msra.mxu0 %v1277
    %1330 = vmatprep.subr.mxu0 0.0
    %1331 = vmatpush1.msra.mxu0 %v1278
    %1332 = vmatprep.subr.mxu0 0.0
    %1333 = vmatpush1.msra.mxu0 %v1279
    %1334 = vmatprep.subr.mxu0 0.0
    %1335 = vmatpush1.msra.mxu0 %v1280
    %1336 = vmatprep.subr.mxu0 0.0
    %1337 = vmatpush1.msra.mxu0 %v1281
    %1338 = vmatprep.subr.mxu0 0.0
    %1339 = vmatpush1.msra.mxu0 %v1282
    %1340 = vmatprep.subr.mxu0 0.0
    %1341 = vmatpush1.msra.mxu0 %v1283
    %1342 = vmatprep.subr.mxu0 0.0
    %1343 = vmatpush1.msra.mxu0 %v1284
    %1344 = vmatprep.subr.mxu0 0.0
    %1345 = vmatpush1.msra.mxu0 %v1285
    %1346 = vmatprep.subr.mxu0 0.0
    %1347 = vmatpush1.msra.mxu0 %v1286
    %1348 = vmatprep.subr.mxu0 0.0
    %1349 = vmatpush1.msra.mxu0 %v1287
    %1350 = vmatprep.subr.mxu0 0.0
    %1351 = vmatpush1.msra.mxu0 0.0
    %1352 = vmatprep.subr.mxu0 0.0
    %1353 = vmatpush1.msra.mxu0 0.0
    %1354 = vmatprep.subr.mxu0 0.0
    %1355 = vmatpush1.msra.mxu0 0.0
    %1356 = vmatprep.subr.mxu0 0.0
    %1357 = vmatpush1.msra.mxu0 0.0
    %1358 = vmatprep.subr.mxu0 0.0
    %1359 = vmatpush1.msra.mxu0 0.0
    %1360 = vmatprep.subr.mxu0 0.0
    %1361 = vmatpush1.msra.mxu0 0.0
    %1362 = vmatprep.subr.mxu0 0.0
    %1363 = vmatpush1.msra.mxu0 0.0
    %1364 = vmatprep.subr.mxu0 0.0
    %1365 = vmatpush1.msra.mxu0 0.0
    %1366 = vmatprep.subr.mxu0 0.0
    %1367 = vmatpush1.msra.mxu0 0.0
    %1368 = vmatprep.subr.mxu0 0.0
    %1369 = vmatpush1.msra.mxu0 0.0
    %1370 = vmatprep.subr.mxu0 0.0
    %1371 = vmatpush1.msra.mxu0 0.0
    %1372 = vmatprep.subr.mxu0 0.0
    %1373 = vmatpush1.msra.mxu0 0.0
    %1374 = vmatprep.subr.mxu0 0.0
    %1375 = vmatpush1.msra.mxu0 0.0
    %1376 = vmatprep.subr.mxu0 0.0
    %1377 = vmatpush1.msra.mxu0 0.0
    %1378 = vmatprep.subr.mxu0 0.0
    %1379 = vmatpush1.msra.mxu0 0.0
    %1380 = vmatprep.subr.mxu0 0.0
    %1381 = vmatpush1.msra.mxu0 0.0
    %1382 = vmatprep.subr.mxu0 0.0
    %1383 = vmatpush1.msra.mxu0 0.0
    %1384 = vmatprep.subr.mxu0 0.0
    %1385 = vmatpush1.msra.mxu0 0.0
    %1386 = vmatprep.subr.mxu0 0.0
    %1387 = vmatpush1.msra.mxu0 0.0
    %1388 = vmatprep.subr.mxu0 0.0
    %1389 = vmatpush1.msra.mxu0 0.0
    %1390 = vmatprep.subr.mxu0 0.0
    %1391 = vmatpush1.msra.mxu0 0.0
    %1392 = vmatprep.mubr.f32.mxu0 0.0
    %1393 = vmatmul.mubr.f32.gmra.mrb[0].mxu0 %v1312
    %v1394 = vpop.f32.mrb[0].mxu0
    %v1395 = vadd.f32 0.0, %v1394
    %v1396 = vpop.f32.mrb[0].mxu0
    %1397 = vmatprep.mubr.f32.mxu0 0.0
    %1398 = vmatmul.mubr.f32.gmra.mrb[0].mxu0 %v1314
    %v1399 = vpop.f32.mrb[0].mxu0
    %v1400 = vadd.f32 0.0, %v1399
    %v1401 = vpop.f32.mrb[0].mxu0
    %1402 = vmatprep.mubr.f32.mxu0 0.0
    %1403 = vmatmul.mubr.f32.gmra.mrb[0].mxu0 %v1316
    %v1404 = vpop.f32.mrb[0].mxu0
    %v1405 = vadd.f32 0.0, %v1404
    %v1406 = vpop.f32.mrb[0].mxu0
    %1407 = vmatprep.mubr.f32.mxu0 0.0
    %1408 = vmatmul.mubr.f32.gmra.mrb[0].mxu0 %v1318
    %v1409 = vpop.f32.mrb[0].mxu0
    %v1410 = vadd.f32 0.0, %v1409
    %v1411 = vpop.f32.mrb[0].mxu0
    %1412 = vmatprep.mubr.f32.mxu0 0.0
    %1413 = vmatmul.mubr.f32.gmra.mrb[0].mxu0 %v1320
    %v1414 = vpop.f32.mrb[0].mxu0
    %v1415 = vadd.f32 0.0, %v1414
    %v1416 = vpop.f32.mrb[0].mxu0
    %1417 = vmatprep.mubr.f32.mxu0 0.0
    %1418 = vmatmul.mubr.f32.gmra.mrb[0].mxu0 %v1322
    %v1419 = vpop.f32.mrb[0].mxu0
    %v1420 = vadd.f32 0.0, %v1419
    %v1421 = vpop.f32.mrb[0].mxu0
    %1422 = vmatprep.mubr.f32.mxu0 0.0
    %1423 = vmatmul.mubr.f32.gmra.mrb[0].mxu0 %v1324
    %v1424 = vpop.f32.mrb[0].mxu0
    %v1425 = vadd.f32 0.0, %v1424
    %v1426 = vpop.f32.mrb[0].mxu0
    %1427 = vmatprep.mubr.f32.mxu0 0.0
    %1428 = vmatmul.mubr.f32.gmra.mrb[0].mxu0 %v1326
    %v1429 = vpop.f32.mrb[0].mxu0
    %v1430 = vadd.f32 0.0, %v1429
    %v1431 = vpop.f32.mrb[0].mxu0
    %1432 = vdwg.mxu0
    %v1433 = vsel %vm1311, %v1256, 0
    %v1435 = vsel %vm1311, %v1257, 0
    %v1437 = vsel %vm1311, %v1258, 0
    %v1439 = vsel %vm1311, %v1259, 0
    %v1441 = vsel %vm1311, %v1260, 0
    %v1443 = vsel %vm1311, %v1261, 0
    %v1445 = vsel %vm1311, %v1262, 0
    %v1447 = vsel %vm1311, %v1263, 0
    %1449 = vmatprep.subr.mxu0 0.0
    %1450 = vmatpush1.msra.mxu0 %v1265
    %1451 = vmatprep.subr.mxu0 0.0
    %1452 = vmatpush1.msra.mxu0 %v1266
    %1453 = vmatprep.subr.mxu0 0.0
    %1454 = vmatpush1.msra.mxu0 %v1267
    %1455 = vmatprep.subr.mxu0 0.0
    %1456 = vmatpush1.msra.mxu0 %v1268
    %1457 = vmatprep.subr.mxu0 0.0
    %1458 = vmatpush1.msra.mxu0 %v1269
    %1459 = vmatprep.subr.mxu0 0.0
    %1460 = vmatpush1.msra.mxu0 %v1270
    %1461 = vmatprep.subr.mxu0 0.0
    %1462 = vmatpush1.msra.mxu0 %v1271
    %1463 = vmatprep.subr.mxu0 0.0
    %1464 = vmatpush1.msra.mxu0 %v1272
    %1465 = vmatprep.subr.mxu0 0.0
    %1466 = vmatpush1.msra.mxu0 %v1273
    %1467 = vmatprep.subr.mxu0 0.0
    %1468 = vmatpush1.msra.mxu0 %v1274
    %1469 = vmatprep.subr.mxu0 0.0
    %1470 = vmatpush1.msra.mxu0 %v1275
    %1471 = vmatprep.subr.mxu0 0.0
    %1472 = vmatpush1.msra.mxu0 0.0
    %1473 = vmatprep.subr.mxu0 0.0
    %1474 = vmatpush1.msra.mxu0 0.0
    %1475 = vmatprep.subr.mxu0 0.0
    %1476 = vmatpush1.msra.mxu0 0.0
    %1477 = vmatprep.subr.mxu0 0.0
    %1478 = vmatpush1.msra.mxu0 0.0
    %1479 = vmatprep.subr.mxu0 0.0
    %1480 = vmatpush1.msra.mxu0 0.0
    %1481 = vmatprep.subr.mxu0 0.0
    %1482 = vmatpush1.msra.mxu0 0.0
    %1483 = vmatprep.subr.mxu0 0.0
    %1484 = vmatpush1.msra.mxu0 0.0
    %1485 = vmatprep.subr.mxu0 0.0
    %1486 = vmatpush1.msra.mxu0 0.0
    %1487 = vmatprep.subr.mxu0 0.0
    %1488 = vmatpush1.msra.mxu0 0.0
    %1489 = vmatprep.subr.mxu0 0.0
    %1490 = vmatpush1.msra.mxu0 0.0
    %1491 = vmatprep.subr.mxu0 0.0
    %1492 = vmatpush1.msra.mxu0 0.0
    %1493 = vmatprep.subr.mxu0 0.0
    %1494 = vmatpush1.msra.mxu0 0.0
    %1495 = vmatprep.subr.mxu0 0.0
    %1496 = vmatpush1.msra.mxu0 0.0
    %1497 = vmatprep.subr.mxu0 0.0
    %1498 = vmatpush1.msra.mxu0 0.0
    %1499 = vmatprep.subr.mxu0 0.0
    %1500 = vmatpush1.msra.mxu0 0.0
    %1501 = vmatprep.subr.mxu0 0.0
    %1502 = vmatpush1.msra.mxu0 0.0
    %1503 = vmatprep.subr.mxu0 0.0
    %1504 = vmatpush1.msra.mxu0 0.0
    %1505 = vmatprep.subr.mxu0 0.0
    %1506 = vmatpush1.msra.mxu0 0.0
    %1507 = vmatprep.subr.mxu0 0.0
    %1508 = vmatpush1.msra.mxu0 0.0
    %1509 = vmatprep.subr.mxu0 0.0
    %1510 = vmatpush1.msra.mxu0 0.0
    %1511 = vmatprep.subr.mxu0 0.0
    %1512 = vmatpush1.msra.mxu0 0.0
    %1513 = vmatprep.mubr.f32.mxu0 0.0
    %1514 = vmatmul.mubr.f32.gmra.mrb[0].mxu0 %v1433
    %v1515 = vpop.f32.mrb[0].mxu0
    %v1516 = vadd.f32 %v1395, %v1515
    %v1517 = vpop.f32.mrb[0].mxu0
    %1518 = vmatprep.mubr.f32.mxu0 0.0
    %1519 = vmatmul.mubr.f32.gmra.mrb[0].mxu0 %v1435
    %v1520 = vpop.f32.mrb[0].mxu0
    %v1521 = vadd.f32 %v1400, %v1520
    %v1522 = vpop.f32.mrb[0].mxu0
    %1523 = vmatprep.mubr.f32.mxu0 0.0
    %1524 = vmatmul.mubr.f32.gmra.mrb[0].mxu0 %v1437
    %v1525 = vpop.f32.mrb[0].mxu0
    %v1526 = vadd.f32 %v1405, %v1525
    %v1527 = vpop.f32.mrb[0].mxu0
    %1528 = vmatprep.mubr.f32.mxu0 0.0
    %1529 = vmatmul.mubr.f32.gmra.mrb[0].mxu0 %v1439
    %v1530 = vpop.f32.mrb[0].mxu0
    %v1531 = vadd.f32 %v1410, %v1530
    %v1532 = vpop.f32.mrb[0].mxu0
    %1533 = vmatprep.mubr.f32.mxu0 0.0
    %1534 = vmatmul.mubr.f32.gmra.mrb[0].mxu0 %v1441
    %v1535 = vpop.f32.mrb[0].mxu0
    %v1536 = vadd.f32 %v1415, %v1535
    %v1537 = vpop.f32.mrb[0].mxu0
    %1538 = vmatprep.mubr.f32.mxu0 0.0
    %1539 = vmatmul.mubr.f32.gmra.mrb[0].mxu0 %v1443
    %v1540 = vpop.f32.mrb[0].mxu0
    %v1541 = vadd.f32 %v1420, %v1540
    %v1542 = vpop.f32.mrb[0].mxu0
    %1543 = vmatprep.mubr.f32.mxu0 0.0
    %1544 = vmatmul.mubr.f32.gmra.mrb[0].mxu0 %v1445
    %v1545 = vpop.f32.mrb[0].mxu0
    %v1546 = vadd.f32 %v1425, %v1545
    %v1547 = vpop.f32.mrb[0].mxu0
    %1548 = vmatprep.mubr.f32.mxu0 0.0
    %1549 = vmatmul.mubr.f32.gmra.mrb[0].mxu0 %v1447
    %v1550 = vpop.f32.mrb[0].mxu0
    %v1551 = vadd.f32 %v1430, %v1550
    %v1552 = vpop.f32.mrb[0].mxu0
    %1553 = vdwg.mxu0
    %s1554 = scalar_lea.vmem %s3, 528
    %v1555 = vld [vmem:[%s1554] sm:$0xff]
    %v1556 = vld [vmem:[%s1554 + $0x8] sm:$0xff]
    %v1557 = vld [vmem:[%s1554 + $0x10] sm:$0xff]
    %v1558 = vld [vmem:[%s1554 + $0x18] sm:$0xff]
    %v1559 = vld [vmem:[%s1554 + $0x20] sm:$0xff]
    %v1560 = vld [vmem:[%s1554 + $0x28] sm:$0xff]
    %v1561 = vld [vmem:[%s1554 + $0x30] sm:$0xff]
    %v1562 = vld [vmem:[%s1554 + $0x38] sm:$0xff]
    %v1563 = vld [vmem:[%s1554 + $0x40] sm:$0xff]
    %v1564 = vld [vmem:[%s1554 + $0x48] sm:$0xff]
    %v1565 = vld [vmem:[%s1554 + $0x50] sm:$0xff]
    %v1566 = vrot.slane %v1256, 2
    %v1567 = vrot.slane %v1257, 2
    %v1568 = vsel %vm346, %v1566, %v1567
    %v1569 = vrot.slane %v1258, 2
    %v1570 = vsel %vm346, %v1567, %v1569
    %v1571 = vrot.slane %v1259, 2
    %v1572 = vsel %vm346, %v1569, %v1571
    %v1573 = vrot.slane %v1260, 2
    %v1574 = vsel %vm346, %v1571, %v1573
    %v1575 = vrot.slane %v1261, 2
    %v1576 = vsel %vm346, %v1573, %v1575
    %v1577 = vrot.slane %v1262, 2
    %v1578 = vsel %vm346, %v1575, %v1577
    %v1579 = vrot.slane %v1263, 2
    %v1580 = vsel %vm346, %v1577, %v1579
    %v1581 = vsel %vm1311, %v1568, 0
    %v1583 = vsel %vm1311, %v1570, 0
    %v1585 = vsel %vm1311, %v1572, 0
    %v1587 = vsel %vm1311, %v1574, 0
    %v1589 = vsel %vm1311, %v1576, 0
    %v1591 = vsel %vm1311, %v1578, 0
    %v1593 = vsel %vm1311, %v1580, 0
    %v1595 = vsel %vm1311, %v1579, 0
    %1597 = vmatprep.subr.mxu0 0.0
    %1598 = vmatpush1.msra.mxu0 %v1555
    %1599 = vmatprep.subr.mxu0 0.0
    %1600 = vmatpush1.msra.mxu0 %v1556
    %1601 = vmatprep.subr.mxu0 0.0
    %1602 = vmatpush1.msra.mxu0 %v1557
    %1603 = vmatprep.subr.mxu0 0.0
    %1604 = vmatpush1.msra.mxu0 %v1558
    %1605 = vmatprep.subr.mxu0 0.0
    %1606 = vmatpush1.msra.mxu0 %v1559
    %1607 = vmatprep.subr.mxu0 0.0
    %1608 = vmatpush1.msra.mxu0 %v1560
    %1609 = vmatprep.subr.mxu0 0.0
    %1610 = vmatpush1.msra.mxu0 %v1561
    %1611 = vmatprep.subr.mxu0 0.0
    %1612 = vmatpush1.msra.mxu0 %v1562
    %1613 = vmatprep.subr.mxu0 0.0
    %1614 = vmatpush1.msra.mxu0 %v1563
    %1615 = vmatprep.subr.mxu0 0.0
    %1616 = vmatpush1.msra.mxu0 %v1564
    %1617 = vmatprep.subr.mxu0 0.0
    %1618 = vmatpush1.msra.mxu0 %v1565
    %1619 = vmatprep.subr.mxu0 0.0
    %1620 = vmatpush1.msra.mxu0 0.0
    %1621 = vmatprep.subr.mxu0 0.0
    %1622 = vmatpush1.msra.mxu0 0.0
    %1623 = vmatprep.subr.mxu0 0.0
    %1624 = vmatpush1.msra.mxu0 0.0
    %1625 = vmatprep.subr.mxu0 0.0
    %1626 = vmatpush1.msra.mxu0 0.0
    %1627 = vmatprep.subr.mxu0 0.0
    %1628 = vmatpush1.msra.mxu0 0.0
    %1629 = vmatprep.subr.mxu0 0.0
    %1630 = vmatpush1.msra.mxu0 0.0
    %1631 = vmatprep.subr.mxu0 0.0
    %1632 = vmatpush1.msra.mxu0 0.0
    %1633 = vmatprep.subr.mxu0 0.0
    %1634 = vmatpush1.msra.mxu0 0.0
    %1635 = vmatprep.subr.mxu0 0.0
    %1636 = vmatpush1.msra.mxu0 0.0
    %1637 = vmatprep.subr.mxu0 0.0
    %1638 = vmatpush1.msra.mxu0 0.0
    %1639 = vmatprep.subr.mxu0 0.0
    %1640 = vmatpush1.msra.mxu0 0.0
    %1641 = vmatprep.subr.mxu0 0.0
    %1642 = vmatpush1.msra.mxu0 0.0
    %1643 = vmatprep.subr.mxu0 0.0
    %1644 = vmatpush1.msra.mxu0 0.0
    %1645 = vmatprep.subr.mxu0 0.0
    %1646 = vmatpush1.msra.mxu0 0.0
    %1647 = vmatprep.subr.mxu0 0.0
    %1648 = vmatpush1.msra.mxu0 0.0
    %1649 = vmatprep.subr.mxu0 0.0
    %1650 = vmatpush1.msra.mxu0 0.0
    %1651 = vmatprep.subr.mxu0 0.0
    %1652 = vmatpush1.msra.mxu0 0.0
    %1653 = vmatprep.subr.mxu0 0.0
    %1654 = vmatpush1.msra.mxu0 0.0
    %1655 = vmatprep.subr.mxu0 0.0
    %1656 = vmatpush1.msra.mxu0 0.0
    %1657 = vmatprep.subr.mxu0 0.0
    %1658 = vmatpush1.msra.mxu0 0.0
    %1659 = vmatprep.subr.mxu0 0.0
    %1660 = vmatpush1.msra.mxu0 0.0
    %1661 = vmatprep.mubr.f32.mxu0 0.0
    %1662 = vmatmul.mubr.f32.gmra.mrb[0].mxu0 %v1581
    %v1663 = vpop.f32.mrb[0].mxu0
    %v1664 = vadd.f32 0.0, %v1663
    %v1665 = vpop.f32.mrb[0].mxu0
    %1666 = vmatprep.mubr.f32.mxu0 0.0
    %1667 = vmatmul.mubr.f32.gmra.mrb[0].mxu0 %v1583
    %v1668 = vpop.f32.mrb[0].mxu0
    %v1669 = vadd.f32 0.0, %v1668
    %v1670 = vpop.f32.mrb[0].mxu0
    %1671 = vmatprep.mubr.f32.mxu0 0.0
    %1672 = vmatmul.mubr.f32.gmra.mrb[0].mxu0 %v1585
    %v1673 = vpop.f32.mrb[0].mxu0
    %v1674 = vadd.f32 0.0, %v1673
    %v1675 = vpop.f32.mrb[0].mxu0
    %1676 = vmatprep.mubr.f32.mxu0 0.0
    %1677 = vmatmul.mubr.f32.gmra.mrb[0].mxu0 %v1587
    %v1678 = vpop.f32.mrb[0].mxu0
    %v1679 = vadd.f32 0.0, %v1678
    %v1680 = vpop.f32.mrb[0].mxu0
    %1681 = vmatprep.mubr.f32.mxu0 0.0
    %1682 = vmatmul.mubr.f32.gmra.mrb[0].mxu0 %v1589
    %v1683 = vpop.f32.mrb[0].mxu0
    %v1684 = vadd.f32 0.0, %v1683
    %v1685 = vpop.f32.mrb[0].mxu0
    %1686 = vmatprep.mubr.f32.mxu0 0.0
    %1687 = vmatmul.mubr.f32.gmra.mrb[0].mxu0 %v1591
    %v1688 = vpop.f32.mrb[0].mxu0
    %v1689 = vadd.f32 0.0, %v1688
    %v1690 = vpop.f32.mrb[0].mxu0
    %1691 = vmatprep.mubr.f32.mxu0 0.0
    %1692 = vmatmul.mubr.f32.gmra.mrb[0].mxu0 %v1593
    %v1693 = vpop.f32.mrb[0].mxu0
    %v1694 = vadd.f32 0.0, %v1693
    %v1695 = vpop.f32.mrb[0].mxu0
    %1696 = vmatprep.mubr.f32.mxu0 0.0
    %1697 = vmatmul.mubr.f32.gmra.mrb[0].mxu0 %v1595
    %v1698 = vpop.f32.mrb[0].mxu0
    %v1699 = vadd.f32 0.0, %v1698
    %v1700 = vpop.f32.mrb[0].mxu0
    %1701 = vdwg.mxu0
    %v1702 = vadd.f32 %v1516, %v1664
    %v1703 = vadd.f32 %v1521, %v1669
    %v1704 = vadd.f32 %v1526, %v1674
    %v1705 = vadd.f32 %v1531, %v1679
    %v1706 = vadd.f32 %v1536, %v1684
    %v1707 = vadd.f32 %v1541, %v1689
    %v1708 = vadd.f32 %v1546, %v1694
    %v1709 = vadd.f32 %v1551, %v1699
    %v1711 = vlaneseq
    %v1712 = vshrl.u32 %v1711, 7
    %v1713 = vsub.s32 0, %v1712
    %v1714 = vrot.slane %v1264, %v1713
    %v1716 = vadd.f32 %v1702, %v1714
    %v1717 = vadd.f32 %v1703, %v1714
    %v1718 = vadd.f32 %v1704, %v1714
    %v1719 = vadd.f32 %v1705, %v1714
    %v1720 = vadd.f32 %v1706, %v1714
    %v1721 = vadd.f32 %v1707, %v1714
    %v1722 = vadd.f32 %v1708, %v1714
    %v1723 = vadd.f32 %v1709, %v1714
    %v1724 = vmax.f32 %v1716, 0.0
    %v1725 = vmax.f32 %v1717, 0.0
    %v1726 = vmax.f32 %v1718, 0.0
    %v1727 = vmax.f32 %v1719, 0.0
    %v1728 = vmax.f32 %v1720, 0.0
    %v1729 = vmax.f32 %v1721, 0.0
    %v1730 = vmax.f32 %v1722, 0.0
    %v1731 = vmax.f32 %v1723, 0.0
    %s1732 = scalar_lea.vmem %s3, 88
    %v1733 = vld [vmem:[%s1732] sm:$0xff]
    %v1734 = vld [vmem:[%s1732 + $0x8] sm:$0xff]
    %v1735 = vld [vmem:[%s1732 + $0x10] sm:$0xff]
    %v1736 = vld [vmem:[%s1732 + $0x18] sm:$0xff]
    %v1737 = vld [vmem:[%s1732 + $0x20] sm:$0xff]
    %v1738 = vld [vmem:[%s1732 + $0x28] sm:$0xff]
    %v1739 = vld [vmem:[%s1732 + $0x30] sm:$0xff]
    %v1740 = vld [vmem:[%s1732 + $0x38] sm:$0xff]
    %v1741 = vld [vmem:[%s1732 + $0x40] sm:$0xff]
    %v1742 = vld [vmem:[%s1732 + $0x48] sm:$0xff]
    %v1743 = vld [vmem:[%s1732 + $0x50] sm:$0xff]
    %s1744 = scalar_lea.vmem %s3, 352
    %v1745 = vld [vmem:[%s1744] sm:$0xff]
    %v1746 = vld [vmem:[%s1744 + $0x8] sm:$0xff]
    %v1747 = vld [vmem:[%s1744 + $0x10] sm:$0xff]
    %v1748 = vld [vmem:[%s1744 + $0x18] sm:$0xff]
    %v1749 = vld [vmem:[%s1744 + $0x20] sm:$0xff]
    %v1750 = vld [vmem:[%s1744 + $0x28] sm:$0xff]
    %v1751 = vld [vmem:[%s1744 + $0x30] sm:$0xff]
    %v1752 = vld [vmem:[%s1744 + $0x38] sm:$0xff]
    %v1753 = vld [vmem:[%s1744 + $0x40] sm:$0xff]
    %v1754 = vld [vmem:[%s1744 + $0x48] sm:$0xff]
    %v1755 = vld [vmem:[%s1744 + $0x50] sm:$0xff]
    %1756 = vmatprep.subr.mxu0 0.0
    %1757 = vmatpush1.msra.mxu0 %v1745
    %1758 = vmatprep.subr.mxu0 0.0
    %1759 = vmatpush1.msra.mxu0 %v1746
    %1760 = vmatprep.subr.mxu0 0.0
    %1761 = vmatpush1.msra.mxu0 %v1747
    %1762 = vmatprep.subr.mxu0 0.0
    %1763 = vmatpush1.msra.mxu0 %v1748
    %1764 = vmatprep.subr.mxu0 0.0
    %1765 = vmatpush1.msra.mxu0 %v1749
    %1766 = vmatprep.subr.mxu0 0.0
    %1767 = vmatpush1.msra.mxu0 %v1750
    %1768 = vmatprep.subr.mxu0 0.0
    %1769 = vmatpush1.msra.mxu0 %v1751
    %1770 = vmatprep.subr.mxu0 0.0
    %1771 = vmatpush1.msra.mxu0 %v1752
    %1772 = vmatprep.subr.mxu0 0.0
    %1773 = vmatpush1.msra.mxu0 %v1753
    %1774 = vmatprep.subr.mxu0 0.0
    %1775 = vmatpush1.msra.mxu0 %v1754
    %1776 = vmatprep.subr.mxu0 0.0
    %1777 = vmatpush1.msra.mxu0 %v1755
    %1778 = vmatprep.subr.mxu0 0.0
    %1779 = vmatpush1.msra.mxu0 0.0
    %1780 = vmatprep.subr.mxu0 0.0
    %1781 = vmatpush1.msra.mxu0 0.0
    %1782 = vmatprep.subr.mxu0 0.0
    %1783 = vmatpush1.msra.mxu0 0.0
    %1784 = vmatprep.subr.mxu0 0.0
    %1785 = vmatpush1.msra.mxu0 0.0
    %1786 = vmatprep.subr.mxu0 0.0
    %1787 = vmatpush1.msra.mxu0 0.0
    %1788 = vmatprep.subr.mxu0 0.0
    %1789 = vmatpush1.msra.mxu0 0.0
    %1790 = vmatprep.subr.mxu0 0.0
    %1791 = vmatpush1.msra.mxu0 0.0
    %1792 = vmatprep.subr.mxu0 0.0
    %1793 = vmatpush1.msra.mxu0 0.0
    %1794 = vmatprep.subr.mxu0 0.0
    %1795 = vmatpush1.msra.mxu0 0.0
    %1796 = vmatprep.subr.mxu0 0.0
    %1797 = vmatpush1.msra.mxu0 0.0
    %1798 = vmatprep.subr.mxu0 0.0
    %1799 = vmatpush1.msra.mxu0 0.0
    %1800 = vmatprep.subr.mxu0 0.0
    %1801 = vmatpush1.msra.mxu0 0.0
    %1802 = vmatprep.subr.mxu0 0.0
    %1803 = vmatpush1.msra.mxu0 0.0
    %1804 = vmatprep.subr.mxu0 0.0
    %1805 = vmatpush1.msra.mxu0 0.0
    %1806 = vmatprep.subr.mxu0 0.0
    %1807 = vmatpush1.msra.mxu0 0.0
    %1808 = vmatprep.subr.mxu0 0.0
    %1809 = vmatpush1.msra.mxu0 0.0
    %1810 = vmatprep.subr.mxu0 0.0
    %1811 = vmatpush1.msra.mxu0 0.0
    %1812 = vmatprep.subr.mxu0 0.0
    %1813 = vmatpush1.msra.mxu0 0.0
    %1814 = vmatprep.subr.mxu0 0.0
    %1815 = vmatpush1.msra.mxu0 0.0
    %1816 = vmatprep.subr.mxu0 0.0
    %1817 = vmatpush1.msra.mxu0 0.0
    %1818 = vmatprep.subr.mxu0 0.0
    %1819 = vmatpush1.msra.mxu0 0.0
    %1820 = vmatprep.mubr.f32.mxu0 0.0
    %1821 = vmatmul.mubr.f32.gmra.mrb[0].mxu0 %v1312
    %v1822 = vpop.f32.mrb[0].mxu0
    %v1823 = vadd.f32 0.0, %v1822
    %v1824 = vpop.f32.mrb[0].mxu0
    %1825 = vmatprep.mubr.f32.mxu0 0.0
    %1826 = vmatmul.mubr.f32.gmra.mrb[0].mxu0 %v1314
    %v1827 = vpop.f32.mrb[0].mxu0
    %v1828 = vadd.f32 0.0, %v1827
    %v1829 = vpop.f32.mrb[0].mxu0
    %1830 = vmatprep.mubr.f32.mxu0 0.0
    %1831 = vmatmul.mubr.f32.gmra.mrb[0].mxu0 %v1316
    %v1832 = vpop.f32.mrb[0].mxu0
    %v1833 = vadd.f32 0.0, %v1832
    %v1834 = vpop.f32.mrb[0].mxu0
    %1835 = vmatprep.mubr.f32.mxu0 0.0
    %1836 = vmatmul.mubr.f32.gmra.mrb[0].mxu0 %v1318
    %v1837 = vpop.f32.mrb[0].mxu0
    %v1838 = vadd.f32 0.0, %v1837
    %v1839 = vpop.f32.mrb[0].mxu0
    %1840 = vmatprep.mubr.f32.mxu0 0.0
    %1841 = vmatmul.mubr.f32.gmra.mrb[0].mxu0 %v1320
    %v1842 = vpop.f32.mrb[0].mxu0
    %v1843 = vadd.f32 0.0, %v1842
    %v1844 = vpop.f32.mrb[0].mxu0
    %1845 = vmatprep.mubr.f32.mxu0 0.0
    %1846 = vmatmul.mubr.f32.gmra.mrb[0].mxu0 %v1322
    %v1847 = vpop.f32.mrb[0].mxu0
    %v1848 = vadd.f32 0.0, %v1847
    %v1849 = vpop.f32.mrb[0].mxu0
    %1850 = vmatprep.mubr.f32.mxu0 0.0
    %1851 = vmatmul.mubr.f32.gmra.mrb[0].mxu0 %v1324
    %v1852 = vpop.f32.mrb[0].mxu0
    %v1853 = vadd.f32 0.0, %v1852
    %v1854 = vpop.f32.mrb[0].mxu0
    %1855 = vmatprep.mubr.f32.mxu0 0.0
    %1856 = vmatmul.mubr.f32.gmra.mrb[0].mxu0 %v1326
    %v1857 = vpop.f32.mrb[0].mxu0
    %v1858 = vadd.f32 0.0, %v1857
    %v1859 = vpop.f32.mrb[0].mxu0
    %1860 = vdwg.mxu0
    %1861 = vmatprep.subr.mxu0 0.0
    %1862 = vmatpush1.msra.mxu0 %v1733
    %1863 = vmatprep.subr.mxu0 0.0
    %1864 = vmatpush1.msra.mxu0 %v1734
    %1865 = vmatprep.subr.mxu0 0.0
    %1866 = vmatpush1.msra.mxu0 %v1735
    %1867 = vmatprep.subr.mxu0 0.0
    %1868 = vmatpush1.msra.mxu0 %v1736
    %1869 = vmatprep.subr.mxu0 0.0
    %1870 = vmatpush1.msra.mxu0 %v1737
    %1871 = vmatprep.subr.mxu0 0.0
    %1872 = vmatpush1.msra.mxu0 %v1738
    %1873 = vmatprep.subr.mxu0 0.0
    %1874 = vmatpush1.msra.mxu0 %v1739
    %1875 = vmatprep.subr.mxu0 0.0
    %1876 = vmatpush1.msra.mxu0 %v1740
    %1877 = vmatprep.subr.mxu0 0.0
    %1878 = vmatpush1.msra.mxu0 %v1741
    %1879 = vmatprep.subr.mxu0 0.0
    %1880 = vmatpush1.msra.mxu0 %v1742
    %1881 = vmatprep.subr.mxu0 0.0
    %1882 = vmatpush1.msra.mxu0 %v1743
    %1883 = vmatprep.subr.mxu0 0.0
    %1884 = vmatpush1.msra.mxu0 0.0
    %1885 = vmatprep.subr.mxu0 0.0
    %1886 = vmatpush1.msra.mxu0 0.0
    %1887 = vmatprep.subr.mxu0 0.0
    %1888 = vmatpush1.msra.mxu0 0.0
    %1889 = vmatprep.subr.mxu0 0.0
    %1890 = vmatpush1.msra.mxu0 0.0
    %1891 = vmatprep.subr.mxu0 0.0
    %1892 = vmatpush1.msra.mxu0 0.0
    %1893 = vmatprep.subr.mxu0 0.0
    %1894 = vmatpush1.msra.mxu0 0.0
    %1895 = vmatprep.subr.mxu0 0.0
    %1896 = vmatpush1.msra.mxu0 0.0
    %1897 = vmatprep.subr.mxu0 0.0
    %1898 = vmatpush1.msra.mxu0 0.0
    %1899 = vmatprep.subr.mxu0 0.0
    %1900 = vmatpush1.msra.mxu0 0.0
    %1901 = vmatprep.subr.mxu0 0.0
    %1902 = vmatpush1.msra.mxu0 0.0
    %1903 = vmatprep.subr.mxu0 0.0
    %1904 = vmatpush1.msra.mxu0 0.0
    %1905 = vmatprep.subr.mxu0 0.0
    %1906 = vmatpush1.msra.mxu0 0.0
    %1907 = vmatprep.subr.mxu0 0.0
    %1908 = vmatpush1.msra.mxu0 0.0
    %1909 = vmatprep.subr.mxu0 0.0
    %1910 = vmatpush1.msra.mxu0 0.0
    %1911 = vmatprep.subr.mxu0 0.0
    %1912 = vmatpush1.msra.mxu0 0.0
    %1913 = vmatprep.subr.mxu0 0.0
    %1914 = vmatpush1.msra.mxu0 0.0
    %1915 = vmatprep.subr.mxu0 0.0
    %1916 = vmatpush1.msra.mxu0 0.0
    %1917 = vmatprep.subr.mxu0 0.0
    %1918 = vmatpush1.msra.mxu0 0.0
    %1919 = vmatprep.subr.mxu0 0.0
    %1920 = vmatpush1.msra.mxu0 0.0
    %1921 = vmatprep.subr.mxu0 0.0
    %1922 = vmatpush1.msra.mxu0 0.0
    %1923 = vmatprep.subr.mxu0 0.0
    %1924 = vmatpush1.msra.mxu0 0.0
    %1925 = vmatprep.mubr.f32.mxu0 0.0
    %1926 = vmatmul.mubr.f32.gmra.mrb[0].mxu0 %v1433
    %v1927 = vpop.f32.mrb[0].mxu0
    %v1928 = vadd.f32 %v1823, %v1927
    %v1929 = vpop.f32.mrb[0].mxu0
    %1930 = vmatprep.mubr.f32.mxu0 0.0
    %1931 = vmatmul.mubr.f32.gmra.mrb[0].mxu0 %v1435
    %v1932 = vpop.f32.mrb[0].mxu0
    %v1933 = vadd.f32 %v1828, %v1932
    %v1934 = vpop.f32.mrb[0].mxu0
    %1935 = vmatprep.mubr.f32.mxu0 0.0
    %1936 = vmatmul.mubr.f32.gmra.mrb[0].mxu0 %v1437
    %v1937 = vpop.f32.mrb[0].mxu0
    %v1938 = vadd.f32 %v1833, %v1937
    %v1939 = vpop.f32.mrb[0].mxu0
    %1940 = vmatprep.mubr.f32.mxu0 0.0
    %1941 = vmatmul.mubr.f32.gmra.mrb[0].mxu0 %v1439
    %v1942 = vpop.f32.mrb[0].mxu0
    %v1943 = vadd.f32 %v1838, %v1942
    %v1944 = vpop.f32.mrb[0].mxu0
    %1945 = vmatprep.mubr.f32.mxu0 0.0
    %1946 = vmatmul.mubr.f32.gmra.mrb[0].mxu0 %v1441
    %v1947 = vpop.f32.mrb[0].mxu0
    %v1948 = vadd.f32 %v1843, %v1947
    %v1949 = vpop.f32.mrb[0].mxu0
    %1950 = vmatprep.mubr.f32.mxu0 0.0
    %1951 = vmatmul.mubr.f32.gmra.mrb[0].mxu0 %v1443
    %v1952 = vpop.f32.mrb[0].mxu0
    %v1953 = vadd.f32 %v1848, %v1952
    %v1954 = vpop.f32.mrb[0].mxu0
    %1955 = vmatprep.mubr.f32.mxu0 0.0
    %1956 = vmatmul.mubr.f32.gmra.mrb[0].mxu0 %v1445
    %v1957 = vpop.f32.mrb[0].mxu0
    %v1958 = vadd.f32 %v1853, %v1957
    %v1959 = vpop.f32.mrb[0].mxu0
    %1960 = vmatprep.mubr.f32.mxu0 0.0
    %1961 = vmatmul.mubr.f32.gmra.mrb[0].mxu0 %v1447
    %v1962 = vpop.f32.mrb[0].mxu0
    %v1963 = vadd.f32 %v1858, %v1962
    %v1964 = vpop.f32.mrb[0].mxu0
    %1965 = vdwg.mxu0
    %s1966 = scalar_lea.vmem %s3, 616
    %v1967 = vld [vmem:[%s1966] sm:$0xff]
    %v1968 = vld [vmem:[%s1966 + $0x8] sm:$0xff]
    %v1969 = vld [vmem:[%s1966 + $0x10] sm:$0xff]
    %v1970 = vld [vmem:[%s1966 + $0x18] sm:$0xff]
    %v1971 = vld [vmem:[%s1966 + $0x20] sm:$0xff]
    %v1972 = vld [vmem:[%s1966 + $0x28] sm:$0xff]
    %v1973 = vld [vmem:[%s1966 + $0x30] sm:$0xff]
    %v1974 = vld [vmem:[%s1966 + $0x38] sm:$0xff]
    %v1975 = vld [vmem:[%s1966 + $0x40] sm:$0xff]
    %v1976 = vld [vmem:[%s1966 + $0x48] sm:$0xff]
    %v1977 = vld [vmem:[%s1966 + $0x50] sm:$0xff]
    %1978 = vmatprep.subr.mxu0 0.0
    %1979 = vmatpush1.msra.mxu0 %v1967
    %1980 = vmatprep.subr.mxu0 0.0
    %1981 = vmatpush1.msra.mxu0 %v1968
    %1982 = vmatprep.subr.mxu0 0.0
    %1983 = vmatpush1.msra.mxu0 %v1969
    %1984 = vmatprep.subr.mxu0 0.0
    %1985 = vmatpush1.msra.mxu0 %v1970
    %1986 = vmatprep.subr.mxu0 0.0
    %1987 = vmatpush1.msra.mxu0 %v1971
    %1988 = vmatprep.subr.mxu0 0.0
    %1989 = vmatpush1.msra.mxu0 %v1972
    %1990 = vmatprep.subr.mxu0 0.0
    %1991 = vmatpush1.msra.mxu0 %v1973
    %1992 = vmatprep.subr.mxu0 0.0
    %1993 = vmatpush1.msra.mxu0 %v1974
    %1994 = vmatprep.subr.mxu0 0.0
    %1995 = vmatpush1.msra.mxu0 %v1975
    %1996 = vmatprep.subr.mxu0 0.0
    %1997 = vmatpush1.msra.mxu0 %v1976
    %1998 = vmatprep.subr.mxu0 0.0
    %1999 = vmatpush1.msra.mxu0 %v1977
    %2000 = vmatprep.subr.mxu0 0.0
    %2001 = vmatpush1.msra.mxu0 0.0
    %2002 = vmatprep.subr.mxu0 0.0
    %2003 = vmatpush1.msra.mxu0 0.0
    %2004 = vmatprep.subr.mxu0 0.0
    %2005 = vmatpush1.msra.mxu0 0.0
    %2006 = vmatprep.subr.mxu0 0.0
    %2007 = vmatpush1.msra.mxu0 0.0
    %2008 = vmatprep.subr.mxu0 0.0
    %2009 = vmatpush1.msra.mxu0 0.0
    %2010 = vmatprep.subr.mxu0 0.0
    %2011 = vmatpush1.msra.mxu0 0.0
    %2012 = vmatprep.subr.mxu0 0.0
    %2013 = vmatpush1.msra.mxu0 0.0
    %2014 = vmatprep.subr.mxu0 0.0
    %2015 = vmatpush1.msra.mxu0 0.0
    %2016 = vmatprep.subr.mxu0 0.0
    %2017 = vmatpush1.msra.mxu0 0.0
    %2018 = vmatprep.subr.mxu0 0.0
    %2019 = vmatpush1.msra.mxu0 0.0
    %2020 = vmatprep.subr.mxu0 0.0
    %2021 = vmatpush1.msra.mxu0 0.0
    %2022 = vmatprep.subr.mxu0 0.0
    %2023 = vmatpush1.msra.mxu0 0.0
    %2024 = vmatprep.subr.mxu0 0.0
    %2025 = vmatpush1.msra.mxu0 0.0
    %2026 = vmatprep.subr.mxu0 0.0
    %2027 = vmatpush1.msra.mxu0 0.0
    %2028 = vmatprep.subr.mxu0 0.0
    %2029 = vmatpush1.msra.mxu0 0.0
    %2030 = vmatprep.subr.mxu0 0.0
    %2031 = vmatpush1.msra.mxu0 0.0
    %2032 = vmatprep.subr.mxu0 0.0
    %2033 = vmatpush1.msra.mxu0 0.0
    %2034 = vmatprep.subr.mxu0 0.0
    %2035 = vmatpush1.msra.mxu0 0.0
    %2036 = vmatprep.subr.mxu0 0.0
    %2037 = vmatpush1.msra.mxu0 0.0
    %2038 = vmatprep.subr.mxu0 0.0
    %2039 = vmatpush1.msra.mxu0 0.0
    %2040 = vmatprep.subr.mxu0 0.0
    %2041 = vmatpush1.msra.mxu0 0.0
    %2042 = vmatprep.mubr.f32.mxu0 0.0
    %2043 = vmatmul.mubr.f32.gmra.mrb[0].mxu0 %v1581
    %v2044 = vpop.f32.mrb[0].mxu0
    %v2045 = vadd.f32 0.0, %v2044
    %v2046 = vpop.f32.mrb[0].mxu0
    %2047 = vmatprep.mubr.f32.mxu0 0.0
    %2048 = vmatmul.mubr.f32.gmra.mrb[0].mxu0 %v1583
    %v2049 = vpop.f32.mrb[0].mxu0
    %v2050 = vadd.f32 0.0, %v2049
    %v2051 = vpop.f32.mrb[0].mxu0
    %2052 = vmatprep.mubr.f32.mxu0 0.0
    %2053 = vmatmul.mubr.f32.gmra.mrb[0].mxu0 %v1585
    %v2054 = vpop.f32.mrb[0].mxu0
    %v2055 = vadd.f32 0.0, %v2054
    %v2056 = vpop.f32.mrb[0].mxu0
    %2057 = vmatprep.mubr.f32.mxu0 0.0
    %2058 = vmatmul.mubr.f32.gmra.mrb[0].mxu0 %v1587
    %v2059 = vpop.f32.mrb[0].mxu0
    %v2060 = vadd.f32 0.0, %v2059
    %v2061 = vpop.f32.mrb[0].mxu0
    %2062 = vmatprep.mubr.f32.mxu0 0.0
    %2063 = vmatmul.mubr.f32.gmra.mrb[0].mxu0 %v1589
    %v2064 = vpop.f32.mrb[0].mxu0
    %v2065 = vadd.f32 0.0, %v2064
    %v2066 = vpop.f32.mrb[0].mxu0
    %2067 = vmatprep.mubr.f32.mxu0 0.0
    %2068 = vmatmul.mubr.f32.gmra.mrb[0].mxu0 %v1591
    %v2069 = vpop.f32.mrb[0].mxu0
    %v2070 = vadd.f32 0.0, %v2069
    %v2071 = vpop.f32.mrb[0].mxu0
    %2072 = vmatprep.mubr.f32.mxu0 0.0
    %2073 = vmatmul.mubr.f32.gmra.mrb[0].mxu0 %v1593
    %v2074 = vpop.f32.mrb[0].mxu0
    %v2075 = vadd.f32 0.0, %v2074
    %v2076 = vpop.f32.mrb[0].mxu0
    %2077 = vmatprep.mubr.f32.mxu0 0.0
    %2078 = vmatmul.mubr.f32.gmra.mrb[0].mxu0 %v1595
    %v2079 = vpop.f32.mrb[0].mxu0
    %v2080 = vadd.f32 0.0, %v2079
    %v2081 = vpop.f32.mrb[0].mxu0
    %2082 = vdwg.mxu0
    %v2083 = vadd.f32 %v1928, %v2045
    %v2084 = vadd.f32 %v1933, %v2050
    %v2085 = vadd.f32 %v1938, %v2055
    %v2086 = vadd.f32 %v1943, %v2060
    %v2087 = vadd.f32 %v1948, %v2065
    %v2088 = vadd.f32 %v1953, %v2070
    %v2089 = vadd.f32 %v1958, %v2075
    %v2090 = vadd.f32 %v1963, %v2080
    %v2091 = vadd.f32 %v2083, %v1714
    %v2092 = vadd.f32 %v2084, %v1714
    %v2093 = vadd.f32 %v2085, %v1714
    %v2094 = vadd.f32 %v2086, %v1714
    %v2095 = vadd.f32 %v2087, %v1714
    %v2096 = vadd.f32 %v2088, %v1714
    %v2097 = vadd.f32 %v2089, %v1714
    %v2098 = vadd.f32 %v2090, %v1714
    %v2099 = vmax.f32 %v2091, 0.0
    %v2100 = vmax.f32 %v2092, 0.0
    %v2101 = vmax.f32 %v2093, 0.0
    %v2102 = vmax.f32 %v2094, 0.0
    %v2103 = vmax.f32 %v2095, 0.0
    %v2104 = vmax.f32 %v2096, 0.0
    %v2105 = vmax.f32 %v2097, 0.0
    %v2106 = vmax.f32 %v2098, 0.0
    %v2107 = vmax.f32 %v1724, %v2099
    %v2108 = vmax.f32 %v1725, %v2100
    %v2109 = vmax.f32 %v1726, %v2101
    %v2110 = vmax.f32 %v1727, %v2102
    %v2111 = vmax.f32 %v1728, %v2103
    %v2112 = vmax.f32 %v1729, %v2104
    %v2113 = vmax.f32 %v1730, %v2105
    %v2114 = vmax.f32 %v1731, %v2106
    %s2115 = scalar_lea.vmem %s3, 176
    %v2116 = vld [vmem:[%s2115] sm:$0xff]
    %v2117 = vld [vmem:[%s2115 + $0x8] sm:$0xff]
    %v2118 = vld [vmem:[%s2115 + $0x10] sm:$0xff]
    %v2119 = vld [vmem:[%s2115 + $0x18] sm:$0xff]
    %v2120 = vld [vmem:[%s2115 + $0x20] sm:$0xff]
    %v2121 = vld [vmem:[%s2115 + $0x28] sm:$0xff]
    %v2122 = vld [vmem:[%s2115 + $0x30] sm:$0xff]
    %v2123 = vld [vmem:[%s2115 + $0x38] sm:$0xff]
    %v2124 = vld [vmem:[%s2115 + $0x40] sm:$0xff]
    %v2125 = vld [vmem:[%s2115 + $0x48] sm:$0xff]
    %v2126 = vld [vmem:[%s2115 + $0x50] sm:$0xff]
    %s2127 = scalar_lea.vmem %s3, 440
    %v2128 = vld [vmem:[%s2127] sm:$0xff]
    %v2129 = vld [vmem:[%s2127 + $0x8] sm:$0xff]
    %v2130 = vld [vmem:[%s2127 + $0x10] sm:$0xff]
    %v2131 = vld [vmem:[%s2127 + $0x18] sm:$0xff]
    %v2132 = vld [vmem:[%s2127 + $0x20] sm:$0xff]
    %v2133 = vld [vmem:[%s2127 + $0x28] sm:$0xff]
    %v2134 = vld [vmem:[%s2127 + $0x30] sm:$0xff]
    %v2135 = vld [vmem:[%s2127 + $0x38] sm:$0xff]
    %v2136 = vld [vmem:[%s2127 + $0x40] sm:$0xff]
    %v2137 = vld [vmem:[%s2127 + $0x48] sm:$0xff]
    %v2138 = vld [vmem:[%s2127 + $0x50] sm:$0xff]
    %2139 = vmatprep.subr.mxu0 0.0
    %2140 = vmatpush1.msra.mxu0 %v2128
    %2141 = vmatprep.subr.mxu0 0.0
    %2142 = vmatpush1.msra.mxu0 %v2129
    %2143 = vmatprep.subr.mxu0 0.0
    %2144 = vmatpush1.msra.mxu0 %v2130
    %2145 = vmatprep.subr.mxu0 0.0
    %2146 = vmatpush1.msra.mxu0 %v2131
    %2147 = vmatprep.subr.mxu0 0.0
    %2148 = vmatpush1.msra.mxu0 %v2132
    %2149 = vmatprep.subr.mxu0 0.0
    %2150 = vmatpush1.msra.mxu0 %v2133
    %2151 = vmatprep.subr.mxu0 0.0
    %2152 = vmatpush1.msra.mxu0 %v2134
    %2153 = vmatprep.subr.mxu0 0.0
    %2154 = vmatpush1.msra.mxu0 %v2135
    %2155 = vmatprep.subr.mxu0 0.0
    %2156 = vmatpush1.msra.mxu0 %v2136
    %2157 = vmatprep.subr.mxu0 0.0
    %2158 = vmatpush1.msra.mxu0 %v2137
    %2159 = vmatprep.subr.mxu0 0.0
    %2160 = vmatpush1.msra.mxu0 %v2138
    %2161 = vmatprep.subr.mxu0 0.0
    %2162 = vmatpush1.msra.mxu0 0.0
    %2163 = vmatprep.subr.mxu0 0.0
    %2164 = vmatpush1.msra.mxu0 0.0
    %2165 = vmatprep.subr.mxu0 0.0
    %2166 = vmatpush1.msra.mxu0 0.0
    %2167 = vmatprep.subr.mxu0 0.0
    %2168 = vmatpush1.msra.mxu0 0.0
    %2169 = vmatprep.subr.mxu0 0.0
    %2170 = vmatpush1.msra.mxu0 0.0
    %2171 = vmatprep.subr.mxu0 0.0
    %2172 = vmatpush1.msra.mxu0 0.0
    %2173 = vmatprep.subr.mxu0 0.0
    %2174 = vmatpush1.msra.mxu0 0.0
    %2175 = vmatprep.subr.mxu0 0.0
    %2176 = vmatpush1.msra.mxu0 0.0
    %2177 = vmatprep.subr.mxu0 0.0
    %2178 = vmatpush1.msra.mxu0 0.0
    %2179 = vmatprep.subr.mxu0 0.0
    %2180 = vmatpush1.msra.mxu0 0.0
    %2181 = vmatprep.subr.mxu0 0.0
    %2182 = vmatpush1.msra.mxu0 0.0
    %2183 = vmatprep.subr.mxu0 0.0
    %2184 = vmatpush1.msra.mxu0 0.0
    %2185 = vmatprep.subr.mxu0 0.0
    %2186 = vmatpush1.msra.mxu0 0.0
    %2187 = vmatprep.subr.mxu0 0.0
    %2188 = vmatpush1.msra.mxu0 0.0
    %2189 = vmatprep.subr.mxu0 0.0
    %2190 = vmatpush1.msra.mxu0 0.0
    %2191 = vmatprep.subr.mxu0 0.0
    %2192 = vmatpush1.msra.mxu0 0.0
    %2193 = vmatprep.subr.mxu0 0.0
    %2194 = vmatpush1.msra.mxu0 0.0
    %2195 = vmatprep.subr.mxu0 0.0
    %2196 = vmatpush1.msra.mxu0 0.0
    %2197 = vmatprep.subr.mxu0 0.0
    %2198 = vmatpush1.msra.mxu0 0.0
    %2199 = vmatprep.subr.mxu0 0.0
    %2200 = vmatpush1.msra.mxu0 0.0
    %2201 = vmatprep.subr.mxu0 0.0
    %2202 = vmatpush1.msra.mxu0 0.0
    %2203 = vmatprep.mubr.f32.mxu0 0.0
    %2204 = vmatmul.mubr.f32.gmra.mrb[0].mxu0 %v1312
    %v2205 = vpop.f32.mrb[0].mxu0
    %v2206 = vadd.f32 0.0, %v2205
    %v2207 = vpop.f32.mrb[0].mxu0
    %2208 = vmatprep.mubr.f32.mxu0 0.0
    %2209 = vmatmul.mubr.f32.gmra.mrb[0].mxu0 %v1314
    %v2210 = vpop.f32.mrb[0].mxu0
    %v2211 = vadd.f32 0.0, %v2210
    %v2212 = vpop.f32.mrb[0].mxu0
    %2213 = vmatprep.mubr.f32.mxu0 0.0
    %2214 = vmatmul.mubr.f32.gmra.mrb[0].mxu0 %v1316
    %v2215 = vpop.f32.mrb[0].mxu0
    %v2216 = vadd.f32 0.0, %v2215
    %v2217 = vpop.f32.mrb[0].mxu0
    %2218 = vmatprep.mubr.f32.mxu0 0.0
    %2219 = vmatmul.mubr.f32.gmra.mrb[0].mxu0 %v1318
    %v2220 = vpop.f32.mrb[0].mxu0
    %v2221 = vadd.f32 0.0, %v2220
    %v2222 = vpop.f32.mrb[0].mxu0
    %2223 = vmatprep.mubr.f32.mxu0 0.0
    %2224 = vmatmul.mubr.f32.gmra.mrb[0].mxu0 %v1320
    %v2225 = vpop.f32.mrb[0].mxu0
    %v2226 = vadd.f32 0.0, %v2225
    %v2227 = vpop.f32.mrb[0].mxu0
    %2228 = vmatprep.mubr.f32.mxu0 0.0
    %2229 = vmatmul.mubr.f32.gmra.mrb[0].mxu0 %v1322
    %v2230 = vpop.f32.mrb[0].mxu0
    %v2231 = vadd.f32 0.0, %v2230
    %v2232 = vpop.f32.mrb[0].mxu0
    %2233 = vmatprep.mubr.f32.mxu0 0.0
    %2234 = vmatmul.mubr.f32.gmra.mrb[0].mxu0 %v1324
    %v2235 = vpop.f32.mrb[0].mxu0
    %v2236 = vadd.f32 0.0, %v2235
    %v2237 = vpop.f32.mrb[0].mxu0
    %2238 = vmatprep.mubr.f32.mxu0 0.0
    %2239 = vmatmul.mubr.f32.gmra.mrb[0].mxu0 %v1326
    %v2240 = vpop.f32.mrb[0].mxu0
    %v2241 = vadd.f32 0.0, %v2240
    %v2242 = vpop.f32.mrb[0].mxu0
    %2243 = vdwg.mxu0
    %2244 = vmatprep.subr.mxu0 0.0
    %2245 = vmatpush1.msra.mxu0 %v2116
    %2246 = vmatprep.subr.mxu0 0.0
    %2247 = vmatpush1.msra.mxu0 %v2117
    %2248 = vmatprep.subr.mxu0 0.0
    %2249 = vmatpush1.msra.mxu0 %v2118
    %2250 = vmatprep.subr.mxu0 0.0
    %2251 = vmatpush1.msra.mxu0 %v2119
    %2252 = vmatprep.subr.mxu0 0.0
    %2253 = vmatpush1.msra.mxu0 %v2120
    %2254 = vmatprep.subr.mxu0 0.0
    %2255 = vmatpush1.msra.mxu0 %v2121
    %2256 = vmatprep.subr.mxu0 0.0
    %2257 = vmatpush1.msra.mxu0 %v2122
    %2258 = vmatprep.subr.mxu0 0.0
    %2259 = vmatpush1.msra.mxu0 %v2123
    %2260 = vmatprep.subr.mxu0 0.0
    %2261 = vmatpush1.msra.mxu0 %v2124
    %2262 = vmatprep.subr.mxu0 0.0
    %2263 = vmatpush1.msra.mxu0 %v2125
    %2264 = vmatprep.subr.mxu0 0.0
    %2265 = vmatpush1.msra.mxu0 %v2126
    %2266 = vmatprep.subr.mxu0 0.0
    %2267 = vmatpush1.msra.mxu0 0.0
    %2268 = vmatprep.subr.mxu0 0.0
    %2269 = vmatpush1.msra.mxu0 0.0
    %2270 = vmatprep.subr.mxu0 0.0
    %2271 = vmatpush1.msra.mxu0 0.0
    %2272 = vmatprep.subr.mxu0 0.0
    %2273 = vmatpush1.msra.mxu0 0.0
    %2274 = vmatprep.subr.mxu0 0.0
    %2275 = vmatpush1.msra.mxu0 0.0
    %2276 = vmatprep.subr.mxu0 0.0
    %2277 = vmatpush1.msra.mxu0 0.0
    %2278 = vmatprep.subr.mxu0 0.0
    %2279 = vmatpush1.msra.mxu0 0.0
    %2280 = vmatprep.subr.mxu0 0.0
    %2281 = vmatpush1.msra.mxu0 0.0
    %2282 = vmatprep.subr.mxu0 0.0
    %2283 = vmatpush1.msra.mxu0 0.0
    %2284 = vmatprep.subr.mxu0 0.0
    %2285 = vmatpush1.msra.mxu0 0.0
    %2286 = vmatprep.subr.mxu0 0.0
    %2287 = vmatpush1.msra.mxu0 0.0
    %2288 = vmatprep.subr.mxu0 0.0
    %2289 = vmatpush1.msra.mxu0 0.0
    %2290 = vmatprep.subr.mxu0 0.0
    %2291 = vmatpush1.msra.mxu0 0.0
    %2292 = vmatprep.subr.mxu0 0.0
    %2293 = vmatpush1.msra.mxu0 0.0
    %2294 = vmatprep.subr.mxu0 0.0
    %2295 = vmatpush1.msra.mxu0 0.0
    %2296 = vmatprep.subr.mxu0 0.0
    %2297 = vmatpush1.msra.mxu0 0.0
    %2298 = vmatprep.subr.mxu0 0.0
    %2299 = vmatpush1.msra.mxu0 0.0
    %2300 = vmatprep.subr.mxu0 0.0
    %2301 = vmatpush1.msra.mxu0 0.0
    %2302 = vmatprep.subr.mxu0 0.0
    %2303 = vmatpush1.msra.mxu0 0.0
    %2304 = vmatprep.subr.mxu0 0.0
    %2305 = vmatpush1.msra.mxu0 0.0
    %2306 = vmatprep.subr.mxu0 0.0
    %2307 = vmatpush1.msra.mxu0 0.0
    %2308 = vmatprep.mubr.f32.mxu0 0.0
    %2309 = vmatmul.mubr.f32.gmra.mrb[0].mxu0 %v1433
    %v2310 = vpop.f32.mrb[0].mxu0
    %v2311 = vadd.f32 %v2206, %v2310
    %v2312 = vpop.f32.mrb[0].mxu0
    %2313 = vmatprep.mubr.f32.mxu0 0.0
    %2314 = vmatmul.mubr.f32.gmra.mrb[0].mxu0 %v1435
    %v2315 = vpop.f32.mrb[0].mxu0
    %v2316 = vadd.f32 %v2211, %v2315
    %v2317 = vpop.f32.mrb[0].mxu0
    %2318 = vmatprep.mubr.f32.mxu0 0.0
    %2319 = vmatmul.mubr.f32.gmra.mrb[0].mxu0 %v1437
    %v2320 = vpop.f32.mrb[0].mxu0
    %v2321 = vadd.f32 %v2216, %v2320
    %v2322 = vpop.f32.mrb[0].mxu0
    %2323 = vmatprep.mubr.f32.mxu0 0.0
    %2324 = vmatmul.mubr.f32.gmra.mrb[0].mxu0 %v1439
    %v2325 = vpop.f32.mrb[0].mxu0
    %v2326 = vadd.f32 %v2221, %v2325
    %v2327 = vpop.f32.mrb[0].mxu0
    %2328 = vmatprep.mubr.f32.mxu0 0.0
    %2329 = vmatmul.mubr.f32.gmra.mrb[0].mxu0 %v1441
    %v2330 = vpop.f32.mrb[0].mxu0
    %v2331 = vadd.f32 %v2226, %v2330
    %v2332 = vpop.f32.mrb[0].mxu0
    %2333 = vmatprep.mubr.f32.mxu0 0.0
    %2334 = vmatmul.mubr.f32.gmra.mrb[0].mxu0 %v1443
    %v2335 = vpop.f32.mrb[0].mxu0
    %v2336 = vadd.f32 %v2231, %v2335
    %v2337 = vpop.f32.mrb[0].mxu0
    %2338 = vmatprep.mubr.f32.mxu0 0.0
    %2339 = vmatmul.mubr.f32.gmra.mrb[0].mxu0 %v1445
    %v2340 = vpop.f32.mrb[0].mxu0
    %v2341 = vadd.f32 %v2236, %v2340
    %v2342 = vpop.f32.mrb[0].mxu0
    %2343 = vmatprep.mubr.f32.mxu0 0.0
    %2344 = vmatmul.mubr.f32.gmra.mrb[0].mxu0 %v1447
    %v2345 = vpop.f32.mrb[0].mxu0
    %v2346 = vadd.f32 %v2241, %v2345
    %v2347 = vpop.f32.mrb[0].mxu0
    %2348 = vdwg.mxu0
    %s2349 = scalar_lea.vmem %s3, 704
    %v2350 = vld [vmem:[%s2349] sm:$0xff]
    %v2351 = vld [vmem:[%s2349 + $0x8] sm:$0xff]
    %v2352 = vld [vmem:[%s2349 + $0x10] sm:$0xff]
    %v2353 = vld [vmem:[%s2349 + $0x18] sm:$0xff]
    %v2354 = vld [vmem:[%s2349 + $0x20] sm:$0xff]
    %v2355 = vld [vmem:[%s2349 + $0x28] sm:$0xff]
    %v2356 = vld [vmem:[%s2349 + $0x30] sm:$0xff]
    %v2357 = vld [vmem:[%s2349 + $0x38] sm:$0xff]
    %v2358 = vld [vmem:[%s2349 + $0x40] sm:$0xff]
    %v2359 = vld [vmem:[%s2349 + $0x48] sm:$0xff]
    %v2360 = vld [vmem:[%s2349 + $0x50] sm:$0xff]
    %2361 = vmatprep.subr.mxu0 0.0
    %2362 = vmatpush1.msra.mxu0 %v2350
    %2363 = vmatprep.subr.mxu0 0.0
    %2364 = vmatpush1.msra.mxu0 %v2351
    %2365 = vmatprep.subr.mxu0 0.0
    %2366 = vmatpush1.msra.mxu0 %v2352
    %2367 = vmatprep.subr.mxu0 0.0
    %2368 = vmatpush1.msra.mxu0 %v2353
    %2369 = vmatprep.subr.mxu0 0.0
    %2370 = vmatpush1.msra.mxu0 %v2354
    %2371 = vmatprep.subr.mxu0 0.0
    %2372 = vmatpush1.msra.mxu0 %v2355
    %2373 = vmatprep.subr.mxu0 0.0
    %2374 = vmatpush1.msra.mxu0 %v2356
    %2375 = vmatprep.subr.mxu0 0.0
    %2376 = vmatpush1.msra.mxu0 %v2357
    %2377 = vmatprep.subr.mxu0 0.0
    %2378 = vmatpush1.msra.mxu0 %v2358
    %2379 = vmatprep.subr.mxu0 0.0
    %2380 = vmatpush1.msra.mxu0 %v2359
    %2381 = vmatprep.subr.mxu0 0.0
    %2382 = vmatpush1.msra.mxu0 %v2360
    %2383 = vmatprep.subr.mxu0 0.0
    %2384 = vmatpush1.msra.mxu0 0.0
    %2385 = vmatprep.subr.mxu0 0.0
    %2386 = vmatpush1.msra.mxu0 0.0
    %2387 = vmatprep.subr.mxu0 0.0
    %2388 = vmatpush1.msra.mxu0 0.0
    %2389 = vmatprep.subr.mxu0 0.0
    %2390 = vmatpush1.msra.mxu0 0.0
    %2391 = vmatprep.subr.mxu0 0.0
    %2392 = vmatpush1.msra.mxu0 0.0
    %2393 = vmatprep.subr.mxu0 0.0
    %2394 = vmatpush1.msra.mxu0 0.0
    %2395 = vmatprep.subr.mxu0 0.0
    %2396 = vmatpush1.msra.mxu0 0.0
    %2397 = vmatprep.subr.mxu0 0.0
    %2398 = vmatpush1.msra.mxu0 0.0
    %2399 = vmatprep.subr.mxu0 0.0
    %2400 = vmatpush1.msra.mxu0 0.0
    %2401 = vmatprep.subr.mxu0 0.0
    %2402 = vmatpush1.msra.mxu0 0.0
    %2403 = vmatprep.subr.mxu0 0.0
    %2404 = vmatpush1.msra.mxu0 0.0
    %2405 = vmatprep.subr.mxu0 0.0
    %2406 = vmatpush1.msra.mxu0 0.0
    %2407 = vmatprep.subr.mxu0 0.0
    %2408 = vmatpush1.msra.mxu0 0.0
    %2409 = vmatprep.subr.mxu0 0.0
    %2410 = vmatpush1.msra.mxu0 0.0
    %2411 = vmatprep.subr.mxu0 0.0
    %2412 = vmatpush1.msra.mxu0 0.0
    %2413 = vmatprep.subr.mxu0 0.0
    %2414 = vmatpush1.msra.mxu0 0.0
    %2415 = vmatprep.subr.mxu0 0.0
    %2416 = vmatpush1.msra.mxu0 0.0
    %2417 = vmatprep.subr.mxu0 0.0
    %2418 = vmatpush1.msra.mxu0 0.0
    %2419 = vmatprep.subr.mxu0 0.0
    %2420 = vmatpush1.msra.mxu0 0.0
    %2421 = vmatprep.subr.mxu0 0.0
    %2422 = vmatpush1.msra.mxu0 0.0
    %2423 = vmatprep.subr.mxu0 0.0
    %2424 = vmatpush1.msra.mxu0 0.0
    %2425 = vmatprep.mubr.f32.mxu0 0.0
    %2426 = vmatmul.mubr.f32.gmra.mrb[0].mxu0 %v1581
    %v2427 = vpop.f32.mrb[0].mxu0
    %v2428 = vadd.f32 0.0, %v2427
    %v2429 = vpop.f32.mrb[0].mxu0
    %2430 = vmatprep.mubr.f32.mxu0 0.0
    %2431 = vmatmul.mubr.f32.gmra.mrb[0].mxu0 %v1583
    %v2432 = vpop.f32.mrb[0].mxu0
    %v2433 = vadd.f32 0.0, %v2432
    %v2434 = vpop.f32.mrb[0].mxu0
    %2435 = vmatprep.mubr.f32.mxu0 0.0
    %2436 = vmatmul.mubr.f32.gmra.mrb[0].mxu0 %v1585
    %v2437 = vpop.f32.mrb[0].mxu0
    %v2438 = vadd.f32 0.0, %v2437
    %v2439 = vpop.f32.mrb[0].mxu0
    %2440 = vmatprep.mubr.f32.mxu0 0.0
    %2441 = vmatmul.mubr.f32.gmra.mrb[0].mxu0 %v1587
    %v2442 = vpop.f32.mrb[0].mxu0
    %v2443 = vadd.f32 0.0, %v2442
    %v2444 = vpop.f32.mrb[0].mxu0
    %2445 = vmatprep.mubr.f32.mxu0 0.0
    %2446 = vmatmul.mubr.f32.gmra.mrb[0].mxu0 %v1589
    %v2447 = vpop.f32.mrb[0].mxu0
    %v2448 = vadd.f32 0.0, %v2447
    %v2449 = vpop.f32.mrb[0].mxu0
    %2450 = vmatprep.mubr.f32.mxu0 0.0
    %2451 = vmatmul.mubr.f32.gmra.mrb[0].mxu0 %v1591
    %v2452 = vpop.f32.mrb[0].mxu0
    %v2453 = vadd.f32 0.0, %v2452
    %v2454 = vpop.f32.mrb[0].mxu0
    %2455 = vmatprep.mubr.f32.mxu0 0.0
    %2456 = vmatmul.mubr.f32.gmra.mrb[0].mxu0 %v1593
    %v2457 = vpop.f32.mrb[0].mxu0
    %v2458 = vadd.f32 0.0, %v2457
    %v2459 = vpop.f32.mrb[0].mxu0
    %2460 = vmatprep.mubr.f32.mxu0 0.0
    %2461 = vmatmul.mubr.f32.gmra.mrb[0].mxu0 %v1595
    %v2462 = vpop.f32.mrb[0].mxu0
    %v2463 = vadd.f32 0.0, %v2462
    %v2464 = vpop.f32.mrb[0].mxu0
    %2465 = vdwg.mxu0
    %v2466 = vadd.f32 %v2311, %v2428
    %v2467 = vadd.f32 %v2316, %v2433
    %v2468 = vadd.f32 %v2321, %v2438
    %v2469 = vadd.f32 %v2326, %v2443
    %v2470 = vadd.f32 %v2331, %v2448
    %v2471 = vadd.f32 %v2336, %v2453
    %v2472 = vadd.f32 %v2341, %v2458
    %v2473 = vadd.f32 %v2346, %v2463
    %v2474 = vadd.f32 %v2466, %v1714
    %v2475 = vadd.f32 %v2467, %v1714
    %v2476 = vadd.f32 %v2468, %v1714
    %v2477 = vadd.f32 %v2469, %v1714
    %v2478 = vadd.f32 %v2470, %v1714
    %v2479 = vadd.f32 %v2471, %v1714
    %v2480 = vadd.f32 %v2472, %v1714
    %v2481 = vadd.f32 %v2473, %v1714
    %v2482 = vmax.f32 %v2474, 0.0
    %v2483 = vmax.f32 %v2475, 0.0
    %v2484 = vmax.f32 %v2476, 0.0
    %v2485 = vmax.f32 %v2477, 0.0
    %v2486 = vmax.f32 %v2478, 0.0
    %v2487 = vmax.f32 %v2479, 0.0
    %v2488 = vmax.f32 %v2480, 0.0
    %v2489 = vmax.f32 %v2481, 0.0
    %v2490 = vmax.f32 %v2107, %v2482
    %v2491 = vmax.f32 %v2108, %v2483
    %v2492 = vmax.f32 %v2109, %v2484
    %v2493 = vmax.f32 %v2110, %v2485
    %v2494 = vmax.f32 %v2111, %v2486
    %v2495 = vmax.f32 %v2112, %v2487
    %v2496 = vmax.f32 %v2113, %v2488
    %v2497 = vmax.f32 %v2114, %v2489
    %v2498 = vld [vmem:[%s6] sm:$0x1]
    %v2499 = vld [vmem:[%s5] sm:$0xff]
    %v2500 = vld [vmem:[%s5 + $0x8] sm:$0xff]
    %v2501 = vld [vmem:[%s5 + $0x10] sm:$0xff]
    %v2502 = vld [vmem:[%s5 + $0x18] sm:$0xff]
    %v2503 = vld [vmem:[%s5 + $0x20] sm:$0xff]
    %v2504 = vld [vmem:[%s5 + $0x28] sm:$0xff]
    %s2505 = scalar_lea.vmem %s5, 48
    %v2506 = vld [vmem:[%s2505] sm:$0xff]
    %v2507 = vld [vmem:[%s2505 + $0x8] sm:$0xff]
    %v2508 = vld [vmem:[%s2505 + $0x10] sm:$0xff]
    %v2509 = vld [vmem:[%s2505 + $0x18] sm:$0xff]
    %v2510 = vld [vmem:[%s2505 + $0x20] sm:$0xff]
    %v2511 = vld [vmem:[%s2505 + $0x28] sm:$0xff]
    %v2520 = vrot.slane %v2490, 1
    %v2521 = vrot.slane %v2491, 1
    %v2522 = vsel %vm74, %v2520, %v2521
    %v2523 = vrot.slane %v2492, 1
    %v2524 = vsel %vm74, %v2521, %v2523
    %v2525 = vrot.slane %v2493, 1
    %v2526 = vsel %vm74, %v2523, %v2525
    %v2527 = vrot.slane %v2494, 1
    %v2528 = vsel %vm74, %v2525, %v2527
    %v2529 = vrot.slane %v2495, 1
    %v2530 = vsel %vm74, %v2527, %v2529
    %v2531 = vrot.slane %v2496, 1
    %v2532 = vsel %vm74, %v2529, %v2531
    %v2533 = vrot.slane %v2497, 1
    %v2534 = vsel %vm74, %v2531, %v2533
    %vm2535 = vcmask 392192
    %v2536 = vsel %vm2535, %v2522, 0
    %v2538 = vsel %vm2535, %v2524, 0
    %v2540 = vsel %vm2535, %v2526, 0
    %v2542 = vsel %vm2535, %v2528, 0
    %v2544 = vsel %vm2535, %v2530, 0
    %v2546 = vsel %vm2535, %v2532, 0
    %v2548 = vsel %vm2535, %v2534, 0
    %v2550 = vsel %vm2535, %v2533, 0
    %2552 = vmatprep.subr.mxu0 0.0
    %2553 = vmatpush1.msra.mxu0 %v2506
    %2554 = vmatprep.subr.mxu0 0.0
    %2555 = vmatpush1.msra.mxu0 %v2507
    %2556 = vmatprep.subr.mxu0 0.0
    %2557 = vmatpush1.msra.mxu0 %v2508
    %2558 = vmatprep.subr.mxu0 0.0
    %2559 = vmatpush1.msra.mxu0 %v2509
    %2560 = vmatprep.subr.mxu0 0.0
    %2561 = vmatpush1.msra.mxu0 %v2510
    %2562 = vmatprep.subr.mxu0 0.0
    %2563 = vmatpush1.msra.mxu0 %v2511
    %2564 = vmatprep.subr.mxu0 0.0
    %2565 = vmatpush1.msra.mxu0 0.0
    %2566 = vmatprep.subr.mxu0 0.0
    %2567 = vmatpush1.msra.mxu0 0.0
    %2568 = vmatprep.subr.mxu0 0.0
    %2569 = vmatpush1.msra.mxu0 0.0
    %2570 = vmatprep.subr.mxu0 0.0
    %2571 = vmatpush1.msra.mxu0 0.0
    %2572 = vmatprep.subr.mxu0 0.0
    %2573 = vmatpush1.msra.mxu0 0.0
    %2574 = vmatprep.subr.mxu0 0.0
    %2575 = vmatpush1.msra.mxu0 0.0
    %2576 = vmatprep.subr.mxu0 0.0
    %2577 = vmatpush1.msra.mxu0 0.0
    %2578 = vmatprep.subr.mxu0 0.0
    %2579 = vmatpush1.msra.mxu0 0.0
    %2580 = vmatprep.subr.mxu0 0.0
    %2581 = vmatpush1.msra.mxu0 0.0
    %2582 = vmatprep.subr.mxu0 0.0
    %2583 = vmatpush1.msra.mxu0 0.0
    %2584 = vmatprep.subr.mxu0 0.0
    %2585 = vmatpush1.msra.mxu0 0.0
    %2586 = vmatprep.subr.mxu0 0.0
    %2587 = vmatpush1.msra.mxu0 0.0
    %2588 = vmatprep.subr.mxu0 0.0
    %2589 = vmatpush1.msra.mxu0 0.0
    %2590 = vmatprep.subr.mxu0 0.0
    %2591 = vmatpush1.msra.mxu0 0.0
    %2592 = vmatprep.subr.mxu0 0.0
    %2593 = vmatpush1.msra.mxu0 0.0
    %2594 = vmatprep.subr.mxu0 0.0
    %2595 = vmatpush1.msra.mxu0 0.0
    %2596 = vmatprep.subr.mxu0 0.0
    %2597 = vmatpush1.msra.mxu0 0.0
    %2598 = vmatprep.subr.mxu0 0.0
    %2599 = vmatpush1.msra.mxu0 0.0
    %2600 = vmatprep.subr.mxu0 0.0
    %2601 = vmatpush1.msra.mxu0 0.0
    %2602 = vmatprep.subr.mxu0 0.0
    %2603 = vmatpush1.msra.mxu0 0.0
    %2604 = vmatprep.subr.mxu0 0.0
    %2605 = vmatpush1.msra.mxu0 0.0
    %2606 = vmatprep.subr.mxu0 0.0
    %2607 = vmatpush1.msra.mxu0 0.0
    %2608 = vmatprep.subr.mxu0 0.0
    %2609 = vmatpush1.msra.mxu0 0.0
    %2610 = vmatprep.subr.mxu0 0.0
    %2611 = vmatpush1.msra.mxu0 0.0
    %2612 = vmatprep.subr.mxu0 0.0
    %2613 = vmatpush1.msra.mxu0 0.0
    %2614 = vmatprep.subr.mxu0 0.0
    %2615 = vmatpush1.msra.mxu0 0.0
    %2616 = vmatprep.mubr.f32.mxu0 0.0
    %2617 = vmatmul.mubr.f32.gmra.mrb[0].mxu0 %v2536
    %v2618 = vpop.f32.mrb[0].mxu0
    %v2619 = vadd.f32 0.0, %v2618
    %v2620 = vpop.f32.mrb[0].mxu0
    %2621 = vmatprep.mubr.f32.mxu0 0.0
    %2622 = vmatmul.mubr.f32.gmra.mrb[0].mxu0 %v2538
    %v2623 = vpop.f32.mrb[0].mxu0
    %v2624 = vadd.f32 0.0, %v2623
    %v2625 = vpop.f32.mrb[0].mxu0
    %2626 = vmatprep.mubr.f32.mxu0 0.0
    %2627 = vmatmul.mubr.f32.gmra.mrb[0].mxu0 %v2540
    %v2628 = vpop.f32.mrb[0].mxu0
    %v2629 = vadd.f32 0.0, %v2628
    %v2630 = vpop.f32.mrb[0].mxu0
    %2631 = vmatprep.mubr.f32.mxu0 0.0
    %2632 = vmatmul.mubr.f32.gmra.mrb[0].mxu0 %v2542
    %v2633 = vpop.f32.mrb[0].mxu0
    %v2634 = vadd.f32 0.0, %v2633
    %v2635 = vpop.f32.mrb[0].mxu0
    %2636 = vmatprep.mubr.f32.mxu0 0.0
    %2637 = vmatmul.mubr.f32.gmra.mrb[0].mxu0 %v2544
    %v2638 = vpop.f32.mrb[0].mxu0
    %v2639 = vadd.f32 0.0, %v2638
    %v2640 = vpop.f32.mrb[0].mxu0
    %2641 = vmatprep.mubr.f32.mxu0 0.0
    %2642 = vmatmul.mubr.f32.gmra.mrb[0].mxu0 %v2546
    %v2643 = vpop.f32.mrb[0].mxu0
    %v2644 = vadd.f32 0.0, %v2643
    %v2645 = vpop.f32.mrb[0].mxu0
    %2646 = vmatprep.mubr.f32.mxu0 0.0
    %2647 = vmatmul.mubr.f32.gmra.mrb[0].mxu0 %v2548
    %v2648 = vpop.f32.mrb[0].mxu0
    %v2649 = vadd.f32 0.0, %v2648
    %v2650 = vpop.f32.mrb[0].mxu0
    %2651 = vmatprep.mubr.f32.mxu0 0.0
    %2652 = vmatmul.mubr.f32.gmra.mrb[0].mxu0 %v2550
    %v2653 = vpop.f32.mrb[0].mxu0
    %v2654 = vadd.f32 0.0, %v2653
    %v2655 = vpop.f32.mrb[0].mxu0
    %2656 = vdwg.mxu0
    %v2657 = vsel %vm2535, %v2490, 0
    %v2659 = vsel %vm2535, %v2491, 0
    %v2661 = vsel %vm2535, %v2492, 0
    %v2663 = vsel %vm2535, %v2493, 0
    %v2665 = vsel %vm2535, %v2494, 0
    %v2667 = vsel %vm2535, %v2495, 0
    %v2669 = vsel %vm2535, %v2496, 0
    %v2671 = vsel %vm2535, %v2497, 0
    %2673 = vmatprep.subr.mxu0 0.0
    %2674 = vmatpush1.msra.mxu0 %v2499
    %2675 = vmatprep.subr.mxu0 0.0
    %2676 = vmatpush1.msra.mxu0 %v2500
    %2677 = vmatprep.subr.mxu0 0.0
    %2678 = vmatpush1.msra.mxu0 %v2501
    %2679 = vmatprep.subr.mxu0 0.0
    %2680 = vmatpush1.msra.mxu0 %v2502
    %2681 = vmatprep.subr.mxu0 0.0
    %2682 = vmatpush1.msra.mxu0 %v2503
    %2683 = vmatprep.subr.mxu0 0.0
    %2684 = vmatpush1.msra.mxu0 %v2504
    %2685 = vmatprep.subr.mxu0 0.0
    %2686 = vmatpush1.msra.mxu0 0.0
    %2687 = vmatprep.subr.mxu0 0.0
    %2688 = vmatpush1.msra.mxu0 0.0
    %2689 = vmatprep.subr.mxu0 0.0
    %2690 = vmatpush1.msra.mxu0 0.0
    %2691 = vmatprep.subr.mxu0 0.0
    %2692 = vmatpush1.msra.mxu0 0.0
    %2693 = vmatprep.subr.mxu0 0.0
    %2694 = vmatpush1.msra.mxu0 0.0
    %2695 = vmatprep.subr.mxu0 0.0
    %2696 = vmatpush1.msra.mxu0 0.0
    %2697 = vmatprep.subr.mxu0 0.0
    %2698 = vmatpush1.msra.mxu0 0.0
    %2699 = vmatprep.subr.mxu0 0.0
    %2700 = vmatpush1.msra.mxu0 0.0
    %2701 = vmatprep.subr.mxu0 0.0
    %2702 = vmatpush1.msra.mxu0 0.0
    %2703 = vmatprep.subr.mxu0 0.0
    %2704 = vmatpush1.msra.mxu0 0.0
    %2705 = vmatprep.subr.mxu0 0.0
    %2706 = vmatpush1.msra.mxu0 0.0
    %2707 = vmatprep.subr.mxu0 0.0
    %2708 = vmatpush1.msra.mxu0 0.0
    %2709 = vmatprep.subr.mxu0 0.0
    %2710 = vmatpush1.msra.mxu0 0.0
    %2711 = vmatprep.subr.mxu0 0.0
    %2712 = vmatpush1.msra.mxu0 0.0
    %2713 = vmatprep.subr.mxu0 0.0
    %2714 = vmatpush1.msra.mxu0 0.0
    %2715 = vmatprep.subr.mxu0 0.0
    %2716 = vmatpush1.msra.mxu0 0.0
    %2717 = vmatprep.subr.mxu0 0.0
    %2718 = vmatpush1.msra.mxu0 0.0
    %2719 = vmatprep.subr.mxu0 0.0
    %2720 = vmatpush1.msra.mxu0 0.0
    %2721 = vmatprep.subr.mxu0 0.0
    %2722 = vmatpush1.msra.mxu0 0.0
    %2723 = vmatprep.subr.mxu0 0.0
    %2724 = vmatpush1.msra.mxu0 0.0
    %2725 = vmatprep.subr.mxu0 0.0
    %2726 = vmatpush1.msra.mxu0 0.0
    %2727 = vmatprep.subr.mxu0 0.0
    %2728 = vmatpush1.msra.mxu0 0.0
    %2729 = vmatprep.subr.mxu0 0.0
    %2730 = vmatpush1.msra.mxu0 0.0
    %2731 = vmatprep.subr.mxu0 0.0
    %2732 = vmatpush1.msra.mxu0 0.0
    %2733 = vmatprep.subr.mxu0 0.0
    %2734 = vmatpush1.msra.mxu0 0.0
    %2735 = vmatprep.subr.mxu0 0.0
    %2736 = vmatpush1.msra.mxu0 0.0
    %2737 = vmatprep.mubr.f32.mxu0 0.0
    %2738 = vmatmul.mubr.f32.gmra.mrb[0].mxu0 %v2657
    %v2739 = vpop.f32.mrb[0].mxu0
    %v2740 = vadd.f32 %v2619, %v2739
    %v2741 = vpop.f32.mrb[0].mxu0
    %2742 = vmatprep.mubr.f32.mxu0 0.0
    %2743 = vmatmul.mubr.f32.gmra.mrb[0].mxu0 %v2659
    %v2744 = vpop.f32.mrb[0].mxu0
    %v2745 = vadd.f32 %v2624, %v2744
    %v2746 = vpop.f32.mrb[0].mxu0
    %2747 = vmatprep.mubr.f32.mxu0 0.0
    %2748 = vmatmul.mubr.f32.gmra.mrb[0].mxu0 %v2661
    %v2749 = vpop.f32.mrb[0].mxu0
    %v2750 = vadd.f32 %v2629, %v2749
    %v2751 = vpop.f32.mrb[0].mxu0
    %2752 = vmatprep.mubr.f32.mxu0 0.0
    %2753 = vmatmul.mubr.f32.gmra.mrb[0].mxu0 %v2663
    %v2754 = vpop.f32.mrb[0].mxu0
    %v2755 = vadd.f32 %v2634, %v2754
    %v2756 = vpop.f32.mrb[0].mxu0
    %2757 = vmatprep.mubr.f32.mxu0 0.0
    %2758 = vmatmul.mubr.f32.gmra.mrb[0].mxu0 %v2665
    %v2759 = vpop.f32.mrb[0].mxu0
    %v2760 = vadd.f32 %v2639, %v2759
    %v2761 = vpop.f32.mrb[0].mxu0
    %2762 = vmatprep.mubr.f32.mxu0 0.0
    %2763 = vmatmul.mubr.f32.gmra.mrb[0].mxu0 %v2667
    %v2764 = vpop.f32.mrb[0].mxu0
    %v2765 = vadd.f32 %v2644, %v2764
    %v2766 = vpop.f32.mrb[0].mxu0
    %2767 = vmatprep.mubr.f32.mxu0 0.0
    %2768 = vmatmul.mubr.f32.gmra.mrb[0].mxu0 %v2669
    %v2769 = vpop.f32.mrb[0].mxu0
    %v2770 = vadd.f32 %v2649, %v2769
    %v2771 = vpop.f32.mrb[0].mxu0
    %2772 = vmatprep.mubr.f32.mxu0 0.0
    %2773 = vmatmul.mubr.f32.gmra.mrb[0].mxu0 %v2671
    %v2774 = vpop.f32.mrb[0].mxu0
    %v2775 = vadd.f32 %v2654, %v2774
    %v2776 = vpop.f32.mrb[0].mxu0
    %2777 = vdwg.mxu0
    %s2778 = scalar_lea.vmem %s5, 96
    %v2779 = vld [vmem:[%s2778] sm:$0xff]
    %v2780 = vld [vmem:[%s2778 + $0x8] sm:$0xff]
    %v2781 = vld [vmem:[%s2778 + $0x10] sm:$0xff]
    %v2782 = vld [vmem:[%s2778 + $0x18] sm:$0xff]
    %v2783 = vld [vmem:[%s2778 + $0x20] sm:$0xff]
    %v2784 = vld [vmem:[%s2778 + $0x28] sm:$0xff]
    %v2785 = vrot.slane %v2490, 2
    %v2786 = vrot.slane %v2491, 2
    %v2787 = vsel %vm346, %v2785, %v2786
    %v2788 = vrot.slane %v2492, 2
    %v2789 = vsel %vm346, %v2786, %v2788
    %v2790 = vrot.slane %v2493, 2
    %v2791 = vsel %vm346, %v2788, %v2790
    %v2792 = vrot.slane %v2494, 2
    %v2793 = vsel %vm346, %v2790, %v2792
    %v2794 = vrot.slane %v2495, 2
    %v2795 = vsel %vm346, %v2792, %v2794
    %v2796 = vrot.slane %v2496, 2
    %v2797 = vsel %vm346, %v2794, %v2796
    %v2798 = vrot.slane %v2497, 2
    %v2799 = vsel %vm346, %v2796, %v2798
    %v2800 = vsel %vm2535, %v2787, 0
    %v2802 = vsel %vm2535, %v2789, 0
    %v2804 = vsel %vm2535, %v2791, 0
    %v2806 = vsel %vm2535, %v2793, 0
    %v2808 = vsel %vm2535, %v2795, 0
    %v2810 = vsel %vm2535, %v2797, 0
    %v2812 = vsel %vm2535, %v2799, 0
    %v2814 = vsel %vm2535, %v2798, 0
    %2816 = vmatprep.subr.mxu0 0.0
    %2817 = vmatpush1.msra.mxu0 %v2779
    %2818 = vmatprep.subr.mxu0 0.0
    %2819 = vmatpush1.msra.mxu0 %v2780
    %2820 = vmatprep.subr.mxu0 0.0
    %2821 = vmatpush1.msra.mxu0 %v2781
    %2822 = vmatprep.subr.mxu0 0.0
    %2823 = vmatpush1.msra.mxu0 %v2782
    %2824 = vmatprep.subr.mxu0 0.0
    %2825 = vmatpush1.msra.mxu0 %v2783
    %2826 = vmatprep.subr.mxu0 0.0
    %2827 = vmatpush1.msra.mxu0 %v2784
    %2828 = vmatprep.subr.mxu0 0.0
    %2829 = vmatpush1.msra.mxu0 0.0
    %2830 = vmatprep.subr.mxu0 0.0
    %2831 = vmatpush1.msra.mxu0 0.0
    %2832 = vmatprep.subr.mxu0 0.0
    %2833 = vmatpush1.msra.mxu0 0.0
    %2834 = vmatprep.subr.mxu0 0.0
    %2835 = vmatpush1.msra.mxu0 0.0
    %2836 = vmatprep.subr.mxu0 0.0
    %2837 = vmatpush1.msra.mxu0 0.0
    %2838 = vmatprep.subr.mxu0 0.0
    %2839 = vmatpush1.msra.mxu0 0.0
    %2840 = vmatprep.subr.mxu0 0.0
    %2841 = vmatpush1.msra.mxu0 0.0
    %2842 = vmatprep.subr.mxu0 0.0
    %2843 = vmatpush1.msra.mxu0 0.0
    %2844 = vmatprep.subr.mxu0 0.0
    %2845 = vmatpush1.msra.mxu0 0.0
    %2846 = vmatprep.subr.mxu0 0.0
    %2847 = vmatpush1.msra.mxu0 0.0
    %2848 = vmatprep.subr.mxu0 0.0
    %2849 = vmatpush1.msra.mxu0 0.0
    %2850 = vmatprep.subr.mxu0 0.0
    %2851 = vmatpush1.msra.mxu0 0.0
    %2852 = vmatprep.subr.mxu0 0.0
    %2853 = vmatpush1.msra.mxu0 0.0
    %2854 = vmatprep.subr.mxu0 0.0
    %2855 = vmatpush1.msra.mxu0 0.0
    %2856 = vmatprep.subr.mxu0 0.0
    %2857 = vmatpush1.msra.mxu0 0.0
    %2858 = vmatprep.subr.mxu0 0.0
    %2859 = vmatpush1.msra.mxu0 0.0
    %2860 = vmatprep.subr.mxu0 0.0
    %2861 = vmatpush1.msra.mxu0 0.0
    %2862 = vmatprep.subr.mxu0 0.0
    %2863 = vmatpush1.msra.mxu0 0.0
    %2864 = vmatprep.subr.mxu0 0.0
    %2865 = vmatpush1.msra.mxu0 0.0
    %2866 = vmatprep.subr.mxu0 0.0
    %2867 = vmatpush1.msra.mxu0 0.0
    %2868 = vmatprep.subr.mxu0 0.0
    %2869 = vmatpush1.msra.mxu0 0.0
    %2870 = vmatprep.subr.mxu0 0.0
    %2871 = vmatpush1.msra.mxu0 0.0
    %2872 = vmatprep.subr.mxu0 0.0
    %2873 = vmatpush1.msra.mxu0 0.0
    %2874 = vmatprep.subr.mxu0 0.0
    %2875 = vmatpush1.msra.mxu0 0.0
    %2876 = vmatprep.subr.mxu0 0.0
    %2877 = vmatpush1.msra.mxu0 0.0
    %2878 = vmatprep.subr.mxu0 0.0
    %2879 = vmatpush1.msra.mxu0 0.0
    %2880 = vmatprep.mubr.f32.mxu0 0.0
    %2881 = vmatmul.mubr.f32.gmra.mrb[0].mxu0 %v2800
    %v2882 = vpop.f32.mrb[0].mxu0
    %v2883 = vadd.f32 0.0, %v2882
    %v2884 = vpop.f32.mrb[0].mxu0
    %2885 = vmatprep.mubr.f32.mxu0 0.0
    %2886 = vmatmul.mubr.f32.gmra.mrb[0].mxu0 %v2802
    %v2887 = vpop.f32.mrb[0].mxu0
    %v2888 = vadd.f32 0.0, %v2887
    %v2889 = vpop.f32.mrb[0].mxu0
    %2890 = vmatprep.mubr.f32.mxu0 0.0
    %2891 = vmatmul.mubr.f32.gmra.mrb[0].mxu0 %v2804
    %v2892 = vpop.f32.mrb[0].mxu0
    %v2893 = vadd.f32 0.0, %v2892
    %v2894 = vpop.f32.mrb[0].mxu0
    %2895 = vmatprep.mubr.f32.mxu0 0.0
    %2896 = vmatmul.mubr.f32.gmra.mrb[0].mxu0 %v2806
    %v2897 = vpop.f32.mrb[0].mxu0
    %v2898 = vadd.f32 0.0, %v2897
    %v2899 = vpop.f32.mrb[0].mxu0
    %2900 = vmatprep.mubr.f32.mxu0 0.0
    %2901 = vmatmul.mubr.f32.gmra.mrb[0].mxu0 %v2808
    %v2902 = vpop.f32.mrb[0].mxu0
    %v2903 = vadd.f32 0.0, %v2902
    %v2904 = vpop.f32.mrb[0].mxu0
    %2905 = vmatprep.mubr.f32.mxu0 0.0
    %2906 = vmatmul.mubr.f32.gmra.mrb[0].mxu0 %v2810
    %v2907 = vpop.f32.mrb[0].mxu0
    %v2908 = vadd.f32 0.0, %v2907
    %v2909 = vpop.f32.mrb[0].mxu0
    %2910 = vmatprep.mubr.f32.mxu0 0.0
    %2911 = vmatmul.mubr.f32.gmra.mrb[0].mxu0 %v2812
    %v2912 = vpop.f32.mrb[0].mxu0
    %v2913 = vadd.f32 0.0, %v2912
    %v2914 = vpop.f32.mrb[0].mxu0
    %2915 = vmatprep.mubr.f32.mxu0 0.0
    %2916 = vmatmul.mubr.f32.gmra.mrb[0].mxu0 %v2814
    %v2917 = vpop.f32.mrb[0].mxu0
    %v2918 = vadd.f32 0.0, %v2917
    %v2919 = vpop.f32.mrb[0].mxu0
    %2920 = vdwg.mxu0
    %v2921 = vadd.f32 %v2740, %v2883
    %v2922 = vadd.f32 %v2745, %v2888
    %v2923 = vadd.f32 %v2750, %v2893
    %v2924 = vadd.f32 %v2755, %v2898
    %v2925 = vadd.f32 %v2760, %v2903
    %v2926 = vadd.f32 %v2765, %v2908
    %v2927 = vadd.f32 %v2770, %v2913
    %v2928 = vadd.f32 %v2775, %v2918
    %v2930 = vlaneseq
    %v2931 = vshrl.u32 %v2930, 7
    %v2932 = vsub.s32 0, %v2931
    %v2933 = vrot.slane %v2498, %v2932
    %v2935 = vadd.f32 %v2921, %v2933
    %v2936 = vadd.f32 %v2922, %v2933
    %v2937 = vadd.f32 %v2923, %v2933
    %v2938 = vadd.f32 %v2924, %v2933
    %v2939 = vadd.f32 %v2925, %v2933
    %v2940 = vadd.f32 %v2926, %v2933
    %v2941 = vadd.f32 %v2927, %v2933
    %v2942 = vadd.f32 %v2928, %v2933
    %v2943 = vmax.f32 %v2935, 0.0
    %v2944 = vmax.f32 %v2936, 0.0
    %v2945 = vmax.f32 %v2937, 0.0
    %v2946 = vmax.f32 %v2938, 0.0
    %v2947 = vmax.f32 %v2939, 0.0
    %v2948 = vmax.f32 %v2940, 0.0
    %v2949 = vmax.f32 %v2941, 0.0
    %v2950 = vmax.f32 %v2942, 0.0
    %vm2951 = vcmask 253952
    %2952 = vst.msk [vmem:[#allocation2] sm:$0x1] %vm2951, %v2943
    %v2955 = vunpack.c.l.s4 1983009808
    %v2956 = vunpack.c.0.s8 %v2955
    %v2957 = vlaneseq
    %v2958 = vshrl.u32 %v2957, 7
    %v2959 = vsub.s32 %v2956, %v2958
    %v2960 = vrot.slane %v2943, %v2959
    %v2961 = vrot.slane %v2960, 7
    %v2962 = vrot.slane %v2961, 2
    %2963 = vrot.lane.b32.xlu0 %v2962, 32
    %v2964 = vpop.permute.xlu0 %2963
    %vm2966 = vcmask 516352
    %2967 = vst.msk [vmem:[#allocation2] sm:$0x1] %vm2966, %v2964
    %v2968 = vcombine.high %v2960, %v2960
    %2969 = vrot.lane.b32.xlu0 %v2968, 64
    %v2970 = vpop.permute.xlu0 %2969
    %vm2972 = vcmask 778752
    %2973 = vst.msk [vmem:[#allocation2] sm:$0x1] %vm2972, %v2970
    %v2974 = vrot.slane %v2968, 7
    %v2975 = vrot.slane %v2974, 2
    %2976 = vrot.lane.b32.xlu0 %v2975, 96
    %v2977 = vpop.permute.xlu0 %2976
    %vm2979 = vcmask 1041152
    %2980 = vst.msk [vmem:[#allocation2] sm:$0x1] %vm2979, %v2977
    %v2981 = vcombine.high %v2943, %v2943
    %v2983 = vunpack.c.l.s4 1983009808
    %v2984 = vunpack.c.0.s8 %v2983
    %v2985 = vlaneseq
    %v2986 = vshrl.u32 %v2985, 7
    %v2987 = vsub.s32 %v2984, %v2986
    %v2988 = vrot.slane %v2981, %v2987
    %2990 = vst.msk [vmem:[#allocation2 + $0x2] sm:$0x1] %vm2951, %v2988
    %v2991 = vrot.slane %v2988, 7
    %v2992 = vrot.slane %v2991, 2
    %2993 = vrot.lane.b32.xlu0 %v2992, 32
    %v2994 = vpop.permute.xlu0 %2993
    %2996 = vst.msk [vmem:[#allocation2 + $0x2] sm:$0x1] %vm2966, %v2994
    %v2997 = vcombine.high %v2988, %v2988
    %2998 = vrot.lane.b32.xlu0 %v2997, 64
    %v2999 = vpop.permute.xlu0 %2998
    %3001 = vst.msk [vmem:[#allocation2 + $0x2] sm:$0x1] %vm2972, %v2999
    %v3002 = vrot.slane %v2997, 7
    %v3003 = vrot.slane %v3002, 2
    %3004 = vrot.lane.b32.xlu0 %v3003, 96
    %v3005 = vpop.permute.xlu0 %3004
    %3007 = vst.msk [vmem:[#allocation2 + $0x2] sm:$0x1] %vm2979, %v3005
    %3008 = vst.msk [vmem:[#allocation2 + $0x4] sm:$0x1] %vm2951, %v2944
    %v3011 = vunpack.c.l.s4 1983009808
    %v3012 = vunpack.c.0.s8 %v3011
    %v3013 = vlaneseq
    %v3014 = vshrl.u32 %v3013, 7
    %v3015 = vsub.s32 %v3012, %v3014
    %v3016 = vrot.slane %v2944, %v3015
    %v3017 = vrot.slane %v3016, 7
    %v3018 = vrot.slane %v3017, 2
    %3019 = vrot.lane.b32.xlu0 %v3018, 32
    %v3020 = vpop.permute.xlu0 %3019
    %3022 = vst.msk [vmem:[#allocation2 + $0x4] sm:$0x1] %vm2966, %v3020
    %v3023 = vcombine.high %v3016, %v3016
    %3024 = vrot.lane.b32.xlu0 %v3023, 64
    %v3025 = vpop.permute.xlu0 %3024
    %3027 = vst.msk [vmem:[#allocation2 + $0x4] sm:$0x1] %vm2972, %v3025
    %v3028 = vrot.slane %v3023, 7
    %v3029 = vrot.slane %v3028, 2
    %3030 = vrot.lane.b32.xlu0 %v3029, 96
    %v3031 = vpop.permute.xlu0 %3030
    %3033 = vst.msk [vmem:[#allocation2 + $0x4] sm:$0x1] %vm2979, %v3031
    %v3034 = vcombine.high %v2944, %v2944
    %v3036 = vunpack.c.l.s4 1983009808
    %v3037 = vunpack.c.0.s8 %v3036
    %v3038 = vlaneseq
    %v3039 = vshrl.u32 %v3038, 7
    %v3040 = vsub.s32 %v3037, %v3039
    %v3041 = vrot.slane %v3034, %v3040
    %3043 = vst.msk [vmem:[#allocation2 + $0x6] sm:$0x1] %vm2951, %v3041
    %v3044 = vrot.slane %v3041, 7
    %v3045 = vrot.slane %v3044, 2
    %3046 = vrot.lane.b32.xlu0 %v3045, 32
    %v3047 = vpop.permute.xlu0 %3046
    %3049 = vst.msk [vmem:[#allocation2 + $0x6] sm:$0x1] %vm2966, %v3047
    %v3050 = vcombine.high %v3041, %v3041
    %3051 = vrot.lane.b32.xlu0 %v3050, 64
    %v3052 = vpop.permute.xlu0 %3051
    %3054 = vst.msk [vmem:[#allocation2 + $0x6] sm:$0x1] %vm2972, %v3052
    %v3055 = vrot.slane %v3050, 7
    %v3056 = vrot.slane %v3055, 2
    %3057 = vrot.lane.b32.xlu0 %v3056, 96
    %v3058 = vpop.permute.xlu0 %3057
    %3060 = vst.msk [vmem:[#allocation2 + $0x6] sm:$0x1] %vm2979, %v3058
    %3061 = vst.msk [vmem:[#allocation2 + $0x8] sm:$0x1] %vm2951, %v2945
    %v3064 = vunpack.c.l.s4 1983009808
    %v3065 = vunpack.c.0.s8 %v3064
    %v3066 = vlaneseq
    %v3067 = vshrl.u32 %v3066, 7
    %v3068 = vsub.s32 %v3065, %v3067
    %v3069 = vrot.slane %v2945, %v3068
    %v3070 = vrot.slane %v3069, 7
    %v3071 = vrot.slane %v3070, 2
    %3072 = vrot.lane.b32.xlu0 %v3071, 32
    %v3073 = vpop.permute.xlu0 %3072
    %3075 = vst.msk [vmem:[#allocation2 + $0x8] sm:$0x1] %vm2966, %v3073
    %v3076 = vcombine.high %v3069, %v3069
    %3077 = vrot.lane.b32.xlu0 %v3076, 64
    %v3078 = vpop.permute.xlu0 %3077
    %3080 = vst.msk [vmem:[#allocation2 + $0x8] sm:$0x1] %vm2972, %v3078
    %v3081 = vrot.slane %v3076, 7
    %v3082 = vrot.slane %v3081, 2
    %3083 = vrot.lane.b32.xlu0 %v3082, 96
    %v3084 = vpop.permute.xlu0 %3083
    %3086 = vst.msk [vmem:[#allocation2 + $0x8] sm:$0x1] %vm2979, %v3084
    %v3087 = vcombine.high %v2945, %v2945
    %v3089 = vunpack.c.l.s4 1983009808
    %v3090 = vunpack.c.0.s8 %v3089
    %v3091 = vlaneseq
    %v3092 = vshrl.u32 %v3091, 7
    %v3093 = vsub.s32 %v3090, %v3092
    %v3094 = vrot.slane %v3087, %v3093
    %3096 = vst.msk [vmem:[#allocation2 + $0xa] sm:$0x1] %vm2951, %v3094
    %v3097 = vrot.slane %v3094, 7
    %v3098 = vrot.slane %v3097, 2
    %3099 = vrot.lane.b32.xlu0 %v3098, 32
    %v3100 = vpop.permute.xlu0 %3099
    %3102 = vst.msk [vmem:[#allocation2 + $0xa] sm:$0x1] %vm2966, %v3100
    %v3103 = vcombine.high %v3094, %v3094
    %3104 = vrot.lane.b32.xlu0 %v3103, 64
    %v3105 = vpop.permute.xlu0 %3104
    %3107 = vst.msk [vmem:[#allocation2 + $0xa] sm:$0x1] %vm2972, %v3105
    %v3108 = vrot.slane %v3103, 7
    %v3109 = vrot.slane %v3108, 2
    %3110 = vrot.lane.b32.xlu0 %v3109, 96
    %v3111 = vpop.permute.xlu0 %3110
    %3113 = vst.msk [vmem:[#allocation2 + $0xa] sm:$0x1] %vm2979, %v3111
    %3114 = vst.msk [vmem:[#allocation2 + $0xc] sm:$0x1] %vm2951, %v2946
    %v3117 = vunpack.c.l.s4 1983009808
    %v3118 = vunpack.c.0.s8 %v3117
    %v3119 = vlaneseq
    %v3120 = vshrl.u32 %v3119, 7
    %v3121 = vsub.s32 %v3118, %v3120
    %v3122 = vrot.slane %v2946, %v3121
    %v3123 = vrot.slane %v3122, 7
    %v3124 = vrot.slane %v3123, 2
    %3125 = vrot.lane.b32.xlu0 %v3124, 32
    %v3126 = vpop.permute.xlu0 %3125
    %3128 = vst.msk [vmem:[#allocation2 + $0xc] sm:$0x1] %vm2966, %v3126
    %v3129 = vcombine.high %v3122, %v3122
    %3130 = vrot.lane.b32.xlu0 %v3129, 64
    %v3131 = vpop.permute.xlu0 %3130
    %3133 = vst.msk [vmem:[#allocation2 + $0xc] sm:$0x1] %vm2972, %v3131
    %v3134 = vrot.slane %v3129, 7
    %v3135 = vrot.slane %v3134, 2
    %3136 = vrot.lane.b32.xlu0 %v3135, 96
    %v3137 = vpop.permute.xlu0 %3136
    %3139 = vst.msk [vmem:[#allocation2 + $0xc] sm:$0x1] %vm2979, %v3137
    %v3140 = vcombine.high %v2946, %v2946
    %v3142 = vunpack.c.l.s4 1983009808
    %v3143 = vunpack.c.0.s8 %v3142
    %v3144 = vlaneseq
    %v3145 = vshrl.u32 %v3144, 7
    %v3146 = vsub.s32 %v3143, %v3145
    %v3147 = vrot.slane %v3140, %v3146
    %3149 = vst.msk [vmem:[#allocation2 + $0xe] sm:$0x1] %vm2951, %v3147
    %v3150 = vrot.slane %v3147, 7
    %v3151 = vrot.slane %v3150, 2
    %3152 = vrot.lane.b32.xlu0 %v3151, 32
    %v3153 = vpop.permute.xlu0 %3152
    %3155 = vst.msk [vmem:[#allocation2 + $0xe] sm:$0x1] %vm2966, %v3153
    %v3156 = vcombine.high %v3147, %v3147
    %3157 = vrot.lane.b32.xlu0 %v3156, 64
    %v3158 = vpop.permute.xlu0 %3157
    %3160 = vst.msk [vmem:[#allocation2 + $0xe] sm:$0x1] %vm2972, %v3158
    %v3161 = vrot.slane %v3156, 7
    %v3162 = vrot.slane %v3161, 2
    %3163 = vrot.lane.b32.xlu0 %v3162, 96
    %v3164 = vpop.permute.xlu0 %3163
    %3166 = vst.msk [vmem:[#allocation2 + $0xe] sm:$0x1] %vm2979, %v3164
    %3167 = vst.msk [vmem:[#allocation2 + $0x10] sm:$0x1] %vm2951, %v2947
    %v3170 = vunpack.c.l.s4 1983009808
    %v3171 = vunpack.c.0.s8 %v3170
    %v3172 = vlaneseq
    %v3173 = vshrl.u32 %v3172, 7
    %v3174 = vsub.s32 %v3171, %v3173
    %v3175 = vrot.slane %v2947, %v3174
    %v3176 = vrot.slane %v3175, 7
    %v3177 = vrot.slane %v3176, 2
    %3178 = vrot.lane.b32.xlu0 %v3177, 32
    %v3179 = vpop.permute.xlu0 %3178
    %3181 = vst.msk [vmem:[#allocation2 + $0x10] sm:$0x1] %vm2966, %v3179
    %v3182 = vcombine.high %v3175, %v3175
    %3183 = vrot.lane.b32.xlu0 %v3182, 64
    %v3184 = vpop.permute.xlu0 %3183
    %3186 = vst.msk [vmem:[#allocation2 + $0x10] sm:$0x1] %vm2972, %v3184
    %v3187 = vrot.slane %v3182, 7
    %v3188 = vrot.slane %v3187, 2
    %3189 = vrot.lane.b32.xlu0 %v3188, 96
    %v3190 = vpop.permute.xlu0 %3189
    %3192 = vst.msk [vmem:[#allocation2 + $0x10] sm:$0x1] %vm2979, %v3190
    %v3193 = vcombine.high %v2947, %v2947
    %v3195 = vunpack.c.l.s4 1983009808
    %v3196 = vunpack.c.0.s8 %v3195
    %v3197 = vlaneseq
    %v3198 = vshrl.u32 %v3197, 7
    %v3199 = vsub.s32 %v3196, %v3198
    %v3200 = vrot.slane %v3193, %v3199
    %3202 = vst.msk [vmem:[#allocation2 + $0x12] sm:$0x1] %vm2951, %v3200
    %v3203 = vrot.slane %v3200, 7
    %v3204 = vrot.slane %v3203, 2
    %3205 = vrot.lane.b32.xlu0 %v3204, 32
    %v3206 = vpop.permute.xlu0 %3205
    %3208 = vst.msk [vmem:[#allocation2 + $0x12] sm:$0x1] %vm2966, %v3206
    %v3209 = vcombine.high %v3200, %v3200
    %3210 = vrot.lane.b32.xlu0 %v3209, 64
    %v3211 = vpop.permute.xlu0 %3210
    %3213 = vst.msk [vmem:[#allocation2 + $0x12] sm:$0x1] %vm2972, %v3211
    %v3214 = vrot.slane %v3209, 7
    %v3215 = vrot.slane %v3214, 2
    %3216 = vrot.lane.b32.xlu0 %v3215, 96
    %v3217 = vpop.permute.xlu0 %3216
    %3219 = vst.msk [vmem:[#allocation2 + $0x12] sm:$0x1] %vm2979, %v3217
    %3220 = vst.msk [vmem:[#allocation2 + $0x14] sm:$0x1] %vm2951, %v2948
    %v3223 = vunpack.c.l.s4 1983009808
    %v3224 = vunpack.c.0.s8 %v3223
    %v3225 = vlaneseq
    %v3226 = vshrl.u32 %v3225, 7
    %v3227 = vsub.s32 %v3224, %v3226
    %v3228 = vrot.slane %v2948, %v3227
    %v3229 = vrot.slane %v3228, 7
    %v3230 = vrot.slane %v3229, 2
    %3231 = vrot.lane.b32.xlu0 %v3230, 32
    %v3232 = vpop.permute.xlu0 %3231
    %3234 = vst.msk [vmem:[#allocation2 + $0x14] sm:$0x1] %vm2966, %v3232
    %v3235 = vcombine.high %v3228, %v3228
    %3236 = vrot.lane.b32.xlu0 %v3235, 64
    %v3237 = vpop.permute.xlu0 %3236
    %3239 = vst.msk [vmem:[#allocation2 + $0x14] sm:$0x1] %vm2972, %v3237
    %v3240 = vrot.slane %v3235, 7
    %v3241 = vrot.slane %v3240, 2
    %3242 = vrot.lane.b32.xlu0 %v3241, 96
    %v3243 = vpop.permute.xlu0 %3242
    %3245 = vst.msk [vmem:[#allocation2 + $0x14] sm:$0x1] %vm2979, %v3243
    %v3246 = vcombine.high %v2948, %v2948
    %v3248 = vunpack.c.l.s4 1983009808
    %v3249 = vunpack.c.0.s8 %v3248
    %v3250 = vlaneseq
    %v3251 = vshrl.u32 %v3250, 7
    %v3252 = vsub.s32 %v3249, %v3251
    %v3253 = vrot.slane %v3246, %v3252
    %3255 = vst.msk [vmem:[#allocation2 + $0x16] sm:$0x1] %vm2951, %v3253
    %v3256 = vrot.slane %v3253, 7
    %v3257 = vrot.slane %v3256, 2
    %3258 = vrot.lane.b32.xlu0 %v3257, 32
    %v3259 = vpop.permute.xlu0 %3258
    %3261 = vst.msk [vmem:[#allocation2 + $0x16] sm:$0x1] %vm2966, %v3259
    %v3262 = vcombine.high %v3253, %v3253
    %3263 = vrot.lane.b32.xlu0 %v3262, 64
    %v3264 = vpop.permute.xlu0 %3263
    %3266 = vst.msk [vmem:[#allocation2 + $0x16] sm:$0x1] %vm2972, %v3264
    %v3267 = vrot.slane %v3262, 7
    %v3268 = vrot.slane %v3267, 2
    %3269 = vrot.lane.b32.xlu0 %v3268, 96
    %v3270 = vpop.permute.xlu0 %3269
    %3272 = vst.msk [vmem:[#allocation2 + $0x16] sm:$0x1] %vm2979, %v3270
    %3273 = vst.msk [vmem:[#allocation2 + $0x18] sm:$0x1] %vm2951, %v2949
    %v3276 = vunpack.c.l.s4 1983009808
    %v3277 = vunpack.c.0.s8 %v3276
    %v3278 = vlaneseq
    %v3279 = vshrl.u32 %v3278, 7
    %v3280 = vsub.s32 %v3277, %v3279
    %v3281 = vrot.slane %v2949, %v3280
    %v3282 = vrot.slane %v3281, 7
    %v3283 = vrot.slane %v3282, 2
    %3284 = vrot.lane.b32.xlu0 %v3283, 32
    %v3285 = vpop.permute.xlu0 %3284
    %3287 = vst.msk [vmem:[#allocation2 + $0x18] sm:$0x1] %vm2966, %v3285
    %v3288 = vcombine.high %v3281, %v3281
    %3289 = vrot.lane.b32.xlu0 %v3288, 64
    %v3290 = vpop.permute.xlu0 %3289
    %3292 = vst.msk [vmem:[#allocation2 + $0x18] sm:$0x1] %vm2972, %v3290
    %v3293 = vrot.slane %v3288, 7
    %v3294 = vrot.slane %v3293, 2
    %3295 = vrot.lane.b32.xlu0 %v3294, 96
    %v3296 = vpop.permute.xlu0 %3295
    %3298 = vst.msk [vmem:[#allocation2 + $0x18] sm:$0x1] %vm2979, %v3296
    %v3299 = vcombine.high %v2949, %v2949
    %v3301 = vunpack.c.l.s4 1983009808
    %v3302 = vunpack.c.0.s8 %v3301
    %v3303 = vlaneseq
    %v3304 = vshrl.u32 %v3303, 7
    %v3305 = vsub.s32 %v3302, %v3304
    %v3306 = vrot.slane %v3299, %v3305
    %3308 = vst.msk [vmem:[#allocation2 + $0x1a] sm:$0x1] %vm2951, %v3306
    %v3309 = vrot.slane %v3306, 7
    %v3310 = vrot.slane %v3309, 2
    %3311 = vrot.lane.b32.xlu0 %v3310, 32
    %v3312 = vpop.permute.xlu0 %3311
    %3314 = vst.msk [vmem:[#allocation2 + $0x1a] sm:$0x1] %vm2966, %v3312
    %v3315 = vcombine.high %v3306, %v3306
    %3316 = vrot.lane.b32.xlu0 %v3315, 64
    %v3317 = vpop.permute.xlu0 %3316
    %3319 = vst.msk [vmem:[#allocation2 + $0x1a] sm:$0x1] %vm2972, %v3317
    %v3320 = vrot.slane %v3315, 7
    %v3321 = vrot.slane %v3320, 2
    %3322 = vrot.lane.b32.xlu0 %v3321, 96
    %v3323 = vpop.permute.xlu0 %3322
    %3325 = vst.msk [vmem:[#allocation2 + $0x1a] sm:$0x1] %vm2979, %v3323
    %3326 = vst.msk [vmem:[#allocation2 + $0x1c] sm:$0x1] %vm2951, %v2950
    %v3329 = vunpack.c.l.s4 1983009808
    %v3330 = vunpack.c.0.s8 %v3329
    %v3331 = vlaneseq
    %v3332 = vshrl.u32 %v3331, 7
    %v3333 = vsub.s32 %v3330, %v3332
    %v3334 = vrot.slane %v2950, %v3333
    %v3335 = vrot.slane %v3334, 7
    %v3336 = vrot.slane %v3335, 2
    %3337 = vrot.lane.b32.xlu0 %v3336, 32
    %v3338 = vpop.permute.xlu0 %3337
    %3340 = vst.msk [vmem:[#allocation2 + $0x1c] sm:$0x1] %vm2966, %v3338
    %v3341 = vld [vmem:[%s0 + $0x40] sm:$0xff]
    %v3342 = vld [vmem:[%s0 + $0x48] sm:$0xff]
    %v3343 = vld [vmem:[%s0 + $0x50] sm:$0xff]
    %v3344 = vld [vmem:[%s0 + $0x58] sm:$0xff]
    %v3345 = vld [vmem:[%s0 + $0x60] sm:$0xff]
    %v3346 = vld [vmem:[%s0 + $0x68] sm:$0xff]
    %v3347 = vld [vmem:[%s0 + $0x70] sm:$0xff]
    %v3348 = vld [vmem:[%s0 + $0x78] sm:$0xff]
    %v3349 = vld [vmem:[%s2] sm:$0x1]
    %v3350 = vld [vmem:[%s1] sm:$0xff]
    %v3351 = vld [vmem:[%s1 + $0x8] sm:$0xff]
    %v3352 = vld [vmem:[%s1 + $0x10] sm:$0xff]
    %v3353 = vld [vmem:[%s1 + $0x18] sm:$0xff]
    %v3354 = vld [vmem:[%s1 + $0x20] sm:$0xf]
    %v3355 = vld [vmem:[%s60] sm:$0xff]
    %v3356 = vld [vmem:[%s60 + $0x8] sm:$0xff]
    %v3357 = vld [vmem:[%s60 + $0x10] sm:$0xff]
    %v3358 = vld [vmem:[%s60 + $0x18] sm:$0xff]
    %v3359 = vld [vmem:[%s60 + $0x20] sm:$0xf]
    %v3368 = vrot.slane %v3341, 1
    %v3369 = vrot.slane %v3342, 1
    %v3370 = vsel %vm74, %v3368, %v3369
    %v3371 = vrot.slane %v3343, 1
    %v3372 = vsel %vm74, %v3369, %v3371
    %v3373 = vrot.slane %v3344, 1
    %v3374 = vsel %vm74, %v3371, %v3373
    %v3375 = vrot.slane %v3345, 1
    %v3376 = vsel %vm74, %v3373, %v3375
    %v3377 = vrot.slane %v3346, 1
    %v3378 = vsel %vm74, %v3375, %v3377
    %v3379 = vrot.slane %v3347, 1
    %v3380 = vsel %vm74, %v3377, %v3379
    %v3381 = vrot.slane %v3348, 1
    %v3382 = vsel %vm74, %v3379, %v3381
    %v3383 = vsel %vm90, %v3370, 0
    %v3385 = vsel %vm90, %v3372, 0
    %v3387 = vsel %vm90, %v3374, 0
    %v3389 = vsel %vm90, %v3376, 0
    %v3391 = vsel %vm90, %v3378, 0
    %v3393 = vsel %vm90, %v3380, 0
    %v3395 = vsel %vm90, %v3382, 0
    %v3397 = vsel %vm90, %v3381, 0
    %v3400 = vsel %vm107, %v3359, 0
    %3402 = vmatprep.subr.mxu0 0.0
    %3403 = vmatpush1.msra.mxu0 %v3355
    %3404 = vmatprep.subr.mxu0 0.0
    %3405 = vmatpush1.msra.mxu0 %v3356
    %3406 = vmatprep.subr.mxu0 0.0
    %3407 = vmatpush1.msra.mxu0 %v3357
    %3408 = vmatprep.subr.mxu0 0.0
    %3409 = vmatpush1.msra.mxu0 %v3358
    %3410 = vmatprep.subr.mxu0 0.0
    %3411 = vmatpush1.msra.mxu0 %v3400
    %3412 = vmatprep.subr.mxu0 0.0
    %3413 = vmatpush1.msra.mxu0 0.0
    %3414 = vmatprep.subr.mxu0 0.0
    %3415 = vmatpush1.msra.mxu0 0.0
    %3416 = vmatprep.subr.mxu0 0.0
    %3417 = vmatpush1.msra.mxu0 0.0
    %3418 = vmatprep.subr.mxu0 0.0
    %3419 = vmatpush1.msra.mxu0 0.0
    %3420 = vmatprep.subr.mxu0 0.0
    %3421 = vmatpush1.msra.mxu0 0.0
    %3422 = vmatprep.subr.mxu0 0.0
    %3423 = vmatpush1.msra.mxu0 0.0
    %3424 = vmatprep.subr.mxu0 0.0
    %3425 = vmatpush1.msra.mxu0 0.0
    %3426 = vmatprep.subr.mxu0 0.0
    %3427 = vmatpush1.msra.mxu0 0.0
    %3428 = vmatprep.subr.mxu0 0.0
    %3429 = vmatpush1.msra.mxu0 0.0
    %3430 = vmatprep.subr.mxu0 0.0
    %3431 = vmatpush1.msra.mxu0 0.0
    %3432 = vmatprep.subr.mxu0 0.0
    %3433 = vmatpush1.msra.mxu0 0.0
    %3434 = vmatprep.subr.mxu0 0.0
    %3435 = vmatpush1.msra.mxu0 0.0
    %3436 = vmatprep.subr.mxu0 0.0
    %3437 = vmatpush1.msra.mxu0 0.0
    %3438 = vmatprep.subr.mxu0 0.0
    %3439 = vmatpush1.msra.mxu0 0.0
    %3440 = vmatprep.subr.mxu0 0.0
    %3441 = vmatpush1.msra.mxu0 0.0
    %3442 = vmatprep.subr.mxu0 0.0
    %3443 = vmatpush1.msra.mxu0 0.0
    %3444 = vmatprep.subr.mxu0 0.0
    %3445 = vmatpush1.msra.mxu0 0.0
    %3446 = vmatprep.subr.mxu0 0.0
    %3447 = vmatpush1.msra.mxu0 0.0
    %3448 = vmatprep.subr.mxu0 0.0
    %3449 = vmatpush1.msra.mxu0 0.0
    %3450 = vmatprep.subr.mxu0 0.0
    %3451 = vmatpush1.msra.mxu0 0.0
    %3452 = vmatprep.subr.mxu0 0.0
    %3453 = vmatpush1.msra.mxu0 0.0
    %3454 = vmatprep.subr.mxu0 0.0
    %3455 = vmatpush1.msra.mxu0 0.0
    %3456 = vmatprep.subr.mxu0 0.0
    %3457 = vmatpush1.msra.mxu0 0.0
    %3458 = vmatprep.subr.mxu0 0.0
    %3459 = vmatpush1.msra.mxu0 0.0
    %3460 = vmatprep.subr.mxu0 0.0
    %3461 = vmatpush1.msra.mxu0 0.0
    %3462 = vmatprep.subr.mxu0 0.0
    %3463 = vmatpush1.msra.mxu0 0.0
    %3464 = vmatprep.subr.mxu0 0.0
    %3465 = vmatpush1.msra.mxu0 0.0
    %3466 = vmatprep.mubr.f32.mxu0 0.0
    %3467 = vmatmul.mubr.f32.gmra.mrb[0].mxu0 %v3383
    %v3468 = vpop.f32.mrb[0].mxu0
    %v3469 = vadd.f32 0.0, %v3468
    %v3470 = vpop.f32.mrb[0].mxu0
    %3471 = vmatprep.mubr.f32.mxu0 0.0
    %3472 = vmatmul.mubr.f32.gmra.mrb[0].mxu0 %v3385
    %v3473 = vpop.f32.mrb[0].mxu0
    %v3474 = vadd.f32 0.0, %v3473
    %v3475 = vpop.f32.mrb[0].mxu0
    %3476 = vmatprep.mubr.f32.mxu0 0.0
    %3477 = vmatmul.mubr.f32.gmra.mrb[0].mxu0 %v3387
    %v3478 = vpop.f32.mrb[0].mxu0
    %v3479 = vadd.f32 0.0, %v3478
    %v3480 = vpop.f32.mrb[0].mxu0
    %3481 = vmatprep.mubr.f32.mxu0 0.0
    %3482 = vmatmul.mubr.f32.gmra.mrb[0].mxu0 %v3389
    %v3483 = vpop.f32.mrb[0].mxu0
    %v3484 = vadd.f32 0.0, %v3483
    %v3485 = vpop.f32.mrb[0].mxu0
    %3486 = vmatprep.mubr.f32.mxu0 0.0
    %3487 = vmatmul.mubr.f32.gmra.mrb[0].mxu0 %v3391
    %v3488 = vpop.f32.mrb[0].mxu0
    %v3489 = vadd.f32 0.0, %v3488
    %v3490 = vpop.f32.mrb[0].mxu0
    %3491 = vmatprep.mubr.f32.mxu0 0.0
    %3492 = vmatmul.mubr.f32.gmra.mrb[0].mxu0 %v3393
    %v3493 = vpop.f32.mrb[0].mxu0
    %v3494 = vadd.f32 0.0, %v3493
    %v3495 = vpop.f32.mrb[0].mxu0
    %3496 = vmatprep.mubr.f32.mxu0 0.0
    %3497 = vmatmul.mubr.f32.gmra.mrb[0].mxu0 %v3395
    %v3498 = vpop.f32.mrb[0].mxu0
    %v3499 = vadd.f32 0.0, %v3498
    %v3500 = vpop.f32.mrb[0].mxu0
    %3501 = vmatprep.mubr.f32.mxu0 0.0
    %3502 = vmatmul.mubr.f32.gmra.mrb[0].mxu0 %v3397
    %v3503 = vpop.f32.mrb[0].mxu0
    %v3504 = vadd.f32 0.0, %v3503
    %v3505 = vpop.f32.mrb[0].mxu0
    %3506 = vdwg.mxu0
    %v3507 = vsel %vm90, %v3341, 0
    %v3509 = vsel %vm90, %v3342, 0
    %v3511 = vsel %vm90, %v3343, 0
    %v3513 = vsel %vm90, %v3344, 0
    %v3515 = vsel %vm90, %v3345, 0
    %v3517 = vsel %vm90, %v3346, 0
    %v3519 = vsel %vm90, %v3347, 0
    %v3521 = vsel %vm90, %v3348, 0
    %v3524 = vsel %vm107, %v3354, 0
    %3526 = vmatprep.subr.mxu0 0.0
    %3527 = vmatpush1.msra.mxu0 %v3350
    %3528 = vmatprep.subr.mxu0 0.0
    %3529 = vmatpush1.msra.mxu0 %v3351
    %3530 = vmatprep.subr.mxu0 0.0
    %3531 = vmatpush1.msra.mxu0 %v3352
    %3532 = vmatprep.subr.mxu0 0.0
    %3533 = vmatpush1.msra.mxu0 %v3353
    %3534 = vmatprep.subr.mxu0 0.0
    %3535 = vmatpush1.msra.mxu0 %v3524
    %3536 = vmatprep.subr.mxu0 0.0
    %3537 = vmatpush1.msra.mxu0 0.0
    %3538 = vmatprep.subr.mxu0 0.0
    %3539 = vmatpush1.msra.mxu0 0.0
    %3540 = vmatprep.subr.mxu0 0.0
    %3541 = vmatpush1.msra.mxu0 0.0
    %3542 = vmatprep.subr.mxu0 0.0
    %3543 = vmatpush1.msra.mxu0 0.0
    %3544 = vmatprep.subr.mxu0 0.0
    %3545 = vmatpush1.msra.mxu0 0.0
    %3546 = vmatprep.subr.mxu0 0.0
    %3547 = vmatpush1.msra.mxu0 0.0
    %3548 = vmatprep.subr.mxu0 0.0
    %3549 = vmatpush1.msra.mxu0 0.0
    %3550 = vmatprep.subr.mxu0 0.0
    %3551 = vmatpush1.msra.mxu0 0.0
    %3552 = vmatprep.subr.mxu0 0.0
    %3553 = vmatpush1.msra.mxu0 0.0
    %3554 = vmatprep.subr.mxu0 0.0
    %3555 = vmatpush1.msra.mxu0 0.0
    %3556 = vmatprep.subr.mxu0 0.0
    %3557 = vmatpush1.msra.mxu0 0.0
    %3558 = vmatprep.subr.mxu0 0.0
    %3559 = vmatpush1.msra.mxu0 0.0
    %3560 = vmatprep.subr.mxu0 0.0
    %3561 = vmatpush1.msra.mxu0 0.0
    %3562 = vmatprep.subr.mxu0 0.0
    %3563 = vmatpush1.msra.mxu0 0.0
    %3564 = vmatprep.subr.mxu0 0.0
    %3565 = vmatpush1.msra.mxu0 0.0
    %3566 = vmatprep.subr.mxu0 0.0
    %3567 = vmatpush1.msra.mxu0 0.0
    %3568 = vmatprep.subr.mxu0 0.0
    %3569 = vmatpush1.msra.mxu0 0.0
    %3570 = vmatprep.subr.mxu0 0.0
    %3571 = vmatpush1.msra.mxu0 0.0
    %3572 = vmatprep.subr.mxu0 0.0
    %3573 = vmatpush1.msra.mxu0 0.0
    %3574 = vmatprep.subr.mxu0 0.0
    %3575 = vmatpush1.msra.mxu0 0.0
    %3576 = vmatprep.subr.mxu0 0.0
    %3577 = vmatpush1.msra.mxu0 0.0
    %3578 = vmatprep.subr.mxu0 0.0
    %3579 = vmatpush1.msra.mxu0 0.0
    %3580 = vmatprep.subr.mxu0 0.0
    %3581 = vmatpush1.msra.mxu0 0.0
    %3582 = vmatprep.subr.mxu0 0.0
    %3583 = vmatpush1.msra.mxu0 0.0
    %3584 = vmatprep.subr.mxu0 0.0
    %3585 = vmatpush1.msra.mxu0 0.0
    %3586 = vmatprep.subr.mxu0 0.0
    %3587 = vmatpush1.msra.mxu0 0.0
    %3588 = vmatprep.subr.mxu0 0.0
    %3589 = vmatpush1.msra.mxu0 0.0
    %3590 = vmatprep.mubr.f32.mxu0 0.0
    %3591 = vmatmul.mubr.f32.gmra.mrb[0].mxu0 %v3507
    %v3592 = vpop.f32.mrb[0].mxu0
    %v3593 = vadd.f32 %v3469, %v3592
    %v3594 = vpop.f32.mrb[0].mxu0
    %3595 = vmatprep.mubr.f32.mxu0 0.0
    %3596 = vmatmul.mubr.f32.gmra.mrb[0].mxu0 %v3509
    %v3597 = vpop.f32.mrb[0].mxu0
    %v3598 = vadd.f32 %v3474, %v3597
    %v3599 = vpop.f32.mrb[0].mxu0
    %3600 = vmatprep.mubr.f32.mxu0 0.0
    %3601 = vmatmul.mubr.f32.gmra.mrb[0].mxu0 %v3511
    %v3602 = vpop.f32.mrb[0].mxu0
    %v3603 = vadd.f32 %v3479, %v3602
    %v3604 = vpop.f32.mrb[0].mxu0
    %3605 = vmatprep.mubr.f32.mxu0 0.0
    %3606 = vmatmul.mubr.f32.gmra.mrb[0].mxu0 %v3513
    %v3607 = vpop.f32.mrb[0].mxu0
    %v3608 = vadd.f32 %v3484, %v3607
    %v3609 = vpop.f32.mrb[0].mxu0
    %3610 = vmatprep.mubr.f32.mxu0 0.0
    %3611 = vmatmul.mubr.f32.gmra.mrb[0].mxu0 %v3515
    %v3612 = vpop.f32.mrb[0].mxu0
    %v3613 = vadd.f32 %v3489, %v3612
    %v3614 = vpop.f32.mrb[0].mxu0
    %3615 = vmatprep.mubr.f32.mxu0 0.0
    %3616 = vmatmul.mubr.f32.gmra.mrb[0].mxu0 %v3517
    %v3617 = vpop.f32.mrb[0].mxu0
    %v3618 = vadd.f32 %v3494, %v3617
    %v3619 = vpop.f32.mrb[0].mxu0
    %3620 = vmatprep.mubr.f32.mxu0 0.0
    %3621 = vmatmul.mubr.f32.gmra.mrb[0].mxu0 %v3519
    %v3622 = vpop.f32.mrb[0].mxu0
    %v3623 = vadd.f32 %v3499, %v3622
    %v3624 = vpop.f32.mrb[0].mxu0
    %3625 = vmatprep.mubr.f32.mxu0 0.0
    %3626 = vmatmul.mubr.f32.gmra.mrb[0].mxu0 %v3521
    %v3627 = vpop.f32.mrb[0].mxu0
    %v3628 = vadd.f32 %v3504, %v3627
    %v3629 = vpop.f32.mrb[0].mxu0
    %3630 = vdwg.mxu0
    %v3631 = vld [vmem:[%s340] sm:$0xff]
    %v3632 = vld [vmem:[%s340 + $0x8] sm:$0xff]
    %v3633 = vld [vmem:[%s340 + $0x10] sm:$0xff]
    %v3634 = vld [vmem:[%s340 + $0x18] sm:$0xff]
    %v3635 = vld [vmem:[%s340 + $0x20] sm:$0xf]
    %v3636 = vrot.slane %v3341, 2
    %v3637 = vrot.slane %v3342, 2
    %v3638 = vsel %vm346, %v3636, %v3637
    %v3639 = vrot.slane %v3343, 2
    %v3640 = vsel %vm346, %v3637, %v3639
    %v3641 = vrot.slane %v3344, 2
    %v3642 = vsel %vm346, %v3639, %v3641
    %v3643 = vrot.slane %v3345, 2
    %v3644 = vsel %vm346, %v3641, %v3643
    %v3645 = vrot.slane %v3346, 2
    %v3646 = vsel %vm346, %v3643, %v3645
    %v3647 = vrot.slane %v3347, 2
    %v3648 = vsel %vm346, %v3645, %v3647
    %v3649 = vrot.slane %v3348, 2
    %v3650 = vsel %vm346, %v3647, %v3649
    %v3651 = vsel %vm90, %v3638, 0
    %v3653 = vsel %vm90, %v3640, 0
    %v3655 = vsel %vm90, %v3642, 0
    %v3657 = vsel %vm90, %v3644, 0
    %v3659 = vsel %vm90, %v3646, 0
    %v3661 = vsel %vm90, %v3648, 0
    %v3663 = vsel %vm90, %v3650, 0
    %v3665 = vsel %vm90, %v3649, 0
    %v3668 = vsel %vm107, %v3635, 0
    %3670 = vmatprep.subr.mxu0 0.0
    %3671 = vmatpush1.msra.mxu0 %v3631
    %3672 = vmatprep.subr.mxu0 0.0
    %3673 = vmatpush1.msra.mxu0 %v3632
    %3674 = vmatprep.subr.mxu0 0.0
    %3675 = vmatpush1.msra.mxu0 %v3633
    %3676 = vmatprep.subr.mxu0 0.0
    %3677 = vmatpush1.msra.mxu0 %v3634
    %3678 = vmatprep.subr.mxu0 0.0
    %3679 = vmatpush1.msra.mxu0 %v3668
    %3680 = vmatprep.subr.mxu0 0.0
    %3681 = vmatpush1.msra.mxu0 0.0
    %3682 = vmatprep.subr.mxu0 0.0
    %3683 = vmatpush1.msra.mxu0 0.0
    %3684 = vmatprep.subr.mxu0 0.0
    %3685 = vmatpush1.msra.mxu0 0.0
    %3686 = vmatprep.subr.mxu0 0.0
    %3687 = vmatpush1.msra.mxu0 0.0
    %3688 = vmatprep.subr.mxu0 0.0
    %3689 = vmatpush1.msra.mxu0 0.0
    %3690 = vmatprep.subr.mxu0 0.0
    %3691 = vmatpush1.msra.mxu0 0.0
    %3692 = vmatprep.subr.mxu0 0.0
    %3693 = vmatpush1.msra.mxu0 0.0
    %3694 = vmatprep.subr.mxu0 0.0
    %3695 = vmatpush1.msra.mxu0 0.0
    %3696 = vmatprep.subr.mxu0 0.0
    %3697 = vmatpush1.msra.mxu0 0.0
    %3698 = vmatprep.subr.mxu0 0.0
    %3699 = vmatpush1.msra.mxu0 0.0
    %3700 = vmatprep.subr.mxu0 0.0
    %3701 = vmatpush1.msra.mxu0 0.0
    %3702 = vmatprep.subr.mxu0 0.0
    %3703 = vmatpush1.msra.mxu0 0.0
    %3704 = vmatprep.subr.mxu0 0.0
    %3705 = vmatpush1.msra.mxu0 0.0
    %3706 = vmatprep.subr.mxu0 0.0
    %3707 = vmatpush1.msra.mxu0 0.0
    %3708 = vmatprep.subr.mxu0 0.0
    %3709 = vmatpush1.msra.mxu0 0.0
    %3710 = vmatprep.subr.mxu0 0.0
    %3711 = vmatpush1.msra.mxu0 0.0
    %3712 = vmatprep.subr.mxu0 0.0
    %3713 = vmatpush1.msra.mxu0 0.0
    %3714 = vmatprep.subr.mxu0 0.0
    %3715 = vmatpush1.msra.mxu0 0.0
    %3716 = vmatprep.subr.mxu0 0.0
    %3717 = vmatpush1.msra.mxu0 0.0
    %3718 = vmatprep.subr.mxu0 0.0
    %3719 = vmatpush1.msra.mxu0 0.0
    %3720 = vmatprep.subr.mxu0 0.0
    %3721 = vmatpush1.msra.mxu0 0.0
    %3722 = vmatprep.subr.mxu0 0.0
    %3723 = vmatpush1.msra.mxu0 0.0
    %3724 = vmatprep.subr.mxu0 0.0
    %3725 = vmatpush1.msra.mxu0 0.0
    %3726 = vmatprep.subr.mxu0 0.0
    %3727 = vmatpush1.msra.mxu0 0.0
    %3728 = vmatprep.subr.mxu0 0.0
    %3729 = vmatpush1.msra.mxu0 0.0
    %3730 = vmatprep.subr.mxu0 0.0
    %3731 = vmatpush1.msra.mxu0 0.0
    %3732 = vmatprep.subr.mxu0 0.0
    %3733 = vmatpush1.msra.mxu0 0.0
    %3734 = vmatprep.mubr.f32.mxu0 0.0
    %3735 = vmatmul.mubr.f32.gmra.mrb[0].mxu0 %v3651
    %v3736 = vpop.f32.mrb[0].mxu0
    %v3737 = vadd.f32 0.0, %v3736
    %v3738 = vpop.f32.mrb[0].mxu0
    %3739 = vmatprep.mubr.f32.mxu0 0.0
    %3740 = vmatmul.mubr.f32.gmra.mrb[0].mxu0 %v3653
    %v3741 = vpop.f32.mrb[0].mxu0
    %v3742 = vadd.f32 0.0, %v3741
    %v3743 = vpop.f32.mrb[0].mxu0
    %3744 = vmatprep.mubr.f32.mxu0 0.0
    %3745 = vmatmul.mubr.f32.gmra.mrb[0].mxu0 %v3655
    %v3746 = vpop.f32.mrb[0].mxu0
    %v3747 = vadd.f32 0.0, %v3746
    %v3748 = vpop.f32.mrb[0].mxu0
    %3749 = vmatprep.mubr.f32.mxu0 0.0
    %3750 = vmatmul.mubr.f32.gmra.mrb[0].mxu0 %v3657
    %v3751 = vpop.f32.mrb[0].mxu0
    %v3752 = vadd.f32 0.0, %v3751
    %v3753 = vpop.f32.mrb[0].mxu0
    %3754 = vmatprep.mubr.f32.mxu0 0.0
    %3755 = vmatmul.mubr.f32.gmra.mrb[0].mxu0 %v3659
    %v3756 = vpop.f32.mrb[0].mxu0
    %v3757 = vadd.f32 0.0, %v3756
    %v3758 = vpop.f32.mrb[0].mxu0
    %3759 = vmatprep.mubr.f32.mxu0 0.0
    %3760 = vmatmul.mubr.f32.gmra.mrb[0].mxu0 %v3661
    %v3761 = vpop.f32.mrb[0].mxu0
    %v3762 = vadd.f32 0.0, %v3761
    %v3763 = vpop.f32.mrb[0].mxu0
    %3764 = vmatprep.mubr.f32.mxu0 0.0
    %3765 = vmatmul.mubr.f32.gmra.mrb[0].mxu0 %v3663
    %v3766 = vpop.f32.mrb[0].mxu0
    %v3767 = vadd.f32 0.0, %v3766
    %v3768 = vpop.f32.mrb[0].mxu0
    %3769 = vmatprep.mubr.f32.mxu0 0.0
    %3770 = vmatmul.mubr.f32.gmra.mrb[0].mxu0 %v3665
    %v3771 = vpop.f32.mrb[0].mxu0
    %v3772 = vadd.f32 0.0, %v3771
    %v3773 = vpop.f32.mrb[0].mxu0
    %3774 = vdwg.mxu0
    %v3775 = vadd.f32 %v3593, %v3737
    %v3776 = vadd.f32 %v3598, %v3742
    %v3777 = vadd.f32 %v3603, %v3747
    %v3778 = vadd.f32 %v3608, %v3752
    %v3779 = vadd.f32 %v3613, %v3757
    %v3780 = vadd.f32 %v3618, %v3762
    %v3781 = vadd.f32 %v3623, %v3767
    %v3782 = vadd.f32 %v3628, %v3772
    %v3784 = vlaneseq
    %v3785 = vshrl.u32 %v3784, 7
    %v3786 = vsub.s32 0, %v3785
    %v3787 = vrot.slane %v3349, %v3786
    %v3789 = vadd.f32 %v3775, %v3787
    %v3790 = vadd.f32 %v3776, %v3787
    %v3791 = vadd.f32 %v3777, %v3787
    %v3792 = vadd.f32 %v3778, %v3787
    %v3793 = vadd.f32 %v3779, %v3787
    %v3794 = vadd.f32 %v3780, %v3787
    %v3795 = vadd.f32 %v3781, %v3787
    %v3796 = vadd.f32 %v3782, %v3787
    %v3797 = vmax.f32 %v3789, 0.0
    %v3798 = vmax.f32 %v3790, 0.0
    %v3799 = vmax.f32 %v3791, 0.0
    %v3800 = vmax.f32 %v3792, 0.0
    %v3801 = vmax.f32 %v3793, 0.0
    %v3802 = vmax.f32 %v3794, 0.0
    %v3803 = vmax.f32 %v3795, 0.0
    %v3804 = vmax.f32 %v3796, 0.0
    %v3805 = vld [vmem:[%s516] sm:$0xff]
    %v3806 = vld [vmem:[%s516 + $0x8] sm:$0xff]
    %v3807 = vld [vmem:[%s516 + $0x10] sm:$0xff]
    %v3808 = vld [vmem:[%s516 + $0x18] sm:$0xff]
    %v3809 = vld [vmem:[%s516 + $0x20] sm:$0xf]
    %v3810 = vld [vmem:[%s522] sm:$0xff]
    %v3811 = vld [vmem:[%s522 + $0x8] sm:$0xff]
    %v3812 = vld [vmem:[%s522 + $0x10] sm:$0xff]
    %v3813 = vld [vmem:[%s522 + $0x18] sm:$0xff]
    %v3814 = vld [vmem:[%s522 + $0x20] sm:$0xf]
    %v3816 = vsel %vm107, %v3814, 0
    %3818 = vmatprep.subr.mxu0 0.0
    %3819 = vmatpush1.msra.mxu0 %v3810
    %3820 = vmatprep.subr.mxu0 0.0
    %3821 = vmatpush1.msra.mxu0 %v3811
    %3822 = vmatprep.subr.mxu0 0.0
    %3823 = vmatpush1.msra.mxu0 %v3812
    %3824 = vmatprep.subr.mxu0 0.0
    %3825 = vmatpush1.msra.mxu0 %v3813
    %3826 = vmatprep.subr.mxu0 0.0
    %3827 = vmatpush1.msra.mxu0 %v3816
    %3828 = vmatprep.subr.mxu0 0.0
    %3829 = vmatpush1.msra.mxu0 0.0
    %3830 = vmatprep.subr.mxu0 0.0
    %3831 = vmatpush1.msra.mxu0 0.0
    %3832 = vmatprep.subr.mxu0 0.0
    %3833 = vmatpush1.msra.mxu0 0.0
    %3834 = vmatprep.subr.mxu0 0.0
    %3835 = vmatpush1.msra.mxu0 0.0
    %3836 = vmatprep.subr.mxu0 0.0
    %3837 = vmatpush1.msra.mxu0 0.0
    %3838 = vmatprep.subr.mxu0 0.0
    %3839 = vmatpush1.msra.mxu0 0.0
    %3840 = vmatprep.subr.mxu0 0.0
    %3841 = vmatpush1.msra.mxu0 0.0
    %3842 = vmatprep.subr.mxu0 0.0
    %3843 = vmatpush1.msra.mxu0 0.0
    %3844 = vmatprep.subr.mxu0 0.0
    %3845 = vmatpush1.msra.mxu0 0.0
    %3846 = vmatprep.subr.mxu0 0.0
    %3847 = vmatpush1.msra.mxu0 0.0
    %3848 = vmatprep.subr.mxu0 0.0
    %3849 = vmatpush1.msra.mxu0 0.0
    %3850 = vmatprep.subr.mxu0 0.0
    %3851 = vmatpush1.msra.mxu0 0.0
    %3852 = vmatprep.subr.mxu0 0.0
    %3853 = vmatpush1.msra.mxu0 0.0
    %3854 = vmatprep.subr.mxu0 0.0
    %3855 = vmatpush1.msra.mxu0 0.0
    %3856 = vmatprep.subr.mxu0 0.0
    %3857 = vmatpush1.msra.mxu0 0.0
    %3858 = vmatprep.subr.mxu0 0.0
    %3859 = vmatpush1.msra.mxu0 0.0
    %3860 = vmatprep.subr.mxu0 0.0
    %3861 = vmatpush1.msra.mxu0 0.0
    %3862 = vmatprep.subr.mxu0 0.0
    %3863 = vmatpush1.msra.mxu0 0.0
    %3864 = vmatprep.subr.mxu0 0.0
    %3865 = vmatpush1.msra.mxu0 0.0
    %3866 = vmatprep.subr.mxu0 0.0
    %3867 = vmatpush1.msra.mxu0 0.0
    %3868 = vmatprep.subr.mxu0 0.0
    %3869 = vmatpush1.msra.mxu0 0.0
    %3870 = vmatprep.subr.mxu0 0.0
    %3871 = vmatpush1.msra.mxu0 0.0
    %3872 = vmatprep.subr.mxu0 0.0
    %3873 = vmatpush1.msra.mxu0 0.0
    %3874 = vmatprep.subr.mxu0 0.0
    %3875 = vmatpush1.msra.mxu0 0.0
    %3876 = vmatprep.subr.mxu0 0.0
    %3877 = vmatpush1.msra.mxu0 0.0
    %3878 = vmatprep.subr.mxu0 0.0
    %3879 = vmatpush1.msra.mxu0 0.0
    %3880 = vmatprep.subr.mxu0 0.0
    %3881 = vmatpush1.msra.mxu0 0.0
    %3882 = vmatprep.mubr.f32.mxu0 0.0
    %3883 = vmatmul.mubr.f32.gmra.mrb[0].mxu0 %v3383
    %v3884 = vpop.f32.mrb[0].mxu0
    %v3885 = vadd.f32 0.0, %v3884
    %v3886 = vpop.f32.mrb[0].mxu0
    %3887 = vmatprep.mubr.f32.mxu0 0.0
    %3888 = vmatmul.mubr.f32.gmra.mrb[0].mxu0 %v3385
    %v3889 = vpop.f32.mrb[0].mxu0
    %v3890 = vadd.f32 0.0, %v3889
    %v3891 = vpop.f32.mrb[0].mxu0
    %3892 = vmatprep.mubr.f32.mxu0 0.0
    %3893 = vmatmul.mubr.f32.gmra.mrb[0].mxu0 %v3387
    %v3894 = vpop.f32.mrb[0].mxu0
    %v3895 = vadd.f32 0.0, %v3894
    %v3896 = vpop.f32.mrb[0].mxu0
    %3897 = vmatprep.mubr.f32.mxu0 0.0
    %3898 = vmatmul.mubr.f32.gmra.mrb[0].mxu0 %v3389
    %v3899 = vpop.f32.mrb[0].mxu0
    %v3900 = vadd.f32 0.0, %v3899
    %v3901 = vpop.f32.mrb[0].mxu0
    %3902 = vmatprep.mubr.f32.mxu0 0.0
    %3903 = vmatmul.mubr.f32.gmra.mrb[0].mxu0 %v3391
    %v3904 = vpop.f32.mrb[0].mxu0
    %v3905 = vadd.f32 0.0, %v3904
    %v3906 = vpop.f32.mrb[0].mxu0
    %3907 = vmatprep.mubr.f32.mxu0 0.0
    %3908 = vmatmul.mubr.f32.gmra.mrb[0].mxu0 %v3393
    %v3909 = vpop.f32.mrb[0].mxu0
    %v3910 = vadd.f32 0.0, %v3909
    %v3911 = vpop.f32.mrb[0].mxu0
    %3912 = vmatprep.mubr.f32.mxu0 0.0
    %3913 = vmatmul.mubr.f32.gmra.mrb[0].mxu0 %v3395
    %v3914 = vpop.f32.mrb[0].mxu0
    %v3915 = vadd.f32 0.0, %v3914
    %v3916 = vpop.f32.mrb[0].mxu0
    %3917 = vmatprep.mubr.f32.mxu0 0.0
    %3918 = vmatmul.mubr.f32.gmra.mrb[0].mxu0 %v3397
    %v3919 = vpop.f32.mrb[0].mxu0
    %v3920 = vadd.f32 0.0, %v3919
    %v3921 = vpop.f32.mrb[0].mxu0
    %3922 = vdwg.mxu0
    %v3924 = vsel %vm107, %v3809, 0
    %3926 = vmatprep.subr.mxu0 0.0
    %3927 = vmatpush1.msra.mxu0 %v3805
    %3928 = vmatprep.subr.mxu0 0.0
    %3929 = vmatpush1.msra.mxu0 %v3806
    %3930 = vmatprep.subr.mxu0 0.0
    %3931 = vmatpush1.msra.mxu0 %v3807
    %3932 = vmatprep.subr.mxu0 0.0
    %3933 = vmatpush1.msra.mxu0 %v3808
    %3934 = vmatprep.subr.mxu0 0.0
    %3935 = vmatpush1.msra.mxu0 %v3924
    %3936 = vmatprep.subr.mxu0 0.0
    %3937 = vmatpush1.msra.mxu0 0.0
    %3938 = vmatprep.subr.mxu0 0.0
    %3939 = vmatpush1.msra.mxu0 0.0
    %3940 = vmatprep.subr.mxu0 0.0
    %3941 = vmatpush1.msra.mxu0 0.0
    %3942 = vmatprep.subr.mxu0 0.0
    %3943 = vmatpush1.msra.mxu0 0.0
    %3944 = vmatprep.subr.mxu0 0.0
    %3945 = vmatpush1.msra.mxu0 0.0
    %3946 = vmatprep.subr.mxu0 0.0
    %3947 = vmatpush1.msra.mxu0 0.0
    %3948 = vmatprep.subr.mxu0 0.0
    %3949 = vmatpush1.msra.mxu0 0.0
    %3950 = vmatprep.subr.mxu0 0.0
    %3951 = vmatpush1.msra.mxu0 0.0
    %3952 = vmatprep.subr.mxu0 0.0
    %3953 = vmatpush1.msra.mxu0 0.0
    %3954 = vmatprep.subr.mxu0 0.0
    %3955 = vmatpush1.msra.mxu0 0.0
    %3956 = vmatprep.subr.mxu0 0.0
    %3957 = vmatpush1.msra.mxu0 0.0
    %3958 = vmatprep.subr.mxu0 0.0
    %3959 = vmatpush1.msra.mxu0 0.0
    %3960 = vmatprep.subr.mxu0 0.0
    %3961 = vmatpush1.msra.mxu0 0.0
    %3962 = vmatprep.subr.mxu0 0.0
    %3963 = vmatpush1.msra.mxu0 0.0
    %3964 = vmatprep.subr.mxu0 0.0
    %3965 = vmatpush1.msra.mxu0 0.0
    %3966 = vmatprep.subr.mxu0 0.0
    %3967 = vmatpush1.msra.mxu0 0.0
    %3968 = vmatprep.subr.mxu0 0.0
    %3969 = vmatpush1.msra.mxu0 0.0
    %3970 = vmatprep.subr.mxu0 0.0
    %3971 = vmatpush1.msra.mxu0 0.0
    %3972 = vmatprep.subr.mxu0 0.0
    %3973 = vmatpush1.msra.mxu0 0.0
    %3974 = vmatprep.subr.mxu0 0.0
    %3975 = vmatpush1.msra.mxu0 0.0
    %3976 = vmatprep.subr.mxu0 0.0
    %3977 = vmatpush1.msra.mxu0 0.0
    %3978 = vmatprep.subr.mxu0 0.0
    %3979 = vmatpush1.msra.mxu0 0.0
    %3980 = vmatprep.subr.mxu0 0.0
    %3981 = vmatpush1.msra.mxu0 0.0
    %3982 = vmatprep.subr.mxu0 0.0
    %3983 = vmatpush1.msra.mxu0 0.0
    %3984 = vmatprep.subr.mxu0 0.0
    %3985 = vmatpush1.msra.mxu0 0.0
    %3986 = vmatprep.subr.mxu0 0.0
    %3987 = vmatpush1.msra.mxu0 0.0
    %3988 = vmatprep.subr.mxu0 0.0
    %3989 = vmatpush1.msra.mxu0 0.0
    %3990 = vmatprep.mubr.f32.mxu0 0.0
    %3991 = vmatmul.mubr.f32.gmra.mrb[0].mxu0 %v3507
    %v3992 = vpop.f32.mrb[0].mxu0
    %v3993 = vadd.f32 %v3885, %v3992
    %v3994 = vpop.f32.mrb[0].mxu0
    %3995 = vmatprep.mubr.f32.mxu0 0.0
    %3996 = vmatmul.mubr.f32.gmra.mrb[0].mxu0 %v3509
    %v3997 = vpop.f32.mrb[0].mxu0
    %v3998 = vadd.f32 %v3890, %v3997
    %v3999 = vpop.f32.mrb[0].mxu0
    %4000 = vmatprep.mubr.f32.mxu0 0.0
    %4001 = vmatmul.mubr.f32.gmra.mrb[0].mxu0 %v3511
    %v4002 = vpop.f32.mrb[0].mxu0
    %v4003 = vadd.f32 %v3895, %v4002
    %v4004 = vpop.f32.mrb[0].mxu0
    %4005 = vmatprep.mubr.f32.mxu0 0.0
    %4006 = vmatmul.mubr.f32.gmra.mrb[0].mxu0 %v3513
    %v4007 = vpop.f32.mrb[0].mxu0
    %v4008 = vadd.f32 %v3900, %v4007
    %v4009 = vpop.f32.mrb[0].mxu0
    %4010 = vmatprep.mubr.f32.mxu0 0.0
    %4011 = vmatmul.mubr.f32.gmra.mrb[0].mxu0 %v3515
    %v4012 = vpop.f32.mrb[0].mxu0
    %v4013 = vadd.f32 %v3905, %v4012
    %v4014 = vpop.f32.mrb[0].mxu0
    %4015 = vmatprep.mubr.f32.mxu0 0.0
    %4016 = vmatmul.mubr.f32.gmra.mrb[0].mxu0 %v3517
    %v4017 = vpop.f32.mrb[0].mxu0
    %v4018 = vadd.f32 %v3910, %v4017
    %v4019 = vpop.f32.mrb[0].mxu0
    %4020 = vmatprep.mubr.f32.mxu0 0.0
    %4021 = vmatmul.mubr.f32.gmra.mrb[0].mxu0 %v3519
    %v4022 = vpop.f32.mrb[0].mxu0
    %v4023 = vadd.f32 %v3915, %v4022
    %v4024 = vpop.f32.mrb[0].mxu0
    %4025 = vmatprep.mubr.f32.mxu0 0.0
    %4026 = vmatmul.mubr.f32.gmra.mrb[0].mxu0 %v3521
    %v4027 = vpop.f32.mrb[0].mxu0
    %v4028 = vadd.f32 %v3920, %v4027
    %v4029 = vpop.f32.mrb[0].mxu0
    %4030 = vdwg.mxu0
    %v4031 = vld [vmem:[%s744] sm:$0xff]
    %v4032 = vld [vmem:[%s744 + $0x8] sm:$0xff]
    %v4033 = vld [vmem:[%s744 + $0x10] sm:$0xff]
    %v4034 = vld [vmem:[%s744 + $0x18] sm:$0xff]
    %v4035 = vld [vmem:[%s744 + $0x20] sm:$0xf]
    %v4037 = vsel %vm107, %v4035, 0
    %4039 = vmatprep.subr.mxu0 0.0
    %4040 = vmatpush1.msra.mxu0 %v4031
    %4041 = vmatprep.subr.mxu0 0.0
    %4042 = vmatpush1.msra.mxu0 %v4032
    %4043 = vmatprep.subr.mxu0 0.0
    %4044 = vmatpush1.msra.mxu0 %v4033
    %4045 = vmatprep.subr.mxu0 0.0
    %4046 = vmatpush1.msra.mxu0 %v4034
    %4047 = vmatprep.subr.mxu0 0.0
    %4048 = vmatpush1.msra.mxu0 %v4037
    %4049 = vmatprep.subr.mxu0 0.0
    %4050 = vmatpush1.msra.mxu0 0.0
    %4051 = vmatprep.subr.mxu0 0.0
    %4052 = vmatpush1.msra.mxu0 0.0
    %4053 = vmatprep.subr.mxu0 0.0
    %4054 = vmatpush1.msra.mxu0 0.0
    %4055 = vmatprep.subr.mxu0 0.0
    %4056 = vmatpush1.msra.mxu0 0.0
    %4057 = vmatprep.subr.mxu0 0.0
    %4058 = vmatpush1.msra.mxu0 0.0
    %4059 = vmatprep.subr.mxu0 0.0
    %4060 = vmatpush1.msra.mxu0 0.0
    %4061 = vmatprep.subr.mxu0 0.0
    %4062 = vmatpush1.msra.mxu0 0.0
    %4063 = vmatprep.subr.mxu0 0.0
    %4064 = vmatpush1.msra.mxu0 0.0
    %4065 = vmatprep.subr.mxu0 0.0
    %4066 = vmatpush1.msra.mxu0 0.0
    %4067 = vmatprep.subr.mxu0 0.0
    %4068 = vmatpush1.msra.mxu0 0.0
    %4069 = vmatprep.subr.mxu0 0.0
    %4070 = vmatpush1.msra.mxu0 0.0
    %4071 = vmatprep.subr.mxu0 0.0
    %4072 = vmatpush1.msra.mxu0 0.0
    %4073 = vmatprep.subr.mxu0 0.0
    %4074 = vmatpush1.msra.mxu0 0.0
    %4075 = vmatprep.subr.mxu0 0.0
    %4076 = vmatpush1.msra.mxu0 0.0
    %4077 = vmatprep.subr.mxu0 0.0
    %4078 = vmatpush1.msra.mxu0 0.0
    %4079 = vmatprep.subr.mxu0 0.0
    %4080 = vmatpush1.msra.mxu0 0.0
    %4081 = vmatprep.subr.mxu0 0.0
    %4082 = vmatpush1.msra.mxu0 0.0
    %4083 = vmatprep.subr.mxu0 0.0
    %4084 = vmatpush1.msra.mxu0 0.0
    %4085 = vmatprep.subr.mxu0 0.0
    %4086 = vmatpush1.msra.mxu0 0.0
    %4087 = vmatprep.subr.mxu0 0.0
    %4088 = vmatpush1.msra.mxu0 0.0
    %4089 = vmatprep.subr.mxu0 0.0
    %4090 = vmatpush1.msra.mxu0 0.0
    %4091 = vmatprep.subr.mxu0 0.0
    %4092 = vmatpush1.msra.mxu0 0.0
    %4093 = vmatprep.subr.mxu0 0.0
    %4094 = vmatpush1.msra.mxu0 0.0
    %4095 = vmatprep.subr.mxu0 0.0
    %4096 = vmatpush1.msra.mxu0 0.0
    %4097 = vmatprep.subr.mxu0 0.0
    %4098 = vmatpush1.msra.mxu0 0.0
    %4099 = vmatprep.subr.mxu0 0.0
    %4100 = vmatpush1.msra.mxu0 0.0
    %4101 = vmatprep.subr.mxu0 0.0
    %4102 = vmatpush1.msra.mxu0 0.0
    %4103 = vmatprep.mubr.f32.mxu0 0.0
    %4104 = vmatmul.mubr.f32.gmra.mrb[0].mxu0 %v3651
    %v4105 = vpop.f32.mrb[0].mxu0
    %v4106 = vadd.f32 0.0, %v4105
    %v4107 = vpop.f32.mrb[0].mxu0
    %4108 = vmatprep.mubr.f32.mxu0 0.0
    %4109 = vmatmul.mubr.f32.gmra.mrb[0].mxu0 %v3653
    %v4110 = vpop.f32.mrb[0].mxu0
    %v4111 = vadd.f32 0.0, %v4110
    %v4112 = vpop.f32.mrb[0].mxu0
    %4113 = vmatprep.mubr.f32.mxu0 0.0
    %4114 = vmatmul.mubr.f32.gmra.mrb[0].mxu0 %v3655
    %v4115 = vpop.f32.mrb[0].mxu0
    %v4116 = vadd.f32 0.0, %v4115
    %v4117 = vpop.f32.mrb[0].mxu0
    %4118 = vmatprep.mubr.f32.mxu0 0.0
    %4119 = vmatmul.mubr.f32.gmra.mrb[0].mxu0 %v3657
    %v4120 = vpop.f32.mrb[0].mxu0
    %v4121 = vadd.f32 0.0, %v4120
    %v4122 = vpop.f32.mrb[0].mxu0
    %4123 = vmatprep.mubr.f32.mxu0 0.0
    %4124 = vmatmul.mubr.f32.gmra.mrb[0].mxu0 %v3659
    %v4125 = vpop.f32.mrb[0].mxu0
    %v4126 = vadd.f32 0.0, %v4125
    %v4127 = vpop.f32.mrb[0].mxu0
    %4128 = vmatprep.mubr.f32.mxu0 0.0
    %4129 = vmatmul.mubr.f32.gmra.mrb[0].mxu0 %v3661
    %v4130 = vpop.f32.mrb[0].mxu0
    %v4131 = vadd.f32 0.0, %v4130
    %v4132 = vpop.f32.mrb[0].mxu0
    %4133 = vmatprep.mubr.f32.mxu0 0.0
    %4134 = vmatmul.mubr.f32.gmra.mrb[0].mxu0 %v3663
    %v4135 = vpop.f32.mrb[0].mxu0
    %v4136 = vadd.f32 0.0, %v4135
    %v4137 = vpop.f32.mrb[0].mxu0
    %4138 = vmatprep.mubr.f32.mxu0 0.0
    %4139 = vmatmul.mubr.f32.gmra.mrb[0].mxu0 %v3665
    %v4140 = vpop.f32.mrb[0].mxu0
    %v4141 = vadd.f32 0.0, %v4140
    %v4142 = vpop.f32.mrb[0].mxu0
    %4143 = vdwg.mxu0
    %v4144 = vadd.f32 %v3993, %v4106
    %v4145 = vadd.f32 %v3998, %v4111
    %v4146 = vadd.f32 %v4003, %v4116
    %v4147 = vadd.f32 %v4008, %v4121
    %v4148 = vadd.f32 %v4013, %v4126
    %v4149 = vadd.f32 %v4018, %v4131
    %v4150 = vadd.f32 %v4023, %v4136
    %v4151 = vadd.f32 %v4028, %v4141
    %v4152 = vadd.f32 %v4144, %v3787
    %v4153 = vadd.f32 %v4145, %v3787
    %v4154 = vadd.f32 %v4146, %v3787
    %v4155 = vadd.f32 %v4147, %v3787
    %v4156 = vadd.f32 %v4148, %v3787
    %v4157 = vadd.f32 %v4149, %v3787
    %v4158 = vadd.f32 %v4150, %v3787
    %v4159 = vadd.f32 %v4151, %v3787
    %v4160 = vmax.f32 %v4152, 0.0
    %v4161 = vmax.f32 %v4153, 0.0
    %v4162 = vmax.f32 %v4154, 0.0
    %v4163 = vmax.f32 %v4155, 0.0
    %v4164 = vmax.f32 %v4156, 0.0
    %v4165 = vmax.f32 %v4157, 0.0
    %v4166 = vmax.f32 %v4158, 0.0
    %v4167 = vmax.f32 %v4159, 0.0
    %v4168 = vmax.f32 %v3797, %v4160
    %v4169 = vmax.f32 %v3798, %v4161
    %v4170 = vmax.f32 %v3799, %v4162
    %v4171 = vmax.f32 %v3800, %v4163
    %v4172 = vmax.f32 %v3801, %v4164
    %v4173 = vmax.f32 %v3802, %v4165
    %v4174 = vmax.f32 %v3803, %v4166
    %v4175 = vmax.f32 %v3804, %v4167
    %v4176 = vld [vmem:[%s890] sm:$0xff]
    %v4177 = vld [vmem:[%s890 + $0x8] sm:$0xff]
    %v4178 = vld [vmem:[%s890 + $0x10] sm:$0xff]
    %v4179 = vld [vmem:[%s890 + $0x18] sm:$0xff]
    %v4180 = vld [vmem:[%s890 + $0x20] sm:$0xf]
    %v4181 = vld [vmem:[%s896] sm:$0xff]
    %v4182 = vld [vmem:[%s896 + $0x8] sm:$0xff]
    %v4183 = vld [vmem:[%s896 + $0x10] sm:$0xff]
    %v4184 = vld [vmem:[%s896 + $0x18] sm:$0xff]
    %v4185 = vld [vmem:[%s896 + $0x20] sm:$0xf]
    %v4187 = vsel %vm107, %v4185, 0
    %4189 = vmatprep.subr.mxu0 0.0
    %4190 = vmatpush1.msra.mxu0 %v4181
    %4191 = vmatprep.subr.mxu0 0.0
    %4192 = vmatpush1.msra.mxu0 %v4182
    %4193 = vmatprep.subr.mxu0 0.0
    %4194 = vmatpush1.msra.mxu0 %v4183
    %4195 = vmatprep.subr.mxu0 0.0
    %4196 = vmatpush1.msra.mxu0 %v4184
    %4197 = vmatprep.subr.mxu0 0.0
    %4198 = vmatpush1.msra.mxu0 %v4187
    %4199 = vmatprep.subr.mxu0 0.0
    %4200 = vmatpush1.msra.mxu0 0.0
    %4201 = vmatprep.subr.mxu0 0.0
    %4202 = vmatpush1.msra.mxu0 0.0
    %4203 = vmatprep.subr.mxu0 0.0
    %4204 = vmatpush1.msra.mxu0 0.0
    %4205 = vmatprep.subr.mxu0 0.0
    %4206 = vmatpush1.msra.mxu0 0.0
    %4207 = vmatprep.subr.mxu0 0.0
    %4208 = vmatpush1.msra.mxu0 0.0
    %4209 = vmatprep.subr.mxu0 0.0
    %4210 = vmatpush1.msra.mxu0 0.0
    %4211 = vmatprep.subr.mxu0 0.0
    %4212 = vmatpush1.msra.mxu0 0.0
    %4213 = vmatprep.subr.mxu0 0.0
    %4214 = vmatpush1.msra.mxu0 0.0
    %4215 = vmatprep.subr.mxu0 0.0
    %4216 = vmatpush1.msra.mxu0 0.0
    %4217 = vmatprep.subr.mxu0 0.0
    %4218 = vmatpush1.msra.mxu0 0.0
    %4219 = vmatprep.subr.mxu0 0.0
    %4220 = vmatpush1.msra.mxu0 0.0
    %4221 = vmatprep.subr.mxu0 0.0
    %4222 = vmatpush1.msra.mxu0 0.0
    %4223 = vmatprep.subr.mxu0 0.0
    %4224 = vmatpush1.msra.mxu0 0.0
    %4225 = vmatprep.subr.mxu0 0.0
    %4226 = vmatpush1.msra.mxu0 0.0
    %4227 = vmatprep.subr.mxu0 0.0
    %4228 = vmatpush1.msra.mxu0 0.0
    %4229 = vmatprep.subr.mxu0 0.0
    %4230 = vmatpush1.msra.mxu0 0.0
    %4231 = vmatprep.subr.mxu0 0.0
    %4232 = vmatpush1.msra.mxu0 0.0
    %4233 = vmatprep.subr.mxu0 0.0
    %4234 = vmatpush1.msra.mxu0 0.0
    %4235 = vmatprep.subr.mxu0 0.0
    %4236 = vmatpush1.msra.mxu0 0.0
    %4237 = vmatprep.subr.mxu0 0.0
    %4238 = vmatpush1.msra.mxu0 0.0
    %4239 = vmatprep.subr.mxu0 0.0
    %4240 = vmatpush1.msra.mxu0 0.0
    %4241 = vmatprep.subr.mxu0 0.0
    %4242 = vmatpush1.msra.mxu0 0.0
    %4243 = vmatprep.subr.mxu0 0.0
    %4244 = vmatpush1.msra.mxu0 0.0
    %4245 = vmatprep.subr.mxu0 0.0
    %4246 = vmatpush1.msra.mxu0 0.0
    %4247 = vmatprep.subr.mxu0 0.0
    %4248 = vmatpush1.msra.mxu0 0.0
    %4249 = vmatprep.subr.mxu0 0.0
    %4250 = vmatpush1.msra.mxu0 0.0
    %4251 = vmatprep.subr.mxu0 0.0
    %4252 = vmatpush1.msra.mxu0 0.0
    %4253 = vmatprep.mubr.f32.mxu0 0.0
    %4254 = vmatmul.mubr.f32.gmra.mrb[0].mxu0 %v3383
    %v4255 = vpop.f32.mrb[0].mxu0
    %v4256 = vadd.f32 0.0, %v4255
    %v4257 = vpop.f32.mrb[0].mxu0
    %4258 = vmatprep.mubr.f32.mxu0 0.0
    %4259 = vmatmul.mubr.f32.gmra.mrb[0].mxu0 %v3385
    %v4260 = vpop.f32.mrb[0].mxu0
    %v4261 = vadd.f32 0.0, %v4260
    %v4262 = vpop.f32.mrb[0].mxu0
    %4263 = vmatprep.mubr.f32.mxu0 0.0
    %4264 = vmatmul.mubr.f32.gmra.mrb[0].mxu0 %v3387
    %v4265 = vpop.f32.mrb[0].mxu0
    %v4266 = vadd.f32 0.0, %v4265
    %v4267 = vpop.f32.mrb[0].mxu0
    %4268 = vmatprep.mubr.f32.mxu0 0.0
    %4269 = vmatmul.mubr.f32.gmra.mrb[0].mxu0 %v3389
    %v4270 = vpop.f32.mrb[0].mxu0
    %v4271 = vadd.f32 0.0, %v4270
    %v4272 = vpop.f32.mrb[0].mxu0
    %4273 = vmatprep.mubr.f32.mxu0 0.0
    %4274 = vmatmul.mubr.f32.gmra.mrb[0].mxu0 %v3391
    %v4275 = vpop.f32.mrb[0].mxu0
    %v4276 = vadd.f32 0.0, %v4275
    %v4277 = vpop.f32.mrb[0].mxu0
    %4278 = vmatprep.mubr.f32.mxu0 0.0
    %4279 = vmatmul.mubr.f32.gmra.mrb[0].mxu0 %v3393
    %v4280 = vpop.f32.mrb[0].mxu0
    %v4281 = vadd.f32 0.0, %v4280
    %v4282 = vpop.f32.mrb[0].mxu0
    %4283 = vmatprep.mubr.f32.mxu0 0.0
    %4284 = vmatmul.mubr.f32.gmra.mrb[0].mxu0 %v3395
    %v4285 = vpop.f32.mrb[0].mxu0
    %v4286 = vadd.f32 0.0, %v4285
    %v4287 = vpop.f32.mrb[0].mxu0
    %4288 = vmatprep.mubr.f32.mxu0 0.0
    %4289 = vmatmul.mubr.f32.gmra.mrb[0].mxu0 %v3397
    %v4290 = vpop.f32.mrb[0].mxu0
    %v4291 = vadd.f32 0.0, %v4290
    %v4292 = vpop.f32.mrb[0].mxu0
    %4293 = vdwg.mxu0
    %v4295 = vsel %vm107, %v4180, 0
    %4297 = vmatprep.subr.mxu0 0.0
    %4298 = vmatpush1.msra.mxu0 %v4176
    %4299 = vmatprep.subr.mxu0 0.0
    %4300 = vmatpush1.msra.mxu0 %v4177
    %4301 = vmatprep.subr.mxu0 0.0
    %4302 = vmatpush1.msra.mxu0 %v4178
    %4303 = vmatprep.subr.mxu0 0.0
    %4304 = vmatpush1.msra.mxu0 %v4179
    %4305 = vmatprep.subr.mxu0 0.0
    %4306 = vmatpush1.msra.mxu0 %v4295
    %4307 = vmatprep.subr.mxu0 0.0
    %4308 = vmatpush1.msra.mxu0 0.0
    %4309 = vmatprep.subr.mxu0 0.0
    %4310 = vmatpush1.msra.mxu0 0.0
    %4311 = vmatprep.subr.mxu0 0.0
    %4312 = vmatpush1.msra.mxu0 0.0
    %4313 = vmatprep.subr.mxu0 0.0
    %4314 = vmatpush1.msra.mxu0 0.0
    %4315 = vmatprep.subr.mxu0 0.0
    %4316 = vmatpush1.msra.mxu0 0.0
    %4317 = vmatprep.subr.mxu0 0.0
    %4318 = vmatpush1.msra.mxu0 0.0
    %4319 = vmatprep.subr.mxu0 0.0
    %4320 = vmatpush1.msra.mxu0 0.0
    %4321 = vmatprep.subr.mxu0 0.0
    %4322 = vmatpush1.msra.mxu0 0.0
    %4323 = vmatprep.subr.mxu0 0.0
    %4324 = vmatpush1.msra.mxu0 0.0
    %4325 = vmatprep.subr.mxu0 0.0
    %4326 = vmatpush1.msra.mxu0 0.0
    %4327 = vmatprep.subr.mxu0 0.0
    %4328 = vmatpush1.msra.mxu0 0.0
    %4329 = vmatprep.subr.mxu0 0.0
    %4330 = vmatpush1.msra.mxu0 0.0
    %4331 = vmatprep.subr.mxu0 0.0
    %4332 = vmatpush1.msra.mxu0 0.0
    %4333 = vmatprep.subr.mxu0 0.0
    %4334 = vmatpush1.msra.mxu0 0.0
    %4335 = vmatprep.subr.mxu0 0.0
    %4336 = vmatpush1.msra.mxu0 0.0
    %4337 = vmatprep.subr.mxu0 0.0
    %4338 = vmatpush1.msra.mxu0 0.0
    %4339 = vmatprep.subr.mxu0 0.0
    %4340 = vmatpush1.msra.mxu0 0.0
    %4341 = vmatprep.subr.mxu0 0.0
    %4342 = vmatpush1.msra.mxu0 0.0
    %4343 = vmatprep.subr.mxu0 0.0
    %4344 = vmatpush1.msra.mxu0 0.0
    %4345 = vmatprep.subr.mxu0 0.0
    %4346 = vmatpush1.msra.mxu0 0.0
    %4347 = vmatprep.subr.mxu0 0.0
    %4348 = vmatpush1.msra.mxu0 0.0
    %4349 = vmatprep.subr.mxu0 0.0
    %4350 = vmatpush1.msra.mxu0 0.0
    %4351 = vmatprep.subr.mxu0 0.0
    %4352 = vmatpush1.msra.mxu0 0.0
    %4353 = vmatprep.subr.mxu0 0.0
    %4354 = vmatpush1.msra.mxu0 0.0
    %4355 = vmatprep.subr.mxu0 0.0
    %4356 = vmatpush1.msra.mxu0 0.0
    %4357 = vmatprep.subr.mxu0 0.0
    %4358 = vmatpush1.msra.mxu0 0.0
    %4359 = vmatprep.subr.mxu0 0.0
    %4360 = vmatpush1.msra.mxu0 0.0
    %4361 = vmatprep.mubr.f32.mxu0 0.0
    %4362 = vmatmul.mubr.f32.gmra.mrb[0].mxu0 %v3507
    %v4363 = vpop.f32.mrb[0].mxu0
    %v4364 = vadd.f32 %v4256, %v4363
    %v4365 = vpop.f32.mrb[0].mxu0
    %4366 = vmatprep.mubr.f32.mxu0 0.0
    %4367 = vmatmul.mubr.f32.gmra.mrb[0].mxu0 %v3509
    %v4368 = vpop.f32.mrb[0].mxu0
    %v4369 = vadd.f32 %v4261, %v4368
    %v4370 = vpop.f32.mrb[0].mxu0
    %4371 = vmatprep.mubr.f32.mxu0 0.0
    %4372 = vmatmul.mubr.f32.gmra.mrb[0].mxu0 %v3511
    %v4373 = vpop.f32.mrb[0].mxu0
    %v4374 = vadd.f32 %v4266, %v4373
    %v4375 = vpop.f32.mrb[0].mxu0
    %4376 = vmatprep.mubr.f32.mxu0 0.0
    %4377 = vmatmul.mubr.f32.gmra.mrb[0].mxu0 %v3513
    %v4378 = vpop.f32.mrb[0].mxu0
    %v4379 = vadd.f32 %v4271, %v4378
    %v4380 = vpop.f32.mrb[0].mxu0
    %4381 = vmatprep.mubr.f32.mxu0 0.0
    %4382 = vmatmul.mubr.f32.gmra.mrb[0].mxu0 %v3515
    %v4383 = vpop.f32.mrb[0].mxu0
    %v4384 = vadd.f32 %v4276, %v4383
    %v4385 = vpop.f32.mrb[0].mxu0
    %4386 = vmatprep.mubr.f32.mxu0 0.0
    %4387 = vmatmul.mubr.f32.gmra.mrb[0].mxu0 %v3517
    %v4388 = vpop.f32.mrb[0].mxu0
    %v4389 = vadd.f32 %v4281, %v4388
    %v4390 = vpop.f32.mrb[0].mxu0
    %4391 = vmatprep.mubr.f32.mxu0 0.0
    %4392 = vmatmul.mubr.f32.gmra.mrb[0].mxu0 %v3519
    %v4393 = vpop.f32.mrb[0].mxu0
    %v4394 = vadd.f32 %v4286, %v4393
    %v4395 = vpop.f32.mrb[0].mxu0
    %4396 = vmatprep.mubr.f32.mxu0 0.0
    %4397 = vmatmul.mubr.f32.gmra.mrb[0].mxu0 %v3521
    %v4398 = vpop.f32.mrb[0].mxu0
    %v4399 = vadd.f32 %v4291, %v4398
    %v4400 = vpop.f32.mrb[0].mxu0
    %4401 = vdwg.mxu0
    %v4402 = vld [vmem:[%s1118] sm:$0xff]
    %v4403 = vld [vmem:[%s1118 + $0x8] sm:$0xff]
    %v4404 = vld [vmem:[%s1118 + $0x10] sm:$0xff]
    %v4405 = vld [vmem:[%s1118 + $0x18] sm:$0xff]
    %v4406 = vld [vmem:[%s1118 + $0x20] sm:$0xf]
    %v4408 = vsel %vm107, %v4406, 0
    %4410 = vmatprep.subr.mxu0 0.0
    %4411 = vmatpush1.msra.mxu0 %v4402
    %4412 = vmatprep.subr.mxu0 0.0
    %4413 = vmatpush1.msra.mxu0 %v4403
    %4414 = vmatprep.subr.mxu0 0.0
    %4415 = vmatpush1.msra.mxu0 %v4404
    %4416 = vmatprep.subr.mxu0 0.0
    %4417 = vmatpush1.msra.mxu0 %v4405
    %4418 = vmatprep.subr.mxu0 0.0
    %4419 = vmatpush1.msra.mxu0 %v4408
    %4420 = vmatprep.subr.mxu0 0.0
    %4421 = vmatpush1.msra.mxu0 0.0
    %4422 = vmatprep.subr.mxu0 0.0
    %4423 = vmatpush1.msra.mxu0 0.0
    %4424 = vmatprep.subr.mxu0 0.0
    %4425 = vmatpush1.msra.mxu0 0.0
    %4426 = vmatprep.subr.mxu0 0.0
    %4427 = vmatpush1.msra.mxu0 0.0
    %4428 = vmatprep.subr.mxu0 0.0
    %4429 = vmatpush1.msra.mxu0 0.0
    %4430 = vmatprep.subr.mxu0 0.0
    %4431 = vmatpush1.msra.mxu0 0.0
    %4432 = vmatprep.subr.mxu0 0.0
    %4433 = vmatpush1.msra.mxu0 0.0
    %4434 = vmatprep.subr.mxu0 0.0
    %4435 = vmatpush1.msra.mxu0 0.0
    %4436 = vmatprep.subr.mxu0 0.0
    %4437 = vmatpush1.msra.mxu0 0.0
    %4438 = vmatprep.subr.mxu0 0.0
    %4439 = vmatpush1.msra.mxu0 0.0
    %4440 = vmatprep.subr.mxu0 0.0
    %4441 = vmatpush1.msra.mxu0 0.0
    %4442 = vmatprep.subr.mxu0 0.0
    %4443 = vmatpush1.msra.mxu0 0.0
    %4444 = vmatprep.subr.mxu0 0.0
    %4445 = vmatpush1.msra.mxu0 0.0
    %4446 = vmatprep.subr.mxu0 0.0
    %4447 = vmatpush1.msra.mxu0 0.0
    %4448 = vmatprep.subr.mxu0 0.0
    %4449 = vmatpush1.msra.mxu0 0.0
    %4450 = vmatprep.subr.mxu0 0.0
    %4451 = vmatpush1.msra.mxu0 0.0
    %4452 = vmatprep.subr.mxu0 0.0
    %4453 = vmatpush1.msra.mxu0 0.0
    %4454 = vmatprep.subr.mxu0 0.0
    %4455 = vmatpush1.msra.mxu0 0.0
    %4456 = vmatprep.subr.mxu0 0.0
    %4457 = vmatpush1.msra.mxu0 0.0
    %4458 = vmatprep.subr.mxu0 0.0
    %4459 = vmatpush1.msra.mxu0 0.0
    %4460 = vmatprep.subr.mxu0 0.0
    %4461 = vmatpush1.msra.mxu0 0.0
    %4462 = vmatprep.subr.mxu0 0.0
    %4463 = vmatpush1.msra.mxu0 0.0
    %4464 = vmatprep.subr.mxu0 0.0
    %4465 = vmatpush1.msra.mxu0 0.0
    %4466 = vmatprep.subr.mxu0 0.0
    %4467 = vmatpush1.msra.mxu0 0.0
    %4468 = vmatprep.subr.mxu0 0.0
    %4469 = vmatpush1.msra.mxu0 0.0
    %4470 = vmatprep.subr.mxu0 0.0
    %4471 = vmatpush1.msra.mxu0 0.0
    %4472 = vmatprep.subr.mxu0 0.0
    %4473 = vmatpush1.msra.mxu0 0.0
    %4474 = vmatprep.mubr.f32.mxu0 0.0
    %4475 = vmatmul.mubr.f32.gmra.mrb[0].mxu0 %v3651
    %v4476 = vpop.f32.mrb[0].mxu0
    %v4477 = vadd.f32 0.0, %v4476
    %v4478 = vpop.f32.mrb[0].mxu0
    %4479 = vmatprep.mubr.f32.mxu0 0.0
    %4480 = vmatmul.mubr.f32.gmra.mrb[0].mxu0 %v3653
    %v4481 = vpop.f32.mrb[0].mxu0
    %v4482 = vadd.f32 0.0, %v4481
    %v4483 = vpop.f32.mrb[0].mxu0
    %4484 = vmatprep.mubr.f32.mxu0 0.0
    %4485 = vmatmul.mubr.f32.gmra.mrb[0].mxu0 %v3655
    %v4486 = vpop.f32.mrb[0].mxu0
    %v4487 = vadd.f32 0.0, %v4486
    %v4488 = vpop.f32.mrb[0].mxu0
    %4489 = vmatprep.mubr.f32.mxu0 0.0
    %4490 = vmatmul.mubr.f32.gmra.mrb[0].mxu0 %v3657
    %v4491 = vpop.f32.mrb[0].mxu0
    %v4492 = vadd.f32 0.0, %v4491
    %v4493 = vpop.f32.mrb[0].mxu0
    %4494 = vmatprep.mubr.f32.mxu0 0.0
    %4495 = vmatmul.mubr.f32.gmra.mrb[0].mxu0 %v3659
    %v4496 = vpop.f32.mrb[0].mxu0
    %v4497 = vadd.f32 0.0, %v4496
    %v4498 = vpop.f32.mrb[0].mxu0
    %4499 = vmatprep.mubr.f32.mxu0 0.0
    %4500 = vmatmul.mubr.f32.gmra.mrb[0].mxu0 %v3661
    %v4501 = vpop.f32.mrb[0].mxu0
    %v4502 = vadd.f32 0.0, %v4501
    %v4503 = vpop.f32.mrb[0].mxu0
    %4504 = vmatprep.mubr.f32.mxu0 0.0
    %4505 = vmatmul.mubr.f32.gmra.mrb[0].mxu0 %v3663
    %v4506 = vpop.f32.mrb[0].mxu0
    %v4507 = vadd.f32 0.0, %v4506
    %v4508 = vpop.f32.mrb[0].mxu0
    %4509 = vmatprep.mubr.f32.mxu0 0.0
    %4510 = vmatmul.mubr.f32.gmra.mrb[0].mxu0 %v3665
    %v4511 = vpop.f32.mrb[0].mxu0
    %v4512 = vadd.f32 0.0, %v4511
    %v4513 = vpop.f32.mrb[0].mxu0
    %4514 = vdwg.mxu0
    %v4515 = vadd.f32 %v4364, %v4477
    %v4516 = vadd.f32 %v4369, %v4482
    %v4517 = vadd.f32 %v4374, %v4487
    %v4518 = vadd.f32 %v4379, %v4492
    %v4519 = vadd.f32 %v4384, %v4497
    %v4520 = vadd.f32 %v4389, %v4502
    %v4521 = vadd.f32 %v4394, %v4507
    %v4522 = vadd.f32 %v4399, %v4512
    %v4523 = vadd.f32 %v4515, %v3787
    %v4524 = vadd.f32 %v4516, %v3787
    %v4525 = vadd.f32 %v4517, %v3787
    %v4526 = vadd.f32 %v4518, %v3787
    %v4527 = vadd.f32 %v4519, %v3787
    %v4528 = vadd.f32 %v4520, %v3787
    %v4529 = vadd.f32 %v4521, %v3787
    %v4530 = vadd.f32 %v4522, %v3787
    %v4531 = vmax.f32 %v4523, 0.0
    %v4532 = vmax.f32 %v4524, 0.0
    %v4533 = vmax.f32 %v4525, 0.0
    %v4534 = vmax.f32 %v4526, 0.0
    %v4535 = vmax.f32 %v4527, 0.0
    %v4536 = vmax.f32 %v4528, 0.0
    %v4537 = vmax.f32 %v4529, 0.0
    %v4538 = vmax.f32 %v4530, 0.0
    %v4539 = vmax.f32 %v4168, %v4531
    %v4540 = vmax.f32 %v4169, %v4532
    %v4541 = vmax.f32 %v4170, %v4533
    %v4542 = vmax.f32 %v4171, %v4534
    %v4543 = vmax.f32 %v4172, %v4535
    %v4544 = vmax.f32 %v4173, %v4536
    %v4545 = vmax.f32 %v4174, %v4537
    %v4546 = vmax.f32 %v4175, %v4538
    %v4547 = vld [vmem:[%s4] sm:$0x1]
    %v4548 = vld [vmem:[%s3] sm:$0xff]
    %v4549 = vld [vmem:[%s3 + $0x8] sm:$0xff]
    %v4550 = vld [vmem:[%s3 + $0x10] sm:$0xff]
    %v4551 = vld [vmem:[%s3 + $0x18] sm:$0xff]
    %v4552 = vld [vmem:[%s3 + $0x20] sm:$0xff]
    %v4553 = vld [vmem:[%s3 + $0x28] sm:$0xff]
    %v4554 = vld [vmem:[%s3 + $0x30] sm:$0xff]
    %v4555 = vld [vmem:[%s3 + $0x38] sm:$0xff]
    %v4556 = vld [vmem:[%s3 + $0x40] sm:$0xff]
    %v4557 = vld [vmem:[%s3 + $0x48] sm:$0xff]
    %v4558 = vld [vmem:[%s3 + $0x50] sm:$0xff]
    %v4559 = vld [vmem:[%s1276] sm:$0xff]
    %v4560 = vld [vmem:[%s1276 + $0x8] sm:$0xff]
    %v4561 = vld [vmem:[%s1276 + $0x10] sm:$0xff]
    %v4562 = vld [vmem:[%s1276 + $0x18] sm:$0xff]
    %v4563 = vld [vmem:[%s1276 + $0x20] sm:$0xff]
    %v4564 = vld [vmem:[%s1276 + $0x28] sm:$0xff]
    %v4565 = vld [vmem:[%s1276 + $0x30] sm:$0xff]
    %v4566 = vld [vmem:[%s1276 + $0x38] sm:$0xff]
    %v4567 = vld [vmem:[%s1276 + $0x40] sm:$0xff]
    %v4568 = vld [vmem:[%s1276 + $0x48] sm:$0xff]
    %v4569 = vld [vmem:[%s1276 + $0x50] sm:$0xff]
    %v4578 = vrot.slane %v4539, 1
    %v4579 = vrot.slane %v4540, 1
    %v4580 = vsel %vm74, %v4578, %v4579
    %v4581 = vrot.slane %v4541, 1
    %v4582 = vsel %vm74, %v4579, %v4581
    %v4583 = vrot.slane %v4542, 1
    %v4584 = vsel %vm74, %v4581, %v4583
    %v4585 = vrot.slane %v4543, 1
    %v4586 = vsel %vm74, %v4583, %v4585
    %v4587 = vrot.slane %v4544, 1
    %v4588 = vsel %vm74, %v4585, %v4587
    %v4589 = vrot.slane %v4545, 1
    %v4590 = vsel %vm74, %v4587, %v4589
    %v4591 = vrot.slane %v4546, 1
    %v4592 = vsel %vm74, %v4589, %v4591
    %v4593 = vsel %vm1311, %v4580, 0
    %v4595 = vsel %vm1311, %v4582, 0
    %v4597 = vsel %vm1311, %v4584, 0
    %v4599 = vsel %vm1311, %v4586, 0
    %v4601 = vsel %vm1311, %v4588, 0
    %v4603 = vsel %vm1311, %v4590, 0
    %v4605 = vsel %vm1311, %v4592, 0
    %v4607 = vsel %vm1311, %v4591, 0
    %4609 = vmatprep.subr.mxu0 0.0
    %4610 = vmatpush1.msra.mxu0 %v4559
    %4611 = vmatprep.subr.mxu0 0.0
    %4612 = vmatpush1.msra.mxu0 %v4560
    %4613 = vmatprep.subr.mxu0 0.0
    %4614 = vmatpush1.msra.mxu0 %v4561
    %4615 = vmatprep.subr.mxu0 0.0
    %4616 = vmatpush1.msra.mxu0 %v4562
    %4617 = vmatprep.subr.mxu0 0.0
    %4618 = vmatpush1.msra.mxu0 %v4563
    %4619 = vmatprep.subr.mxu0 0.0
    %4620 = vmatpush1.msra.mxu0 %v4564
    %4621 = vmatprep.subr.mxu0 0.0
    %4622 = vmatpush1.msra.mxu0 %v4565
    %4623 = vmatprep.subr.mxu0 0.0
    %4624 = vmatpush1.msra.mxu0 %v4566
    %4625 = vmatprep.subr.mxu0 0.0
    %4626 = vmatpush1.msra.mxu0 %v4567
    %4627 = vmatprep.subr.mxu0 0.0
    %4628 = vmatpush1.msra.mxu0 %v4568
    %4629 = vmatprep.subr.mxu0 0.0
    %4630 = vmatpush1.msra.mxu0 %v4569
    %4631 = vmatprep.subr.mxu0 0.0
    %4632 = vmatpush1.msra.mxu0 0.0
    %4633 = vmatprep.subr.mxu0 0.0
    %4634 = vmatpush1.msra.mxu0 0.0
    %4635 = vmatprep.subr.mxu0 0.0
    %4636 = vmatpush1.msra.mxu0 0.0
    %4637 = vmatprep.subr.mxu0 0.0
    %4638 = vmatpush1.msra.mxu0 0.0
    %4639 = vmatprep.subr.mxu0 0.0
    %4640 = vmatpush1.msra.mxu0 0.0
    %4641 = vmatprep.subr.mxu0 0.0
    %4642 = vmatpush1.msra.mxu0 0.0
    %4643 = vmatprep.subr.mxu0 0.0
    %4644 = vmatpush1.msra.mxu0 0.0
    %4645 = vmatprep.subr.mxu0 0.0
    %4646 = vmatpush1.msra.mxu0 0.0
    %4647 = vmatprep.subr.mxu0 0.0
    %4648 = vmatpush1.msra.mxu0 0.0
    %4649 = vmatprep.subr.mxu0 0.0
    %4650 = vmatpush1.msra.mxu0 0.0
    %4651 = vmatprep.subr.mxu0 0.0
    %4652 = vmatpush1.msra.mxu0 0.0
    %4653 = vmatprep.subr.mxu0 0.0
    %4654 = vmatpush1.msra.mxu0 0.0
    %4655 = vmatprep.subr.mxu0 0.0
    %4656 = vmatpush1.msra.mxu0 0.0
    %4657 = vmatprep.subr.mxu0 0.0
    %4658 = vmatpush1.msra.mxu0 0.0
    %4659 = vmatprep.subr.mxu0 0.0
    %4660 = vmatpush1.msra.mxu0 0.0
    %4661 = vmatprep.subr.mxu0 0.0
    %4662 = vmatpush1.msra.mxu0 0.0
    %4663 = vmatprep.subr.mxu0 0.0
    %4664 = vmatpush1.msra.mxu0 0.0
    %4665 = vmatprep.subr.mxu0 0.0
    %4666 = vmatpush1.msra.mxu0 0.0
    %4667 = vmatprep.subr.mxu0 0.0
    %4668 = vmatpush1.msra.mxu0 0.0
    %4669 = vmatprep.subr.mxu0 0.0
    %4670 = vmatpush1.msra.mxu0 0.0
    %4671 = vmatprep.subr.mxu0 0.0
    %4672 = vmatpush1.msra.mxu0 0.0
    %4673 = vmatprep.mubr.f32.mxu0 0.0
    %4674 = vmatmul.mubr.f32.gmra.mrb[0].mxu0 %v4593
    %v4675 = vpop.f32.mrb[0].mxu0
    %v4676 = vadd.f32 0.0, %v4675
    %v4677 = vpop.f32.mrb[0].mxu0
    %4678 = vmatprep.mubr.f32.mxu0 0.0
    %4679 = vmatmul.mubr.f32.gmra.mrb[0].mxu0 %v4595
    %v4680 = vpop.f32.mrb[0].mxu0
    %v4681 = vadd.f32 0.0, %v4680
    %v4682 = vpop.f32.mrb[0].mxu0
    %4683 = vmatprep.mubr.f32.mxu0 0.0
    %4684 = vmatmul.mubr.f32.gmra.mrb[0].mxu0 %v4597
    %v4685 = vpop.f32.mrb[0].mxu0
    %v4686 = vadd.f32 0.0, %v4685
    %v4687 = vpop.f32.mrb[0].mxu0
    %4688 = vmatprep.mubr.f32.mxu0 0.0
    %4689 = vmatmul.mubr.f32.gmra.mrb[0].mxu0 %v4599
    %v4690 = vpop.f32.mrb[0].mxu0
    %v4691 = vadd.f32 0.0, %v4690
    %v4692 = vpop.f32.mrb[0].mxu0
    %4693 = vmatprep.mubr.f32.mxu0 0.0
    %4694 = vmatmul.mubr.f32.gmra.mrb[0].mxu0 %v4601
    %v4695 = vpop.f32.mrb[0].mxu0
    %v4696 = vadd.f32 0.0, %v4695
    %v4697 = vpop.f32.mrb[0].mxu0
    %4698 = vmatprep.mubr.f32.mxu0 0.0
    %4699 = vmatmul.mubr.f32.gmra.mrb[0].mxu0 %v4603
    %v4700 = vpop.f32.mrb[0].mxu0
    %v4701 = vadd.f32 0.0, %v4700
    %v4702 = vpop.f32.mrb[0].mxu0
    %4703 = vmatprep.mubr.f32.mxu0 0.0
    %4704 = vmatmul.mubr.f32.gmra.mrb[0].mxu0 %v4605
    %v4705 = vpop.f32.mrb[0].mxu0
    %v4706 = vadd.f32 0.0, %v4705
    %v4707 = vpop.f32.mrb[0].mxu0
    %4708 = vmatprep.mubr.f32.mxu0 0.0
    %4709 = vmatmul.mubr.f32.gmra.mrb[0].mxu0 %v4607
    %v4710 = vpop.f32.mrb[0].mxu0
    %v4711 = vadd.f32 0.0, %v4710
    %v4712 = vpop.f32.mrb[0].mxu0
    %4713 = vdwg.mxu0
    %v4714 = vsel %vm1311, %v4539, 0
    %v4716 = vsel %vm1311, %v4540, 0
    %v4718 = vsel %vm1311, %v4541, 0
    %v4720 = vsel %vm1311, %v4542, 0
    %v4722 = vsel %vm1311, %v4543, 0
    %v4724 = vsel %vm1311, %v4544, 0
    %v4726 = vsel %vm1311, %v4545, 0
    %v4728 = vsel %vm1311, %v4546, 0
    %4730 = vmatprep.subr.mxu0 0.0
    %4731 = vmatpush1.msra.mxu0 %v4548
    %4732 = vmatprep.subr.mxu0 0.0
    %4733 = vmatpush1.msra.mxu0 %v4549
    %4734 = vmatprep.subr.mxu0 0.0
    %4735 = vmatpush1.msra.mxu0 %v4550
    %4736 = vmatprep.subr.mxu0 0.0
    %4737 = vmatpush1.msra.mxu0 %v4551
    %4738 = vmatprep.subr.mxu0 0.0
    %4739 = vmatpush1.msra.mxu0 %v4552
    %4740 = vmatprep.subr.mxu0 0.0
    %4741 = vmatpush1.msra.mxu0 %v4553
    %4742 = vmatprep.subr.mxu0 0.0
    %4743 = vmatpush1.msra.mxu0 %v4554
    %4744 = vmatprep.subr.mxu0 0.0
    %4745 = vmatpush1.msra.mxu0 %v4555
    %4746 = vmatprep.subr.mxu0 0.0
    %4747 = vmatpush1.msra.mxu0 %v4556
    %4748 = vmatprep.subr.mxu0 0.0
    %4749 = vmatpush1.msra.mxu0 %v4557
    %4750 = vmatprep.subr.mxu0 0.0
    %4751 = vmatpush1.msra.mxu0 %v4558
    %4752 = vmatprep.subr.mxu0 0.0
    %4753 = vmatpush1.msra.mxu0 0.0
    %4754 = vmatprep.subr.mxu0 0.0
    %4755 = vmatpush1.msra.mxu0 0.0
    %4756 = vmatprep.subr.mxu0 0.0
    %4757 = vmatpush1.msra.mxu0 0.0
    %4758 = vmatprep.subr.mxu0 0.0
    %4759 = vmatpush1.msra.mxu0 0.0
    %4760 = vmatprep.subr.mxu0 0.0
    %4761 = vmatpush1.msra.mxu0 0.0
    %4762 = vmatprep.subr.mxu0 0.0
    %4763 = vmatpush1.msra.mxu0 0.0
    %4764 = vmatprep.subr.mxu0 0.0
    %4765 = vmatpush1.msra.mxu0 0.0
    %4766 = vmatprep.subr.mxu0 0.0
    %4767 = vmatpush1.msra.mxu0 0.0
    %4768 = vmatprep.subr.mxu0 0.0
    %4769 = vmatpush1.msra.mxu0 0.0
    %4770 = vmatprep.subr.mxu0 0.0
    %4771 = vmatpush1.msra.mxu0 0.0
    %4772 = vmatprep.subr.mxu0 0.0
    %4773 = vmatpush1.msra.mxu0 0.0
    %4774 = vmatprep.subr.mxu0 0.0
    %4775 = vmatpush1.msra.mxu0 0.0
    %4776 = vmatprep.subr.mxu0 0.0
    %4777 = vmatpush1.msra.mxu0 0.0
    %4778 = vmatprep.subr.mxu0 0.0
    %4779 = vmatpush1.msra.mxu0 0.0
    %4780 = vmatprep.subr.mxu0 0.0
    %4781 = vmatpush1.msra.mxu0 0.0
    %4782 = vmatprep.subr.mxu0 0.0
    %4783 = vmatpush1.msra.mxu0 0.0
    %4784 = vmatprep.subr.mxu0 0.0
    %4785 = vmatpush1.msra.mxu0 0.0
    %4786 = vmatprep.subr.mxu0 0.0
    %4787 = vmatpush1.msra.mxu0 0.0
    %4788 = vmatprep.subr.mxu0 0.0
    %4789 = vmatpush1.msra.mxu0 0.0
    %4790 = vmatprep.subr.mxu0 0.0
    %4791 = vmatpush1.msra.mxu0 0.0
    %4792 = vmatprep.subr.mxu0 0.0
    %4793 = vmatpush1.msra.mxu0 0.0
    %4794 = vmatprep.mubr.f32.mxu0 0.0
    %4795 = vmatmul.mubr.f32.gmra.mrb[0].mxu0 %v4714
    %v4796 = vpop.f32.mrb[0].mxu0
    %v4797 = vadd.f32 %v4676, %v4796
    %v4798 = vpop.f32.mrb[0].mxu0
    %4799 = vmatprep.mubr.f32.mxu0 0.0
    %4800 = vmatmul.mubr.f32.gmra.mrb[0].mxu0 %v4716
    %v4801 = vpop.f32.mrb[0].mxu0
    %v4802 = vadd.f32 %v4681, %v4801
    %v4803 = vpop.f32.mrb[0].mxu0
    %4804 = vmatprep.mubr.f32.mxu0 0.0
    %4805 = vmatmul.mubr.f32.gmra.mrb[0].mxu0 %v4718
    %v4806 = vpop.f32.mrb[0].mxu0
    %v4807 = vadd.f32 %v4686, %v4806
    %v4808 = vpop.f32.mrb[0].mxu0
    %4809 = vmatprep.mubr.f32.mxu0 0.0
    %4810 = vmatmul.mubr.f32.gmra.mrb[0].mxu0 %v4720
    %v4811 = vpop.f32.mrb[0].mxu0
    %v4812 = vadd.f32 %v4691, %v4811
    %v4813 = vpop.f32.mrb[0].mxu0
    %4814 = vmatprep.mubr.f32.mxu0 0.0
    %4815 = vmatmul.mubr.f32.gmra.mrb[0].mxu0 %v4722
    %v4816 = vpop.f32.mrb[0].mxu0
    %v4817 = vadd.f32 %v4696, %v4816
    %v4818 = vpop.f32.mrb[0].mxu0
    %4819 = vmatprep.mubr.f32.mxu0 0.0
    %4820 = vmatmul.mubr.f32.gmra.mrb[0].mxu0 %v4724
    %v4821 = vpop.f32.mrb[0].mxu0
    %v4822 = vadd.f32 %v4701, %v4821
    %v4823 = vpop.f32.mrb[0].mxu0
    %4824 = vmatprep.mubr.f32.mxu0 0.0
    %4825 = vmatmul.mubr.f32.gmra.mrb[0].mxu0 %v4726
    %v4826 = vpop.f32.mrb[0].mxu0
    %v4827 = vadd.f32 %v4706, %v4826
    %v4828 = vpop.f32.mrb[0].mxu0
    %4829 = vmatprep.mubr.f32.mxu0 0.0
    %4830 = vmatmul.mubr.f32.gmra.mrb[0].mxu0 %v4728
    %v4831 = vpop.f32.mrb[0].mxu0
    %v4832 = vadd.f32 %v4711, %v4831
    %v4833 = vpop.f32.mrb[0].mxu0
    %4834 = vdwg.mxu0
    %v4835 = vld [vmem:[%s1554] sm:$0xff]
    %v4836 = vld [vmem:[%s1554 + $0x8] sm:$0xff]
    %v4837 = vld [vmem:[%s1554 + $0x10] sm:$0xff]
    %v4838 = vld [vmem:[%s1554 + $0x18] sm:$0xff]
    %v4839 = vld [vmem:[%s1554 + $0x20] sm:$0xff]
    %v4840 = vld [vmem:[%s1554 + $0x28] sm:$0xff]
    %v4841 = vld [vmem:[%s1554 + $0x30] sm:$0xff]
    %v4842 = vld [vmem:[%s1554 + $0x38] sm:$0xff]
    %v4843 = vld [vmem:[%s1554 + $0x40] sm:$0xff]
    %v4844 = vld [vmem:[%s1554 + $0x48] sm:$0xff]
    %v4845 = vld [vmem:[%s1554 + $0x50] sm:$0xff]
    %v4846 = vrot.slane %v4539, 2
    %v4847 = vrot.slane %v4540, 2
    %v4848 = vsel %vm346, %v4846, %v4847
    %v4849 = vrot.slane %v4541, 2
    %v4850 = vsel %vm346, %v4847, %v4849
    %v4851 = vrot.slane %v4542, 2
    %v4852 = vsel %vm346, %v4849, %v4851
    %v4853 = vrot.slane %v4543, 2
    %v4854 = vsel %vm346, %v4851, %v4853
    %v4855 = vrot.slane %v4544, 2
    %v4856 = vsel %vm346, %v4853, %v4855
    %v4857 = vrot.slane %v4545, 2
    %v4858 = vsel %vm346, %v4855, %v4857
    %v4859 = vrot.slane %v4546, 2
    %v4860 = vsel %vm346, %v4857, %v4859
    %v4861 = vsel %vm1311, %v4848, 0
    %v4863 = vsel %vm1311, %v4850, 0
    %v4865 = vsel %vm1311, %v4852, 0
    %v4867 = vsel %vm1311, %v4854, 0
    %v4869 = vsel %vm1311, %v4856, 0
    %v4871 = vsel %vm1311, %v4858, 0
    %v4873 = vsel %vm1311, %v4860, 0
    %v4875 = vsel %vm1311, %v4859, 0
    %4877 = vmatprep.subr.mxu0 0.0
    %4878 = vmatpush1.msra.mxu0 %v4835
    %4879 = vmatprep.subr.mxu0 0.0
    %4880 = vmatpush1.msra.mxu0 %v4836
    %4881 = vmatprep.subr.mxu0 0.0
    %4882 = vmatpush1.msra.mxu0 %v4837
    %4883 = vmatprep.subr.mxu0 0.0
    %4884 = vmatpush1.msra.mxu0 %v4838
    %4885 = vmatprep.subr.mxu0 0.0
    %4886 = vmatpush1.msra.mxu0 %v4839
    %4887 = vmatprep.subr.mxu0 0.0
    %4888 = vmatpush1.msra.mxu0 %v4840
    %4889 = vmatprep.subr.mxu0 0.0
    %4890 = vmatpush1.msra.mxu0 %v4841
    %4891 = vmatprep.subr.mxu0 0.0
    %4892 = vmatpush1.msra.mxu0 %v4842
    %4893 = vmatprep.subr.mxu0 0.0
    %4894 = vmatpush1.msra.mxu0 %v4843
    %4895 = vmatprep.subr.mxu0 0.0
    %4896 = vmatpush1.msra.mxu0 %v4844
    %4897 = vmatprep.subr.mxu0 0.0
    %4898 = vmatpush1.msra.mxu0 %v4845
    %4899 = vmatprep.subr.mxu0 0.0
    %4900 = vmatpush1.msra.mxu0 0.0
    %4901 = vmatprep.subr.mxu0 0.0
    %4902 = vmatpush1.msra.mxu0 0.0
    %4903 = vmatprep.subr.mxu0 0.0
    %4904 = vmatpush1.msra.mxu0 0.0
    %4905 = vmatprep.subr.mxu0 0.0
    %4906 = vmatpush1.msra.mxu0 0.0
    %4907 = vmatprep.subr.mxu0 0.0
    %4908 = vmatpush1.msra.mxu0 0.0
    %4909 = vmatprep.subr.mxu0 0.0
    %4910 = vmatpush1.msra.mxu0 0.0
    %4911 = vmatprep.subr.mxu0 0.0
    %4912 = vmatpush1.msra.mxu0 0.0
    %4913 = vmatprep.subr.mxu0 0.0
    %4914 = vmatpush1.msra.mxu0 0.0
    %4915 = vmatprep.subr.mxu0 0.0
    %4916 = vmatpush1.msra.mxu0 0.0
    %4917 = vmatprep.subr.mxu0 0.0
    %4918 = vmatpush1.msra.mxu0 0.0
    %4919 = vmatprep.subr.mxu0 0.0
    %4920 = vmatpush1.msra.mxu0 0.0
    %4921 = vmatprep.subr.mxu0 0.0
    %4922 = vmatpush1.msra.mxu0 0.0
    %4923 = vmatprep.subr.mxu0 0.0
    %4924 = vmatpush1.msra.mxu0 0.0
    %4925 = vmatprep.subr.mxu0 0.0
    %4926 = vmatpush1.msra.mxu0 0.0
    %4927 = vmatprep.subr.mxu0 0.0
    %4928 = vmatpush1.msra.mxu0 0.0
    %4929 = vmatprep.subr.mxu0 0.0
    %4930 = vmatpush1.msra.mxu0 0.0
    %4931 = vmatprep.subr.mxu0 0.0
    %4932 = vmatpush1.msra.mxu0 0.0
    %4933 = vmatprep.subr.mxu0 0.0
    %4934 = vmatpush1.msra.mxu0 0.0
    %4935 = vmatprep.subr.mxu0 0.0
    %4936 = vmatpush1.msra.mxu0 0.0
    %4937 = vmatprep.subr.mxu0 0.0
    %4938 = vmatpush1.msra.mxu0 0.0
    %4939 = vmatprep.subr.mxu0 0.0
    %4940 = vmatpush1.msra.mxu0 0.0
    %4941 = vmatprep.mubr.f32.mxu0 0.0
    %4942 = vmatmul.mubr.f32.gmra.mrb[0].mxu0 %v4861
    %v4943 = vpop.f32.mrb[0].mxu0
    %v4944 = vadd.f32 0.0, %v4943
    %v4945 = vpop.f32.mrb[0].mxu0
    %4946 = vmatprep.mubr.f32.mxu0 0.0
    %4947 = vmatmul.mubr.f32.gmra.mrb[0].mxu0 %v4863
    %v4948 = vpop.f32.mrb[0].mxu0
    %v4949 = vadd.f32 0.0, %v4948
    %v4950 = vpop.f32.mrb[0].mxu0
    %4951 = vmatprep.mubr.f32.mxu0 0.0
    %4952 = vmatmul.mubr.f32.gmra.mrb[0].mxu0 %v4865
    %v4953 = vpop.f32.mrb[0].mxu0
    %v4954 = vadd.f32 0.0, %v4953
    %v4955 = vpop.f32.mrb[0].mxu0
    %4956 = vmatprep.mubr.f32.mxu0 0.0
    %4957 = vmatmul.mubr.f32.gmra.mrb[0].mxu0 %v4867
    %v4958 = vpop.f32.mrb[0].mxu0
    %v4959 = vadd.f32 0.0, %v4958
    %v4960 = vpop.f32.mrb[0].mxu0
    %4961 = vmatprep.mubr.f32.mxu0 0.0
    %4962 = vmatmul.mubr.f32.gmra.mrb[0].mxu0 %v4869
    %v4963 = vpop.f32.mrb[0].mxu0
    %v4964 = vadd.f32 0.0, %v4963
    %v4965 = vpop.f32.mrb[0].mxu0
    %4966 = vmatprep.mubr.f32.mxu0 0.0
    %4967 = vmatmul.mubr.f32.gmra.mrb[0].mxu0 %v4871
    %v4968 = vpop.f32.mrb[0].mxu0
    %v4969 = vadd.f32 0.0, %v4968
    %v4970 = vpop.f32.mrb[0].mxu0
    %4971 = vmatprep.mubr.f32.mxu0 0.0
    %4972 = vmatmul.mubr.f32.gmra.mrb[0].mxu0 %v4873
    %v4973 = vpop.f32.mrb[0].mxu0
    %v4974 = vadd.f32 0.0, %v4973
    %v4975 = vpop.f32.mrb[0].mxu0
    %4976 = vmatprep.mubr.f32.mxu0 0.0
    %4977 = vmatmul.mubr.f32.gmra.mrb[0].mxu0 %v4875
    %v4978 = vpop.f32.mrb[0].mxu0
    %v4979 = vadd.f32 0.0, %v4978
    %v4980 = vpop.f32.mrb[0].mxu0
    %4981 = vdwg.mxu0
    %v4982 = vadd.f32 %v4797, %v4944
    %v4983 = vadd.f32 %v4802, %v4949
    %v4984 = vadd.f32 %v4807, %v4954
    %v4985 = vadd.f32 %v4812, %v4959
    %v4986 = vadd.f32 %v4817, %v4964
    %v4987 = vadd.f32 %v4822, %v4969
    %v4988 = vadd.f32 %v4827, %v4974
    %v4989 = vadd.f32 %v4832, %v4979
    %v4991 = vlaneseq
    %v4992 = vshrl.u32 %v4991, 7
    %v4993 = vsub.s32 0, %v4992
    %v4994 = vrot.slane %v4547, %v4993
    %v4996 = vadd.f32 %v4982, %v4994
    %v4997 = vadd.f32 %v4983, %v4994
    %v4998 = vadd.f32 %v4984, %v4994
    %v4999 = vadd.f32 %v4985, %v4994
    %v5000 = vadd.f32 %v4986, %v4994
    %v5001 = vadd.f32 %v4987, %v4994
    %v5002 = vadd.f32 %v4988, %v4994
    %v5003 = vadd.f32 %v4989, %v4994
    %v5004 = vmax.f32 %v4996, 0.0
    %v5005 = vmax.f32 %v4997, 0.0
    %v5006 = vmax.f32 %v4998, 0.0
    %v5007 = vmax.f32 %v4999, 0.0
    %v5008 = vmax.f32 %v5000, 0.0
    %v5009 = vmax.f32 %v5001, 0.0
    %v5010 = vmax.f32 %v5002, 0.0
    %v5011 = vmax.f32 %v5003, 0.0
    %v5012 = vld [vmem:[%s1732] sm:$0xff]
    %v5013 = vld [vmem:[%s1732 + $0x8] sm:$0xff]
    %v5014 = vld [vmem:[%s1732 + $0x10] sm:$0xff]
    %v5015 = vld [vmem:[%s1732 + $0x18] sm:$0xff]
    %v5016 = vld [vmem:[%s1732 + $0x20] sm:$0xff]
    %v5017 = vld [vmem:[%s1732 + $0x28] sm:$0xff]
    %v5018 = vld [vmem:[%s1732 + $0x30] sm:$0xff]
    %v5019 = vld [vmem:[%s1732 + $0x38] sm:$0xff]
    %v5020 = vld [vmem:[%s1732 + $0x40] sm:$0xff]
    %v5021 = vld [vmem:[%s1732 + $0x48] sm:$0xff]
    %v5022 = vld [vmem:[%s1732 + $0x50] sm:$0xff]
    %v5023 = vld [vmem:[%s1744] sm:$0xff]
    %v5024 = vld [vmem:[%s1744 + $0x8] sm:$0xff]
    %v5025 = vld [vmem:[%s1744 + $0x10] sm:$0xff]
    %v5026 = vld [vmem:[%s1744 + $0x18] sm:$0xff]
    %v5027 = vld [vmem:[%s1744 + $0x20] sm:$0xff]
    %v5028 = vld [vmem:[%s1744 + $0x28] sm:$0xff]
    %v5029 = vld [vmem:[%s1744 + $0x30] sm:$0xff]
    %v5030 = vld [vmem:[%s1744 + $0x38] sm:$0xff]
    %v5031 = vld [vmem:[%s1744 + $0x40] sm:$0xff]
    %v5032 = vld [vmem:[%s1744 + $0x48] sm:$0xff]
    %v5033 = vld [vmem:[%s1744 + $0x50] sm:$0xff]
    %5034 = vmatprep.subr.mxu0 0.0
    %5035 = vmatpush1.msra.mxu0 %v5023
    %5036 = vmatprep.subr.mxu0 0.0
    %5037 = vmatpush1.msra.mxu0 %v5024
    %5038 = vmatprep.subr.mxu0 0.0
    %5039 = vmatpush1.msra.mxu0 %v5025
    %5040 = vmatprep.subr.mxu0 0.0
    %5041 = vmatpush1.msra.mxu0 %v5026
    %5042 = vmatprep.subr.mxu0 0.0
    %5043 = vmatpush1.msra.mxu0 %v5027
    %5044 = vmatprep.subr.mxu0 0.0
    %5045 = vmatpush1.msra.mxu0 %v5028
    %5046 = vmatprep.subr.mxu0 0.0
    %5047 = vmatpush1.msra.mxu0 %v5029
    %5048 = vmatprep.subr.mxu0 0.0
    %5049 = vmatpush1.msra.mxu0 %v5030
    %5050 = vmatprep.subr.mxu0 0.0
    %5051 = vmatpush1.msra.mxu0 %v5031
    %5052 = vmatprep.subr.mxu0 0.0
    %5053 = vmatpush1.msra.mxu0 %v5032
    %5054 = vmatprep.subr.mxu0 0.0
    %5055 = vmatpush1.msra.mxu0 %v5033
    %5056 = vmatprep.subr.mxu0 0.0
    %5057 = vmatpush1.msra.mxu0 0.0
    %5058 = vmatprep.subr.mxu0 0.0
    %5059 = vmatpush1.msra.mxu0 0.0
    %5060 = vmatprep.subr.mxu0 0.0
    %5061 = vmatpush1.msra.mxu0 0.0
    %5062 = vmatprep.subr.mxu0 0.0
    %5063 = vmatpush1.msra.mxu0 0.0
    %5064 = vmatprep.subr.mxu0 0.0
    %5065 = vmatpush1.msra.mxu0 0.0
    %5066 = vmatprep.subr.mxu0 0.0
    %5067 = vmatpush1.msra.mxu0 0.0
    %5068 = vmatprep.subr.mxu0 0.0
    %5069 = vmatpush1.msra.mxu0 0.0
    %5070 = vmatprep.subr.mxu0 0.0
    %5071 = vmatpush1.msra.mxu0 0.0
    %5072 = vmatprep.subr.mxu0 0.0
    %5073 = vmatpush1.msra.mxu0 0.0
    %5074 = vmatprep.subr.mxu0 0.0
    %5075 = vmatpush1.msra.mxu0 0.0
    %5076 = vmatprep.subr.mxu0 0.0
    %5077 = vmatpush1.msra.mxu0 0.0
    %5078 = vmatprep.subr.mxu0 0.0
    %5079 = vmatpush1.msra.mxu0 0.0
    %5080 = vmatprep.subr.mxu0 0.0
    %5081 = vmatpush1.msra.mxu0 0.0
    %5082 = vmatprep.subr.mxu0 0.0
    %5083 = vmatpush1.msra.mxu0 0.0
    %5084 = vmatprep.subr.mxu0 0.0
    %5085 = vmatpush1.msra.mxu0 0.0
    %5086 = vmatprep.subr.mxu0 0.0
    %5087 = vmatpush1.msra.mxu0 0.0
    %5088 = vmatprep.subr.mxu0 0.0
    %5089 = vmatpush1.msra.mxu0 0.0
    %5090 = vmatprep.subr.mxu0 0.0
    %5091 = vmatpush1.msra.mxu0 0.0
    %5092 = vmatprep.subr.mxu0 0.0
    %5093 = vmatpush1.msra.mxu0 0.0
    %5094 = vmatprep.subr.mxu0 0.0
    %5095 = vmatpush1.msra.mxu0 0.0
    %5096 = vmatprep.subr.mxu0 0.0
    %5097 = vmatpush1.msra.mxu0 0.0
    %5098 = vmatprep.mubr.f32.mxu0 0.0
    %5099 = vmatmul.mubr.f32.gmra.mrb[0].mxu0 %v4593
    %v5100 = vpop.f32.mrb[0].mxu0
    %v5101 = vadd.f32 0.0, %v5100
    %v5102 = vpop.f32.mrb[0].mxu0
    %5103 = vmatprep.mubr.f32.mxu0 0.0
    %5104 = vmatmul.mubr.f32.gmra.mrb[0].mxu0 %v4595
    %v5105 = vpop.f32.mrb[0].mxu0
    %v5106 = vadd.f32 0.0, %v5105
    %v5107 = vpop.f32.mrb[0].mxu0
    %5108 = vmatprep.mubr.f32.mxu0 0.0
    %5109 = vmatmul.mubr.f32.gmra.mrb[0].mxu0 %v4597
    %v5110 = vpop.f32.mrb[0].mxu0
    %v5111 = vadd.f32 0.0, %v5110
    %v5112 = vpop.f32.mrb[0].mxu0
    %5113 = vmatprep.mubr.f32.mxu0 0.0
    %5114 = vmatmul.mubr.f32.gmra.mrb[0].mxu0 %v4599
    %v5115 = vpop.f32.mrb[0].mxu0
    %v5116 = vadd.f32 0.0, %v5115
    %v5117 = vpop.f32.mrb[0].mxu0
    %5118 = vmatprep.mubr.f32.mxu0 0.0
    %5119 = vmatmul.mubr.f32.gmra.mrb[0].mxu0 %v4601
    %v5120 = vpop.f32.mrb[0].mxu0
    %v5121 = vadd.f32 0.0, %v5120
    %v5122 = vpop.f32.mrb[0].mxu0
    %5123 = vmatprep.mubr.f32.mxu0 0.0
    %5124 = vmatmul.mubr.f32.gmra.mrb[0].mxu0 %v4603
    %v5125 = vpop.f32.mrb[0].mxu0
    %v5126 = vadd.f32 0.0, %v5125
    %v5127 = vpop.f32.mrb[0].mxu0
    %5128 = vmatprep.mubr.f32.mxu0 0.0
    %5129 = vmatmul.mubr.f32.gmra.mrb[0].mxu0 %v4605
    %v5130 = vpop.f32.mrb[0].mxu0
    %v5131 = vadd.f32 0.0, %v5130
    %v5132 = vpop.f32.mrb[0].mxu0
    %5133 = vmatprep.mubr.f32.mxu0 0.0
    %5134 = vmatmul.mubr.f32.gmra.mrb[0].mxu0 %v4607
    %v5135 = vpop.f32.mrb[0].mxu0
    %v5136 = vadd.f32 0.0, %v5135
    %v5137 = vpop.f32.mrb[0].mxu0
    %5138 = vdwg.mxu0
    %5139 = vmatprep.subr.mxu0 0.0
    %5140 = vmatpush1.msra.mxu0 %v5012
    %5141 = vmatprep.subr.mxu0 0.0
    %5142 = vmatpush1.msra.mxu0 %v5013
    %5143 = vmatprep.subr.mxu0 0.0
    %5144 = vmatpush1.msra.mxu0 %v5014
    %5145 = vmatprep.subr.mxu0 0.0
    %5146 = vmatpush1.msra.mxu0 %v5015
    %5147 = vmatprep.subr.mxu0 0.0
    %5148 = vmatpush1.msra.mxu0 %v5016
    %5149 = vmatprep.subr.mxu0 0.0
    %5150 = vmatpush1.msra.mxu0 %v5017
    %5151 = vmatprep.subr.mxu0 0.0
    %5152 = vmatpush1.msra.mxu0 %v5018
    %5153 = vmatprep.subr.mxu0 0.0
    %5154 = vmatpush1.msra.mxu0 %v5019
    %5155 = vmatprep.subr.mxu0 0.0
    %5156 = vmatpush1.msra.mxu0 %v5020
    %5157 = vmatprep.subr.mxu0 0.0
    %5158 = vmatpush1.msra.mxu0 %v5021
    %5159 = vmatprep.subr.mxu0 0.0
    %5160 = vmatpush1.msra.mxu0 %v5022
    %5161 = vmatprep.subr.mxu0 0.0
    %5162 = vmatpush1.msra.mxu0 0.0
    %5163 = vmatprep.subr.mxu0 0.0
    %5164 = vmatpush1.msra.mxu0 0.0
    %5165 = vmatprep.subr.mxu0 0.0
    %5166 = vmatpush1.msra.mxu0 0.0
    %5167 = vmatprep.subr.mxu0 0.0
    %5168 = vmatpush1.msra.mxu0 0.0
    %5169 = vmatprep.subr.mxu0 0.0
    %5170 = vmatpush1.msra.mxu0 0.0
    %5171 = vmatprep.subr.mxu0 0.0
    %5172 = vmatpush1.msra.mxu0 0.0
    %5173 = vmatprep.subr.mxu0 0.0
    %5174 = vmatpush1.msra.mxu0 0.0
    %5175 = vmatprep.subr.mxu0 0.0
    %5176 = vmatpush1.msra.mxu0 0.0
    %5177 = vmatprep.subr.mxu0 0.0
    %5178 = vmatpush1.msra.mxu0 0.0
    %5179 = vmatprep.subr.mxu0 0.0
    %5180 = vmatpush1.msra.mxu0 0.0
    %5181 = vmatprep.subr.mxu0 0.0
    %5182 = vmatpush1.msra.mxu0 0.0
    %5183 = vmatprep.subr.mxu0 0.0
    %5184 = vmatpush1.msra.mxu0 0.0
    %5185 = vmatprep.subr.mxu0 0.0
    %5186 = vmatpush1.msra.mxu0 0.0
    %5187 = vmatprep.subr.mxu0 0.0
    %5188 = vmatpush1.msra.mxu0 0.0
    %5189 = vmatprep.subr.mxu0 0.0
    %5190 = vmatpush1.msra.mxu0 0.0
    %5191 = vmatprep.subr.mxu0 0.0
    %5192 = vmatpush1.msra.mxu0 0.0
    %5193 = vmatprep.subr.mxu0 0.0
    %5194 = vmatpush1.msra.mxu0 0.0
    %5195 = vmatprep.subr.mxu0 0.0
    %5196 = vmatpush1.msra.mxu0 0.0
    %5197 = vmatprep.subr.mxu0 0.0
    %5198 = vmatpush1.msra.mxu0 0.0
    %5199 = vmatprep.subr.mxu0 0.0
    %5200 = vmatpush1.msra.mxu0 0.0
    %5201 = vmatprep.subr.mxu0 0.0
    %5202 = vmatpush1.msra.mxu0 0.0
    %5203 = vmatprep.mubr.f32.mxu0 0.0
    %5204 = vmatmul.mubr.f32.gmra.mrb[0].mxu0 %v4714
    %v5205 = vpop.f32.mrb[0].mxu0
    %v5206 = vadd.f32 %v5101, %v5205
    %v5207 = vpop.f32.mrb[0].mxu0
    %5208 = vmatprep.mubr.f32.mxu0 0.0
    %5209 = vmatmul.mubr.f32.gmra.mrb[0].mxu0 %v4716
    %v5210 = vpop.f32.mrb[0].mxu0
    %v5211 = vadd.f32 %v5106, %v5210
    %v5212 = vpop.f32.mrb[0].mxu0
    %5213 = vmatprep.mubr.f32.mxu0 0.0
    %5214 = vmatmul.mubr.f32.gmra.mrb[0].mxu0 %v4718
    %v5215 = vpop.f32.mrb[0].mxu0
    %v5216 = vadd.f32 %v5111, %v5215
    %v5217 = vpop.f32.mrb[0].mxu0
    %5218 = vmatprep.mubr.f32.mxu0 0.0
    %5219 = vmatmul.mubr.f32.gmra.mrb[0].mxu0 %v4720
    %v5220 = vpop.f32.mrb[0].mxu0
    %v5221 = vadd.f32 %v5116, %v5220
    %v5222 = vpop.f32.mrb[0].mxu0
    %5223 = vmatprep.mubr.f32.mxu0 0.0
    %5224 = vmatmul.mubr.f32.gmra.mrb[0].mxu0 %v4722
    %v5225 = vpop.f32.mrb[0].mxu0
    %v5226 = vadd.f32 %v5121, %v5225
    %v5227 = vpop.f32.mrb[0].mxu0
    %5228 = vmatprep.mubr.f32.mxu0 0.0
    %5229 = vmatmul.mubr.f32.gmra.mrb[0].mxu0 %v4724
    %v5230 = vpop.f32.mrb[0].mxu0
    %v5231 = vadd.f32 %v5126, %v5230
    %v5232 = vpop.f32.mrb[0].mxu0
    %5233 = vmatprep.mubr.f32.mxu0 0.0
    %5234 = vmatmul.mubr.f32.gmra.mrb[0].mxu0 %v4726
    %v5235 = vpop.f32.mrb[0].mxu0
    %v5236 = vadd.f32 %v5131, %v5235
    %v5237 = vpop.f32.mrb[0].mxu0
    %5238 = vmatprep.mubr.f32.mxu0 0.0
    %5239 = vmatmul.mubr.f32.gmra.mrb[0].mxu0 %v4728
    %v5240 = vpop.f32.mrb[0].mxu0
    %v5241 = vadd.f32 %v5136, %v5240
    %v5242 = vpop.f32.mrb[0].mxu0
    %5243 = vdwg.mxu0
    %v5244 = vld [vmem:[%s1966] sm:$0xff]
    %v5245 = vld [vmem:[%s1966 + $0x8] sm:$0xff]
    %v5246 = vld [vmem:[%s1966 + $0x10] sm:$0xff]
    %v5247 = vld [vmem:[%s1966 + $0x18] sm:$0xff]
    %v5248 = vld [vmem:[%s1966 + $0x20] sm:$0xff]
    %v5249 = vld [vmem:[%s1966 + $0x28] sm:$0xff]
    %v5250 = vld [vmem:[%s1966 + $0x30] sm:$0xff]
    %v5251 = vld [vmem:[%s1966 + $0x38] sm:$0xff]
    %v5252 = vld [vmem:[%s1966 + $0x40] sm:$0xff]
    %v5253 = vld [vmem:[%s1966 + $0x48] sm:$0xff]
    %v5254 = vld [vmem:[%s1966 + $0x50] sm:$0xff]
    %5255 = vmatprep.subr.mxu0 0.0
    %5256 = vmatpush1.msra.mxu0 %v5244
    %5257 = vmatprep.subr.mxu0 0.0
    %5258 = vmatpush1.msra.mxu0 %v5245
    %5259 = vmatprep.subr.mxu0 0.0
    %5260 = vmatpush1.msra.mxu0 %v5246
    %5261 = vmatprep.subr.mxu0 0.0
    %5262 = vmatpush1.msra.mxu0 %v5247
    %5263 = vmatprep.subr.mxu0 0.0
    %5264 = vmatpush1.msra.mxu0 %v5248
    %5265 = vmatprep.subr.mxu0 0.0
    %5266 = vmatpush1.msra.mxu0 %v5249
    %5267 = vmatprep.subr.mxu0 0.0
    %5268 = vmatpush1.msra.mxu0 %v5250
    %5269 = vmatprep.subr.mxu0 0.0
    %5270 = vmatpush1.msra.mxu0 %v5251
    %5271 = vmatprep.subr.mxu0 0.0
    %5272 = vmatpush1.msra.mxu0 %v5252
    %5273 = vmatprep.subr.mxu0 0.0
    %5274 = vmatpush1.msra.mxu0 %v5253
    %5275 = vmatprep.subr.mxu0 0.0
    %5276 = vmatpush1.msra.mxu0 %v5254
    %5277 = vmatprep.subr.mxu0 0.0
    %5278 = vmatpush1.msra.mxu0 0.0
    %5279 = vmatprep.subr.mxu0 0.0
    %5280 = vmatpush1.msra.mxu0 0.0
    %5281 = vmatprep.subr.mxu0 0.0
    %5282 = vmatpush1.msra.mxu0 0.0
    %5283 = vmatprep.subr.mxu0 0.0
    %5284 = vmatpush1.msra.mxu0 0.0
    %5285 = vmatprep.subr.mxu0 0.0
    %5286 = vmatpush1.msra.mxu0 0.0
    %5287 = vmatprep.subr.mxu0 0.0
    %5288 = vmatpush1.msra.mxu0 0.0
    %5289 = vmatprep.subr.mxu0 0.0
    %5290 = vmatpush1.msra.mxu0 0.0
    %5291 = vmatprep.subr.mxu0 0.0
    %5292 = vmatpush1.msra.mxu0 0.0
    %5293 = vmatprep.subr.mxu0 0.0
    %5294 = vmatpush1.msra.mxu0 0.0
    %5295 = vmatprep.subr.mxu0 0.0
    %5296 = vmatpush1.msra.mxu0 0.0
    %5297 = vmatprep.subr.mxu0 0.0
    %5298 = vmatpush1.msra.mxu0 0.0
    %5299 = vmatprep.subr.mxu0 0.0
    %5300 = vmatpush1.msra.mxu0 0.0
    %5301 = vmatprep.subr.mxu0 0.0
    %5302 = vmatpush1.msra.mxu0 0.0
    %5303 = vmatprep.subr.mxu0 0.0
    %5304 = vmatpush1.msra.mxu0 0.0
    %5305 = vmatprep.subr.mxu0 0.0
    %5306 = vmatpush1.msra.mxu0 0.0
    %5307 = vmatprep.subr.mxu0 0.0
    %5308 = vmatpush1.msra.mxu0 0.0
    %5309 = vmatprep.subr.mxu0 0.0
    %5310 = vmatpush1.msra.mxu0 0.0
    %5311 = vmatprep.subr.mxu0 0.0
    %5312 = vmatpush1.msra.mxu0 0.0
    %5313 = vmatprep.subr.mxu0 0.0
    %5314 = vmatpush1.msra.mxu0 0.0
    %5315 = vmatprep.subr.mxu0 0.0
    %5316 = vmatpush1.msra.mxu0 0.0
    %5317 = vmatprep.subr.mxu0 0.0
    %5318 = vmatpush1.msra.mxu0 0.0
    %5319 = vmatprep.mubr.f32.mxu0 0.0
    %5320 = vmatmul.mubr.f32.gmra.mrb[0].mxu0 %v4861
    %v5321 = vpop.f32.mrb[0].mxu0
    %v5322 = vadd.f32 0.0, %v5321
    %v5323 = vpop.f32.mrb[0].mxu0
    %5324 = vmatprep.mubr.f32.mxu0 0.0
    %5325 = vmatmul.mubr.f32.gmra.mrb[0].mxu0 %v4863
    %v5326 = vpop.f32.mrb[0].mxu0
    %v5327 = vadd.f32 0.0, %v5326
    %v5328 = vpop.f32.mrb[0].mxu0
    %5329 = vmatprep.mubr.f32.mxu0 0.0
    %5330 = vmatmul.mubr.f32.gmra.mrb[0].mxu0 %v4865
    %v5331 = vpop.f32.mrb[0].mxu0
    %v5332 = vadd.f32 0.0, %v5331
    %v5333 = vpop.f32.mrb[0].mxu0
    %5334 = vmatprep.mubr.f32.mxu0 0.0
    %5335 = vmatmul.mubr.f32.gmra.mrb[0].mxu0 %v4867
    %v5336 = vpop.f32.mrb[0].mxu0
    %v5337 = vadd.f32 0.0, %v5336
    %v5338 = vpop.f32.mrb[0].mxu0
    %5339 = vmatprep.mubr.f32.mxu0 0.0
    %5340 = vmatmul.mubr.f32.gmra.mrb[0].mxu0 %v4869
    %v5341 = vpop.f32.mrb[0].mxu0
    %v5342 = vadd.f32 0.0, %v5341
    %v5343 = vpop.f32.mrb[0].mxu0
    %5344 = vmatprep.mubr.f32.mxu0 0.0
    %5345 = vmatmul.mubr.f32.gmra.mrb[0].mxu0 %v4871
    %v5346 = vpop.f32.mrb[0].mxu0
    %v5347 = vadd.f32 0.0, %v5346
    %v5348 = vpop.f32.mrb[0].mxu0
    %5349 = vmatprep.mubr.f32.mxu0 0.0
    %5350 = vmatmul.mubr.f32.gmra.mrb[0].mxu0 %v4873
    %v5351 = vpop.f32.mrb[0].mxu0
    %v5352 = vadd.f32 0.0, %v5351
    %v5353 = vpop.f32.mrb[0].mxu0
    %5354 = vmatprep.mubr.f32.mxu0 0.0
    %5355 = vmatmul.mubr.f32.gmra.mrb[0].mxu0 %v4875
    %v5356 = vpop.f32.mrb[0].mxu0
    %v5357 = vadd.f32 0.0, %v5356
    %v5358 = vpop.f32.mrb[0].mxu0
    %5359 = vdwg.mxu0
    %v5360 = vadd.f32 %v5206, %v5322
    %v5361 = vadd.f32 %v5211, %v5327
    %v5362 = vadd.f32 %v5216, %v5332
    %v5363 = vadd.f32 %v5221, %v5337
    %v5364 = vadd.f32 %v5226, %v5342
    %v5365 = vadd.f32 %v5231, %v5347
    %v5366 = vadd.f32 %v5236, %v5352
    %v5367 = vadd.f32 %v5241, %v5357
    %v5368 = vadd.f32 %v5360, %v4994
    %v5369 = vadd.f32 %v5361, %v4994
    %v5370 = vadd.f32 %v5362, %v4994
    %v5371 = vadd.f32 %v5363, %v4994
    %v5372 = vadd.f32 %v5364, %v4994
    %v5373 = vadd.f32 %v5365, %v4994
    %v5374 = vadd.f32 %v5366, %v4994
    %v5375 = vadd.f32 %v5367, %v4994
    %v5376 = vmax.f32 %v5368, 0.0
    %v5377 = vmax.f32 %v5369, 0.0
    %v5378 = vmax.f32 %v5370, 0.0
    %v5379 = vmax.f32 %v5371, 0.0
    %v5380 = vmax.f32 %v5372, 0.0
    %v5381 = vmax.f32 %v5373, 0.0
    %v5382 = vmax.f32 %v5374, 0.0
    %v5383 = vmax.f32 %v5375, 0.0
    %v5384 = vmax.f32 %v5004, %v5376
    %v5385 = vmax.f32 %v5005, %v5377
    %v5386 = vmax.f32 %v5006, %v5378
    %v5387 = vmax.f32 %v5007, %v5379
    %v5388 = vmax.f32 %v5008, %v5380
    %v5389 = vmax.f32 %v5009, %v5381
    %v5390 = vmax.f32 %v5010, %v5382
    %v5391 = vmax.f32 %v5011, %v5383
    %v5392 = vld [vmem:[%s2115] sm:$0xff]
    %v5393 = vld [vmem:[%s2115 + $0x8] sm:$0xff]
    %v5394 = vld [vmem:[%s2115 + $0x10] sm:$0xff]
    %v5395 = vld [vmem:[%s2115 + $0x18] sm:$0xff]
    %v5396 = vld [vmem:[%s2115 + $0x20] sm:$0xff]
    %v5397 = vld [vmem:[%s2115 + $0x28] sm:$0xff]
    %v5398 = vld [vmem:[%s2115 + $0x30] sm:$0xff]
    %v5399 = vld [vmem:[%s2115 + $0x38] sm:$0xff]
    %v5400 = vld [vmem:[%s2115 + $0x40] sm:$0xff]
    %v5401 = vld [vmem:[%s2115 + $0x48] sm:$0xff]
    %v5402 = vld [vmem:[%s2115 + $0x50] sm:$0xff]
    %v5403 = vld [vmem:[%s2127] sm:$0xff]
    %v5404 = vld [vmem:[%s2127 + $0x8] sm:$0xff]
    %v5405 = vld [vmem:[%s2127 + $0x10] sm:$0xff]
    %v5406 = vld [vmem:[%s2127 + $0x18] sm:$0xff]
    %v5407 = vld [vmem:[%s2127 + $0x20] sm:$0xff]
    %v5408 = vld [vmem:[%s2127 + $0x28] sm:$0xff]
    %v5409 = vld [vmem:[%s2127 + $0x30] sm:$0xff]
    %v5410 = vld [vmem:[%s2127 + $0x38] sm:$0xff]
    %v5411 = vld [vmem:[%s2127 + $0x40] sm:$0xff]
    %v5412 = vld [vmem:[%s2127 + $0x48] sm:$0xff]
    %v5413 = vld [vmem:[%s2127 + $0x50] sm:$0xff]
    %5414 = vmatprep.subr.mxu0 0.0
    %5415 = vmatpush1.msra.mxu0 %v5403
    %5416 = vmatprep.subr.mxu0 0.0
    %5417 = vmatpush1.msra.mxu0 %v5404
    %5418 = vmatprep.subr.mxu0 0.0
    %5419 = vmatpush1.msra.mxu0 %v5405
    %5420 = vmatprep.subr.mxu0 0.0
    %5421 = vmatpush1.msra.mxu0 %v5406
    %5422 = vmatprep.subr.mxu0 0.0
    %5423 = vmatpush1.msra.mxu0 %v5407
    %5424 = vmatprep.subr.mxu0 0.0
    %5425 = vmatpush1.msra.mxu0 %v5408
    %5426 = vmatprep.subr.mxu0 0.0
    %5427 = vmatpush1.msra.mxu0 %v5409
    %5428 = vmatprep.subr.mxu0 0.0
    %5429 = vmatpush1.msra.mxu0 %v5410
    %5430 = vmatprep.subr.mxu0 0.0
    %5431 = vmatpush1.msra.mxu0 %v5411
    %5432 = vmatprep.subr.mxu0 0.0
    %5433 = vmatpush1.msra.mxu0 %v5412
    %5434 = vmatprep.subr.mxu0 0.0
    %5435 = vmatpush1.msra.mxu0 %v5413
    %5436 = vmatprep.subr.mxu0 0.0
    %5437 = vmatpush1.msra.mxu0 0.0
    %5438 = vmatprep.subr.mxu0 0.0
    %5439 = vmatpush1.msra.mxu0 0.0
    %5440 = vmatprep.subr.mxu0 0.0
    %5441 = vmatpush1.msra.mxu0 0.0
    %5442 = vmatprep.subr.mxu0 0.0
    %5443 = vmatpush1.msra.mxu0 0.0
    %5444 = vmatprep.subr.mxu0 0.0
    %5445 = vmatpush1.msra.mxu0 0.0
    %5446 = vmatprep.subr.mxu0 0.0
    %5447 = vmatpush1.msra.mxu0 0.0
    %5448 = vmatprep.subr.mxu0 0.0
    %5449 = vmatpush1.msra.mxu0 0.0
    %5450 = vmatprep.subr.mxu0 0.0
    %5451 = vmatpush1.msra.mxu0 0.0
    %5452 = vmatprep.subr.mxu0 0.0
    %5453 = vmatpush1.msra.mxu0 0.0
    %5454 = vmatprep.subr.mxu0 0.0
    %5455 = vmatpush1.msra.mxu0 0.0
    %5456 = vmatprep.subr.mxu0 0.0
    %5457 = vmatpush1.msra.mxu0 0.0
    %5458 = vmatprep.subr.mxu0 0.0
    %5459 = vmatpush1.msra.mxu0 0.0
    %5460 = vmatprep.subr.mxu0 0.0
    %5461 = vmatpush1.msra.mxu0 0.0
    %5462 = vmatprep.subr.mxu0 0.0
    %5463 = vmatpush1.msra.mxu0 0.0
    %5464 = vmatprep.subr.mxu0 0.0
    %5465 = vmatpush1.msra.mxu0 0.0
    %5466 = vmatprep.subr.mxu0 0.0
    %5467 = vmatpush1.msra.mxu0 0.0
    %5468 = vmatprep.subr.mxu0 0.0
    %5469 = vmatpush1.msra.mxu0 0.0
    %5470 = vmatprep.subr.mxu0 0.0
    %5471 = vmatpush1.msra.mxu0 0.0
    %5472 = vmatprep.subr.mxu0 0.0
    %5473 = vmatpush1.msra.mxu0 0.0
    %5474 = vmatprep.subr.mxu0 0.0
    %5475 = vmatpush1.msra.mxu0 0.0
    %5476 = vmatprep.subr.mxu0 0.0
    %5477 = vmatpush1.msra.mxu0 0.0
    %5478 = vmatprep.mubr.f32.mxu0 0.0
    %5479 = vmatmul.mubr.f32.gmra.mrb[0].mxu0 %v4593
    %v5480 = vpop.f32.mrb[0].mxu0
    %v5481 = vadd.f32 0.0, %v5480
    %v5482 = vpop.f32.mrb[0].mxu0
    %5483 = vmatprep.mubr.f32.mxu0 0.0
    %5484 = vmatmul.mubr.f32.gmra.mrb[0].mxu0 %v4595
    %v5485 = vpop.f32.mrb[0].mxu0
    %v5486 = vadd.f32 0.0, %v5485
    %v5487 = vpop.f32.mrb[0].mxu0
    %5488 = vmatprep.mubr.f32.mxu0 0.0
    %5489 = vmatmul.mubr.f32.gmra.mrb[0].mxu0 %v4597
    %v5490 = vpop.f32.mrb[0].mxu0
    %v5491 = vadd.f32 0.0, %v5490
    %v5492 = vpop.f32.mrb[0].mxu0
    %5493 = vmatprep.mubr.f32.mxu0 0.0
    %5494 = vmatmul.mubr.f32.gmra.mrb[0].mxu0 %v4599
    %v5495 = vpop.f32.mrb[0].mxu0
    %v5496 = vadd.f32 0.0, %v5495
    %v5497 = vpop.f32.mrb[0].mxu0
    %5498 = vmatprep.mubr.f32.mxu0 0.0
    %5499 = vmatmul.mubr.f32.gmra.mrb[0].mxu0 %v4601
    %v5500 = vpop.f32.mrb[0].mxu0
    %v5501 = vadd.f32 0.0, %v5500
    %v5502 = vpop.f32.mrb[0].mxu0
    %5503 = vmatprep.mubr.f32.mxu0 0.0
    %5504 = vmatmul.mubr.f32.gmra.mrb[0].mxu0 %v4603
    %v5505 = vpop.f32.mrb[0].mxu0
    %v5506 = vadd.f32 0.0, %v5505
    %v5507 = vpop.f32.mrb[0].mxu0
    %5508 = vmatprep.mubr.f32.mxu0 0.0
    %5509 = vmatmul.mubr.f32.gmra.mrb[0].mxu0 %v4605
    %v5510 = vpop.f32.mrb[0].mxu0
    %v5511 = vadd.f32 0.0, %v5510
    %v5512 = vpop.f32.mrb[0].mxu0
    %5513 = vmatprep.mubr.f32.mxu0 0.0
    %5514 = vmatmul.mubr.f32.gmra.mrb[0].mxu0 %v4607
    %v5515 = vpop.f32.mrb[0].mxu0
    %v5516 = vadd.f32 0.0, %v5515
    %v5517 = vpop.f32.mrb[0].mxu0
    %5518 = vdwg.mxu0
    %5519 = vmatprep.subr.mxu0 0.0
    %5520 = vmatpush1.msra.mxu0 %v5392
    %5521 = vmatprep.subr.mxu0 0.0
    %5522 = vmatpush1.msra.mxu0 %v5393
    %5523 = vmatprep.subr.mxu0 0.0
    %5524 = vmatpush1.msra.mxu0 %v5394
    %5525 = vmatprep.subr.mxu0 0.0
    %5526 = vmatpush1.msra.mxu0 %v5395
    %5527 = vmatprep.subr.mxu0 0.0
    %5528 = vmatpush1.msra.mxu0 %v5396
    %5529 = vmatprep.subr.mxu0 0.0
    %5530 = vmatpush1.msra.mxu0 %v5397
    %5531 = vmatprep.subr.mxu0 0.0
    %5532 = vmatpush1.msra.mxu0 %v5398
    %5533 = vmatprep.subr.mxu0 0.0
    %5534 = vmatpush1.msra.mxu0 %v5399
    %5535 = vmatprep.subr.mxu0 0.0
    %5536 = vmatpush1.msra.mxu0 %v5400
    %5537 = vmatprep.subr.mxu0 0.0
    %5538 = vmatpush1.msra.mxu0 %v5401
    %5539 = vmatprep.subr.mxu0 0.0
    %5540 = vmatpush1.msra.mxu0 %v5402
    %5541 = vmatprep.subr.mxu0 0.0
    %5542 = vmatpush1.msra.mxu0 0.0
    %5543 = vmatprep.subr.mxu0 0.0
    %5544 = vmatpush1.msra.mxu0 0.0
    %5545 = vmatprep.subr.mxu0 0.0
    %5546 = vmatpush1.msra.mxu0 0.0
    %5547 = vmatprep.subr.mxu0 0.0
    %5548 = vmatpush1.msra.mxu0 0.0
    %5549 = vmatprep.subr.mxu0 0.0
    %5550 = vmatpush1.msra.mxu0 0.0
    %5551 = vmatprep.subr.mxu0 0.0
    %5552 = vmatpush1.msra.mxu0 0.0
    %5553 = vmatprep.subr.mxu0 0.0
    %5554 = vmatpush1.msra.mxu0 0.0
    %5555 = vmatprep.subr.mxu0 0.0
    %5556 = vmatpush1.msra.mxu0 0.0
    %5557 = vmatprep.subr.mxu0 0.0
    %5558 = vmatpush1.msra.mxu0 0.0
    %5559 = vmatprep.subr.mxu0 0.0
    %5560 = vmatpush1.msra.mxu0 0.0
    %5561 = vmatprep.subr.mxu0 0.0
    %5562 = vmatpush1.msra.mxu0 0.0
    %5563 = vmatprep.subr.mxu0 0.0
    %5564 = vmatpush1.msra.mxu0 0.0
    %5565 = vmatprep.subr.mxu0 0.0
    %5566 = vmatpush1.msra.mxu0 0.0
    %5567 = vmatprep.subr.mxu0 0.0
    %5568 = vmatpush1.msra.mxu0 0.0
    %5569 = vmatprep.subr.mxu0 0.0
    %5570 = vmatpush1.msra.mxu0 0.0
    %5571 = vmatprep.subr.mxu0 0.0
    %5572 = vmatpush1.msra.mxu0 0.0
    %5573 = vmatprep.subr.mxu0 0.0
    %5574 = vmatpush1.msra.mxu0 0.0
    %5575 = vmatprep.subr.mxu0 0.0
    %5576 = vmatpush1.msra.mxu0 0.0
    %5577 = vmatprep.subr.mxu0 0.0
    %5578 = vmatpush1.msra.mxu0 0.0
    %5579 = vmatprep.subr.mxu0 0.0
    %5580 = vmatpush1.msra.mxu0 0.0
    %5581 = vmatprep.subr.mxu0 0.0
    %5582 = vmatpush1.msra.mxu0 0.0
    %5583 = vmatprep.mubr.f32.mxu0 0.0
    %5584 = vmatmul.mubr.f32.gmra.mrb[0].mxu0 %v4714
    %v5585 = vpop.f32.mrb[0].mxu0
    %v5586 = vadd.f32 %v5481, %v5585
    %v5587 = vpop.f32.mrb[0].mxu0
    %5588 = vmatprep.mubr.f32.mxu0 0.0
    %5589 = vmatmul.mubr.f32.gmra.mrb[0].mxu0 %v4716
    %v5590 = vpop.f32.mrb[0].mxu0
    %v5591 = vadd.f32 %v5486, %v5590
    %v5592 = vpop.f32.mrb[0].mxu0
    %5593 = vmatprep.mubr.f32.mxu0 0.0
    %5594 = vmatmul.mubr.f32.gmra.mrb[0].mxu0 %v4718
    %v5595 = vpop.f32.mrb[0].mxu0
    %v5596 = vadd.f32 %v5491, %v5595
    %v5597 = vpop.f32.mrb[0].mxu0
    %5598 = vmatprep.mubr.f32.mxu0 0.0
    %5599 = vmatmul.mubr.f32.gmra.mrb[0].mxu0 %v4720
    %v5600 = vpop.f32.mrb[0].mxu0
    %v5601 = vadd.f32 %v5496, %v5600
    %v5602 = vpop.f32.mrb[0].mxu0
    %5603 = vmatprep.mubr.f32.mxu0 0.0
    %5604 = vmatmul.mubr.f32.gmra.mrb[0].mxu0 %v4722
    %v5605 = vpop.f32.mrb[0].mxu0
    %v5606 = vadd.f32 %v5501, %v5605
    %v5607 = vpop.f32.mrb[0].mxu0
    %5608 = vmatprep.mubr.f32.mxu0 0.0
    %5609 = vmatmul.mubr.f32.gmra.mrb[0].mxu0 %v4724
    %v5610 = vpop.f32.mrb[0].mxu0
    %v5611 = vadd.f32 %v5506, %v5610
    %v5612 = vpop.f32.mrb[0].mxu0
    %5613 = vmatprep.mubr.f32.mxu0 0.0
    %5614 = vmatmul.mubr.f32.gmra.mrb[0].mxu0 %v4726
    %v5615 = vpop.f32.mrb[0].mxu0
    %v5616 = vadd.f32 %v5511, %v5615
    %v5617 = vpop.f32.mrb[0].mxu0
    %5618 = vmatprep.mubr.f32.mxu0 0.0
    %5619 = vmatmul.mubr.f32.gmra.mrb[0].mxu0 %v4728
    %v5620 = vpop.f32.mrb[0].mxu0
    %v5621 = vadd.f32 %v5516, %v5620
    %v5622 = vpop.f32.mrb[0].mxu0
    %5623 = vdwg.mxu0
    %v5624 = vld [vmem:[%s2349] sm:$0xff]
    %v5625 = vld [vmem:[%s2349 + $0x8] sm:$0xff]
    %v5626 = vld [vmem:[%s2349 + $0x10] sm:$0xff]
    %v5627 = vld [vmem:[%s2349 + $0x18] sm:$0xff]
    %v5628 = vld [vmem:[%s2349 + $0x20] sm:$0xff]
    %v5629 = vld [vmem:[%s2349 + $0x28] sm:$0xff]
    %v5630 = vld [vmem:[%s2349 + $0x30] sm:$0xff]
    %v5631 = vld [vmem:[%s2349 + $0x38] sm:$0xff]
    %v5632 = vld [vmem:[%s2349 + $0x40] sm:$0xff]
    %v5633 = vld [vmem:[%s2349 + $0x48] sm:$0xff]
    %v5634 = vld [vmem:[%s2349 + $0x50] sm:$0xff]
    %5635 = vmatprep.subr.mxu0 0.0
    %5636 = vmatpush1.msra.mxu0 %v5624
    %5637 = vmatprep.subr.mxu0 0.0
    %5638 = vmatpush1.msra.mxu0 %v5625
    %5639 = vmatprep.subr.mxu0 0.0
    %5640 = vmatpush1.msra.mxu0 %v5626
    %5641 = vmatprep.subr.mxu0 0.0
    %5642 = vmatpush1.msra.mxu0 %v5627
    %5643 = vmatprep.subr.mxu0 0.0
    %5644 = vmatpush1.msra.mxu0 %v5628
    %5645 = vmatprep.subr.mxu0 0.0
    %5646 = vmatpush1.msra.mxu0 %v5629
    %5647 = vmatprep.subr.mxu0 0.0
    %5648 = vmatpush1.msra.mxu0 %v5630
    %5649 = vmatprep.subr.mxu0 0.0
    %5650 = vmatpush1.msra.mxu0 %v5631
    %5651 = vmatprep.subr.mxu0 0.0
    %5652 = vmatpush1.msra.mxu0 %v5632
    %5653 = vmatprep.subr.mxu0 0.0
    %5654 = vmatpush1.msra.mxu0 %v5633
    %5655 = vmatprep.subr.mxu0 0.0
    %5656 = vmatpush1.msra.mxu0 %v5634
    %5657 = vmatprep.subr.mxu0 0.0
    %5658 = vmatpush1.msra.mxu0 0.0
    %5659 = vmatprep.subr.mxu0 0.0
    %5660 = vmatpush1.msra.mxu0 0.0
    %5661 = vmatprep.subr.mxu0 0.0
    %5662 = vmatpush1.msra.mxu0 0.0
    %5663 = vmatprep.subr.mxu0 0.0
    %5664 = vmatpush1.msra.mxu0 0.0
    %5665 = vmatprep.subr.mxu0 0.0
    %5666 = vmatpush1.msra.mxu0 0.0
    %5667 = vmatprep.subr.mxu0 0.0
    %5668 = vmatpush1.msra.mxu0 0.0
    %5669 = vmatprep.subr.mxu0 0.0
    %5670 = vmatpush1.msra.mxu0 0.0
    %5671 = vmatprep.subr.mxu0 0.0
    %5672 = vmatpush1.msra.mxu0 0.0
    %5673 = vmatprep.subr.mxu0 0.0
    %5674 = vmatpush1.msra.mxu0 0.0
    %5675 = vmatprep.subr.mxu0 0.0
    %5676 = vmatpush1.msra.mxu0 0.0
    %5677 = vmatprep.subr.mxu0 0.0
    %5678 = vmatpush1.msra.mxu0 0.0
    %5679 = vmatprep.subr.mxu0 0.0
    %5680 = vmatpush1.msra.mxu0 0.0
    %5681 = vmatprep.subr.mxu0 0.0
    %5682 = vmatpush1.msra.mxu0 0.0
    %5683 = vmatprep.subr.mxu0 0.0
    %5684 = vmatpush1.msra.mxu0 0.0
    %5685 = vmatprep.subr.mxu0 0.0
    %5686 = vmatpush1.msra.mxu0 0.0
    %5687 = vmatprep.subr.mxu0 0.0
    %5688 = vmatpush1.msra.mxu0 0.0
    %5689 = vmatprep.subr.mxu0 0.0
    %5690 = vmatpush1.msra.mxu0 0.0
    %5691 = vmatprep.subr.mxu0 0.0
    %5692 = vmatpush1.msra.mxu0 0.0
    %5693 = vmatprep.subr.mxu0 0.0
    %5694 = vmatpush1.msra.mxu0 0.0
    %5695 = vmatprep.subr.mxu0 0.0
    %5696 = vmatpush1.msra.mxu0 0.0
    %5697 = vmatprep.subr.mxu0 0.0
    %5698 = vmatpush1.msra.mxu0 0.0
    %5699 = vmatprep.mubr.f32.mxu0 0.0
    %5700 = vmatmul.mubr.f32.gmra.mrb[0].mxu0 %v4861
    %v5701 = vpop.f32.mrb[0].mxu0
    %v5702 = vadd.f32 0.0, %v5701
    %v5703 = vpop.f32.mrb[0].mxu0
    %5704 = vmatprep.mubr.f32.mxu0 0.0
    %5705 = vmatmul.mubr.f32.gmra.mrb[0].mxu0 %v4863
    %v5706 = vpop.f32.mrb[0].mxu0
    %v5707 = vadd.f32 0.0, %v5706
    %v5708 = vpop.f32.mrb[0].mxu0
    %5709 = vmatprep.mubr.f32.mxu0 0.0
    %5710 = vmatmul.mubr.f32.gmra.mrb[0].mxu0 %v4865
    %v5711 = vpop.f32.mrb[0].mxu0
    %v5712 = vadd.f32 0.0, %v5711
    %v5713 = vpop.f32.mrb[0].mxu0
    %5714 = vmatprep.mubr.f32.mxu0 0.0
    %5715 = vmatmul.mubr.f32.gmra.mrb[0].mxu0 %v4867
    %v5716 = vpop.f32.mrb[0].mxu0
    %v5717 = vadd.f32 0.0, %v5716
    %v5718 = vpop.f32.mrb[0].mxu0
    %5719 = vmatprep.mubr.f32.mxu0 0.0
    %5720 = vmatmul.mubr.f32.gmra.mrb[0].mxu0 %v4869
    %v5721 = vpop.f32.mrb[0].mxu0
    %v5722 = vadd.f32 0.0, %v5721
    %v5723 = vpop.f32.mrb[0].mxu0
    %5724 = vmatprep.mubr.f32.mxu0 0.0
    %5725 = vmatmul.mubr.f32.gmra.mrb[0].mxu0 %v4871
    %v5726 = vpop.f32.mrb[0].mxu0
    %v5727 = vadd.f32 0.0, %v5726
    %v5728 = vpop.f32.mrb[0].mxu0
    %5729 = vmatprep.mubr.f32.mxu0 0.0
    %5730 = vmatmul.mubr.f32.gmra.mrb[0].mxu0 %v4873
    %v5731 = vpop.f32.mrb[0].mxu0
    %v5732 = vadd.f32 0.0, %v5731
    %v5733 = vpop.f32.mrb[0].mxu0
    %5734 = vmatprep.mubr.f32.mxu0 0.0
    %5735 = vmatmul.mubr.f32.gmra.mrb[0].mxu0 %v4875
    %v5736 = vpop.f32.mrb[0].mxu0
    %v5737 = vadd.f32 0.0, %v5736
    %v5738 = vpop.f32.mrb[0].mxu0
    %5739 = vdwg.mxu0
    %v5740 = vadd.f32 %v5586, %v5702
    %v5741 = vadd.f32 %v5591, %v5707
    %v5742 = vadd.f32 %v5596, %v5712
    %v5743 = vadd.f32 %v5601, %v5717
    %v5744 = vadd.f32 %v5606, %v5722
    %v5745 = vadd.f32 %v5611, %v5727
    %v5746 = vadd.f32 %v5616, %v5732
    %v5747 = vadd.f32 %v5621, %v5737
    %v5748 = vadd.f32 %v5740, %v4994
    %v5749 = vadd.f32 %v5741, %v4994
    %v5750 = vadd.f32 %v5742, %v4994
    %v5751 = vadd.f32 %v5743, %v4994
    %v5752 = vadd.f32 %v5744, %v4994
    %v5753 = vadd.f32 %v5745, %v4994
    %v5754 = vadd.f32 %v5746, %v4994
    %v5755 = vadd.f32 %v5747, %v4994
    %v5756 = vmax.f32 %v5748, 0.0
    %v5757 = vmax.f32 %v5749, 0.0
    %v5758 = vmax.f32 %v5750, 0.0
    %v5759 = vmax.f32 %v5751, 0.0
    %v5760 = vmax.f32 %v5752, 0.0
    %v5761 = vmax.f32 %v5753, 0.0
    %v5762 = vmax.f32 %v5754, 0.0
    %v5763 = vmax.f32 %v5755, 0.0
    %v5764 = vmax.f32 %v5384, %v5756
    %v5765 = vmax.f32 %v5385, %v5757
    %v5766 = vmax.f32 %v5386, %v5758
    %v5767 = vmax.f32 %v5387, %v5759
    %v5768 = vmax.f32 %v5388, %v5760
    %v5769 = vmax.f32 %v5389, %v5761
    %v5770 = vmax.f32 %v5390, %v5762
    %v5771 = vmax.f32 %v5391, %v5763
    %v5772 = vld [vmem:[%s6] sm:$0x1]
    %v5773 = vld [vmem:[%s5] sm:$0xff]
    %v5774 = vld [vmem:[%s5 + $0x8] sm:$0xff]
    %v5775 = vld [vmem:[%s5 + $0x10] sm:$0xff]
    %v5776 = vld [vmem:[%s5 + $0x18] sm:$0xff]
    %v5777 = vld [vmem:[%s5 + $0x20] sm:$0xff]
    %v5778 = vld [vmem:[%s5 + $0x28] sm:$0xff]
    %v5779 = vld [vmem:[%s2505] sm:$0xff]
    %v5780 = vld [vmem:[%s2505 + $0x8] sm:$0xff]
    %v5781 = vld [vmem:[%s2505 + $0x10] sm:$0xff]
    %v5782 = vld [vmem:[%s2505 + $0x18] sm:$0xff]
    %v5783 = vld [vmem:[%s2505 + $0x20] sm:$0xff]
    %v5784 = vld [vmem:[%s2505 + $0x28] sm:$0xff]
    %v5793 = vrot.slane %v5764, 1
    %v5794 = vrot.slane %v5765, 1
    %v5795 = vsel %vm74, %v5793, %v5794
    %v5796 = vrot.slane %v5766, 1
    %v5797 = vsel %vm74, %v5794, %v5796
    %v5798 = vrot.slane %v5767, 1
    %v5799 = vsel %vm74, %v5796, %v5798
    %v5800 = vrot.slane %v5768, 1
    %v5801 = vsel %vm74, %v5798, %v5800
    %v5802 = vrot.slane %v5769, 1
    %v5803 = vsel %vm74, %v5800, %v5802
    %v5804 = vrot.slane %v5770, 1
    %v5805 = vsel %vm74, %v5802, %v5804
    %v5806 = vrot.slane %v5771, 1
    %v5807 = vsel %vm74, %v5804, %v5806
    %v5808 = vsel %vm2535, %v5795, 0
    %v5810 = vsel %vm2535, %v5797, 0
    %v5812 = vsel %vm2535, %v5799, 0
    %v5814 = vsel %vm2535, %v5801, 0
    %v5816 = vsel %vm2535, %v5803, 0
    %v5818 = vsel %vm2535, %v5805, 0
    %v5820 = vsel %vm2535, %v5807, 0
    %v5822 = vsel %vm2535, %v5806, 0
    %5824 = vmatprep.subr.mxu0 0.0
    %5825 = vmatpush1.msra.mxu0 %v5779
    %5826 = vmatprep.subr.mxu0 0.0
    %5827 = vmatpush1.msra.mxu0 %v5780
    %5828 = vmatprep.subr.mxu0 0.0
    %5829 = vmatpush1.msra.mxu0 %v5781
    %5830 = vmatprep.subr.mxu0 0.0
    %5831 = vmatpush1.msra.mxu0 %v5782
    %5832 = vmatprep.subr.mxu0 0.0
    %5833 = vmatpush1.msra.mxu0 %v5783
    %5834 = vmatprep.subr.mxu0 0.0
    %5835 = vmatpush1.msra.mxu0 %v5784
    %5836 = vmatprep.subr.mxu0 0.0
    %5837 = vmatpush1.msra.mxu0 0.0
    %5838 = vmatprep.subr.mxu0 0.0
    %5839 = vmatpush1.msra.mxu0 0.0
    %5840 = vmatprep.subr.mxu0 0.0
    %5841 = vmatpush1.msra.mxu0 0.0
    %5842 = vmatprep.subr.mxu0 0.0
    %5843 = vmatpush1.msra.mxu0 0.0
    %5844 = vmatprep.subr.mxu0 0.0
    %5845 = vmatpush1.msra.mxu0 0.0
    %5846 = vmatprep.subr.mxu0 0.0
    %5847 = vmatpush1.msra.mxu0 0.0
    %5848 = vmatprep.subr.mxu0 0.0
    %5849 = vmatpush1.msra.mxu0 0.0
    %5850 = vmatprep.subr.mxu0 0.0
    %5851 = vmatpush1.msra.mxu0 0.0
    %5852 = vmatprep.subr.mxu0 0.0
    %5853 = vmatpush1.msra.mxu0 0.0
    %5854 = vmatprep.subr.mxu0 0.0
    %5855 = vmatpush1.msra.mxu0 0.0
    %5856 = vmatprep.subr.mxu0 0.0
    %5857 = vmatpush1.msra.mxu0 0.0
    %5858 = vmatprep.subr.mxu0 0.0
    %5859 = vmatpush1.msra.mxu0 0.0
    %5860 = vmatprep.subr.mxu0 0.0
    %5861 = vmatpush1.msra.mxu0 0.0
    %5862 = vmatprep.subr.mxu0 0.0
    %5863 = vmatpush1.msra.mxu0 0.0
    %5864 = vmatprep.subr.mxu0 0.0
    %5865 = vmatpush1.msra.mxu0 0.0
    %5866 = vmatprep.subr.mxu0 0.0
    %5867 = vmatpush1.msra.mxu0 0.0
    %5868 = vmatprep.subr.mxu0 0.0
    %5869 = vmatpush1.msra.mxu0 0.0
    %5870 = vmatprep.subr.mxu0 0.0
    %5871 = vmatpush1.msra.mxu0 0.0
    %5872 = vmatprep.subr.mxu0 0.0
    %5873 = vmatpush1.msra.mxu0 0.0
    %5874 = vmatprep.subr.mxu0 0.0
    %5875 = vmatpush1.msra.mxu0 0.0
    %5876 = vmatprep.subr.mxu0 0.0
    %5877 = vmatpush1.msra.mxu0 0.0
    %5878 = vmatprep.subr.mxu0 0.0
    %5879 = vmatpush1.msra.mxu0 0.0
    %5880 = vmatprep.subr.mxu0 0.0
    %5881 = vmatpush1.msra.mxu0 0.0
    %5882 = vmatprep.subr.mxu0 0.0
    %5883 = vmatpush1.msra.mxu0 0.0
    %5884 = vmatprep.subr.mxu0 0.0
    %5885 = vmatpush1.msra.mxu0 0.0
    %5886 = vmatprep.subr.mxu0 0.0
    %5887 = vmatpush1.msra.mxu0 0.0
    %5888 = vmatprep.mubr.f32.mxu0 0.0
    %5889 = vmatmul.mubr.f32.gmra.mrb[0].mxu0 %v5808
    %v5890 = vpop.f32.mrb[0].mxu0
    %v5891 = vadd.f32 0.0, %v5890
    %v5892 = vpop.f32.mrb[0].mxu0
    %5893 = vmatprep.mubr.f32.mxu0 0.0
    %5894 = vmatmul.mubr.f32.gmra.mrb[0].mxu0 %v5810
    %v5895 = vpop.f32.mrb[0].mxu0
    %v5896 = vadd.f32 0.0, %v5895
    %v5897 = vpop.f32.mrb[0].mxu0
    %5898 = vmatprep.mubr.f32.mxu0 0.0
    %5899 = vmatmul.mubr.f32.gmra.mrb[0].mxu0 %v5812
    %v5900 = vpop.f32.mrb[0].mxu0
    %v5901 = vadd.f32 0.0, %v5900
    %v5902 = vpop.f32.mrb[0].mxu0
    %5903 = vmatprep.mubr.f32.mxu0 0.0
    %5904 = vmatmul.mubr.f32.gmra.mrb[0].mxu0 %v5814
    %v5905 = vpop.f32.mrb[0].mxu0
    %v5906 = vadd.f32 0.0, %v5905
    %v5907 = vpop.f32.mrb[0].mxu0
    %5908 = vmatprep.mubr.f32.mxu0 0.0
    %5909 = vmatmul.mubr.f32.gmra.mrb[0].mxu0 %v5816
    %v5910 = vpop.f32.mrb[0].mxu0
    %v5911 = vadd.f32 0.0, %v5910
    %v5912 = vpop.f32.mrb[0].mxu0
    %5913 = vmatprep.mubr.f32.mxu0 0.0
    %5914 = vmatmul.mubr.f32.gmra.mrb[0].mxu0 %v5818
    %v5915 = vpop.f32.mrb[0].mxu0
    %v5916 = vadd.f32 0.0, %v5915
    %v5917 = vpop.f32.mrb[0].mxu0
    %5918 = vmatprep.mubr.f32.mxu0 0.0
    %5919 = vmatmul.mubr.f32.gmra.mrb[0].mxu0 %v5820
    %v5920 = vpop.f32.mrb[0].mxu0
    %v5921 = vadd.f32 0.0, %v5920
    %v5922 = vpop.f32.mrb[0].mxu0
    %5923 = vmatprep.mubr.f32.mxu0 0.0
    %5924 = vmatmul.mubr.f32.gmra.mrb[0].mxu0 %v5822
    %v5925 = vpop.f32.mrb[0].mxu0
    %v5926 = vadd.f32 0.0, %v5925
    %v5927 = vpop.f32.mrb[0].mxu0
    %5928 = vdwg.mxu0
    %v5929 = vsel %vm2535, %v5764, 0
    %v5931 = vsel %vm2535, %v5765, 0
    %v5933 = vsel %vm2535, %v5766, 0
    %v5935 = vsel %vm2535, %v5767, 0
    %v5937 = vsel %vm2535, %v5768, 0
    %v5939 = vsel %vm2535, %v5769, 0
    %v5941 = vsel %vm2535, %v5770, 0
    %v5943 = vsel %vm2535, %v5771, 0
    %5945 = vmatprep.subr.mxu0 0.0
    %5946 = vmatpush1.msra.mxu0 %v5773
    %5947 = vmatprep.subr.mxu0 0.0
    %5948 = vmatpush1.msra.mxu0 %v5774
    %5949 = vmatprep.subr.mxu0 0.0
    %5950 = vmatpush1.msra.mxu0 %v5775
    %5951 = vmatprep.subr.mxu0 0.0
    %5952 = vmatpush1.msra.mxu0 %v5776
    %5953 = vmatprep.subr.mxu0 0.0
    %5954 = vmatpush1.msra.mxu0 %v5777
    %5955 = vmatprep.subr.mxu0 0.0
    %5956 = vmatpush1.msra.mxu0 %v5778
    %5957 = vmatprep.subr.mxu0 0.0
    %5958 = vmatpush1.msra.mxu0 0.0
    %5959 = vmatprep.subr.mxu0 0.0
    %5960 = vmatpush1.msra.mxu0 0.0
    %5961 = vmatprep.subr.mxu0 0.0
    %5962 = vmatpush1.msra.mxu0 0.0
    %5963 = vmatprep.subr.mxu0 0.0
    %5964 = vmatpush1.msra.mxu0 0.0
    %5965 = vmatprep.subr.mxu0 0.0
    %5966 = vmatpush1.msra.mxu0 0.0
    %5967 = vmatprep.subr.mxu0 0.0
    %5968 = vmatpush1.msra.mxu0 0.0
    %5969 = vmatprep.subr.mxu0 0.0
    %5970 = vmatpush1.msra.mxu0 0.0
    %5971 = vmatprep.subr.mxu0 0.0
    %5972 = vmatpush1.msra.mxu0 0.0
    %5973 = vmatprep.subr.mxu0 0.0
    %5974 = vmatpush1.msra.mxu0 0.0
    %5975 = vmatprep.subr.mxu0 0.0
    %5976 = vmatpush1.msra.mxu0 0.0
    %5977 = vmatprep.subr.mxu0 0.0
    %5978 = vmatpush1.msra.mxu0 0.0
    %5979 = vmatprep.subr.mxu0 0.0
    %5980 = vmatpush1.msra.mxu0 0.0
    %5981 = vmatprep.subr.mxu0 0.0
    %5982 = vmatpush1.msra.mxu0 0.0
    %5983 = vmatprep.subr.mxu0 0.0
    %5984 = vmatpush1.msra.mxu0 0.0
    %5985 = vmatprep.subr.mxu0 0.0
    %5986 = vmatpush1.msra.mxu0 0.0
    %5987 = vmatprep.subr.mxu0 0.0
    %5988 = vmatpush1.msra.mxu0 0.0
    %5989 = vmatprep.subr.mxu0 0.0
    %5990 = vmatpush1.msra.mxu0 0.0
    %5991 = vmatprep.subr.mxu0 0.0
    %5992 = vmatpush1.msra.mxu0 0.0
    %5993 = vmatprep.subr.mxu0 0.0
    %5994 = vmatpush1.msra.mxu0 0.0
    %5995 = vmatprep.subr.mxu0 0.0
    %5996 = vmatpush1.msra.mxu0 0.0
    %5997 = vmatprep.subr.mxu0 0.0
    %5998 = vmatpush1.msra.mxu0 0.0
    %5999 = vmatprep.subr.mxu0 0.0
    %6000 = vmatpush1.msra.mxu0 0.0
    %6001 = vmatprep.subr.mxu0 0.0
    %6002 = vmatpush1.msra.mxu0 0.0
    %6003 = vmatprep.subr.mxu0 0.0
    %6004 = vmatpush1.msra.mxu0 0.0
    %6005 = vmatprep.subr.mxu0 0.0
    %6006 = vmatpush1.msra.mxu0 0.0
    %6007 = vmatprep.subr.mxu0 0.0
    %6008 = vmatpush1.msra.mxu0 0.0
    %6009 = vmatprep.mubr.f32.mxu0 0.0
    %6010 = vmatmul.mubr.f32.gmra.mrb[0].mxu0 %v5929
    %v6011 = vpop.f32.mrb[0].mxu0
    %v6012 = vadd.f32 %v5891, %v6011
    %v6013 = vpop.f32.mrb[0].mxu0
    %6014 = vmatprep.mubr.f32.mxu0 0.0
    %6015 = vmatmul.mubr.f32.gmra.mrb[0].mxu0 %v5931
    %v6016 = vpop.f32.mrb[0].mxu0
    %v6017 = vadd.f32 %v5896, %v6016
    %v6018 = vpop.f32.mrb[0].mxu0
    %6019 = vmatprep.mubr.f32.mxu0 0.0
    %6020 = vmatmul.mubr.f32.gmra.mrb[0].mxu0 %v5933
    %v6021 = vpop.f32.mrb[0].mxu0
    %v6022 = vadd.f32 %v5901, %v6021
    %v6023 = vpop.f32.mrb[0].mxu0
    %6024 = vmatprep.mubr.f32.mxu0 0.0
    %6025 = vmatmul.mubr.f32.gmra.mrb[0].mxu0 %v5935
    %v6026 = vpop.f32.mrb[0].mxu0
    %v6027 = vadd.f32 %v5906, %v6026
    %v6028 = vpop.f32.mrb[0].mxu0
    %6029 = vmatprep.mubr.f32.mxu0 0.0
    %6030 = vmatmul.mubr.f32.gmra.mrb[0].mxu0 %v5937
    %v6031 = vpop.f32.mrb[0].mxu0
    %v6032 = vadd.f32 %v5911, %v6031
    %v6033 = vpop.f32.mrb[0].mxu0
    %6034 = vmatprep.mubr.f32.mxu0 0.0
    %6035 = vmatmul.mubr.f32.gmra.mrb[0].mxu0 %v5939
    %v6036 = vpop.f32.mrb[0].mxu0
    %v6037 = vadd.f32 %v5916, %v6036
    %v6038 = vpop.f32.mrb[0].mxu0
    %6039 = vmatprep.mubr.f32.mxu0 0.0
    %6040 = vmatmul.mubr.f32.gmra.mrb[0].mxu0 %v5941
    %v6041 = vpop.f32.mrb[0].mxu0
    %v6042 = vadd.f32 %v5921, %v6041
    %v6043 = vpop.f32.mrb[0].mxu0
    %6044 = vmatprep.mubr.f32.mxu0 0.0
    %6045 = vmatmul.mubr.f32.gmra.mrb[0].mxu0 %v5943
    %v6046 = vpop.f32.mrb[0].mxu0
    %v6047 = vadd.f32 %v5926, %v6046
    %v6048 = vpop.f32.mrb[0].mxu0
    %6049 = vdwg.mxu0
    %v6050 = vld [vmem:[%s2778] sm:$0xff]
    %v6051 = vld [vmem:[%s2778 + $0x8] sm:$0xff]
    %v6052 = vld [vmem:[%s2778 + $0x10] sm:$0xff]
    %v6053 = vld [vmem:[%s2778 + $0x18] sm:$0xff]
    %v6054 = vld [vmem:[%s2778 + $0x20] sm:$0xff]
    %v6055 = vld [vmem:[%s2778 + $0x28] sm:$0xff]
    %v6056 = vrot.slane %v5764, 2
    %v6057 = vrot.slane %v5765, 2
    %v6058 = vsel %vm346, %v6056, %v6057
    %v6059 = vrot.slane %v5766, 2
    %v6060 = vsel %vm346, %v6057, %v6059
    %v6061 = vrot.slane %v5767, 2
    %v6062 = vsel %vm346, %v6059, %v6061
    %v6063 = vrot.slane %v5768, 2
    %v6064 = vsel %vm346, %v6061, %v6063
    %v6065 = vrot.slane %v5769, 2
    %v6066 = vsel %vm346, %v6063, %v6065
    %v6067 = vrot.slane %v5770, 2
    %v6068 = vsel %vm346, %v6065, %v6067
    %v6069 = vrot.slane %v5771, 2
    %v6070 = vsel %vm346, %v6067, %v6069
    %v6071 = vsel %vm2535, %v6058, 0
    %v6073 = vsel %vm2535, %v6060, 0
    %v6075 = vsel %vm2535, %v6062, 0
    %v6077 = vsel %vm2535, %v6064, 0
    %v6079 = vsel %vm2535, %v6066, 0
    %v6081 = vsel %vm2535, %v6068, 0
    %v6083 = vsel %vm2535, %v6070, 0
    %v6085 = vsel %vm2535, %v6069, 0
    %6087 = vmatprep.subr.mxu0 0.0
    %6088 = vmatpush1.msra.mxu0 %v6050
    %6089 = vmatprep.subr.mxu0 0.0
    %6090 = vmatpush1.msra.mxu0 %v6051
    %6091 = vmatprep.subr.mxu0 0.0
    %6092 = vmatpush1.msra.mxu0 %v6052
    %6093 = vmatprep.subr.mxu0 0.0
    %6094 = vmatpush1.msra.mxu0 %v6053
    %6095 = vmatprep.subr.mxu0 0.0
    %6096 = vmatpush1.msra.mxu0 %v6054
    %6097 = vmatprep.subr.mxu0 0.0
    %6098 = vmatpush1.msra.mxu0 %v6055
    %6099 = vmatprep.subr.mxu0 0.0
    %6100 = vmatpush1.msra.mxu0 0.0
    %6101 = vmatprep.subr.mxu0 0.0
    %6102 = vmatpush1.msra.mxu0 0.0
    %6103 = vmatprep.subr.mxu0 0.0
    %6104 = vmatpush1.msra.mxu0 0.0
    %6105 = vmatprep.subr.mxu0 0.0
    %6106 = vmatpush1.msra.mxu0 0.0
    %6107 = vmatprep.subr.mxu0 0.0
    %6108 = vmatpush1.msra.mxu0 0.0
    %6109 = vmatprep.subr.mxu0 0.0
    %6110 = vmatpush1.msra.mxu0 0.0
    %6111 = vmatprep.subr.mxu0 0.0
    %6112 = vmatpush1.msra.mxu0 0.0
    %6113 = vmatprep.subr.mxu0 0.0
    %6114 = vmatpush1.msra.mxu0 0.0
    %6115 = vmatprep.subr.mxu0 0.0
    %6116 = vmatpush1.msra.mxu0 0.0
    %6117 = vmatprep.subr.mxu0 0.0
    %6118 = vmatpush1.msra.mxu0 0.0
    %6119 = vmatprep.subr.mxu0 0.0
    %6120 = vmatpush1.msra.mxu0 0.0
    %6121 = vmatprep.subr.mxu0 0.0
    %6122 = vmatpush1.msra.mxu0 0.0
    %6123 = vmatprep.subr.mxu0 0.0
    %6124 = vmatpush1.msra.mxu0 0.0
    %6125 = vmatprep.subr.mxu0 0.0
    %6126 = vmatpush1.msra.mxu0 0.0
    %6127 = vmatprep.subr.mxu0 0.0
    %6128 = vmatpush1.msra.mxu0 0.0
    %6129 = vmatprep.subr.mxu0 0.0
    %6130 = vmatpush1.msra.mxu0 0.0
    %6131 = vmatprep.subr.mxu0 0.0
    %6132 = vmatpush1.msra.mxu0 0.0
    %6133 = vmatprep.subr.mxu0 0.0
    %6134 = vmatpush1.msra.mxu0 0.0
    %6135 = vmatprep.subr.mxu0 0.0
    %6136 = vmatpush1.msra.mxu0 0.0
    %6137 = vmatprep.subr.mxu0 0.0
    %6138 = vmatpush1.msra.mxu0 0.0
    %6139 = vmatprep.subr.mxu0 0.0
    %6140 = vmatpush1.msra.mxu0 0.0
    %6141 = vmatprep.subr.mxu0 0.0
    %6142 = vmatpush1.msra.mxu0 0.0
    %6143 = vmatprep.subr.mxu0 0.0
    %6144 = vmatpush1.msra.mxu0 0.0
    %6145 = vmatprep.subr.mxu0 0.0
    %6146 = vmatpush1.msra.mxu0 0.0
    %6147 = vmatprep.subr.mxu0 0.0
    %6148 = vmatpush1.msra.mxu0 0.0
    %6149 = vmatprep.subr.mxu0 0.0
    %6150 = vmatpush1.msra.mxu0 0.0
    %6151 = vmatprep.mubr.f32.mxu0 0.0
    %6152 = vmatmul.mubr.f32.gmra.mrb[0].mxu0 %v6071
    %v6153 = vpop.f32.mrb[0].mxu0
    %v6154 = vadd.f32 0.0, %v6153
    %v6155 = vpop.f32.mrb[0].mxu0
    %6156 = vmatprep.mubr.f32.mxu0 0.0
    %6157 = vmatmul.mubr.f32.gmra.mrb[0].mxu0 %v6073
    %v6158 = vpop.f32.mrb[0].mxu0
    %v6159 = vadd.f32 0.0, %v6158
    %v6160 = vpop.f32.mrb[0].mxu0
    %6161 = vmatprep.mubr.f32.mxu0 0.0
    %6162 = vmatmul.mubr.f32.gmra.mrb[0].mxu0 %v6075
    %v6163 = vpop.f32.mrb[0].mxu0
    %v6164 = vadd.f32 0.0, %v6163
    %v6165 = vpop.f32.mrb[0].mxu0
    %6166 = vmatprep.mubr.f32.mxu0 0.0
    %6167 = vmatmul.mubr.f32.gmra.mrb[0].mxu0 %v6077
    %v6168 = vpop.f32.mrb[0].mxu0
    %v6169 = vadd.f32 0.0, %v6168
    %v6170 = vpop.f32.mrb[0].mxu0
    %6171 = vmatprep.mubr.f32.mxu0 0.0
    %6172 = vmatmul.mubr.f32.gmra.mrb[0].mxu0 %v6079
    %v6173 = vpop.f32.mrb[0].mxu0
    %v6174 = vadd.f32 0.0, %v6173
    %v6175 = vpop.f32.mrb[0].mxu0
    %6176 = vmatprep.mubr.f32.mxu0 0.0
    %6177 = vmatmul.mubr.f32.gmra.mrb[0].mxu0 %v6081
    %v6178 = vpop.f32.mrb[0].mxu0
    %v6179 = vadd.f32 0.0, %v6178
    %v6180 = vpop.f32.mrb[0].mxu0
    %6181 = vmatprep.mubr.f32.mxu0 0.0
    %6182 = vmatmul.mubr.f32.gmra.mrb[0].mxu0 %v6083
    %v6183 = vpop.f32.mrb[0].mxu0
    %v6184 = vadd.f32 0.0, %v6183
    %v6185 = vpop.f32.mrb[0].mxu0
    %6186 = vmatprep.mubr.f32.mxu0 0.0
    %6187 = vmatmul.mubr.f32.gmra.mrb[0].mxu0 %v6085
    %v6188 = vpop.f32.mrb[0].mxu0
    %v6189 = vadd.f32 0.0, %v6188
    %v6190 = vpop.f32.mrb[0].mxu0
    %6191 = vdwg.mxu0
    %v6192 = vadd.f32 %v6012, %v6154
    %v6193 = vadd.f32 %v6017, %v6159
    %v6194 = vadd.f32 %v6022, %v6164
    %v6195 = vadd.f32 %v6027, %v6169
    %v6196 = vadd.f32 %v6032, %v6174
    %v6197 = vadd.f32 %v6037, %v6179
    %v6198 = vadd.f32 %v6042, %v6184
    %v6199 = vadd.f32 %v6047, %v6189
    %v6201 = vlaneseq
    %v6202 = vshrl.u32 %v6201, 7
    %v6203 = vsub.s32 0, %v6202
    %v6204 = vrot.slane %v5772, %v6203
    %v6206 = vadd.f32 %v6192, %v6204
    %v6207 = vadd.f32 %v6193, %v6204
    %v6208 = vadd.f32 %v6194, %v6204
    %v6209 = vadd.f32 %v6195, %v6204
    %v6210 = vadd.f32 %v6196, %v6204
    %v6211 = vadd.f32 %v6197, %v6204
    %v6212 = vadd.f32 %v6198, %v6204
    %v6213 = vadd.f32 %v6199, %v6204
    %v6214 = vmax.f32 %v6206, 0.0
    %v6215 = vmax.f32 %v6207, 0.0
    %v6216 = vmax.f32 %v6208, 0.0
    %v6217 = vmax.f32 %v6209, 0.0
    %v6218 = vmax.f32 %v6210, 0.0
    %v6219 = vmax.f32 %v6211, 0.0
    %v6220 = vmax.f32 %v6212, 0.0
    %v6221 = vmax.f32 %v6213, 0.0
    %6222 = vst.msk [vmem:[#allocation2 + $0x1] sm:$0x1] %vm2951, %v6214
    %v6225 = vunpack.c.l.s4 1983009808
    %v6226 = vunpack.c.0.s8 %v6225
    %v6227 = vlaneseq
    %v6228 = vshrl.u32 %v6227, 7
    %v6229 = vsub.s32 %v6226, %v6228
    %v6230 = vrot.slane %v6214, %v6229
    %v6231 = vrot.slane %v6230, 7
    %v6232 = vrot.slane %v6231, 2
    %6233 = vrot.lane.b32.xlu0 %v6232, 32
    %v6234 = vpop.permute.xlu0 %6233
    %6236 = vst.msk [vmem:[#allocation2 + $0x1] sm:$0x1] %vm2966, %v6234
    %v6237 = vcombine.high %v6230, %v6230
    %6238 = vrot.lane.b32.xlu0 %v6237, 64
    %v6239 = vpop.permute.xlu0 %6238
    %6241 = vst.msk [vmem:[#allocation2 + $0x1] sm:$0x1] %vm2972, %v6239
    %v6242 = vrot.slane %v6237, 7
    %v6243 = vrot.slane %v6242, 2
    %6244 = vrot.lane.b32.xlu0 %v6243, 96
    %v6245 = vpop.permute.xlu0 %6244
    %6247 = vst.msk [vmem:[#allocation2 + $0x1] sm:$0x1] %vm2979, %v6245
    %v6248 = vcombine.high %v6214, %v6214
    %v6250 = vunpack.c.l.s4 1983009808
    %v6251 = vunpack.c.0.s8 %v6250
    %v6252 = vlaneseq
    %v6253 = vshrl.u32 %v6252, 7
    %v6254 = vsub.s32 %v6251, %v6253
    %v6255 = vrot.slane %v6248, %v6254
    %6257 = vst.msk [vmem:[#allocation2 + $0x3] sm:$0x1] %vm2951, %v6255
    %v6258 = vrot.slane %v6255, 7
    %v6259 = vrot.slane %v6258, 2
    %6260 = vrot.lane.b32.xlu0 %v6259, 32
    %v6261 = vpop.permute.xlu0 %6260
    %6263 = vst.msk [vmem:[#allocation2 + $0x3] sm:$0x1] %vm2966, %v6261
    %v6264 = vcombine.high %v6255, %v6255
    %6265 = vrot.lane.b32.xlu0 %v6264, 64
    %v6266 = vpop.permute.xlu0 %6265
    %6268 = vst.msk [vmem:[#allocation2 + $0x3] sm:$0x1] %vm2972, %v6266
    %v6269 = vrot.slane %v6264, 7
    %v6270 = vrot.slane %v6269, 2
    %6271 = vrot.lane.b32.xlu0 %v6270, 96
    %v6272 = vpop.permute.xlu0 %6271
    %6274 = vst.msk [vmem:[#allocation2 + $0x3] sm:$0x1] %vm2979, %v6272
    %6275 = vst.msk [vmem:[#allocation2 + $0x5] sm:$0x1] %vm2951, %v6215
    %v6278 = vunpack.c.l.s4 1983009808
    %v6279 = vunpack.c.0.s8 %v6278
    %v6280 = vlaneseq
    %v6281 = vshrl.u32 %v6280, 7
    %v6282 = vsub.s32 %v6279, %v6281
    %v6283 = vrot.slane %v6215, %v6282
    %v6284 = vrot.slane %v6283, 7
    %v6285 = vrot.slane %v6284, 2
    %6286 = vrot.lane.b32.xlu0 %v6285, 32
    %v6287 = vpop.permute.xlu0 %6286
    %6289 = vst.msk [vmem:[#allocation2 + $0x5] sm:$0x1] %vm2966, %v6287
    %v6290 = vcombine.high %v6283, %v6283
    %6291 = vrot.lane.b32.xlu0 %v6290, 64
    %v6292 = vpop.permute.xlu0 %6291
    %6294 = vst.msk [vmem:[#allocation2 + $0x5] sm:$0x1] %vm2972, %v6292
    %v6295 = vrot.slane %v6290, 7
    %v6296 = vrot.slane %v6295, 2
    %6297 = vrot.lane.b32.xlu0 %v6296, 96
    %v6298 = vpop.permute.xlu0 %6297
    %6300 = vst.msk [vmem:[#allocation2 + $0x5] sm:$0x1] %vm2979, %v6298
    %v6301 = vcombine.high %v6215, %v6215
    %v6303 = vunpack.c.l.s4 1983009808
    %v6304 = vunpack.c.0.s8 %v6303
    %v6305 = vlaneseq
    %v6306 = vshrl.u32 %v6305, 7
    %v6307 = vsub.s32 %v6304, %v6306
    %v6308 = vrot.slane %v6301, %v6307
    %6310 = vst.msk [vmem:[#allocation2 + $0x7] sm:$0x1] %vm2951, %v6308
    %v6311 = vrot.slane %v6308, 7
    %v6312 = vrot.slane %v6311, 2
    %6313 = vrot.lane.b32.xlu0 %v6312, 32
    %v6314 = vpop.permute.xlu0 %6313
    %6316 = vst.msk [vmem:[#allocation2 + $0x7] sm:$0x1] %vm2966, %v6314
    %v6317 = vcombine.high %v6308, %v6308
    %6318 = vrot.lane.b32.xlu0 %v6317, 64
    %v6319 = vpop.permute.xlu0 %6318
    %6321 = vst.msk [vmem:[#allocation2 + $0x7] sm:$0x1] %vm2972, %v6319
    %v6322 = vrot.slane %v6317, 7
    %v6323 = vrot.slane %v6322, 2
    %6324 = vrot.lane.b32.xlu0 %v6323, 96
    %v6325 = vpop.permute.xlu0 %6324
    %6327 = vst.msk [vmem:[#allocation2 + $0x7] sm:$0x1] %vm2979, %v6325
    %6328 = vst.msk [vmem:[#allocation2 + $0x9] sm:$0x1] %vm2951, %v6216
    %v6331 = vunpack.c.l.s4 1983009808
    %v6332 = vunpack.c.0.s8 %v6331
    %v6333 = vlaneseq
    %v6334 = vshrl.u32 %v6333, 7
    %v6335 = vsub.s32 %v6332, %v6334
    %v6336 = vrot.slane %v6216, %v6335
    %v6337 = vrot.slane %v6336, 7
    %v6338 = vrot.slane %v6337, 2
    %6339 = vrot.lane.b32.xlu0 %v6338, 32
    %v6340 = vpop.permute.xlu0 %6339
    %6342 = vst.msk [vmem:[#allocation2 + $0x9] sm:$0x1] %vm2966, %v6340
    %v6343 = vcombine.high %v6336, %v6336
    %6344 = vrot.lane.b32.xlu0 %v6343, 64
    %v6345 = vpop.permute.xlu0 %6344
    %6347 = vst.msk [vmem:[#allocation2 + $0x9] sm:$0x1] %vm2972, %v6345
    %v6348 = vrot.slane %v6343, 7
    %v6349 = vrot.slane %v6348, 2
    %6350 = vrot.lane.b32.xlu0 %v6349, 96
    %v6351 = vpop.permute.xlu0 %6350
    %6353 = vst.msk [vmem:[#allocation2 + $0x9] sm:$0x1] %vm2979, %v6351
    %v6354 = vcombine.high %v6216, %v6216
    %v6356 = vunpack.c.l.s4 1983009808
    %v6357 = vunpack.c.0.s8 %v6356
    %v6358 = vlaneseq
    %v6359 = vshrl.u32 %v6358, 7
    %v6360 = vsub.s32 %v6357, %v6359
    %v6361 = vrot.slane %v6354, %v6360
    %6363 = vst.msk [vmem:[#allocation2 + $0xb] sm:$0x1] %vm2951, %v6361
    %v6364 = vrot.slane %v6361, 7
    %v6365 = vrot.slane %v6364, 2
    %6366 = vrot.lane.b32.xlu0 %v6365, 32
    %v6367 = vpop.permute.xlu0 %6366
    %6369 = vst.msk [vmem:[#allocation2 + $0xb] sm:$0x1] %vm2966, %v6367
    %v6370 = vcombine.high %v6361, %v6361
    %6371 = vrot.lane.b32.xlu0 %v6370, 64
    %v6372 = vpop.permute.xlu0 %6371
    %6374 = vst.msk [vmem:[#allocation2 + $0xb] sm:$0x1] %vm2972, %v6372
    %v6375 = vrot.slane %v6370, 7
    %v6376 = vrot.slane %v6375, 2
    %6377 = vrot.lane.b32.xlu0 %v6376, 96
    %v6378 = vpop.permute.xlu0 %6377
    %6380 = vst.msk [vmem:[#allocation2 + $0xb] sm:$0x1] %vm2979, %v6378
    %6381 = vst.msk [vmem:[#allocation2 + $0xd] sm:$0x1] %vm2951, %v6217
    %v6384 = vunpack.c.l.s4 1983009808
    %v6385 = vunpack.c.0.s8 %v6384
    %v6386 = vlaneseq
    %v6387 = vshrl.u32 %v6386, 7
    %v6388 = vsub.s32 %v6385, %v6387
    %v6389 = vrot.slane %v6217, %v6388
    %v6390 = vrot.slane %v6389, 7
    %v6391 = vrot.slane %v6390, 2
    %6392 = vrot.lane.b32.xlu0 %v6391, 32
    %v6393 = vpop.permute.xlu0 %6392
    %6395 = vst.msk [vmem:[#allocation2 + $0xd] sm:$0x1] %vm2966, %v6393
    %v6396 = vcombine.high %v6389, %v6389
    %6397 = vrot.lane.b32.xlu0 %v6396, 64
    %v6398 = vpop.permute.xlu0 %6397
    %6400 = vst.msk [vmem:[#allocation2 + $0xd] sm:$0x1] %vm2972, %v6398
    %v6401 = vrot.slane %v6396, 7
    %v6402 = vrot.slane %v6401, 2
    %6403 = vrot.lane.b32.xlu0 %v6402, 96
    %v6404 = vpop.permute.xlu0 %6403
    %6406 = vst.msk [vmem:[#allocation2 + $0xd] sm:$0x1] %vm2979, %v6404
    %v6407 = vcombine.high %v6217, %v6217
    %v6409 = vunpack.c.l.s4 1983009808
    %v6410 = vunpack.c.0.s8 %v6409
    %v6411 = vlaneseq
    %v6412 = vshrl.u32 %v6411, 7
    %v6413 = vsub.s32 %v6410, %v6412
    %v6414 = vrot.slane %v6407, %v6413
    %6416 = vst.msk [vmem:[#allocation2 + $0xf] sm:$0x1] %vm2951, %v6414
    %v6417 = vrot.slane %v6414, 7
    %v6418 = vrot.slane %v6417, 2
    %6419 = vrot.lane.b32.xlu0 %v6418, 32
    %v6420 = vpop.permute.xlu0 %6419
    %6422 = vst.msk [vmem:[#allocation2 + $0xf] sm:$0x1] %vm2966, %v6420
    %v6423 = vcombine.high %v6414, %v6414
    %6424 = vrot.lane.b32.xlu0 %v6423, 64
    %v6425 = vpop.permute.xlu0 %6424
    %6427 = vst.msk [vmem:[#allocation2 + $0xf] sm:$0x1] %vm2972, %v6425
    %v6428 = vrot.slane %v6423, 7
    %v6429 = vrot.slane %v6428, 2
    %6430 = vrot.lane.b32.xlu0 %v6429, 96
    %v6431 = vpop.permute.xlu0 %6430
    %6433 = vst.msk [vmem:[#allocation2 + $0xf] sm:$0x1] %vm2979, %v6431
    %6434 = vst.msk [vmem:[#allocation2 + $0x11] sm:$0x1] %vm2951, %v6218
    %v6437 = vunpack.c.l.s4 1983009808
    %v6438 = vunpack.c.0.s8 %v6437
    %v6439 = vlaneseq
    %v6440 = vshrl.u32 %v6439, 7
    %v6441 = vsub.s32 %v6438, %v6440
    %v6442 = vrot.slane %v6218, %v6441
    %v6443 = vrot.slane %v6442, 7
    %v6444 = vrot.slane %v6443, 2
    %6445 = vrot.lane.b32.xlu0 %v6444, 32
    %v6446 = vpop.permute.xlu0 %6445
    %6448 = vst.msk [vmem:[#allocation2 + $0x11] sm:$0x1] %vm2966, %v6446
    %v6449 = vcombine.high %v6442, %v6442
    %6450 = vrot.lane.b32.xlu0 %v6449, 64
    %v6451 = vpop.permute.xlu0 %6450
    %6453 = vst.msk [vmem:[#allocation2 + $0x11] sm:$0x1] %vm2972, %v6451
    %v6454 = vrot.slane %v6449, 7
    %v6455 = vrot.slane %v6454, 2
    %6456 = vrot.lane.b32.xlu0 %v6455, 96
    %v6457 = vpop.permute.xlu0 %6456
    %6459 = vst.msk [vmem:[#allocation2 + $0x11] sm:$0x1] %vm2979, %v6457
    %v6460 = vcombine.high %v6218, %v6218
    %v6462 = vunpack.c.l.s4 1983009808
    %v6463 = vunpack.c.0.s8 %v6462
    %v6464 = vlaneseq
    %v6465 = vshrl.u32 %v6464, 7
    %v6466 = vsub.s32 %v6463, %v6465
    %v6467 = vrot.slane %v6460, %v6466
    %6469 = vst.msk [vmem:[#allocation2 + $0x13] sm:$0x1] %vm2951, %v6467
    %v6470 = vrot.slane %v6467, 7
    %v6471 = vrot.slane %v6470, 2
    %6472 = vrot.lane.b32.xlu0 %v6471, 32
    %v6473 = vpop.permute.xlu0 %6472
    %6475 = vst.msk [vmem:[#allocation2 + $0x13] sm:$0x1] %vm2966, %v6473
    %v6476 = vcombine.high %v6467, %v6467
    %6477 = vrot.lane.b32.xlu0 %v6476, 64
    %v6478 = vpop.permute.xlu0 %6477
    %6480 = vst.msk [vmem:[#allocation2 + $0x13] sm:$0x1] %vm2972, %v6478
    %v6481 = vrot.slane %v6476, 7
    %v6482 = vrot.slane %v6481, 2
    %6483 = vrot.lane.b32.xlu0 %v6482, 96
    %v6484 = vpop.permute.xlu0 %6483
    %6486 = vst.msk [vmem:[#allocation2 + $0x13] sm:$0x1] %vm2979, %v6484
    %6487 = vst.msk [vmem:[#allocation2 + $0x15] sm:$0x1] %vm2951, %v6219
    %v6490 = vunpack.c.l.s4 1983009808
    %v6491 = vunpack.c.0.s8 %v6490
    %v6492 = vlaneseq
    %v6493 = vshrl.u32 %v6492, 7
    %v6494 = vsub.s32 %v6491, %v6493
    %v6495 = vrot.slane %v6219, %v6494
    %v6496 = vrot.slane %v6495, 7
    %v6497 = vrot.slane %v6496, 2
    %6498 = vrot.lane.b32.xlu0 %v6497, 32
    %v6499 = vpop.permute.xlu0 %6498
    %6501 = vst.msk [vmem:[#allocation2 + $0x15] sm:$0x1] %vm2966, %v6499
    %v6502 = vcombine.high %v6495, %v6495
    %6503 = vrot.lane.b32.xlu0 %v6502, 64
    %v6504 = vpop.permute.xlu0 %6503
    %6506 = vst.msk [vmem:[#allocation2 + $0x15] sm:$0x1] %vm2972, %v6504
    %v6507 = vrot.slane %v6502, 7
    %v6508 = vrot.slane %v6507, 2
    %6509 = vrot.lane.b32.xlu0 %v6508, 96
    %v6510 = vpop.permute.xlu0 %6509
    %6512 = vst.msk [vmem:[#allocation2 + $0x15] sm:$0x1] %vm2979, %v6510
    %v6513 = vcombine.high %v6219, %v6219
    %v6515 = vunpack.c.l.s4 1983009808
    %v6516 = vunpack.c.0.s8 %v6515
    %v6517 = vlaneseq
    %v6518 = vshrl.u32 %v6517, 7
    %v6519 = vsub.s32 %v6516, %v6518
    %v6520 = vrot.slane %v6513, %v6519
    %6522 = vst.msk [vmem:[#allocation2 + $0x17] sm:$0x1] %vm2951, %v6520
    %v6523 = vrot.slane %v6520, 7
    %v6524 = vrot.slane %v6523, 2
    %6525 = vrot.lane.b32.xlu0 %v6524, 32
    %v6526 = vpop.permute.xlu0 %6525
    %6528 = vst.msk [vmem:[#allocation2 + $0x17] sm:$0x1] %vm2966, %v6526
    %v6529 = vcombine.high %v6520, %v6520
    %6530 = vrot.lane.b32.xlu0 %v6529, 64
    %v6531 = vpop.permute.xlu0 %6530
    %6533 = vst.msk [vmem:[#allocation2 + $0x17] sm:$0x1] %vm2972, %v6531
    %v6534 = vrot.slane %v6529, 7
    %v6535 = vrot.slane %v6534, 2
    %6536 = vrot.lane.b32.xlu0 %v6535, 96
    %v6537 = vpop.permute.xlu0 %6536
    %6539 = vst.msk [vmem:[#allocation2 + $0x17] sm:$0x1] %vm2979, %v6537
    %6540 = vst.msk [vmem:[#allocation2 + $0x19] sm:$0x1] %vm2951, %v6220
    %v6543 = vunpack.c.l.s4 1983009808
    %v6544 = vunpack.c.0.s8 %v6543
    %v6545 = vlaneseq
    %v6546 = vshrl.u32 %v6545, 7
    %v6547 = vsub.s32 %v6544, %v6546
    %v6548 = vrot.slane %v6220, %v6547
    %v6549 = vrot.slane %v6548, 7
    %v6550 = vrot.slane %v6549, 2
    %6551 = vrot.lane.b32.xlu0 %v6550, 32
    %v6552 = vpop.permute.xlu0 %6551
    %6554 = vst.msk [vmem:[#allocation2 + $0x19] sm:$0x1] %vm2966, %v6552
    %v6555 = vcombine.high %v6548, %v6548
    %6556 = vrot.lane.b32.xlu0 %v6555, 64
    %v6557 = vpop.permute.xlu0 %6556
    %6559 = vst.msk [vmem:[#allocation2 + $0x19] sm:$0x1] %vm2972, %v6557
    %v6560 = vrot.slane %v6555, 7
    %v6561 = vrot.slane %v6560, 2
    %6562 = vrot.lane.b32.xlu0 %v6561, 96
    %v6563 = vpop.permute.xlu0 %6562
    %6565 = vst.msk [vmem:[#allocation2 + $0x19] sm:$0x1] %vm2979, %v6563
    %v6566 = vcombine.high %v6220, %v6220
    %v6568 = vunpack.c.l.s4 1983009808
    %v6569 = vunpack.c.0.s8 %v6568
    %v6570 = vlaneseq
    %v6571 = vshrl.u32 %v6570, 7
    %v6572 = vsub.s32 %v6569, %v6571
    %v6573 = vrot.slane %v6566, %v6572
    %6575 = vst.msk [vmem:[#allocation2 + $0x1b] sm:$0x1] %vm2951, %v6573
    %v6576 = vrot.slane %v6573, 7
    %v6577 = vrot.slane %v6576, 2
    %6578 = vrot.lane.b32.xlu0 %v6577, 32
    %v6579 = vpop.permute.xlu0 %6578
    %6581 = vst.msk [vmem:[#allocation2 + $0x1b] sm:$0x1] %vm2966, %v6579
    %v6582 = vcombine.high %v6573, %v6573
    %6583 = vrot.lane.b32.xlu0 %v6582, 64
    %v6584 = vpop.permute.xlu0 %6583
    %6586 = vst.msk [vmem:[#allocation2 + $0x1b] sm:$0x1] %vm2972, %v6584
    %v6587 = vrot.slane %v6582, 7
    %v6588 = vrot.slane %v6587, 2
    %6589 = vrot.lane.b32.xlu0 %v6588, 96
    %v6590 = vpop.permute.xlu0 %6589
    %6592 = vst.msk [vmem:[#allocation2 + $0x1b] sm:$0x1] %vm2979, %v6590
    %6593 = vst.msk [vmem:[#allocation2 + $0x1d] sm:$0x1] %vm2951, %v6221
    %v6596 = vunpack.c.l.s4 1983009808
    %v6597 = vunpack.c.0.s8 %v6596
    %v6598 = vlaneseq
    %v6599 = vshrl.u32 %v6598, 7
    %v6600 = vsub.s32 %v6597, %v6599
    %v6601 = vrot.slane %v6221, %v6600
    %v6602 = vrot.slane %v6601, 7
    %v6603 = vrot.slane %v6602, 2
    %6604 = vrot.lane.b32.xlu0 %v6603, 32
    %v6605 = vpop.permute.xlu0 %6604
    %6607 = vst.msk [vmem:[#allocation2 + $0x1d] sm:$0x1] %vm2966, %v6605
    %v6608 = vld [vmem:[#allocation2] sm:$0xff]
    %v6609 = vld [vmem:[#allocation2 + $0x8] sm:$0xff]
    %v6610 = vld [vmem:[#allocation2 + $0x10] sm:$0xff]
    %v6611 = vld [vmem:[#allocation2 + $0x18] sm:$0x3f]
    %v6612 = vld [vmem:[%s7] sm:$0xff]
    %v6613 = vld [vmem:[%s7 + $0x8] sm:$0xff]
    %v6614 = vld [vmem:[%s7 + $0x10] sm:$0xff]
    %v6615 = vld [vmem:[%s7 + $0x18] sm:$0xff]
    %v6616 = vld [vmem:[%s7 + $0x20] sm:$0xff]
    %v6617 = vld [vmem:[%s7 + $0x28] sm:$0xff]
    %v6618 = vld [vmem:[%s7 + $0x30] sm:$0xff]
    %v6619 = vld [vmem:[%s7 + $0x38] sm:$0xff]
    %v6620 = vld [vmem:[%s7 + $0x40] sm:$0xff]
    %v6621 = vld [vmem:[%s7 + $0x48] sm:$0xff]
    %v6622 = vld [vmem:[%s7 + $0x50] sm:$0xff]
    %v6623 = vld [vmem:[%s7 + $0x58] sm:$0xff]
    %v6624 = vld [vmem:[%s7 + $0x60] sm:$0xff]
    %v6625 = vld [vmem:[%s7 + $0x68] sm:$0xff]
    %v6626 = vld [vmem:[%s7 + $0x70] sm:$0xff]
    %v6627 = vld [vmem:[%s7 + $0x78] sm:$0xff]
    %v6628 = vld [vmem:[%s7 + $0x80] sm:$0xff]
    %v6629 = vld [vmem:[%s7 + $0x88] sm:$0xff]
    %v6630 = vld [vmem:[%s7 + $0x90] sm:$0xff]
    %v6631 = vld [vmem:[%s7 + $0x98] sm:$0xff]
    %v6632 = vld [vmem:[%s7 + $0xa0] sm:$0xff]
    %v6633 = vld [vmem:[%s7 + $0xa8] sm:$0xff]
    %v6634 = vld [vmem:[%s7 + $0xb0] sm:$0xff]
    %v6635 = vld [vmem:[%s7 + $0xb8] sm:$0xff]
    %v6636 = vld [vmem:[%s7 + $0xc0] sm:$0xff]
    %v6637 = vld [vmem:[%s7 + $0xc8] sm:$0xff]
    %v6638 = vld [vmem:[%s7 + $0xd0] sm:$0xff]
    %v6639 = vld [vmem:[%s7 + $0xd8] sm:$0xff]
    %v6640 = vld [vmem:[%s7 + $0xe0] sm:$0xff]
    %v6641 = vld [vmem:[%s7 + $0xe8] sm:$0xff]
    %v6642 = vld [vmem:[%s7 + $0xf0] sm:$0xff]
    %v6643 = vld [vmem:[%s7 + $0xf8] sm:$0xff]
    %v6644 = vld [vmem:[%s7 + $0x100] sm:$0xff]
    %v6645 = vld [vmem:[%s7 + $0x108] sm:$0xff]
    %v6646 = vld [vmem:[%s7 + $0x110] sm:$0xff]
    %v6647 = vld [vmem:[%s7 + $0x118] sm:$0xff]
    %v6648 = vld [vmem:[%s7 + $0x120] sm:$0xff]
    %v6649 = vld [vmem:[%s7 + $0x128] sm:$0xff]
    %v6650 = vld [vmem:[%s7 + $0x130] sm:$0xff]
    %v6651 = vld [vmem:[%s7 + $0x138] sm:$0xff]
    %v6652 = vld [vmem:[%s7 + $0x140] sm:$0xff]
    %v6653 = vld [vmem:[%s7 + $0x148] sm:$0xff]
    %v6654 = vld [vmem:[%s7 + $0x150] sm:$0xff]
    %v6655 = vld [vmem:[%s7 + $0x158] sm:$0xff]
    %v6656 = vld [vmem:[%s7 + $0x160] sm:$0xff]
    %v6657 = vld [vmem:[%s7 + $0x168] sm:$0xff]
    %v6658 = vld [vmem:[%s7 + $0x170] sm:$0xff]
    %v6659 = vld [vmem:[%s7 + $0x178] sm:$0xff]
    %v6660 = vld [vmem:[%s7 + $0x180] sm:$0xff]
    %v6661 = vld [vmem:[%s7 + $0x188] sm:$0xff]
    %v6662 = vld [vmem:[%s7 + $0x190] sm:$0xff]
    %v6663 = vld [vmem:[%s7 + $0x198] sm:$0xff]
    %v6664 = vld [vmem:[%s7 + $0x1a0] sm:$0xff]
    %v6665 = vld [vmem:[%s7 + $0x1a8] sm:$0xff]
    %v6666 = vld [vmem:[%s7 + $0x1b0] sm:$0xff]
    %v6667 = vld [vmem:[%s7 + $0x1b8] sm:$0xff]
    %v6668 = vld [vmem:[%s7 + $0x1c0] sm:$0xff]
    %v6669 = vld [vmem:[%s7 + $0x1c8] sm:$0xff]
    %v6670 = vld [vmem:[%s7 + $0x1d0] sm:$0xff]
    %v6671 = vld [vmem:[%s7 + $0x1d8] sm:$0xff]
    %v6672 = vld [vmem:[%s7 + $0x1e0] sm:$0xff]
    %v6673 = vld [vmem:[%s7 + $0x1e8] sm:$0xff]
    %v6674 = vld [vmem:[%s7 + $0x1f0] sm:$0xff]
    %v6675 = vld [vmem:[%s7 + $0x1f8] sm:$0xff]
    %v6676 = vld [vmem:[%s7 + $0x200] sm:$0xff]
    %v6677 = vld [vmem:[%s7 + $0x208] sm:$0xff]
    %v6678 = vld [vmem:[%s7 + $0x210] sm:$0xff]
    %v6679 = vld [vmem:[%s7 + $0x218] sm:$0xff]
    %v6680 = vld [vmem:[%s7 + $0x220] sm:$0xff]
    %v6681 = vld [vmem:[%s7 + $0x228] sm:$0xff]
    %v6682 = vld [vmem:[%s7 + $0x230] sm:$0xff]
    %v6683 = vld [vmem:[%s7 + $0x238] sm:$0xff]
    %v6684 = vld [vmem:[%s7 + $0x240] sm:$0xff]
    %v6685 = vld [vmem:[%s7 + $0x248] sm:$0xff]
    %v6686 = vld [vmem:[%s7 + $0x250] sm:$0xff]
    %v6687 = vld [vmem:[%s7 + $0x258] sm:$0xff]
    %v6688 = vld [vmem:[%s7 + $0x260] sm:$0xff]
    %v6689 = vld [vmem:[%s7 + $0x268] sm:$0xff]
    %v6690 = vld [vmem:[%s7 + $0x270] sm:$0xff]
    %v6691 = vld [vmem:[%s7 + $0x278] sm:$0xff]
    %v6692 = vld [vmem:[%s7 + $0x280] sm:$0xff]
    %v6693 = vld [vmem:[%s7 + $0x288] sm:$0xff]
    %v6694 = vld [vmem:[%s7 + $0x290] sm:$0xff]
    %v6695 = vld [vmem:[%s7 + $0x298] sm:$0xff]
    %v6696 = vld [vmem:[%s7 + $0x2a0] sm:$0xff]
    %v6697 = vld [vmem:[%s7 + $0x2a8] sm:$0xff]
    %v6698 = vld [vmem:[%s7 + $0x2b0] sm:$0xff]
    %v6699 = vld [vmem:[%s7 + $0x2b8] sm:$0xff]
    %v6700 = vld [vmem:[%s7 + $0x2c0] sm:$0xff]
    %v6701 = vld [vmem:[%s7 + $0x2c8] sm:$0xff]
    %v6702 = vld [vmem:[%s7 + $0x2d0] sm:$0xff]
    %v6703 = vld [vmem:[%s7 + $0x2d8] sm:$0xff]
    %v6704 = vld [vmem:[%s7 + $0x2e0] sm:$0xff]
    %v6705 = vld [vmem:[%s7 + $0x2e8] sm:$0xff]
    %v6706 = vld [vmem:[%s7 + $0x2f0] sm:$0xff]
    %v6707 = vld [vmem:[%s7 + $0x2f8] sm:$0xff]
    %v6708 = vld [vmem:[%s7 + $0x300] sm:$0xff]
    %v6709 = vld [vmem:[%s7 + $0x308] sm:$0xff]
    %v6710 = vld [vmem:[%s7 + $0x310] sm:$0xff]
    %v6711 = vld [vmem:[%s7 + $0x318] sm:$0xff]
    %v6712 = vld [vmem:[%s7 + $0x320] sm:$0xff]
    %v6713 = vld [vmem:[%s7 + $0x328] sm:$0xff]
    %v6714 = vld [vmem:[%s7 + $0x330] sm:$0xff]
    %v6715 = vld [vmem:[%s7 + $0x338] sm:$0xff]
    %v6716 = vld [vmem:[%s7 + $0x340] sm:$0xff]
    %v6717 = vld [vmem:[%s7 + $0x348] sm:$0xff]
    %v6718 = vld [vmem:[%s7 + $0x350] sm:$0xff]
    %v6719 = vld [vmem:[%s7 + $0x358] sm:$0xff]
    %v6720 = vld [vmem:[%s7 + $0x360] sm:$0xff]
    %v6721 = vld [vmem:[%s7 + $0x368] sm:$0xff]
    %v6722 = vld [vmem:[%s7 + $0x370] sm:$0xff]
    %v6723 = vld [vmem:[%s7 + $0x378] sm:$0xff]
    %v6724 = vld [vmem:[%s7 + $0x380] sm:$0xff]
    %v6725 = vld [vmem:[%s7 + $0x388] sm:$0xff]
    %v6726 = vld [vmem:[%s7 + $0x390] sm:$0xff]
    %v6727 = vld [vmem:[%s7 + $0x398] sm:$0xff]
    %v6728 = vld [vmem:[%s7 + $0x3a0] sm:$0xff]
    %v6729 = vld [vmem:[%s7 + $0x3a8] sm:$0xff]
    %v6730 = vld [vmem:[%s7 + $0x3b0] sm:$0xff]
    %v6731 = vld [vmem:[%s7 + $0x3b8] sm:$0xff]
    %v6732 = vld [vmem:[%s7 + $0x3c0] sm:$0xff]
    %v6733 = vld [vmem:[%s7 + $0x3c8] sm:$0xff]
    %v6734 = vld [vmem:[%s7 + $0x3d0] sm:$0xff]
    %v6735 = vld [vmem:[%s7 + $0x3d8] sm:$0xff]
    %v6736 = vld [vmem:[%s7 + $0x3e0] sm:$0xff]
    %v6737 = vld [vmem:[%s7 + $0x3e8] sm:$0xff]
    %v6738 = vld [vmem:[%s7 + $0x3f0] sm:$0xff]
    %v6739 = vld [vmem:[%s7 + $0x3f8] sm:$0xff]
    %v6740 = vld [vmem:[%s7 + $0x400] sm:$0xff]
    %v6741 = vld [vmem:[%s7 + $0x408] sm:$0xff]
    %v6742 = vld [vmem:[%s7 + $0x410] sm:$0xff]
    %v6743 = vld [vmem:[%s7 + $0x418] sm:$0xff]
    %v6744 = vld [vmem:[%s7 + $0x420] sm:$0xff]
    %v6745 = vld [vmem:[%s7 + $0x428] sm:$0xff]
    %v6746 = vld [vmem:[%s7 + $0x430] sm:$0xff]
    %v6747 = vld [vmem:[%s7 + $0x438] sm:$0xff]
    %v6748 = vld [vmem:[%s7 + $0x440] sm:$0xff]
    %v6749 = vld [vmem:[%s7 + $0x448] sm:$0xff]
    %v6750 = vld [vmem:[%s7 + $0x450] sm:$0xff]
    %v6751 = vld [vmem:[%s7 + $0x458] sm:$0xff]
    %v6752 = vld [vmem:[%s7 + $0x460] sm:$0xff]
    %v6753 = vld [vmem:[%s7 + $0x468] sm:$0xff]
    %v6754 = vld [vmem:[%s7 + $0x470] sm:$0xff]
    %v6755 = vld [vmem:[%s7 + $0x478] sm:$0xff]
    %v6756 = vld [vmem:[%s7 + $0x480] sm:$0xff]
    %v6757 = vld [vmem:[%s7 + $0x488] sm:$0xff]
    %v6758 = vld [vmem:[%s7 + $0x490] sm:$0xff]
    %v6759 = vld [vmem:[%s7 + $0x498] sm:$0xff]
    %v6760 = vld [vmem:[%s7 + $0x4a0] sm:$0xff]
    %v6761 = vld [vmem:[%s7 + $0x4a8] sm:$0xff]
    %v6762 = vld [vmem:[%s7 + $0x4b0] sm:$0xff]
    %v6763 = vld [vmem:[%s7 + $0x4b8] sm:$0xff]
    %v6764 = vld [vmem:[%s7 + $0x4c0] sm:$0xff]
    %v6765 = vld [vmem:[%s7 + $0x4c8] sm:$0xff]
    %v6766 = vld [vmem:[%s7 + $0x4d0] sm:$0xff]
    %v6767 = vld [vmem:[%s7 + $0x4d8] sm:$0xff]
    %v6768 = vld [vmem:[%s7 + $0x4e0] sm:$0xff]
    %v6769 = vld [vmem:[%s7 + $0x4e8] sm:$0xff]
    %v6770 = vld [vmem:[%s7 + $0x4f0] sm:$0xff]
    %v6771 = vld [vmem:[%s7 + $0x4f8] sm:$0xff]
    %v6772 = vld [vmem:[%s7 + $0x500] sm:$0xff]
    %v6773 = vld [vmem:[%s7 + $0x508] sm:$0xff]
    %v6774 = vld [vmem:[%s7 + $0x510] sm:$0xff]
    %v6775 = vld [vmem:[%s7 + $0x518] sm:$0xff]
    %v6776 = vld [vmem:[%s7 + $0x520] sm:$0xff]
    %v6777 = vld [vmem:[%s7 + $0x528] sm:$0xff]
    %v6778 = vld [vmem:[%s7 + $0x530] sm:$0xff]
    %v6779 = vld [vmem:[%s7 + $0x538] sm:$0xff]
    %v6780 = vld [vmem:[%s7 + $0x540] sm:$0xff]
    %v6781 = vld [vmem:[%s7 + $0x548] sm:$0xff]
    %v6782 = vld [vmem:[%s7 + $0x550] sm:$0xff]
    %v6783 = vld [vmem:[%s7 + $0x558] sm:$0xff]
    %v6784 = vld [vmem:[%s7 + $0x560] sm:$0xff]
    %v6785 = vld [vmem:[%s7 + $0x568] sm:$0xff]
    %v6786 = vld [vmem:[%s7 + $0x570] sm:$0xff]
    %v6787 = vld [vmem:[%s7 + $0x578] sm:$0xff]
    %v6788 = vld [vmem:[%s7 + $0x580] sm:$0xff]
    %v6789 = vld [vmem:[%s7 + $0x588] sm:$0xff]
    %v6790 = vld [vmem:[%s7 + $0x590] sm:$0xff]
    %v6791 = vld [vmem:[%s7 + $0x598] sm:$0xff]
    %v6792 = vld [vmem:[%s7 + $0x5a0] sm:$0xff]
    %v6793 = vld [vmem:[%s7 + $0x5a8] sm:$0xff]
    %v6794 = vld [vmem:[%s7 + $0x5b0] sm:$0xff]
    %v6795 = vld [vmem:[%s7 + $0x5b8] sm:$0xff]
    %v6796 = vld [vmem:[%s7 + $0x5c0] sm:$0xff]
    %v6797 = vld [vmem:[%s7 + $0x5c8] sm:$0xff]
    %v6798 = vld [vmem:[%s7 + $0x5d0] sm:$0xff]
    %v6799 = vld [vmem:[%s7 + $0x5d8] sm:$0xff]
    %v6800 = vld [vmem:[%s7 + $0x5e0] sm:$0xff]
    %v6801 = vld [vmem:[%s7 + $0x5e8] sm:$0xff]
    %v6802 = vld [vmem:[%s7 + $0x5f0] sm:$0xff]
    %v6803 = vld [vmem:[%s7 + $0x5f8] sm:$0xff]
    %v6804 = vld [vmem:[%s7 + $0x600] sm:$0xff]
    %v6805 = vld [vmem:[%s7 + $0x608] sm:$0xff]
    %v6806 = vld [vmem:[%s7 + $0x610] sm:$0xff]
    %v6807 = vld [vmem:[%s7 + $0x618] sm:$0xff]
    %v6808 = vld [vmem:[%s7 + $0x620] sm:$0xff]
    %v6809 = vld [vmem:[%s7 + $0x628] sm:$0xff]
    %v6810 = vld [vmem:[%s7 + $0x630] sm:$0xff]
    %v6811 = vld [vmem:[%s7 + $0x638] sm:$0xff]
    %v6812 = vld [vmem:[%s7 + $0x640] sm:$0xff]
    %v6813 = vld [vmem:[%s7 + $0x648] sm:$0xff]
    %v6814 = vld [vmem:[%s7 + $0x650] sm:$0xff]
    %v6815 = vld [vmem:[%s7 + $0x658] sm:$0xff]
    %v6816 = vld [vmem:[%s7 + $0x660] sm:$0xff]
    %v6817 = vld [vmem:[%s7 + $0x668] sm:$0xff]
    %v6818 = vld [vmem:[%s7 + $0x670] sm:$0xff]
    %v6819 = vld [vmem:[%s7 + $0x678] sm:$0xff]
    %v6820 = vld [vmem:[%s7 + $0x680] sm:$0xff]
    %v6821 = vld [vmem:[%s7 + $0x688] sm:$0xff]
    %v6822 = vld [vmem:[%s7 + $0x690] sm:$0xff]
    %v6823 = vld [vmem:[%s7 + $0x698] sm:$0xff]
    %v6824 = vld [vmem:[%s7 + $0x6a0] sm:$0xff]
    %v6825 = vld [vmem:[%s7 + $0x6a8] sm:$0xff]
    %v6826 = vld [vmem:[%s7 + $0x6b0] sm:$0xff]
    %v6827 = vld [vmem:[%s7 + $0x6b8] sm:$0xff]
    %v6828 = vld [vmem:[%s7 + $0x6c0] sm:$0xff]
    %v6829 = vld [vmem:[%s7 + $0x6c8] sm:$0xff]
    %v6830 = vld [vmem:[%s7 + $0x6d0] sm:$0xff]
    %v6831 = vld [vmem:[%s7 + $0x6d8] sm:$0xff]
    %v6832 = vld [vmem:[%s7 + $0x6e0] sm:$0xff]
    %v6833 = vld [vmem:[%s7 + $0x6e8] sm:$0xff]
    %v6834 = vld [vmem:[%s7 + $0x6f0] sm:$0xff]
    %v6835 = vld [vmem:[%s7 + $0x6f8] sm:$0xff]
    %v6836 = vld [vmem:[%s7 + $0x700] sm:$0xff]
    %v6837 = vld [vmem:[%s7 + $0x708] sm:$0xff]
    %v6838 = vld [vmem:[%s7 + $0x710] sm:$0xff]
    %v6839 = vld [vmem:[%s7 + $0x718] sm:$0xff]
    %v6840 = vld [vmem:[%s7 + $0x720] sm:$0xff]
    %v6841 = vld [vmem:[%s7 + $0x728] sm:$0xff]
    %v6842 = vld [vmem:[%s7 + $0x730] sm:$0xff]
    %v6843 = vld [vmem:[%s7 + $0x738] sm:$0xff]
    %v6848 = vcombine.high %v6608, %v6608
    %v6850 = vunpack.c.l.s4 1983009808
    %v6851 = vunpack.c.0.s8 %v6850
    %v6852 = vlaneseq
    %v6853 = vshrl.u32 %v6852, 7
    %v6854 = vsub.s32 %v6851, %v6853
    %v6855 = vrot.slane %v6608, %v6854
    %v6857 = vunpack.c.l.s4 1983009808
    %v6858 = vunpack.c.0.s8 %v6857
    %v6859 = vlaneseq
    %v6860 = vshrl.u32 %v6859, 7
    %v6861 = vsub.s32 %v6858, %v6860
    %v6862 = vrot.slane %v6848, %v6861
    %v6863 = vcombine.high %v6855, %v6855
    %v6864 = vcombine.high %v6862, %v6862
    %v6865 = vcombine.high %v6609, %v6609
    %v6867 = vunpack.c.l.s4 1983009808
    %v6868 = vunpack.c.0.s8 %v6867
    %v6869 = vlaneseq
    %v6870 = vshrl.u32 %v6869, 7
    %v6871 = vsub.s32 %v6868, %v6870
    %v6872 = vrot.slane %v6609, %v6871
    %v6874 = vunpack.c.l.s4 1983009808
    %v6875 = vunpack.c.0.s8 %v6874
    %v6876 = vlaneseq
    %v6877 = vshrl.u32 %v6876, 7
    %v6878 = vsub.s32 %v6875, %v6877
    %v6879 = vrot.slane %v6865, %v6878
    %v6880 = vcombine.high %v6872, %v6872
    %v6881 = vcombine.high %v6879, %v6879
    %v6882 = vcombine.high %v6610, %v6610
    %v6884 = vunpack.c.l.s4 1983009808
    %v6885 = vunpack.c.0.s8 %v6884
    %v6886 = vlaneseq
    %v6887 = vshrl.u32 %v6886, 7
    %v6888 = vsub.s32 %v6885, %v6887
    %v6889 = vrot.slane %v6610, %v6888
    %v6891 = vunpack.c.l.s4 1983009808
    %v6892 = vunpack.c.0.s8 %v6891
    %v6893 = vlaneseq
    %v6894 = vshrl.u32 %v6893, 7
    %v6895 = vsub.s32 %v6892, %v6894
    %v6896 = vrot.slane %v6882, %v6895
    %v6897 = vcombine.high %v6889, %v6889
    %v6898 = vcombine.high %v6896, %v6896
    %v6899 = vcombine.high %v6611, %v6611
    %v6901 = vunpack.c.l.s4 1983009808
    %v6902 = vunpack.c.0.s8 %v6901
    %v6903 = vlaneseq
    %v6904 = vshrl.u32 %v6903, 7
    %v6905 = vsub.s32 %v6902, %v6904
    %v6906 = vrot.slane %v6611, %v6905
    %v6908 = vunpack.c.l.s4 1983009808
    %v6909 = vunpack.c.0.s8 %v6908
    %v6910 = vlaneseq
    %v6911 = vshrl.u32 %v6910, 7
    %v6912 = vsub.s32 %v6909, %v6911
    %v6913 = vrot.slane %v6899, %v6912
    %v6914 = vcombine.high %v6906, %v6906
    %v6930 = vpack.c.bf16 %v6855, %v6855
    %v6931 = vpack.c.bf16 %v6863, %v6863
    %v6932 = vpack.c.bf16 %v6862, %v6862
    %v6933 = vpack.c.bf16 %v6864, %v6864
    %v6934 = vpack.c.bf16 %v6872, %v6872
    %v6935 = vpack.c.bf16 %v6880, %v6880
    %v6936 = vpack.c.bf16 %v6879, %v6879
    %v6937 = vpack.c.bf16 %v6881, %v6881
    %v6938 = vpack.c.bf16 %v6889, %v6889
    %v6939 = vpack.c.bf16 %v6897, %v6897
    %v6940 = vpack.c.bf16 %v6896, %v6896
    %v6941 = vpack.c.bf16 %v6898, %v6898
    %v6942 = vpack.c.bf16 %v6906, %v6906
    %v6943 = vpack.c.bf16 %v6914, %v6914
    %v6944 = vpack.c.bf16 %v6913, %v6913
    %v6945 = vld [vmem:[%s8] sm:$0x3]
    %v6947 = vlaneseq
    %v6948 = vshrl.u32 %v6947, 7
    %v6949 = vsub.s32 0, %v6948
    %v6950 = vrot.slane %v6945, %v6949
    %v6951 = vlaneseq
    %v6952 = vshrl.u32 %v6951, 7
    %v6953 = vsub.s32 1, %v6952
    %v6954 = vrot.slane %v6945, %v6953
    %v7189 = vunpack.c.l.b16 %v6612
    %v7190 = vunpack.c.h.b16 %v6612
    %v7191 = vunpack.c.l.b16 %v6613
    %v7192 = vunpack.c.h.b16 %v6613
    %v7193 = vunpack.c.l.b16 %v6614
    %v7194 = vunpack.c.h.b16 %v6614
    %v7195 = vunpack.c.l.b16 %v6615
    %v7196 = vunpack.c.h.b16 %v6615
    %v7197 = vunpack.c.l.b16 %v6616
    %v7198 = vunpack.c.h.b16 %v6616
    %v7199 = vunpack.c.l.b16 %v6617
    %v7200 = vunpack.c.h.b16 %v6617
    %v7201 = vunpack.c.l.b16 %v6618
    %v7202 = vunpack.c.h.b16 %v6618
    %v7203 = vunpack.c.l.b16 %v6619
    %v7204 = vunpack.c.h.b16 %v6619
    %v7205 = vunpack.c.l.b16 %v6620
    %v7206 = vunpack.c.h.b16 %v6620
    %v7207 = vunpack.c.l.b16 %v6621
    %v7208 = vunpack.c.h.b16 %v6621
    %v7209 = vunpack.c.l.b16 %v6622
    %v7210 = vunpack.c.h.b16 %v6622
    %v7211 = vunpack.c.l.b16 %v6623
    %v7212 = vunpack.c.h.b16 %v6623
    %v7213 = vunpack.c.l.b16 %v6624
    %v7214 = vunpack.c.h.b16 %v6624
    %v7215 = vunpack.c.l.b16 %v6625
    %v7216 = vunpack.c.h.b16 %v6625
    %v7217 = vunpack.c.l.b16 %v6626
    %v7218 = vunpack.c.h.b16 %v6626
    %v7219 = vunpack.c.l.b16 %v6627
    %v7220 = vunpack.c.h.b16 %v6627
    %v7221 = vunpack.c.l.b16 %v6628
    %v7222 = vunpack.c.h.b16 %v6628
    %v7223 = vunpack.c.l.b16 %v6629
    %v7224 = vunpack.c.h.b16 %v6629
    %v7225 = vunpack.c.l.b16 %v6630
    %v7226 = vunpack.c.h.b16 %v6630
    %v7227 = vunpack.c.l.b16 %v6631
    %v7228 = vunpack.c.h.b16 %v6631
    %v7229 = vunpack.c.l.b16 %v6632
    %v7230 = vunpack.c.h.b16 %v6632
    %v7231 = vunpack.c.l.b16 %v6633
    %v7232 = vunpack.c.h.b16 %v6633
    %v7233 = vunpack.c.l.b16 %v6634
    %v7234 = vunpack.c.h.b16 %v6634
    %v7235 = vunpack.c.l.b16 %v6635
    %v7236 = vunpack.c.h.b16 %v6635
    %v7237 = vunpack.c.l.b16 %v6636
    %v7238 = vunpack.c.h.b16 %v6636
    %v7239 = vunpack.c.l.b16 %v6637
    %v7240 = vunpack.c.h.b16 %v6637
    %v7241 = vunpack.c.l.b16 %v6638
    %v7242 = vunpack.c.h.b16 %v6638
    %v7243 = vunpack.c.l.b16 %v6639
    %v7244 = vunpack.c.h.b16 %v6639
    %v7245 = vunpack.c.l.b16 %v6640
    %v7246 = vunpack.c.h.b16 %v6640
    %v7247 = vunpack.c.l.b16 %v6641
    %v7248 = vunpack.c.h.b16 %v6641
    %v7249 = vunpack.c.l.b16 %v6642
    %v7250 = vunpack.c.h.b16 %v6642
    %v7251 = vunpack.c.l.b16 %v6643
    %v7252 = vunpack.c.h.b16 %v6643
    %v7253 = vunpack.c.l.b16 %v6644
    %v7254 = vunpack.c.h.b16 %v6644
    %v7255 = vunpack.c.l.b16 %v6645
    %v7256 = vunpack.c.h.b16 %v6645
    %v7257 = vunpack.c.l.b16 %v6646
    %v7258 = vunpack.c.h.b16 %v6646
    %v7259 = vunpack.c.l.b16 %v6647
    %v7260 = vunpack.c.h.b16 %v6647
    %v7261 = vunpack.c.l.b16 %v6648
    %v7262 = vunpack.c.h.b16 %v6648
    %v7263 = vunpack.c.l.b16 %v6649
    %v7264 = vunpack.c.h.b16 %v6649
    %v7265 = vunpack.c.l.b16 %v6650
    %v7266 = vunpack.c.h.b16 %v6650
    %v7267 = vunpack.c.l.b16 %v6651
    %v7268 = vunpack.c.h.b16 %v6651
    %v7269 = vunpack.c.l.b16 %v6652
    %v7270 = vunpack.c.h.b16 %v6652
    %v7271 = vunpack.c.l.b16 %v6653
    %v7272 = vunpack.c.h.b16 %v6653
    %v7273 = vunpack.c.l.b16 %v6654
    %v7274 = vunpack.c.h.b16 %v6654
    %v7275 = vunpack.c.l.b16 %v6655
    %v7276 = vunpack.c.h.b16 %v6655
    %v7277 = vunpack.c.l.b16 %v6656
    %v7278 = vunpack.c.h.b16 %v6656
    %v7279 = vunpack.c.l.b16 %v6657
    %v7280 = vunpack.c.h.b16 %v6657
    %v7281 = vunpack.c.l.b16 %v6658
    %v7282 = vunpack.c.h.b16 %v6658
    %v7283 = vunpack.c.l.b16 %v6659
    %v7284 = vunpack.c.h.b16 %v6659
    %v7285 = vunpack.c.l.b16 %v6660
    %v7286 = vunpack.c.h.b16 %v6660
    %v7287 = vunpack.c.l.b16 %v6661
    %v7288 = vunpack.c.h.b16 %v6661
    %v7289 = vunpack.c.l.b16 %v6662
    %v7290 = vunpack.c.h.b16 %v6662
    %v7291 = vunpack.c.l.b16 %v6663
    %v7292 = vunpack.c.h.b16 %v6663
    %v7293 = vunpack.c.l.b16 %v6664
    %v7294 = vunpack.c.h.b16 %v6664
    %v7295 = vunpack.c.l.b16 %v6665
    %v7296 = vunpack.c.h.b16 %v6665
    %v7297 = vunpack.c.l.b16 %v6666
    %v7298 = vunpack.c.h.b16 %v6666
    %v7299 = vunpack.c.l.b16 %v6667
    %v7300 = vunpack.c.h.b16 %v6667
    %v7301 = vunpack.c.l.b16 %v6668
    %v7302 = vunpack.c.h.b16 %v6668
    %v7303 = vunpack.c.l.b16 %v6669
    %v7304 = vunpack.c.h.b16 %v6669
    %v7305 = vunpack.c.l.b16 %v6670
    %v7306 = vunpack.c.h.b16 %v6670
    %v7307 = vunpack.c.l.b16 %v6671
    %v7308 = vunpack.c.h.b16 %v6671
    %v7309 = vunpack.c.l.b16 %v6672
    %v7310 = vunpack.c.h.b16 %v6672
    %v7311 = vunpack.c.l.b16 %v6673
    %v7312 = vunpack.c.h.b16 %v6673
    %v7313 = vunpack.c.l.b16 %v6674
    %v7314 = vunpack.c.h.b16 %v6674
    %v7315 = vunpack.c.l.b16 %v6675
    %v7316 = vunpack.c.h.b16 %v6675
    %v7317 = vunpack.c.l.b16 %v6676
    %v7318 = vunpack.c.h.b16 %v6676
    %v7319 = vunpack.c.l.b16 %v6677
    %v7320 = vunpack.c.h.b16 %v6677
    %v7321 = vunpack.c.l.b16 %v6678
    %v7322 = vunpack.c.h.b16 %v6678
    %v7323 = vunpack.c.l.b16 %v6679
    %v7324 = vunpack.c.h.b16 %v6679
    %v7325 = vunpack.c.l.b16 %v6680
    %v7326 = vunpack.c.h.b16 %v6680
    %v7327 = vunpack.c.l.b16 %v6681
    %v7328 = vunpack.c.h.b16 %v6681
    %v7329 = vunpack.c.l.b16 %v6682
    %v7330 = vunpack.c.h.b16 %v6682
    %v7331 = vunpack.c.l.b16 %v6683
    %v7332 = vunpack.c.h.b16 %v6683
    %v7333 = vunpack.c.l.b16 %v6684
    %v7334 = vunpack.c.h.b16 %v6684
    %v7335 = vunpack.c.l.b16 %v6685
    %v7336 = vunpack.c.h.b16 %v6685
    %v7337 = vunpack.c.l.b16 %v6686
    %v7338 = vunpack.c.h.b16 %v6686
    %v7339 = vunpack.c.l.b16 %v6687
    %v7340 = vunpack.c.h.b16 %v6687
    %v7341 = vunpack.c.l.b16 %v6688
    %v7342 = vunpack.c.h.b16 %v6688
    %v7343 = vunpack.c.l.b16 %v6689
    %v7344 = vunpack.c.h.b16 %v6689
    %v7345 = vunpack.c.l.b16 %v6690
    %v7346 = vunpack.c.h.b16 %v6690
    %v7347 = vunpack.c.l.b16 %v6691
    %v7348 = vunpack.c.h.b16 %v6691
    %v7349 = vunpack.c.l.b16 %v6692
    %v7350 = vunpack.c.h.b16 %v6692
    %v7351 = vunpack.c.l.b16 %v6693
    %v7352 = vunpack.c.h.b16 %v6693
    %v7353 = vunpack.c.l.b16 %v6694
    %v7354 = vunpack.c.h.b16 %v6694
    %v7355 = vunpack.c.l.b16 %v6695
    %v7356 = vunpack.c.h.b16 %v6695
    %v7357 = vunpack.c.l.b16 %v6696
    %v7358 = vunpack.c.h.b16 %v6696
    %v7359 = vunpack.c.l.b16 %v6697
    %v7360 = vunpack.c.h.b16 %v6697
    %v7361 = vunpack.c.l.b16 %v6698
    %v7362 = vunpack.c.h.b16 %v6698
    %v7363 = vunpack.c.l.b16 %v6699
    %v7364 = vunpack.c.h.b16 %v6699
    %v7365 = vunpack.c.l.b16 %v6700
    %v7366 = vunpack.c.h.b16 %v6700
    %v7367 = vunpack.c.l.b16 %v6701
    %v7368 = vunpack.c.h.b16 %v6701
    %v7369 = vunpack.c.l.b16 %v6702
    %v7370 = vunpack.c.h.b16 %v6702
    %v7371 = vunpack.c.l.b16 %v6703
    %v7372 = vunpack.c.h.b16 %v6703
    %v7373 = vunpack.c.l.b16 %v6704
    %v7374 = vunpack.c.h.b16 %v6704
    %v7375 = vunpack.c.l.b16 %v6705
    %v7376 = vunpack.c.h.b16 %v6705
    %v7377 = vunpack.c.l.b16 %v6706
    %v7378 = vunpack.c.h.b16 %v6706
    %v7379 = vunpack.c.l.b16 %v6707
    %v7380 = vunpack.c.h.b16 %v6707
    %v7381 = vunpack.c.l.b16 %v6708
    %v7382 = vunpack.c.h.b16 %v6708
    %v7383 = vunpack.c.l.b16 %v6709
    %v7384 = vunpack.c.h.b16 %v6709
    %v7385 = vunpack.c.l.b16 %v6710
    %v7386 = vunpack.c.h.b16 %v6710
    %v7387 = vunpack.c.l.b16 %v6711
    %v7388 = vunpack.c.h.b16 %v6711
    %v7389 = vunpack.c.l.b16 %v6712
    %v7390 = vunpack.c.h.b16 %v6712
    %v7391 = vunpack.c.l.b16 %v6713
    %v7392 = vunpack.c.h.b16 %v6713
    %v7393 = vunpack.c.l.b16 %v6714
    %v7394 = vunpack.c.h.b16 %v6714
    %v7395 = vunpack.c.l.b16 %v6715
    %v7396 = vunpack.c.h.b16 %v6715
    %v7397 = vunpack.c.l.b16 %v6716
    %v7398 = vunpack.c.h.b16 %v6716
    %v7399 = vunpack.c.l.b16 %v6717
    %v7400 = vunpack.c.h.b16 %v6717
    %v7401 = vunpack.c.l.b16 %v6718
    %v7402 = vunpack.c.h.b16 %v6718
    %v7403 = vunpack.c.l.b16 %v6719
    %v7404 = vunpack.c.h.b16 %v6719
    %v7405 = vunpack.c.l.b16 %v6720
    %v7406 = vunpack.c.h.b16 %v6720
    %v7407 = vunpack.c.l.b16 %v6721
    %v7408 = vunpack.c.h.b16 %v6721
    %v7409 = vunpack.c.l.b16 %v6722
    %v7410 = vunpack.c.h.b16 %v6722
    %v7411 = vunpack.c.l.b16 %v6723
    %v7412 = vunpack.c.h.b16 %v6723
    %v7413 = vunpack.c.l.b16 %v6724
    %v7414 = vunpack.c.h.b16 %v6724
    %v7415 = vunpack.c.l.b16 %v6725
    %v7416 = vunpack.c.h.b16 %v6725
    %v7417 = vunpack.c.l.b16 %v6726
    %v7418 = vunpack.c.h.b16 %v6726
    %v7419 = vunpack.c.l.b16 %v6727
    %v7420 = vunpack.c.h.b16 %v6727
    %v7421 = vunpack.c.l.b16 %v6728
    %v7422 = vunpack.c.h.b16 %v6728
    %v7423 = vunpack.c.l.b16 %v6729
    %v7424 = vunpack.c.h.b16 %v6729
    %v7425 = vunpack.c.l.b16 %v6730
    %v7426 = vunpack.c.h.b16 %v6730
    %v7427 = vunpack.c.l.b16 %v6731
    %v7428 = vunpack.c.h.b16 %v6731
    %v7429 = vunpack.c.l.b16 %v6732
    %v7430 = vunpack.c.h.b16 %v6732
    %v7431 = vunpack.c.l.b16 %v6733
    %v7432 = vunpack.c.h.b16 %v6733
    %v7433 = vunpack.c.l.b16 %v6734
    %v7434 = vunpack.c.h.b16 %v6734
    %v7435 = vunpack.c.l.b16 %v6735
    %v7436 = vunpack.c.h.b16 %v6735
    %v7437 = vunpack.c.l.b16 %v6736
    %v7438 = vunpack.c.h.b16 %v6736
    %v7439 = vunpack.c.l.b16 %v6737
    %v7440 = vunpack.c.h.b16 %v6737
    %v7441 = vunpack.c.l.b16 %v6738
    %v7442 = vunpack.c.h.b16 %v6738
    %v7443 = vunpack.c.l.b16 %v6739
    %v7444 = vunpack.c.h.b16 %v6739
    %v7445 = vunpack.c.l.b16 %v6740
    %v7446 = vunpack.c.h.b16 %v6740
    %v7447 = vunpack.c.l.b16 %v6741
    %v7448 = vunpack.c.h.b16 %v6741
    %v7449 = vunpack.c.l.b16 %v6742
    %v7450 = vunpack.c.h.b16 %v6742
    %v7451 = vunpack.c.l.b16 %v6743
    %v7452 = vunpack.c.h.b16 %v6743
    %v7453 = vunpack.c.l.b16 %v6744
    %v7454 = vunpack.c.h.b16 %v6744
    %v7455 = vunpack.c.l.b16 %v6745
    %v7456 = vunpack.c.h.b16 %v6745
    %v7457 = vunpack.c.l.b16 %v6746
    %v7458 = vunpack.c.h.b16 %v6746
    %v7459 = vunpack.c.l.b16 %v6747
    %v7460 = vunpack.c.h.b16 %v6747
    %v7461 = vunpack.c.l.b16 %v6748
    %v7462 = vunpack.c.h.b16 %v6748
    %v7463 = vunpack.c.l.b16 %v6749
    %v7464 = vunpack.c.h.b16 %v6749
    %v7465 = vunpack.c.l.b16 %v6750
    %v7466 = vunpack.c.h.b16 %v6750
    %v7467 = vunpack.c.l.b16 %v6751
    %v7468 = vunpack.c.h.b16 %v6751
    %v7469 = vunpack.c.l.b16 %v6752
    %v7470 = vunpack.c.h.b16 %v6752
    %v7471 = vunpack.c.l.b16 %v6753
    %v7472 = vunpack.c.h.b16 %v6753
    %v7473 = vunpack.c.l.b16 %v6754
    %v7474 = vunpack.c.h.b16 %v6754
    %v7475 = vunpack.c.l.b16 %v6755
    %v7476 = vunpack.c.h.b16 %v6755
    %v7477 = vunpack.c.l.b16 %v6756
    %v7478 = vunpack.c.h.b16 %v6756
    %v7479 = vunpack.c.l.b16 %v6757
    %v7480 = vunpack.c.h.b16 %v6757
    %v7481 = vunpack.c.l.b16 %v6758
    %v7482 = vunpack.c.h.b16 %v6758
    %v7483 = vunpack.c.l.b16 %v6759
    %v7484 = vunpack.c.h.b16 %v6759
    %v7485 = vunpack.c.l.b16 %v6760
    %v7486 = vunpack.c.h.b16 %v6760
    %v7487 = vunpack.c.l.b16 %v6761
    %v7488 = vunpack.c.h.b16 %v6761
    %v7489 = vunpack.c.l.b16 %v6762
    %v7490 = vunpack.c.h.b16 %v6762
    %v7491 = vunpack.c.l.b16 %v6763
    %v7492 = vunpack.c.h.b16 %v6763
    %v7493 = vunpack.c.l.b16 %v6764
    %v7494 = vunpack.c.h.b16 %v6764
    %v7495 = vunpack.c.l.b16 %v6765
    %v7496 = vunpack.c.h.b16 %v6765
    %v7497 = vunpack.c.l.b16 %v6766
    %v7498 = vunpack.c.h.b16 %v6766
    %v7499 = vunpack.c.l.b16 %v6767
    %v7500 = vunpack.c.h.b16 %v6767
    %v7501 = vunpack.c.l.b16 %v6768
    %v7502 = vunpack.c.h.b16 %v6768
    %v7503 = vunpack.c.l.b16 %v6769
    %v7504 = vunpack.c.h.b16 %v6769
    %v7505 = vunpack.c.l.b16 %v6770
    %v7506 = vunpack.c.h.b16 %v6770
    %v7507 = vunpack.c.l.b16 %v6771
    %v7508 = vunpack.c.h.b16 %v6771
    %v7509 = vunpack.c.l.b16 %v6772
    %v7510 = vunpack.c.h.b16 %v6772
    %v7511 = vunpack.c.l.b16 %v6773
    %v7512 = vunpack.c.h.b16 %v6773
    %v7513 = vunpack.c.l.b16 %v6774
    %v7514 = vunpack.c.h.b16 %v6774
    %v7515 = vunpack.c.l.b16 %v6775
    %v7516 = vunpack.c.h.b16 %v6775
    %v7517 = vunpack.c.l.b16 %v6776
    %v7518 = vunpack.c.h.b16 %v6776
    %v7519 = vunpack.c.l.b16 %v6777
    %v7520 = vunpack.c.h.b16 %v6777
    %v7521 = vunpack.c.l.b16 %v6778
    %v7522 = vunpack.c.h.b16 %v6778
    %v7523 = vunpack.c.l.b16 %v6779
    %v7524 = vunpack.c.h.b16 %v6779
    %v7525 = vunpack.c.l.b16 %v6780
    %v7526 = vunpack.c.h.b16 %v6780
    %v7527 = vunpack.c.l.b16 %v6781
    %v7528 = vunpack.c.h.b16 %v6781
    %v7529 = vunpack.c.l.b16 %v6782
    %v7530 = vunpack.c.h.b16 %v6782
    %v7531 = vunpack.c.l.b16 %v6783
    %v7532 = vunpack.c.h.b16 %v6783
    %v7533 = vunpack.c.l.b16 %v6784
    %v7534 = vunpack.c.h.b16 %v6784
    %v7535 = vunpack.c.l.b16 %v6785
    %v7536 = vunpack.c.h.b16 %v6785
    %v7537 = vunpack.c.l.b16 %v6786
    %v7538 = vunpack.c.h.b16 %v6786
    %v7539 = vunpack.c.l.b16 %v6787
    %v7540 = vunpack.c.h.b16 %v6787
    %v7541 = vunpack.c.l.b16 %v6788
    %v7542 = vunpack.c.h.b16 %v6788
    %v7543 = vunpack.c.l.b16 %v6789
    %v7544 = vunpack.c.h.b16 %v6789
    %v7545 = vunpack.c.l.b16 %v6790
    %v7546 = vunpack.c.h.b16 %v6790
    %v7547 = vunpack.c.l.b16 %v6791
    %v7548 = vunpack.c.h.b16 %v6791
    %v7549 = vunpack.c.l.b16 %v6792
    %v7550 = vunpack.c.h.b16 %v6792
    %v7551 = vunpack.c.l.b16 %v6793
    %v7552 = vunpack.c.h.b16 %v6793
    %v7553 = vunpack.c.l.b16 %v6794
    %v7554 = vunpack.c.h.b16 %v6794
    %v7555 = vunpack.c.l.b16 %v6795
    %v7556 = vunpack.c.h.b16 %v6795
    %v7557 = vunpack.c.l.b16 %v6796
    %v7558 = vunpack.c.h.b16 %v6796
    %v7559 = vunpack.c.l.b16 %v6797
    %v7560 = vunpack.c.h.b16 %v6797
    %v7561 = vunpack.c.l.b16 %v6798
    %v7562 = vunpack.c.h.b16 %v6798
    %v7563 = vunpack.c.l.b16 %v6799
    %v7564 = vunpack.c.h.b16 %v6799
    %v7565 = vunpack.c.l.b16 %v6800
    %v7566 = vunpack.c.h.b16 %v6800
    %v7567 = vunpack.c.l.b16 %v6801
    %v7568 = vunpack.c.h.b16 %v6801
    %v7569 = vunpack.c.l.b16 %v6802
    %v7570 = vunpack.c.h.b16 %v6802
    %v7571 = vunpack.c.l.b16 %v6803
    %v7572 = vunpack.c.h.b16 %v6803
    %v7573 = vunpack.c.l.b16 %v6804
    %v7574 = vunpack.c.h.b16 %v6804
    %v7575 = vunpack.c.l.b16 %v6805
    %v7576 = vunpack.c.h.b16 %v6805
    %v7577 = vunpack.c.l.b16 %v6806
    %v7578 = vunpack.c.h.b16 %v6806
    %v7579 = vunpack.c.l.b16 %v6807
    %v7580 = vunpack.c.h.b16 %v6807
    %v7581 = vunpack.c.l.b16 %v6808
    %v7582 = vunpack.c.h.b16 %v6808
    %v7583 = vunpack.c.l.b16 %v6809
    %v7584 = vunpack.c.h.b16 %v6809
    %v7585 = vunpack.c.l.b16 %v6810
    %v7586 = vunpack.c.h.b16 %v6810
    %v7587 = vunpack.c.l.b16 %v6811
    %v7588 = vunpack.c.h.b16 %v6811
    %v7589 = vunpack.c.l.b16 %v6812
    %v7590 = vunpack.c.h.b16 %v6812
    %v7591 = vunpack.c.l.b16 %v6813
    %v7592 = vunpack.c.h.b16 %v6813
    %v7593 = vunpack.c.l.b16 %v6814
    %v7594 = vunpack.c.h.b16 %v6814
    %v7595 = vunpack.c.l.b16 %v6815
    %v7596 = vunpack.c.h.b16 %v6815
    %v7597 = vunpack.c.l.b16 %v6816
    %v7598 = vunpack.c.h.b16 %v6816
    %v7599 = vunpack.c.l.b16 %v6817
    %v7600 = vunpack.c.h.b16 %v6817
    %v7601 = vunpack.c.l.b16 %v6818
    %v7602 = vunpack.c.h.b16 %v6818
    %v7603 = vunpack.c.l.b16 %v6819
    %v7604 = vunpack.c.h.b16 %v6819
    %v7605 = vunpack.c.l.b16 %v6820
    %v7606 = vunpack.c.h.b16 %v6820
    %v7607 = vunpack.c.l.b16 %v6821
    %v7608 = vunpack.c.h.b16 %v6821
    %v7609 = vunpack.c.l.b16 %v6822
    %v7610 = vunpack.c.h.b16 %v6822
    %v7611 = vunpack.c.l.b16 %v6823
    %v7612 = vunpack.c.h.b16 %v6823
    %v7613 = vunpack.c.l.b16 %v6824
    %v7614 = vunpack.c.h.b16 %v6824
    %v7615 = vunpack.c.l.b16 %v6825
    %v7616 = vunpack.c.h.b16 %v6825
    %v7617 = vunpack.c.l.b16 %v6826
    %v7618 = vunpack.c.h.b16 %v6826
    %v7619 = vunpack.c.l.b16 %v6827
    %v7620 = vunpack.c.h.b16 %v6827
    %v7621 = vunpack.c.l.b16 %v6828
    %v7622 = vunpack.c.h.b16 %v6828
    %v7623 = vunpack.c.l.b16 %v6829
    %v7624 = vunpack.c.h.b16 %v6829
    %v7625 = vunpack.c.l.b16 %v6830
    %v7626 = vunpack.c.h.b16 %v6830
    %v7627 = vunpack.c.l.b16 %v6831
    %v7628 = vunpack.c.h.b16 %v6831
    %v7629 = vunpack.c.l.b16 %v6832
    %v7630 = vunpack.c.h.b16 %v6832
    %v7631 = vunpack.c.l.b16 %v6833
    %v7632 = vunpack.c.h.b16 %v6833
    %v7633 = vunpack.c.l.b16 %v6834
    %v7634 = vunpack.c.h.b16 %v6834
    %v7635 = vunpack.c.l.b16 %v6835
    %v7636 = vunpack.c.h.b16 %v6835
    %v7637 = vunpack.c.l.b16 %v6836
    %v7638 = vunpack.c.h.b16 %v6836
    %v7639 = vunpack.c.l.b16 %v6837
    %v7640 = vunpack.c.h.b16 %v6837
    %v7641 = vunpack.c.l.b16 %v6838
    %v7642 = vunpack.c.h.b16 %v6838
    %v7643 = vunpack.c.l.b16 %v6839
    %v7644 = vunpack.c.h.b16 %v6839
    %v7645 = vunpack.c.l.b16 %v6840
    %v7646 = vunpack.c.h.b16 %v6840
    %v7647 = vunpack.c.l.b16 %v6841
    %v7648 = vunpack.c.h.b16 %v6841
    %v7649 = vunpack.c.l.b16 %v6842
    %v7650 = vunpack.c.h.b16 %v6842
    %v7651 = vunpack.c.l.b16 %v6843
    %v7652 = vunpack.c.h.b16 %v6843
    %v7653 = vpack.c.b16 %v7191, %v7189
    %v7654 = vpack.c.b16 %v7192, %v7190
    %v7655 = vpack.c.b16 %v7195, %v7193
    %v7656 = vpack.c.b16 %v7196, %v7194
    %v7657 = vpack.c.b16 %v7199, %v7197
    %v7658 = vpack.c.b16 %v7200, %v7198
    %v7659 = vpack.c.b16 %v7203, %v7201
    %v7660 = vpack.c.b16 %v7204, %v7202
    %v7661 = vpack.c.b16 %v7207, %v7205
    %v7662 = vpack.c.b16 %v7208, %v7206
    %v7663 = vpack.c.b16 %v7211, %v7209
    %v7664 = vpack.c.b16 %v7212, %v7210
    %v7665 = vpack.c.b16 %v7215, %v7213
    %v7666 = vpack.c.b16 %v7216, %v7214
    %v7667 = vpack.c.b16 %v7219, %v7217
    %v7668 = vpack.c.b16 %v7220, %v7218
    %v7669 = vpack.c.b16 %v7223, %v7221
    %v7670 = vpack.c.b16 %v7224, %v7222
    %v7671 = vpack.c.b16 %v7227, %v7225
    %v7672 = vpack.c.b16 %v7228, %v7226
    %v7673 = vpack.c.b16 %v7231, %v7229
    %v7674 = vpack.c.b16 %v7232, %v7230
    %v7675 = vpack.c.b16 %v7235, %v7233
    %v7676 = vpack.c.b16 %v7236, %v7234
    %v7677 = vpack.c.b16 %v7239, %v7237
    %v7678 = vpack.c.b16 %v7240, %v7238
    %v7679 = vpack.c.b16 %v7243, %v7241
    %v7680 = vpack.c.b16 %v7244, %v7242
    %v7681 = vpack.c.b16 %v7247, %v7245
    %v7682 = vpack.c.b16 %v7248, %v7246
    %v7683 = vpack.c.b16 %v7251, %v7249
    %v7684 = vpack.c.b16 %v7252, %v7250
    %v7685 = vpack.c.b16 %v7255, %v7253
    %v7686 = vpack.c.b16 %v7256, %v7254
    %v7687 = vpack.c.b16 %v7259, %v7257
    %v7688 = vpack.c.b16 %v7260, %v7258
    %v7689 = vpack.c.b16 %v7263, %v7261
    %v7690 = vpack.c.b16 %v7264, %v7262
    %v7691 = vpack.c.b16 %v7267, %v7265
    %v7692 = vpack.c.b16 %v7268, %v7266
    %v7693 = vpack.c.b16 %v7271, %v7269
    %v7694 = vpack.c.b16 %v7272, %v7270
    %v7695 = vpack.c.b16 %v7275, %v7273
    %v7696 = vpack.c.b16 %v7276, %v7274
    %v7697 = vpack.c.b16 %v7279, %v7277
    %v7698 = vpack.c.b16 %v7280, %v7278
    %v7699 = vpack.c.b16 %v7283, %v7281
    %v7700 = vpack.c.b16 %v7284, %v7282
    %v7701 = vpack.c.b16 %v7287, %v7285
    %v7702 = vpack.c.b16 %v7288, %v7286
    %v7703 = vpack.c.b16 %v7291, %v7289
    %v7704 = vpack.c.b16 %v7292, %v7290
    %v7705 = vpack.c.b16 %v7295, %v7293
    %v7706 = vpack.c.b16 %v7296, %v7294
    %v7707 = vpack.c.b16 %v7299, %v7297
    %v7708 = vpack.c.b16 %v7300, %v7298
    %v7709 = vpack.c.b16 %v7303, %v7301
    %v7710 = vpack.c.b16 %v7304, %v7302
    %v7711 = vpack.c.b16 %v7307, %v7305
    %v7712 = vpack.c.b16 %v7308, %v7306
    %v7713 = vpack.c.b16 %v7311, %v7309
    %v7714 = vpack.c.b16 %v7312, %v7310
    %v7715 = vpack.c.b16 %v7315, %v7313
    %v7716 = vpack.c.b16 %v7316, %v7314
    %v7717 = vpack.c.b16 %v7319, %v7317
    %v7718 = vpack.c.b16 %v7320, %v7318
    %v7719 = vpack.c.b16 %v7323, %v7321
    %v7720 = vpack.c.b16 %v7324, %v7322
    %v7721 = vpack.c.b16 %v7327, %v7325
    %v7722 = vpack.c.b16 %v7328, %v7326
    %v7723 = vpack.c.b16 %v7331, %v7329
    %v7724 = vpack.c.b16 %v7332, %v7330
    %v7725 = vpack.c.b16 %v7335, %v7333
    %v7726 = vpack.c.b16 %v7336, %v7334
    %v7727 = vpack.c.b16 %v7339, %v7337
    %v7728 = vpack.c.b16 %v7340, %v7338
    %v7729 = vpack.c.b16 %v7343, %v7341
    %v7730 = vpack.c.b16 %v7344, %v7342
    %v7731 = vpack.c.b16 %v7347, %v7345
    %v7732 = vpack.c.b16 %v7348, %v7346
    %v7733 = vpack.c.b16 %v7351, %v7349
    %v7734 = vpack.c.b16 %v7352, %v7350
    %v7735 = vpack.c.b16 %v7355, %v7353
    %v7736 = vpack.c.b16 %v7356, %v7354
    %v7737 = vpack.c.b16 %v7359, %v7357
    %v7738 = vpack.c.b16 %v7360, %v7358
    %v7739 = vpack.c.b16 %v7363, %v7361
    %v7740 = vpack.c.b16 %v7364, %v7362
    %v7741 = vpack.c.b16 %v7367, %v7365
    %v7742 = vpack.c.b16 %v7368, %v7366
    %v7743 = vpack.c.b16 %v7371, %v7369
    %v7744 = vpack.c.b16 %v7372, %v7370
    %v7745 = vpack.c.b16 %v7375, %v7373
    %v7746 = vpack.c.b16 %v7376, %v7374
    %v7747 = vpack.c.b16 %v7379, %v7377
    %v7748 = vpack.c.b16 %v7380, %v7378
    %v7749 = vpack.c.b16 %v7383, %v7381
    %v7750 = vpack.c.b16 %v7384, %v7382
    %v7751 = vpack.c.b16 %v7387, %v7385
    %v7752 = vpack.c.b16 %v7388, %v7386
    %v7753 = vpack.c.b16 %v7391, %v7389
    %v7754 = vpack.c.b16 %v7392, %v7390
    %v7755 = vpack.c.b16 %v7395, %v7393
    %v7756 = vpack.c.b16 %v7396, %v7394
    %v7757 = vpack.c.b16 %v7399, %v7397
    %v7758 = vpack.c.b16 %v7400, %v7398
    %v7759 = vpack.c.b16 %v7403, %v7401
    %v7760 = vpack.c.b16 %v7404, %v7402
    %v7761 = vpack.c.b16 %v7407, %v7405
    %v7762 = vpack.c.b16 %v7408, %v7406
    %v7763 = vpack.c.b16 %v7411, %v7409
    %v7764 = vpack.c.b16 %v7412, %v7410
    %v7765 = vpack.c.b16 %v7415, %v7413
    %v7766 = vpack.c.b16 %v7416, %v7414
    %v7767 = vpack.c.b16 %v7419, %v7417
    %v7768 = vpack.c.b16 %v7420, %v7418
    %v7769 = vpack.c.b16 %v7423, %v7421
    %v7770 = vpack.c.b16 %v7424, %v7422
    %v7771 = vpack.c.b16 %v7427, %v7425
    %v7772 = vpack.c.b16 %v7428, %v7426
    %v7773 = vpack.c.b16 %v7431, %v7429
    %v7774 = vpack.c.b16 %v7432, %v7430
    %v7775 = vpack.c.b16 %v7435, %v7433
    %v7776 = vpack.c.b16 %v7436, %v7434
    %v7777 = vpack.c.b16 %v7439, %v7437
    %v7778 = vpack.c.b16 %v7440, %v7438
    %v7779 = vpack.c.b16 %v7443, %v7441
    %v7780 = vpack.c.b16 %v7444, %v7442
    %v7781 = vpack.c.b16 %v7447, %v7445
    %v7782 = vpack.c.b16 %v7448, %v7446
    %v7783 = vpack.c.b16 %v7451, %v7449
    %v7784 = vpack.c.b16 %v7452, %v7450
    %v7785 = vpack.c.b16 %v7455, %v7453
    %v7786 = vpack.c.b16 %v7456, %v7454
    %v7787 = vpack.c.b16 %v7459, %v7457
    %v7788 = vpack.c.b16 %v7460, %v7458
    %v7789 = vpack.c.b16 %v7463, %v7461
    %v7790 = vpack.c.b16 %v7464, %v7462
    %v7791 = vpack.c.b16 %v7467, %v7465
    %v7792 = vpack.c.b16 %v7468, %v7466
    %v7793 = vpack.c.b16 %v7471, %v7469
    %v7794 = vpack.c.b16 %v7472, %v7470
    %v7795 = vpack.c.b16 %v7475, %v7473
    %v7796 = vpack.c.b16 %v7476, %v7474
    %v7797 = vpack.c.b16 %v7479, %v7477
    %v7798 = vpack.c.b16 %v7480, %v7478
    %v7799 = vpack.c.b16 %v7483, %v7481
    %v7800 = vpack.c.b16 %v7484, %v7482
    %v7801 = vpack.c.b16 %v7487, %v7485
    %v7802 = vpack.c.b16 %v7488, %v7486
    %v7803 = vpack.c.b16 %v7491, %v7489
    %v7804 = vpack.c.b16 %v7492, %v7490
    %v7805 = vpack.c.b16 %v7495, %v7493
    %v7806 = vpack.c.b16 %v7496, %v7494
    %v7807 = vpack.c.b16 %v7499, %v7497
    %v7808 = vpack.c.b16 %v7500, %v7498
    %v7809 = vpack.c.b16 %v7503, %v7501
    %v7810 = vpack.c.b16 %v7504, %v7502
    %v7811 = vpack.c.b16 %v7507, %v7505
    %v7812 = vpack.c.b16 %v7508, %v7506
    %v7813 = vpack.c.b16 %v7511, %v7509
    %v7814 = vpack.c.b16 %v7512, %v7510
    %v7815 = vpack.c.b16 %v7515, %v7513
    %v7816 = vpack.c.b16 %v7516, %v7514
    %v7817 = vpack.c.b16 %v7519, %v7517
    %v7818 = vpack.c.b16 %v7520, %v7518
    %v7819 = vpack.c.b16 %v7523, %v7521
    %v7820 = vpack.c.b16 %v7524, %v7522
    %v7821 = vpack.c.b16 %v7527, %v7525
    %v7822 = vpack.c.b16 %v7528, %v7526
    %v7823 = vpack.c.b16 %v7531, %v7529
    %v7824 = vpack.c.b16 %v7532, %v7530
    %v7825 = vpack.c.b16 %v7535, %v7533
    %v7826 = vpack.c.b16 %v7536, %v7534
    %v7827 = vpack.c.b16 %v7539, %v7537
    %v7828 = vpack.c.b16 %v7540, %v7538
    %v7829 = vpack.c.b16 %v7543, %v7541
    %v7830 = vpack.c.b16 %v7544, %v7542
    %v7831 = vpack.c.b16 %v7547, %v7545
    %v7832 = vpack.c.b16 %v7548, %v7546
    %v7833 = vpack.c.b16 %v7551, %v7549
    %v7834 = vpack.c.b16 %v7552, %v7550
    %v7835 = vpack.c.b16 %v7555, %v7553
    %v7836 = vpack.c.b16 %v7556, %v7554
    %v7837 = vpack.c.b16 %v7559, %v7557
    %v7838 = vpack.c.b16 %v7560, %v7558
    %v7839 = vpack.c.b16 %v7563, %v7561
    %v7840 = vpack.c.b16 %v7564, %v7562
    %v7841 = vpack.c.b16 %v7567, %v7565
    %v7842 = vpack.c.b16 %v7568, %v7566
    %v7843 = vpack.c.b16 %v7571, %v7569
    %v7844 = vpack.c.b16 %v7572, %v7570
    %v7845 = vpack.c.b16 %v7575, %v7573
    %v7846 = vpack.c.b16 %v7576, %v7574
    %v7847 = vpack.c.b16 %v7579, %v7577
    %v7848 = vpack.c.b16 %v7580, %v7578
    %v7849 = vpack.c.b16 %v7583, %v7581
    %v7850 = vpack.c.b16 %v7584, %v7582
    %v7851 = vpack.c.b16 %v7587, %v7585
    %v7852 = vpack.c.b16 %v7588, %v7586
    %v7853 = vpack.c.b16 %v7591, %v7589
    %v7854 = vpack.c.b16 %v7592, %v7590
    %v7855 = vpack.c.b16 %v7595, %v7593
    %v7856 = vpack.c.b16 %v7596, %v7594
    %v7857 = vpack.c.b16 %v7599, %v7597
    %v7858 = vpack.c.b16 %v7600, %v7598
    %v7859 = vpack.c.b16 %v7603, %v7601
    %v7860 = vpack.c.b16 %v7604, %v7602
    %v7861 = vpack.c.b16 %v7607, %v7605
    %v7862 = vpack.c.b16 %v7608, %v7606
    %v7863 = vpack.c.b16 %v7611, %v7609
    %v7864 = vpack.c.b16 %v7612, %v7610
    %v7865 = vpack.c.b16 %v7615, %v7613
    %v7866 = vpack.c.b16 %v7616, %v7614
    %v7867 = vpack.c.b16 %v7619, %v7617
    %v7868 = vpack.c.b16 %v7620, %v7618
    %v7869 = vpack.c.b16 %v7623, %v7621
    %v7870 = vpack.c.b16 %v7624, %v7622
    %v7871 = vpack.c.b16 %v7627, %v7625
    %v7872 = vpack.c.b16 %v7628, %v7626
    %v7873 = vpack.c.b16 %v7631, %v7629
    %v7874 = vpack.c.b16 %v7632, %v7630
    %v7875 = vpack.c.b16 %v7635, %v7633
    %v7876 = vpack.c.b16 %v7636, %v7634
    %v7877 = vpack.c.b16 %v7639, %v7637
    %v7878 = vpack.c.b16 %v7640, %v7638
    %v7879 = vpack.c.b16 %v7643, %v7641
    %v7880 = vpack.c.b16 %v7644, %v7642
    %v7881 = vpack.c.b16 %v7647, %v7645
    %v7882 = vpack.c.b16 %v7648, %v7646
    %v7883 = vpack.c.b16 %v7651, %v7649
    %v7884 = vpack.c.b16 %v7652, %v7650
    %vm8117 = vcmask 523264
    %v8119 = vsel %vm8117, %v6944, 0
    %8121 = vmatprep.subr.bf16.mxu0 %v7654
    %8122 = vmatpush1.bf16.msra.mxu0 %v7653
    %8123 = vmatprep.subr.bf16.mxu0 %v7656
    %8124 = vmatpush1.bf16.msra.mxu0 %v7655
    %8125 = vmatprep.subr.bf16.mxu0 %v7658
    %8126 = vmatpush1.bf16.msra.mxu0 %v7657
    %8127 = vmatprep.subr.bf16.mxu0 %v7660
    %8128 = vmatpush1.bf16.msra.mxu0 %v7659
    %8129 = vmatprep.subr.bf16.mxu0 %v7662
    %8130 = vmatpush1.bf16.msra.mxu0 %v7661
    %8131 = vmatprep.subr.bf16.mxu0 %v7664
    %8132 = vmatpush1.bf16.msra.mxu0 %v7663
    %8133 = vmatprep.subr.bf16.mxu0 %v7666
    %8134 = vmatpush1.bf16.msra.mxu0 %v7665
    %8135 = vmatprep.subr.bf16.mxu0 %v7668
    %8136 = vmatpush1.bf16.msra.mxu0 %v7667
    %8137 = vmatprep.subr.bf16.mxu0 %v7670
    %8138 = vmatpush1.bf16.msra.mxu0 %v7669
    %8139 = vmatprep.subr.bf16.mxu0 %v7672
    %8140 = vmatpush1.bf16.msra.mxu0 %v7671
    %8141 = vmatprep.subr.bf16.mxu0 %v7674
    %8142 = vmatpush1.bf16.msra.mxu0 %v7673
    %8143 = vmatprep.subr.bf16.mxu0 %v7676
    %8144 = vmatpush1.bf16.msra.mxu0 %v7675
    %8145 = vmatprep.subr.bf16.mxu0 %v7678
    %8146 = vmatpush1.bf16.msra.mxu0 %v7677
    %8147 = vmatprep.subr.bf16.mxu0 %v7680
    %8148 = vmatpush1.bf16.msra.mxu0 %v7679
    %8149 = vmatprep.subr.bf16.mxu0 %v7682
    %8150 = vmatpush1.bf16.msra.mxu0 %v7681
    %8151 = vmatprep.subr.bf16.mxu0 %v7684
    %8152 = vmatpush1.bf16.msra.mxu0 %v7683
    %8153 = vmatprep.mubr.bf16.mxu0 %v6931
    %8154 = vmatmul.mubr.bf16.gmra.mrb[0].mxu0 %v6930
    %v8155 = vpop.f32.mrb[0].mxu0
    %v8156 = vadd.f32 %v6950, %v8155
    %v8157 = vpop.f32.mrb[0].mxu0
    %v8158 = vadd.f32 %v6954, %v8157
    %v8159 = vpop.f32.mrb[0].mxu0
    %v8160 = vpop.f32.mrb[0].mxu0
    %8161 = vdwg.mxu0
    %8162 = vmatprep.subr.bf16.mxu0 %v7686
    %8163 = vmatpush1.bf16.msra.mxu0 %v7685
    %8164 = vmatprep.subr.bf16.mxu0 %v7688
    %8165 = vmatpush1.bf16.msra.mxu0 %v7687
    %8166 = vmatprep.subr.bf16.mxu0 %v7690
    %8167 = vmatpush1.bf16.msra.mxu0 %v7689
    %8168 = vmatprep.subr.bf16.mxu0 %v7692
    %8169 = vmatpush1.bf16.msra.mxu0 %v7691
    %8170 = vmatprep.subr.bf16.mxu0 %v7694
    %8171 = vmatpush1.bf16.msra.mxu0 %v7693
    %8172 = vmatprep.subr.bf16.mxu0 %v7696
    %8173 = vmatpush1.bf16.msra.mxu0 %v7695
    %8174 = vmatprep.subr.bf16.mxu0 %v7698
    %8175 = vmatpush1.bf16.msra.mxu0 %v7697
    %8176 = vmatprep.subr.bf16.mxu0 %v7700
    %8177 = vmatpush1.bf16.msra.mxu0 %v7699
    %8178 = vmatprep.subr.bf16.mxu0 %v7702
    %8179 = vmatpush1.bf16.msra.mxu0 %v7701
    %8180 = vmatprep.subr.bf16.mxu0 %v7704
    %8181 = vmatpush1.bf16.msra.mxu0 %v7703
    %8182 = vmatprep.subr.bf16.mxu0 %v7706
    %8183 = vmatpush1.bf16.msra.mxu0 %v7705
    %8184 = vmatprep.subr.bf16.mxu0 %v7708
    %8185 = vmatpush1.bf16.msra.mxu0 %v7707
    %8186 = vmatprep.subr.bf16.mxu0 %v7710
    %8187 = vmatpush1.bf16.msra.mxu0 %v7709
    %8188 = vmatprep.subr.bf16.mxu0 %v7712
    %8189 = vmatpush1.bf16.msra.mxu0 %v7711
    %8190 = vmatprep.subr.bf16.mxu0 %v7714
    %8191 = vmatpush1.bf16.msra.mxu0 %v7713
    %8192 = vmatprep.subr.bf16.mxu0 %v7716
    %8193 = vmatpush1.bf16.msra.mxu0 %v7715
    %8194 = vmatprep.mubr.bf16.mxu0 %v6933
    %8195 = vmatmul.mubr.bf16.gmra.mrb[0].mxu0 %v6932
    %v8196 = vpop.f32.mrb[0].mxu0
    %v8197 = vadd.f32 %v8156, %v8196
    %v8198 = vpop.f32.mrb[0].mxu0
    %v8199 = vadd.f32 %v8158, %v8198
    %v8200 = vpop.f32.mrb[0].mxu0
    %v8201 = vpop.f32.mrb[0].mxu0
    %8202 = vdwg.mxu0
    %8203 = vmatprep.subr.bf16.mxu0 %v7718
    %8204 = vmatpush1.bf16.msra.mxu0 %v7717
    %8205 = vmatprep.subr.bf16.mxu0 %v7720
    %8206 = vmatpush1.bf16.msra.mxu0 %v7719
    %8207 = vmatprep.subr.bf16.mxu0 %v7722
    %8208 = vmatpush1.bf16.msra.mxu0 %v7721
    %8209 = vmatprep.subr.bf16.mxu0 %v7724
    %8210 = vmatpush1.bf16.msra.mxu0 %v7723
    %8211 = vmatprep.subr.bf16.mxu0 %v7726
    %8212 = vmatpush1.bf16.msra.mxu0 %v7725
    %8213 = vmatprep.subr.bf16.mxu0 %v7728
    %8214 = vmatpush1.bf16.msra.mxu0 %v7727
    %8215 = vmatprep.subr.bf16.mxu0 %v7730
    %8216 = vmatpush1.bf16.msra.mxu0 %v7729
    %8217 = vmatprep.subr.bf16.mxu0 %v7732
    %8218 = vmatpush1.bf16.msra.mxu0 %v7731
    %8219 = vmatprep.subr.bf16.mxu0 %v7734
    %8220 = vmatpush1.bf16.msra.mxu0 %v7733
    %8221 = vmatprep.subr.bf16.mxu0 %v7736
    %8222 = vmatpush1.bf16.msra.mxu0 %v7735
    %8223 = vmatprep.subr.bf16.mxu0 %v7738
    %8224 = vmatpush1.bf16.msra.mxu0 %v7737
    %8225 = vmatprep.subr.bf16.mxu0 %v7740
    %8226 = vmatpush1.bf16.msra.mxu0 %v7739
    %8227 = vmatprep.subr.bf16.mxu0 %v7742
    %8228 = vmatpush1.bf16.msra.mxu0 %v7741
    %8229 = vmatprep.subr.bf16.mxu0 %v7744
    %8230 = vmatpush1.bf16.msra.mxu0 %v7743
    %8231 = vmatprep.subr.bf16.mxu0 %v7746
    %8232 = vmatpush1.bf16.msra.mxu0 %v7745
    %8233 = vmatprep.subr.bf16.mxu0 %v7748
    %8234 = vmatpush1.bf16.msra.mxu0 %v7747
    %8235 = vmatprep.mubr.bf16.mxu0 %v6935
    %8236 = vmatmul.mubr.bf16.gmra.mrb[0].mxu0 %v6934
    %v8237 = vpop.f32.mrb[0].mxu0
    %v8238 = vadd.f32 %v8197, %v8237
    %v8239 = vpop.f32.mrb[0].mxu0
    %v8240 = vadd.f32 %v8199, %v8239
    %v8241 = vpop.f32.mrb[0].mxu0
    %v8242 = vpop.f32.mrb[0].mxu0
    %8243 = vdwg.mxu0
    %8244 = vmatprep.subr.bf16.mxu0 %v7750
    %8245 = vmatpush1.bf16.msra.mxu0 %v7749
    %8246 = vmatprep.subr.bf16.mxu0 %v7752
    %8247 = vmatpush1.bf16.msra.mxu0 %v7751
    %8248 = vmatprep.subr.bf16.mxu0 %v7754
    %8249 = vmatpush1.bf16.msra.mxu0 %v7753
    %8250 = vmatprep.subr.bf16.mxu0 %v7756
    %8251 = vmatpush1.bf16.msra.mxu0 %v7755
    %8252 = vmatprep.subr.bf16.mxu0 %v7758
    %8253 = vmatpush1.bf16.msra.mxu0 %v7757
    %8254 = vmatprep.subr.bf16.mxu0 %v7760
    %8255 = vmatpush1.bf16.msra.mxu0 %v7759
    %8256 = vmatprep.subr.bf16.mxu0 %v7762
    %8257 = vmatpush1.bf16.msra.mxu0 %v7761
    %8258 = vmatprep.subr.bf16.mxu0 %v7764
    %8259 = vmatpush1.bf16.msra.mxu0 %v7763
    %8260 = vmatprep.subr.bf16.mxu0 %v7766
    %8261 = vmatpush1.bf16.msra.mxu0 %v7765
    %8262 = vmatprep.subr.bf16.mxu0 %v7768
    %8263 = vmatpush1.bf16.msra.mxu0 %v7767
    %8264 = vmatprep.subr.bf16.mxu0 %v7770
    %8265 = vmatpush1.bf16.msra.mxu0 %v7769
    %8266 = vmatprep.subr.bf16.mxu0 %v7772
    %8267 = vmatpush1.bf16.msra.mxu0 %v7771
    %8268 = vmatprep.subr.bf16.mxu0 %v7774
    %8269 = vmatpush1.bf16.msra.mxu0 %v7773
    %8270 = vmatprep.subr.bf16.mxu0 %v7776
    %8271 = vmatpush1.bf16.msra.mxu0 %v7775
    %8272 = vmatprep.subr.bf16.mxu0 %v7778
    %8273 = vmatpush1.bf16.msra.mxu0 %v7777
    %8274 = vmatprep.subr.bf16.mxu0 %v7780
    %8275 = vmatpush1.bf16.msra.mxu0 %v7779
    %8276 = vmatprep.mubr.bf16.mxu0 %v6937
    %8277 = vmatmul.mubr.bf16.gmra.mrb[0].mxu0 %v6936
    %v8278 = vpop.f32.mrb[0].mxu0
    %v8279 = vadd.f32 %v8238, %v8278
    %v8280 = vpop.f32.mrb[0].mxu0
    %v8281 = vadd.f32 %v8240, %v8280
    %v8282 = vpop.f32.mrb[0].mxu0
    %v8283 = vpop.f32.mrb[0].mxu0
    %8284 = vdwg.mxu0
    %8285 = vmatprep.subr.bf16.mxu0 %v7782
    %8286 = vmatpush1.bf16.msra.mxu0 %v7781
    %8287 = vmatprep.subr.bf16.mxu0 %v7784
    %8288 = vmatpush1.bf16.msra.mxu0 %v7783
    %8289 = vmatprep.subr.bf16.mxu0 %v7786
    %8290 = vmatpush1.bf16.msra.mxu0 %v7785
    %8291 = vmatprep.subr.bf16.mxu0 %v7788
    %8292 = vmatpush1.bf16.msra.mxu0 %v7787
    %8293 = vmatprep.subr.bf16.mxu0 %v7790
    %8294 = vmatpush1.bf16.msra.mxu0 %v7789
    %8295 = vmatprep.subr.bf16.mxu0 %v7792
    %8296 = vmatpush1.bf16.msra.mxu0 %v7791
    %8297 = vmatprep.subr.bf16.mxu0 %v7794
    %8298 = vmatpush1.bf16.msra.mxu0 %v7793
    %8299 = vmatprep.subr.bf16.mxu0 %v7796
    %8300 = vmatpush1.bf16.msra.mxu0 %v7795
    %8301 = vmatprep.subr.bf16.mxu0 %v7798
    %8302 = vmatpush1.bf16.msra.mxu0 %v7797
    %8303 = vmatprep.subr.bf16.mxu0 %v7800
    %8304 = vmatpush1.bf16.msra.mxu0 %v7799
    %8305 = vmatprep.subr.bf16.mxu0 %v7802
    %8306 = vmatpush1.bf16.msra.mxu0 %v7801
    %8307 = vmatprep.subr.bf16.mxu0 %v7804
    %8308 = vmatpush1.bf16.msra.mxu0 %v7803
    %8309 = vmatprep.subr.bf16.mxu0 %v7806
    %8310 = vmatpush1.bf16.msra.mxu0 %v7805
    %8311 = vmatprep.subr.bf16.mxu0 %v7808
    %8312 = vmatpush1.bf16.msra.mxu0 %v7807
    %8313 = vmatprep.subr.bf16.mxu0 %v7810
    %8314 = vmatpush1.bf16.msra.mxu0 %v7809
    %8315 = vmatprep.subr.bf16.mxu0 %v7812
    %8316 = vmatpush1.bf16.msra.mxu0 %v7811
    %8317 = vmatprep.mubr.bf16.mxu0 %v6939
    %8318 = vmatmul.mubr.bf16.gmra.mrb[0].mxu0 %v6938
    %v8319 = vpop.f32.mrb[0].mxu0
    %v8320 = vadd.f32 %v8279, %v8319
    %v8321 = vpop.f32.mrb[0].mxu0
    %v8322 = vadd.f32 %v8281, %v8321
    %v8323 = vpop.f32.mrb[0].mxu0
    %v8324 = vpop.f32.mrb[0].mxu0
    %8325 = vdwg.mxu0
    %8326 = vmatprep.subr.bf16.mxu0 %v7814
    %8327 = vmatpush1.bf16.msra.mxu0 %v7813
    %8328 = vmatprep.subr.bf16.mxu0 %v7816
    %8329 = vmatpush1.bf16.msra.mxu0 %v7815
    %8330 = vmatprep.subr.bf16.mxu0 %v7818
    %8331 = vmatpush1.bf16.msra.mxu0 %v7817
    %8332 = vmatprep.subr.bf16.mxu0 %v7820
    %8333 = vmatpush1.bf16.msra.mxu0 %v7819
    %8334 = vmatprep.subr.bf16.mxu0 %v7822
    %8335 = vmatpush1.bf16.msra.mxu0 %v7821
    %8336 = vmatprep.subr.bf16.mxu0 %v7824
    %8337 = vmatpush1.bf16.msra.mxu0 %v7823
    %8338 = vmatprep.subr.bf16.mxu0 %v7826
    %8339 = vmatpush1.bf16.msra.mxu0 %v7825
    %8340 = vmatprep.subr.bf16.mxu0 %v7828
    %8341 = vmatpush1.bf16.msra.mxu0 %v7827
    %8342 = vmatprep.subr.bf16.mxu0 %v7830
    %8343 = vmatpush1.bf16.msra.mxu0 %v7829
    %8344 = vmatprep.subr.bf16.mxu0 %v7832
    %8345 = vmatpush1.bf16.msra.mxu0 %v7831
    %8346 = vmatprep.subr.bf16.mxu0 %v7834
    %8347 = vmatpush1.bf16.msra.mxu0 %v7833
    %8348 = vmatprep.subr.bf16.mxu0 %v7836
    %8349 = vmatpush1.bf16.msra.mxu0 %v7835
    %8350 = vmatprep.subr.bf16.mxu0 %v7838
    %8351 = vmatpush1.bf16.msra.mxu0 %v7837
    %8352 = vmatprep.subr.bf16.mxu0 %v7840
    %8353 = vmatpush1.bf16.msra.mxu0 %v7839
    %8354 = vmatprep.subr.bf16.mxu0 %v7842
    %8355 = vmatpush1.bf16.msra.mxu0 %v7841
    %8356 = vmatprep.subr.bf16.mxu0 %v7844
    %8357 = vmatpush1.bf16.msra.mxu0 %v7843
    %8358 = vmatprep.mubr.bf16.mxu0 %v6941
    %8359 = vmatmul.mubr.bf16.gmra.mrb[0].mxu0 %v6940
    %v8360 = vpop.f32.mrb[0].mxu0
    %v8361 = vadd.f32 %v8320, %v8360
    %v8362 = vpop.f32.mrb[0].mxu0
    %v8363 = vadd.f32 %v8322, %v8362
    %v8364 = vpop.f32.mrb[0].mxu0
    %v8365 = vpop.f32.mrb[0].mxu0
    %8366 = vdwg.mxu0
    %8367 = vmatprep.subr.bf16.mxu0 %v7846
    %8368 = vmatpush1.bf16.msra.mxu0 %v7845
    %8369 = vmatprep.subr.bf16.mxu0 %v7848
    %8370 = vmatpush1.bf16.msra.mxu0 %v7847
    %8371 = vmatprep.subr.bf16.mxu0 %v7850
    %8372 = vmatpush1.bf16.msra.mxu0 %v7849
    %8373 = vmatprep.subr.bf16.mxu0 %v7852
    %8374 = vmatpush1.bf16.msra.mxu0 %v7851
    %8375 = vmatprep.subr.bf16.mxu0 %v7854
    %8376 = vmatpush1.bf16.msra.mxu0 %v7853
    %8377 = vmatprep.subr.bf16.mxu0 %v7856
    %8378 = vmatpush1.bf16.msra.mxu0 %v7855
    %8379 = vmatprep.subr.bf16.mxu0 %v7858
    %8380 = vmatpush1.bf16.msra.mxu0 %v7857
    %8381 = vmatprep.subr.bf16.mxu0 %v7860
    %8382 = vmatpush1.bf16.msra.mxu0 %v7859
    %8383 = vmatprep.subr.bf16.mxu0 %v7862
    %8384 = vmatpush1.bf16.msra.mxu0 %v7861
    %8385 = vmatprep.subr.bf16.mxu0 %v7864
    %8386 = vmatpush1.bf16.msra.mxu0 %v7863
    %8387 = vmatprep.subr.bf16.mxu0 %v7866
    %8388 = vmatpush1.bf16.msra.mxu0 %v7865
    %8389 = vmatprep.subr.bf16.mxu0 %v7868
    %8390 = vmatpush1.bf16.msra.mxu0 %v7867
    %8391 = vmatprep.subr.bf16.mxu0 %v7870
    %8392 = vmatpush1.bf16.msra.mxu0 %v7869
    %8393 = vmatprep.subr.bf16.mxu0 %v7872
    %8394 = vmatpush1.bf16.msra.mxu0 %v7871
    %8395 = vmatprep.subr.bf16.mxu0 %v7874
    %8396 = vmatpush1.bf16.msra.mxu0 %v7873
    %8397 = vmatprep.subr.bf16.mxu0 %v7876
    %8398 = vmatpush1.bf16.msra.mxu0 %v7875
    %8399 = vmatprep.mubr.bf16.mxu0 %v6943
    %8400 = vmatmul.mubr.bf16.gmra.mrb[0].mxu0 %v6942
    %v8401 = vpop.f32.mrb[0].mxu0
    %v8402 = vadd.f32 %v8361, %v8401
    %v8403 = vpop.f32.mrb[0].mxu0
    %v8404 = vadd.f32 %v8363, %v8403
    %v8405 = vpop.f32.mrb[0].mxu0
    %v8406 = vpop.f32.mrb[0].mxu0
    %8407 = vdwg.mxu0
    %8408 = vmatprep.subr.bf16.mxu0 %v7878
    %8409 = vmatpush1.bf16.msra.mxu0 %v7877
    %8410 = vmatprep.subr.bf16.mxu0 %v7880
    %8411 = vmatpush1.bf16.msra.mxu0 %v7879
    %8412 = vmatprep.subr.bf16.mxu0 %v7882
    %8413 = vmatpush1.bf16.msra.mxu0 %v7881
    %8414 = vmatprep.subr.bf16.mxu0 %v7884
    %8415 = vmatpush1.bf16.msra.mxu0 %v7883
    %8416 = vmatprep.subr.bf16.mxu0 0
    %8417 = vmatpush1.bf16.msra.mxu0 0
    %8418 = vmatprep.subr.bf16.mxu0 0
    %8419 = vmatpush1.bf16.msra.mxu0 0
    %8420 = vmatprep.subr.bf16.mxu0 0
    %8421 = vmatpush1.bf16.msra.mxu0 0
    %8422 = vmatprep.subr.bf16.mxu0 0
    %8423 = vmatpush1.bf16.msra.mxu0 0
    %8424 = vmatprep.subr.bf16.mxu0 0
    %8425 = vmatpush1.bf16.msra.mxu0 0
    %8426 = vmatprep.subr.bf16.mxu0 0
    %8427 = vmatpush1.bf16.msra.mxu0 0
    %8428 = vmatprep.subr.bf16.mxu0 0
    %8429 = vmatpush1.bf16.msra.mxu0 0
    %8430 = vmatprep.subr.bf16.mxu0 0
    %8431 = vmatpush1.bf16.msra.mxu0 0
    %8432 = vmatprep.subr.bf16.mxu0 0
    %8433 = vmatpush1.bf16.msra.mxu0 0
    %8434 = vmatprep.subr.bf16.mxu0 0
    %8435 = vmatpush1.bf16.msra.mxu0 0
    %8436 = vmatprep.subr.bf16.mxu0 0
    %8437 = vmatpush1.bf16.msra.mxu0 0
    %8438 = vmatprep.subr.bf16.mxu0 0
    %8439 = vmatpush1.bf16.msra.mxu0 0
    %8440 = vmatprep.mubr.bf16.mxu0 0
    %8441 = vmatmul.mubr.bf16.gmra.mrb[0].mxu0 %v8119
    %v8442 = vpop.f32.mrb[0].mxu0
    %v8443 = vadd.f32 %v8402, %v8442
    %v8444 = vpop.f32.mrb[0].mxu0
    %v8445 = vadd.f32 %v8404, %v8444
    %v8446 = vpop.f32.mrb[0].mxu0
    %v8447 = vpop.f32.mrb[0].mxu0
    %8448 = vdwg.mxu0
    %v8449 = vmax.f32 %v8443, 0.0
    %v8450 = vmax.f32 %v8445, 0.0
    %v8451 = vld [vmem:[%s9] sm:$0xf]
    %v8452 = vld [vmem:[%s9 + $0x4] sm:$0xf]
    %v8453 = vld [vmem:[%s9 + $0x8] sm:$0xf]
    %v8454 = vld [vmem:[%s9 + $0xc] sm:$0xf]
    %v8455 = vld [vmem:[%s9 + $0x10] sm:$0xf]
    %v8456 = vld [vmem:[%s9 + $0x14] sm:$0xf]
    %v8457 = vld [vmem:[%s9 + $0x18] sm:$0xf]
    %v8458 = vld [vmem:[%s9 + $0x1c] sm:$0xf]
    %v8459 = vld [vmem:[%s9 + $0x20] sm:$0xf]
    %v8460 = vld [vmem:[%s9 + $0x24] sm:$0xf]
    %v8461 = vld [vmem:[%s9 + $0x28] sm:$0xf]
    %v8462 = vld [vmem:[%s9 + $0x2c] sm:$0xf]
    %v8463 = vld [vmem:[%s9 + $0x30] sm:$0xf]
    %v8464 = vld [vmem:[%s9 + $0x34] sm:$0xf]
    %v8465 = vld [vmem:[%s9 + $0x38] sm:$0xf]
    %v8466 = vld [vmem:[%s9 + $0x3c] sm:$0xf]
    %v8467 = vld [vmem:[%s9 + $0x40] sm:$0xf]
    %v8468 = vld [vmem:[%s9 + $0x44] sm:$0xf]
    %v8469 = vld [vmem:[%s9 + $0x48] sm:$0xf]
    %v8470 = vld [vmem:[%s9 + $0x4c] sm:$0xf]
    %v8471 = vld [vmem:[%s9 + $0x50] sm:$0xf]
    %v8472 = vld [vmem:[%s9 + $0x54] sm:$0xf]
    %v8473 = vld [vmem:[%s9 + $0x58] sm:$0xf]
    %v8474 = vld [vmem:[%s9 + $0x5c] sm:$0xf]
    %v8475 = vld [vmem:[%s9 + $0x60] sm:$0xf]
    %v8476 = vld [vmem:[%s9 + $0x64] sm:$0xf]
    %v8477 = vld [vmem:[%s9 + $0x68] sm:$0xf]
    %v8478 = vld [vmem:[%s9 + $0x6c] sm:$0xf]
    %v8479 = vld [vmem:[%s9 + $0x70] sm:$0xf]
    %v8480 = vld [vmem:[%s9 + $0x74] sm:$0xf]
    %v8481 = vld [vmem:[%s9 + $0x78] sm:$0xf]
    %v8482 = vld [vmem:[%s9 + $0x7c] sm:$0xf]
    %v8483 = vpack.c.bf16 %v8449, %v8449
    %v8484 = vpack.c.bf16 %v8450, %v8450
    %v8485 = vld [vmem:[%s10] sm:$0x1]
    %v8487 = vlaneseq
    %v8488 = vshrl.u32 %v8487, 7
    %v8489 = vsub.s32 0, %v8488
    %v8490 = vrot.slane %v8485, %v8489
    %v8524 = vunpack.c.l.b16 %v8451
    %v8525 = vunpack.c.l.b16 %v8452
    %v8526 = vunpack.c.l.b16 %v8453
    %v8527 = vunpack.c.l.b16 %v8454
    %v8528 = vunpack.c.l.b16 %v8455
    %v8529 = vunpack.c.l.b16 %v8456
    %v8530 = vunpack.c.l.b16 %v8457
    %v8531 = vunpack.c.l.b16 %v8458
    %v8532 = vunpack.c.l.b16 %v8459
    %v8533 = vunpack.c.l.b16 %v8460
    %v8534 = vunpack.c.l.b16 %v8461
    %v8535 = vunpack.c.l.b16 %v8462
    %v8536 = vunpack.c.l.b16 %v8463
    %v8537 = vunpack.c.l.b16 %v8464
    %v8538 = vunpack.c.l.b16 %v8465
    %v8539 = vunpack.c.l.b16 %v8466
    %v8540 = vunpack.c.l.b16 %v8467
    %v8541 = vunpack.c.l.b16 %v8468
    %v8542 = vunpack.c.l.b16 %v8469
    %v8543 = vunpack.c.l.b16 %v8470
    %v8544 = vunpack.c.l.b16 %v8471
    %v8545 = vunpack.c.l.b16 %v8472
    %v8546 = vunpack.c.l.b16 %v8473
    %v8547 = vunpack.c.l.b16 %v8474
    %v8548 = vunpack.c.l.b16 %v8475
    %v8549 = vunpack.c.l.b16 %v8476
    %v8550 = vunpack.c.l.b16 %v8477
    %v8551 = vunpack.c.l.b16 %v8478
    %v8552 = vunpack.c.l.b16 %v8479
    %v8553 = vunpack.c.l.b16 %v8480
    %v8554 = vunpack.c.l.b16 %v8481
    %v8555 = vunpack.c.l.b16 %v8482
    %v8556 = vpack.c.b16 %v8525, %v8524
    %v8557 = vpack.c.b16 %v8527, %v8526
    %v8558 = vpack.c.b16 %v8529, %v8528
    %v8559 = vpack.c.b16 %v8531, %v8530
    %v8560 = vpack.c.b16 %v8533, %v8532
    %v8561 = vpack.c.b16 %v8535, %v8534
    %v8562 = vpack.c.b16 %v8537, %v8536
    %v8563 = vpack.c.b16 %v8539, %v8538
    %v8564 = vpack.c.b16 %v8541, %v8540
    %v8565 = vpack.c.b16 %v8543, %v8542
    %v8566 = vpack.c.b16 %v8545, %v8544
    %v8567 = vpack.c.b16 %v8547, %v8546
    %v8568 = vpack.c.b16 %v8549, %v8548
    %v8569 = vpack.c.b16 %v8551, %v8550
    %v8570 = vpack.c.b16 %v8553, %v8552
    %v8571 = vpack.c.b16 %v8555, %v8554
    %8588 = vmatprep.subr.bf16.mxu0 0
    %8589 = vmatpush1.bf16.msra.mxu0 %v8556
    %8590 = vmatprep.subr.bf16.mxu0 0
    %8591 = vmatpush1.bf16.msra.mxu0 %v8557
    %8592 = vmatprep.subr.bf16.mxu0 0
    %8593 = vmatpush1.bf16.msra.mxu0 %v8558
    %8594 = vmatprep.subr.bf16.mxu0 0
    %8595 = vmatpush1.bf16.msra.mxu0 %v8559
    %8596 = vmatprep.subr.bf16.mxu0 0
    %8597 = vmatpush1.bf16.msra.mxu0 %v8560
    %8598 = vmatprep.subr.bf16.mxu0 0
    %8599 = vmatpush1.bf16.msra.mxu0 %v8561
    %8600 = vmatprep.subr.bf16.mxu0 0
    %8601 = vmatpush1.bf16.msra.mxu0 %v8562
    %8602 = vmatprep.subr.bf16.mxu0 0
    %8603 = vmatpush1.bf16.msra.mxu0 %v8563
    %8604 = vmatprep.subr.bf16.mxu0 0
    %8605 = vmatpush1.bf16.msra.mxu0 %v8564
    %8606 = vmatprep.subr.bf16.mxu0 0
    %8607 = vmatpush1.bf16.msra.mxu0 %v8565
    %8608 = vmatprep.subr.bf16.mxu0 0
    %8609 = vmatpush1.bf16.msra.mxu0 %v8566
    %8610 = vmatprep.subr.bf16.mxu0 0
    %8611 = vmatpush1.bf16.msra.mxu0 %v8567
    %8612 = vmatprep.subr.bf16.mxu0 0
    %8613 = vmatpush1.bf16.msra.mxu0 %v8568
    %8614 = vmatprep.subr.bf16.mxu0 0
    %8615 = vmatpush1.bf16.msra.mxu0 %v8569
    %8616 = vmatprep.subr.bf16.mxu0 0
    %8617 = vmatpush1.bf16.msra.mxu0 %v8570
    %8618 = vmatprep.subr.bf16.mxu0 0
    %8619 = vmatpush1.bf16.msra.mxu0 %v8571
    %8620 = vmatprep.mubr.bf16.mxu0 %v8484
    %8621 = vmatmul.mubr.bf16.gmra.mrb[0].mxu0 %v8483
    %v8622 = vpop.f32.mrb[0].mxu0
    %v8623 = vadd.f32 %v8490, %v8622
    %v8624 = vpop.f32.mrb[0].mxu0
    %v8625 = vpop.f32.mrb[0].mxu0
    %v8626 = vpop.f32.mrb[0].mxu0
    %8627 = vdwg.mxu0
    %v8628 = vmax.f32 %v8623, 0.0
    %v8629 = vld [vmem:[%s11] sm:$0xff]
    %v8630 = vld [vmem:[%s11 + $0x8] sm:$0xff]
    %v8631 = vld [vmem:[%s11 + $0x10] sm:$0xff]
    %v8632 = vld [vmem:[%s11 + $0x18] sm:$0xff]
    %v8633 = vld [vmem:[%s11 + $0x20] sm:$0xff]
    %v8634 = vld [vmem:[%s11 + $0x28] sm:$0xff]
    %v8635 = vld [vmem:[%s11 + $0x30] sm:$0xff]
    %v8636 = vld [vmem:[%s11 + $0x38] sm:$0xff]
    %v8637 = vld [vmem:[%s12] sm:$0x1]
    %v8639 = vlaneseq
    %v8640 = vshrl.u32 %v8639, 7
    %v8641 = vsub.s32 0, %v8640
    %v8642 = vrot.slane %v8637, %v8641
    %v8645 = vsel %vm8117, %v8628, 0
    %8647 = vmatprep.subr.mxu0 0.0
    %8648 = vmatpush1.msra.mxu0 %v8629
    %8649 = vmatprep.subr.mxu0 0.0
    %8650 = vmatpush1.msra.mxu0 %v8630
    %8651 = vmatprep.subr.mxu0 0.0
    %8652 = vmatpush1.msra.mxu0 %v8631
    %8653 = vmatprep.subr.mxu0 0.0
    %8654 = vmatpush1.msra.mxu0 %v8632
    %8655 = vmatprep.subr.mxu0 0.0
    %8656 = vmatpush1.msra.mxu0 %v8633
    %8657 = vmatprep.subr.mxu0 0.0
    %8658 = vmatpush1.msra.mxu0 %v8634
    %8659 = vmatprep.subr.mxu0 0.0
    %8660 = vmatpush1.msra.mxu0 %v8635
    %8661 = vmatprep.subr.mxu0 0.0
    %8662 = vmatpush1.msra.mxu0 %v8636
    %8663 = vmatprep.subr.mxu0 0.0
    %8664 = vmatpush1.msra.mxu0 0.0
    %8665 = vmatprep.subr.mxu0 0.0
    %8666 = vmatpush1.msra.mxu0 0.0
    %8667 = vmatprep.subr.mxu0 0.0
    %8668 = vmatpush1.msra.mxu0 0.0
    %8669 = vmatprep.subr.mxu0 0.0
    %8670 = vmatpush1.msra.mxu0 0.0
    %8671 = vmatprep.subr.mxu0 0.0
    %8672 = vmatpush1.msra.mxu0 0.0
    %8673 = vmatprep.subr.mxu0 0.0
    %8674 = vmatpush1.msra.mxu0 0.0
    %8675 = vmatprep.subr.mxu0 0.0
    %8676 = vmatpush1.msra.mxu0 0.0
    %8677 = vmatprep.subr.mxu0 0.0
    %8678 = vmatpush1.msra.mxu0 0.0
    %8679 = vmatprep.subr.mxu0 0.0
    %8680 = vmatpush1.msra.mxu0 0.0
    %8681 = vmatprep.subr.mxu0 0.0
    %8682 = vmatpush1.msra.mxu0 0.0
    %8683 = vmatprep.subr.mxu0 0.0
    %8684 = vmatpush1.msra.mxu0 0.0
    %8685 = vmatprep.subr.mxu0 0.0
    %8686 = vmatpush1.msra.mxu0 0.0
    %8687 = vmatprep.subr.mxu0 0.0
    %8688 = vmatpush1.msra.mxu0 0.0
    %8689 = vmatprep.subr.mxu0 0.0
    %8690 = vmatpush1.msra.mxu0 0.0
    %8691 = vmatprep.subr.mxu0 0.0
    %8692 = vmatpush1.msra.mxu0 0.0
    %8693 = vmatprep.subr.mxu0 0.0
    %8694 = vmatpush1.msra.mxu0 0.0
    %8695 = vmatprep.subr.mxu0 0.0
    %8696 = vmatpush1.msra.mxu0 0.0
    %8697 = vmatprep.subr.mxu0 0.0
    %8698 = vmatpush1.msra.mxu0 0.0
    %8699 = vmatprep.subr.mxu0 0.0
    %8700 = vmatpush1.msra.mxu0 0.0
    %8701 = vmatprep.subr.mxu0 0.0
    %8702 = vmatpush1.msra.mxu0 0.0
    %8703 = vmatprep.subr.mxu0 0.0
    %8704 = vmatpush1.msra.mxu0 0.0
    %8705 = vmatprep.subr.mxu0 0.0
    %8706 = vmatpush1.msra.mxu0 0.0
    %8707 = vmatprep.subr.mxu0 0.0
    %8708 = vmatpush1.msra.mxu0 0.0
    %8709 = vmatprep.subr.mxu0 0.0
    %8710 = vmatpush1.msra.mxu0 0.0
    %8711 = vmatprep.mubr.f32.mxu0 0.0
    %8712 = vmatmul.mubr.f32.gmra.mrb[0].mxu0 %v8645
    %v8713 = vpop.f32.mrb[0].mxu0
    %v8714 = vadd.f32 %v8642, %v8713
    %v8715 = vpop.f32.mrb[0].mxu0
    %8716 = vdwg.mxu0
    %vm8717 = vcmask 25600
    %v8718 = vsel %vm8717, %v8714, -inf
    %8719 = vmax.xlane.f32.xlu0 %v8718
    %v8720 = vpop.xlane.xlu0 %8719
    %v8721 = vsub.f32 %v8714, %v8720
    %v8722 = vmul.f32 %v8721, 1.442695
    %v8723 = vpow.pop %v8722
    %v8724 = vsel %vm8717, %v8723, 0.0
    %8725 = vadd.xlane.f32.xlu0 %v8724
    %v8726 = vpop.xlane.xlu0 %8725
    %v8727 = vrcp.pop %v8726
    %v8728 = vmul.f32 %v8723, %v8727
    %8729 = vst.msk [vmem:[#allocation3] sm:$0x3] %vm8717, %v8728
    // Predicated region
    $region54: #{forward.1} parent=1 // pred_check
      _
    $region55: #{forward.1} parent=1 // pred_check_branch
      %8731 = sbr.rel (0) target = $region57
    $region56: #{forward.1} parent=1 // pred_region
      %s8733 = ssub.s32 32, 32
      %8734 = vsyncadd [#allocation4], %s8733
      %s8736 = sshll.u32 [#allocation3], 4
      %s8737 = int_to_ptr.vmem [resolvable:$true] %s8736
      %8739 = dma.vmem_to_hbm [thread:$0]  %s8737, 32, %s13, [#allocation4]
    $region57: #{forward.1} parent=1 // pred_fallthru
      _
    // Predicated region
    $region58: #{forward.1} parent=1 // pred_check
      _
    $region59: #{forward.1} parent=1 // pred_check_branch
      %8741 = sbr.rel (0) target = $region61
    $region60: #{forward.1} parent=1 // pred_region
      %8742 = dma.done [#allocation4], 32
    $region61: #{forward.1} parent=1 // pred_fallthru
      _
    %8743 = vsyncpa [#allocation4], 1

</llo_original>
